<compile_context>
chip_gen: v7x
topology: tpu7x:2x2x1
jax: 0.10.0
libtpu: 0.0.40
codegen_flags: <defaults>
</compile_context>

<pallas_src>
import functools

import numpy as np

import jax
import jax.numpy as jnp
from jax import lax
from jax.experimental import pallas as pl
from jax.experimental.pallas import tpu as pltpu


CP = 8          # channel (sublane) padding unit
_EPS = 1e-5     # BatchNorm eps (PyTorch default)


def _round_up(v, m):
    return ((v + m - 1) // m) * m


# ----------------------------------------------------------------------------
# Fused ResBlock kernel
# ----------------------------------------------------------------------------
def _resblock_kernel(*refs, mode, wp, wp_in, margin, has_b, has_sc, has_head):
    it = iter(refs)
    a_ref = next(it)                                   # (CP, Mr_in) f32
    rs_ref = next(it) if mode != "none" else None      # (Mr_in, Mr) bf16
    xb_ref = next(it) if has_b else None               # (CP, Mr) f32 (skip)
    mask_ref = next(it)                                # (1, Mr) f32
    w1a_ref = next(it)                                 # (CP, 9*CP) bf16
    w1b_ref = next(it) if has_b else None              # (CP, 9*CP) bf16
    b1_ref = next(it)                                  # (CP, 1) f32
    w2_ref = next(it)                                  # (CP, 9*CP) bf16
    b2_ref = next(it)                                  # (CP, 1) f32
    wsa_ref = wsb_ref = bs_ref = None
    if has_sc:
        wsa_ref = next(it)                             # (CP, CP) bf16
        if has_b:
            wsb_ref = next(it)                         # (CP, CP) bf16
        bs_ref = next(it)                              # (CP, 1) f32
    wh_ref = bh_ref = None
    if has_head:
        wh_ref = next(it)                              # (Ncls, CP) bf16
        bh_ref = next(it)                              # (Ncls, 1) f32
    o_ref = next(it)                                   # (Cfinal, Mr) f32
    ext_ref = next(it)                                 # (CP, width) f32 scratch

    mr = o_ref.shape[-1]
    mask = mask_ref[...]
    # 3x3 taps as flat lane offsets in the row-major ring-padded layout.
    offs = [dh * wp + dw for dh in (-1, 0, 1) for dw in (-1, 0, 1)]

    # One upfront zero of the small staging scratch: every lane a tap slice can
    # touch is then finite (stale VMEM may hold NaNs), so garbage only reaches
    # ring/tail outputs, which are masked / discarded.  No per-conv zeroing.
    ext_ref[...] = jnp.zeros(ext_ref.shape, jnp.float32)

    def tap_stack(v):
        # v: (CP, mr) f32 at the working resolution.  Stage into the scratch
        # (aligned store) and read the 9 shifted taps (unaligned ref slices),
        # stacked on the sublane axis -> (9*CP, mr) bf16 for ONE MXU dot.
        ext_ref[:, margin:margin + mr] = v
        return jnp.concatenate(
            [ext_ref[:, margin + o:margin + o + mr] for o in offs],
            axis=0).astype(jnp.bfloat16)

    # ---- stage 0: bring input A to the working resolution (fused glue) -----
    a_raw = a_ref[...]
    if mode == "pool":
        # relu(maxpool2x2): max over {x, x>>1, x>>wp_in, x>>(wp_in+1)} at the
        # 2x2 window bases, then a 0/1 selection matmul compacts them into the
        # low-res ring-padded flat layout.
        mri = a_raw.shape[-1]
        ext_ref[:, margin:margin + mri] = a_raw
        p = a_raw
        for s in (1, wp_in, wp_in + 1):
            p = jnp.maximum(p, ext_ref[:, margin + s:margin + s + mri])
        p = jnp.maximum(p, 0.0)
        xa = jnp.dot(p.astype(jnp.bfloat16), rs_ref[...],
                     preferred_element_type=jnp.float32)
    elif mode == "up":
        # relu(bilinear x2 upsample) as one constant interpolation matmul.
        xa = jnp.maximum(
            jnp.dot(a_raw.astype(jnp.bfloat16), rs_ref[...],
                    preferred_element_type=jnp.float32), 0.0)
    else:
        xa = a_raw

    # ---- conv1 (3x3) + folded BN + ReLU: one stacked dot per input ---------
    acc = jnp.dot(w1a_ref[...], tap_stack(xa), preferred_element_type=jnp.float32)
    if has_b:
        xb = xb_ref[...]
        acc = acc + jnp.dot(w1b_ref[...], tap_stack(xb),
                            preferred_element_type=jnp.float32)
    # Zero the ring/tail -> exact zero-padding semantics for conv2's taps.
    h1 = jnp.maximum(acc + b1_ref[...], 0.0) * mask

    # ---- conv2 (3x3) + folded BN + ReLU -------------------------------------
    h2 = jnp.maximum(
        jnp.dot(w2_ref[...], tap_stack(h1), preferred_element_type=jnp.float32)
        + b2_ref[...], 0.0)

    # ---- shortcut (1x1 conv + folded BN | identity) + residual add ----------
    if has_sc:
        sc = jnp.dot(wsa_ref[...], xa.astype(jnp.bfloat16),
                     preferred_element_type=jnp.float32)
        if has_b:
            sc = sc + jnp.dot(wsb_ref[...], xb.astype(jnp.bfloat16),
                              preferred_element_type=jnp.float32)
        out = h2 + sc + bs_ref[...]
    else:
        out = h2 + xa

    # ---- optional fused soft head: 1x1 conv (+bias) + folded BN + ReLU ------
    if has_head:
        out = jnp.maximum(
            jnp.dot(wh_ref[...], out.astype(jnp.bfloat16),
                    preferred_element_type=jnp.float32) + bh_ref[...], 0.0)

    # Masked output (zero ring/tail) so the slab can be consumed directly as a
    # skip / next-block input; interior pixels are exact.
    o_ref[...] = out * mask


# ----------------------------------------------------------------------------
# Geometry helpers + per-resolution constants (built once at trace time)
# ----------------------------------------------------------------------------
def _geom(n, h, w):
    hp, wp = h + 2, w + 2
    m = n * hp * wp
    return dict(n=n, h=h, w=w, hp=hp, wp=wp, m=m, mr=_round_up(m, 128))


def _interior_mask(g):
    msk = np.zeros((g["n"], g["hp"], g["wp"]), np.float32)
    msk[:, 1:g["h"] + 1, 1:g["w"] + 1] = 1.0
    out = np.zeros((1, g["mr"]), np.float32)
    out[:, :g["m"]] = msk.reshape(1, g["m"])
    return jnp.asarray(out)


def _pool_matrix(gi, go):
    # 0/1 selection: picks the top-left element of each 2x2 window base in the
    # hi-res padded flat layout and drops it at the low-res interior position.
    s = np.zeros((gi["mr"], go["mr"]), np.float32)
    for b in range(gi["n"]):
        for r in range(go["h"]):
            for c in range(go["w"]):
                j = b * gi["hp"] * gi["wp"] + (2 * r + 1) * gi["wp"] + (2 * c + 1)
                i = b * go["hp"] * go["wp"] + (r + 1) * go["wp"] + (c + 1)
                s[j, i] = 1.0
    return jnp.asarray(s, dtype=jnp.bfloat16)


def _upsample_matrix(gl, gh):
    # Bilinear x2, align_corners=False (matches F.interpolate default).
    u = np.zeros((gl["mr"], gh["mr"]), np.float32)
    hl, wl = gl["h"], gl["w"]
    for b in range(gh["n"]):
        for r in range(gh["h"]):
            sr = (r + 0.5) / 2.0 - 0.5
            r0 = int(np.floor(sr))
            fr = sr - r0
            rows = [(min(max(r0, 0), hl - 1), 1.0 - fr),
                    (min(max(r0 + 1, 0), hl - 1), fr)]
            for c in range(gh["w"]):
                scc = (c + 0.5) / 2.0 - 0.5
                c0 = int(np.floor(scc))
                fc = scc - c0
                cols = [(min(max(c0, 0), wl - 1), 1.0 - fc),
                        (min(max(c0 + 1, 0), wl - 1), fc)]
                i_hi = b * gh["hp"] * gh["wp"] + (r + 1) * gh["wp"] + (c + 1)
                for (rl, wr) in rows:
                    for (cl, wc) in cols:
                        wgt = wr * wc
                        if wgt == 0.0:
                            continue
                        j_lo = b * gl["hp"] * gl["wp"] + (rl + 1) * gl["wp"] + (cl + 1)
                        u[j_lo, i_hi] += wgt
    return jnp.asarray(u, dtype=jnp.bfloat16)


def _pad_flatten(x_cnhw, g):
    c = x_cnhw.shape[0]
    xp = jnp.pad(x_cnhw, ((0, CP - c), (0, 0), (1, 1), (1, 1)))
    xf = xp.reshape(CP, g["m"])
    return jnp.pad(xf, ((0, 0), (0, g["mr"] - g["m"])))


# ----------------------------------------------------------------------------
# Block wrapper
# ----------------------------------------------------------------------------
def res_block(xa, kp, g, *, mode="none", rs=None, g_in=None, xb=None, head=None):
    has_b = xb is not None
    assert has_b == ("w1b" in kp)
    has_sc = "wsa" in kp
    has_head = head is not None
    c_final = head["wh"].shape[0] if has_head else CP

    mr, wp = g["mr"], g["wp"]
    wp_in = g_in["wp"] if mode == "pool" else 0
    in_len = xa.shape[-1]
    margin = _round_up(max(wp, wp_in) + 1, 128)
    width = max(mr, in_len) + 2 * margin

    mask = _interior_mask(g)

    args = [xa]
    if mode != "none":
        args.append(rs)
    if has_b:
        args.append(xb)
    args += [mask, kp["w1a"]]
    if has_b:
        args.append(kp["w1b"])
    args += [kp["b1"], kp["w2"], kp["b2"]]
    if has_sc:
        args.append(kp["wsa"])
        if has_b:
            args.append(kp["wsb"])
        args.append(kp["bs"])
    if has_head:
        args += [head["wh"], head["bh"]]

    kern = functools.partial(_resblock_kernel, mode=mode, wp=wp, wp_in=wp_in,
                             margin=margin, has_b=has_b, has_sc=has_sc,
                             has_head=has_head)
    return pl.pallas_call(
        kern,
        out_shape=jax.ShapeDtypeStruct((c_final, mr), jnp.float32),
        in_specs=[pl.BlockSpec(memory_space=pltpu.MemorySpace.VMEM)] * len(args),
        out_specs=pl.BlockSpec(memory_space=pltpu.MemorySpace.VMEM),
        scratch_shapes=[pltpu.VMEM((CP, width), jnp.float32)],
    )(*args)


# ----------------------------------------------------------------------------
# Parameters (deterministic, PyTorch-equivalent structure, BN folded)
# ----------------------------------------------------------------------------
def _make_bn(key, c):
    k1, k2, k3, k4 = jax.random.split(key, 4)
    gamma = jax.random.uniform(k1, (c,), minval=0.5, maxval=1.5, dtype=jnp.float32)
    beta = 0.1 * jax.random.normal(k2, (c,), dtype=jnp.float32)
    mean = 0.1 * jax.random.normal(k3, (c,), dtype=jnp.float32)
    var = jax.random.uniform(k4, (c,), minval=0.5, maxval=1.5, dtype=jnp.float32)
    return gamma, beta, mean, var


def _fold_bn(bn, conv_bias=None):
    gamma, beta, mean, var = bn
    scale = gamma / jnp.sqrt(var + _EPS)
    bias = beta - mean * scale
    if conv_bias is not None:
        bias = bias + conv_bias * scale
    return scale, bias


def make_resblock_params(key, cin, cout):
    ks = jax.random.split(key, 6)
    s1, b1 = _fold_bn(_make_bn(ks[2], cout))
    s2, b2 = _fold_bn(_make_bn(ks[3], cout))
    w1 = 0.2 * jax.random.normal(ks[0], (cout, cin, 3, 3), dtype=jnp.float32)
    w2 = 0.2 * jax.random.normal(ks[1], (cout, cout, 3, 3), dtype=jnp.float32)
    p = {"w1": w1 * s1[:, None, None, None], "b1": b1,
         "w2": w2 * s2[:, None, None, None], "b2": b2}
    if cin != cout:
        ss, bs = _fold_bn(_make_bn(ks[5], cout))
        ws = 0.2 * jax.random.normal(ks[4], (cout, cin), dtype=jnp.float32)
        p["ws"] = ws * ss[:, None]
        p["bs"] = bs
    return p


def make_resunet_params(key, num_classes, input_channels=3):
    ch = [4, 4, 4, 4, 4]
    ks = jax.random.split(key, 12)
    params = {
        "encoder1": make_resblock_params(ks[0], input_channels, ch[0]),
        "encoder2": make_resblock_params(ks[1], ch[0], ch[1]),
        "encoder3": make_resblock_params(ks[2], ch[1], ch[2]),
        "encoder4": make_resblock_params(ks[3], ch[2], ch[3]),
        "encoder5": make_resblock_params(ks[4], ch[3], ch[4]),
        "decoder4": make_resblock_params(ks[5], ch[4] + ch[3], ch[3]),
        "decoder3": make_resblock_params(ks[6], ch[3] + ch[2], ch[2]),
        "decoder2": make_resblock_params(ks[7], ch[2] + ch[1], ch[1]),
        "decoder1": make_resblock_params(ks[8], ch[1] + ch[0], ch[0]),
    }
    soft_b = 0.1 * jax.random.normal(ks[10], (num_classes,), dtype=jnp.float32)
    ss, sb = _fold_bn(_make_bn(ks[11], num_classes), conv_bias=soft_b)
    wsoft = 0.2 * jax.random.normal(ks[9], (num_classes, ch[0]), dtype=jnp.float32)
    params["soft"] = {"w": wsoft * ss[:, None], "b": sb}
    return params


# Kernel-ready parameters: taps stacked, channels padded to CP, MXU side bf16.
def _stack3x3(w):
    wpd = jnp.pad(w, ((0, CP - w.shape[0]), (0, CP - w.shape[1]), (0, 0), (0, 0)))
    return jnp.transpose(wpd, (0, 2, 3, 1)).reshape(CP, 9 * CP)


def _pad_bias(b):
    return jnp.pad(b, (0, CP - b.shape[0])).reshape(CP, 1)


def _pad2(a, r, c):
    return jnp.pad(a, ((0, r - a.shape[0]), (0, c - a.shape[1])))


def _prep_block(p, cina=None):
    cin = p["w1"].shape[1]
    if cina is None:
        cina = cin
    kp = {"w1a": _stack3x3(p["w1"][:, :cina]).astype(jnp.bfloat16),
          "b1": _pad_bias(p["b1"]),
          "w2": _stack3x3(p["w2"]).astype(jnp.bfloat16),
          "b2": _pad_bias(p["b2"])}
    if cin > cina:
        kp["w1b"] = _stack3x3(p["w1"][:, cina:]).astype(jnp.bfloat16)
    if "ws" in p:
        kp["wsa"] = _pad2(p["ws"][:, :cina], CP, CP).astype(jnp.bfloat16)
        if cin > cina:
            kp["wsb"] = _pad2(p["ws"][:, cina:], CP, CP).astype(jnp.bfloat16)
        kp["bs"] = _pad_bias(p["bs"])
    return kp


def prepare_kernel_params(params):
    ch = [4, 4, 4, 4, 4]
    kp = {
        "encoder1": _prep_block(params["encoder1"]),
        "encoder2": _prep_block(params["encoder2"]),
        "encoder3": _prep_block(params["encoder3"]),
        "encoder4": _prep_block(params["encoder4"]),
        "encoder5": _prep_block(params["encoder5"]),
        "decoder4": _prep_block(params["decoder4"], cina=ch[4]),
        "decoder3": _prep_block(params["decoder3"], cina=ch[3]),
        "decoder2": _prep_block(params["decoder2"], cina=ch[2]),
        "decoder1": _prep_block(params["decoder1"], cina=ch[1]),
    }
    wsoft = params["soft"]["w"]
    kp["soft"] = {
        "wh": jnp.pad(wsoft, ((0, 0), (0, CP - wsoft.shape[1]))).astype(jnp.bfloat16),
        "bh": params["soft"]["b"].reshape(-1, 1),
    }
    return kp


# ----------------------------------------------------------------------------
# Forward pass (U-Net forward(x) of the reference)
# ----------------------------------------------------------------------------
def resunet_forward(kparams, x_nchw):
    n, _, h, w = x_nchw.shape
    assert h % 16 == 0 and w % 16 == 0, "needs 4 levels of 2x pooling"
    g = [_geom(n, h >> i, w >> i) for i in range(5)]

    s01 = _pool_matrix(g[0], g[1])
    s12 = _pool_matrix(g[1], g[2])
    s23 = _pool_matrix(g[2], g[3])
    s34 = _pool_matrix(g[3], g[4])
    u43 = _upsample_matrix(g[4], g[3])
    u32 = _upsample_matrix(g[3], g[2])
    u21 = _upsample_matrix(g[2], g[1])
    u10 = _upsample_matrix(g[1], g[0])

    x = jnp.transpose(x_nchw, (1, 0, 2, 3)).astype(jnp.float32)
    x0 = _pad_flatten(x, g[0])

    e1 = res_block(x0, kparams["encoder1"], g[0])
    e2 = res_block(e1, kparams["encoder2"], g[1], mode="pool", rs=s01, g_in=g[0])
    e3 = res_block(e2, kparams["encoder3"], g[2], mode="pool", rs=s12, g_in=g[1])
    e4 = res_block(e3, kparams["encoder4"], g[3], mode="pool", rs=s23, g_in=g[2])
    e5 = res_block(e4, kparams["encoder5"], g[4], mode="pool", rs=s34, g_in=g[3])

    d4 = res_block(e5, kparams["decoder4"], g[3], mode="up", rs=u43, xb=e4)
    d3 = res_block(d4, kparams["decoder3"], g[2], mode="up", rs=u32, xb=e3)
    d2 = res_block(d3, kparams["decoder2"], g[1], mode="up", rs=u21, xb=e2)
    d1 = res_block(d2, kparams["decoder1"], g[0], mode="up", rs=u10, xb=e1,
                   head=kparams["soft"])

    ncls = kparams["soft"]["wh"].shape[0]
    y = d1[:ncls, :g[0]["m"]].reshape(ncls, n, g[0]["hp"], g[0]["wp"])
    y = y[:, :, 1:h + 1, 1:w + 1]
    return jnp.transpose(y, (1, 0, 2, 3))


# ----------------------------------------------------------------------------
# Pure-JAX reference (f32, lax.conv) for a correctness check
# ----------------------------------------------------------------------------
def _conv_ref(x, w, b):
    y = lax.conv_general_dilated(x, w, (1, 1), "SAME",
                                 dimension_numbers=("NCHW", "OIHW", "NCHW"))
    return y + b.reshape(1, -1, 1, 1)


def _resblock_ref(x, p):
    hh = jax.nn.relu(_conv_ref(x, p["w1"], p["b1"]))
    hh = jax.nn.relu(_conv_ref(hh, p["w2"], p["b2"]))
    if "ws" in p:
        s = _conv_ref(x, p["ws"][:, :, None, None], p["bs"])
    else:
        s = x
    return hh + s


def _maxpool_relu_ref(x):
    n, c, h, w = x.shape
    return jax.nn.relu(x.reshape(n, c, h // 2, 2, w // 2, 2).max(axis=(3, 5)))


def _up2_ref(a, axis):
    sz = a.shape[axis]
    first = lax.slice_in_dim(a, 0, 1, axis=axis)
    last = lax.slice_in_dim(a, sz - 1, sz, axis=axis)
    lo = jnp.concatenate([first, lax.slice_in_dim(a, 0, sz - 1, axis=axis)], axis=axis)
    hi = jnp.concatenate([lax.slice_in_dim(a, 1, sz, axis=axis), last], axis=axis)
    even = 0.25 * lo + 0.75 * a
    odd = 0.75 * a + 0.25 * hi
    st = jnp.stack([even, odd], axis=axis + 1)
    ns = list(a.shape)
    ns[axis] = 2 * sz
    return st.reshape(ns)


def _upsample_relu_ref(x):
    return jax.nn.relu(_up2_ref(_up2_ref(x, 2), 3))


def resunet_reference(params, x):
    out = _resblock_ref(x, params["encoder1"]); t1 = out
    out = _resblock_ref(_maxpool_relu_ref(out), params["encoder2"]); t2 = out
    out = _resblock_ref(_maxpool_relu_ref(out), params["encoder3"]); t3 = out
    out = _resblock_ref(_maxpool_relu_ref(out), params["encoder4"]); t4 = out
    out = _resblock_ref(_maxpool_relu_ref(out), params["encoder5"])
    out = _resblock_ref(jnp.concatenate([_upsample_relu_ref(out), t4], 1),
                        params["decoder4"])
    out = _resblock_ref(jnp.concatenate([_upsample_relu_ref(out), t3], 1),
                        params["decoder3"])
    out = _resblock_ref(jnp.concatenate([_upsample_relu_ref(out), t2], 1),
                        params["decoder2"])
    out = _resblock_ref(jnp.concatenate([_upsample_relu_ref(out), t1], 1),
                        params["decoder1"])
    out = jax.nn.relu(_conv_ref(out, params["soft"]["w"][:, :, None, None],
                                params["soft"]["b"]))
    return out


# ----------------------------------------------------------------------------
if __name__ == "__main__":
    key = jax.random.PRNGKey(0)
    kparam, kx = jax.random.split(key)

    num_classes = 2
    input_channels = 3
    params = make_resunet_params(kparam, num_classes, input_channels)
    kparams = prepare_kernel_params(params)

    x = jax.random.normal(kx, (2, input_channels, 16, 16), dtype=jnp.float32)

    fwd = jax.jit(resunet_forward)
    y = jax.block_until_ready(fwd(kparams, x))

    assert y.shape == (2, num_classes, 16, 16), y.shape
    assert bool(jnp.all(jnp.isfinite(y)))

    # Pure-JAX f32 reference check (kernel uses bf16 MXU operands -> loose tol).
    y_ref = jax.block_until_ready(jax.jit(resunet_reference)(params, x))
    err = float(jnp.max(jnp.abs(y - y_ref)))
    scale = float(jnp.max(jnp.abs(y_ref))) + 1e-3
    assert err / scale < 0.15, ("mismatch vs reference", err, scale)

    print("KERNEL_OK")
</pallas_src>

<mosaic_0001>
module attributes {stable_mosaic.version = 11 : i64} {
  func.func @_resblock_kernel(%arg0: memref<8x256xf32, #tpu.memory_space<vmem>>, %arg1: memref<256x128xbf16, #tpu.memory_space<vmem>>, %arg2: memref<1x128xf32, #tpu.memory_space<vmem>>, %arg3: memref<8x72xbf16, #tpu.memory_space<vmem>>, %arg4: memref<8x1xf32, #tpu.memory_space<vmem>>, %arg5: memref<8x72xbf16, #tpu.memory_space<vmem>>, %arg6: memref<8x1xf32, #tpu.memory_space<vmem>>, %arg7: memref<8x128xf32, #tpu.memory_space<vmem>>, %arg8: memref<8x512xf32, #tpu.memory_space<vmem>>) attributes {dimension_semantics = [], scalar_prefetch = 0 : i64, scratch_operands = 1 : i64, tpu.core_type = #tpu.core_type<tc>} {
    %c0 = arith.constant 0 : index
    %c0_0 = arith.constant 0 : index
    %0 = vector.load %arg2[%c0, %c0_0] : memref<1x128xf32, #tpu.memory_space<vmem>>, vector<1x128xf32>
    %cst = arith.constant 0.000000e+00 : f32
    %1 = vector.broadcast %cst : f32 to vector<8x512xf32>
    %c0_1 = arith.constant 0 : index
    %c0_2 = arith.constant 0 : index
    %2 = vector.load %arg8[%c0_1, %c0_2] : memref<8x512xf32, #tpu.memory_space<vmem>>, vector<8x512xf32>
    tpu.vector_store %arg8[%c0_1, %c0_2], %1 {strides = array<i32>} : memref<8x512xf32, #tpu.memory_space<vmem>>, vector<8x512xf32>,
    %c0_3 = arith.constant 0 : index
    %c0_4 = arith.constant 0 : index
    %3 = vector.load %arg0[%c0_3, %c0_4] : memref<8x256xf32, #tpu.memory_space<vmem>>, vector<8x256xf32>
    %c0_5 = arith.constant 0 : index
    %c128 = arith.constant 128 : index
    %4 = vector.load %arg8[%c0_5, %c128] : memref<8x512xf32, #tpu.memory_space<vmem>>, vector<8x256xf32>
    tpu.vector_store %arg8[%c0_5, %c128], %3 {strides = array<i32>} : memref<8x512xf32, #tpu.memory_space<vmem>>, vector<8x256xf32>,
    %c0_6 = arith.constant 0 : index
    %c129 = arith.constant 129 : index
    %5 = vector.load %arg8[%c0_6, %c129] : memref<8x512xf32, #tpu.memory_space<vmem>>, vector<8x256xf32>
    %6 = arith.maximumf %3, %5 : vector<8x256xf32>
    %c0_7 = arith.constant 0 : index
    %c138 = arith.constant 138 : index
    %7 = vector.load %arg8[%c0_7, %c138] : memref<8x512xf32, #tpu.memory_space<vmem>>, vector<8x256xf32>
    %8 = arith.maximumf %6, %7 : vector<8x256xf32>
    %c0_8 = arith.constant 0 : index
    %c139 = arith.constant 139 : index
    %9 = vector.load %arg8[%c0_8, %c139] : memref<8x512xf32, #tpu.memory_space<vmem>>, vector<8x256xf32>
    %10 = arith.maximumf %8, %9 : vector<8x256xf32>
    %cst_9 = arith.constant 0.000000e+00 : f32
    %11 = vector.broadcast %cst_9 : f32 to vector<8x256xf32>
    %12 = arith.maximumf %10, %11 : vector<8x256xf32>
    %13 = arith.truncf %12 : vector<8x256xf32> to vector<8x256xbf16>
    %c0_10 = arith.constant 0 : index
    %c0_11 = arith.constant 0 : index
    %14 = vector.load %arg1[%c0_10, %c0_11] : memref<256x128xbf16, #tpu.memory_space<vmem>>, vector<256x128xbf16>
    %cst_12 = arith.constant dense<0.000000e+00> : vector<8x128xf32>
    %15 = tpu.matmul %13, %14, %cst_12 {dimension_numbers = #tpu.dot_dimension_numbers<[1], [0], [0], [1], [0, 0, 1, 1], [], []>} : vector<8x256xbf16>, vector<256x128xbf16>, vector<8x128xf32> -> vector<8x128xf32>
    %c0_13 = arith.constant 0 : index
    %c0_14 = arith.constant 0 : index
    %16 = vector.load %arg3[%c0_13, %c0_14] : memref<8x72xbf16, #tpu.memory_space<vmem>>, vector<8x72xbf16>
    %c0_15 = arith.constant 0 : index
    %c128_16 = arith.constant 128 : index
    %17 = vector.load %arg8[%c0_15, %c128_16] : memref<8x512xf32, #tpu.memory_space<vmem>>, vector<8x128xf32>
    tpu.vector_store %arg8[%c0_15, %c128_16], %15 {strides = array<i32>} : memref<8x512xf32, #tpu.memory_space<vmem>>, vector<8x128xf32>,
    %c0_17 = arith.constant 0 : index
    %c121 = arith.constant 121 : index
    %18 = vector.load %arg8[%c0_17, %c121] : memref<8x512xf32, #tpu.memory_space<vmem>>, vector<8x128xf32>
    %c0_18 = arith.constant 0 : index
    %c122 = arith.constant 122 : index
    %19 = vector.load %arg8[%c0_18, %c122] : memref<8x512xf32, #tpu.memory_space<vmem>>, vector<8x128xf32>
    %c0_19 = arith.constant 0 : index
    %c123 = arith.constant 123 : index
    %20 = vector.load %arg8[%c0_19, %c123] : memref<8x512xf32, #tpu.memory_space<vmem>>, vector<8x128xf32>
    %c0_20 = arith.constant 0 : index
    %c127 = arith.constant 127 : index
    %21 = vector.load %arg8[%c0_20, %c127] : memref<8x512xf32, #tpu.memory_space<vmem>>, vector<8x128xf32>
    %c0_21 = arith.constant 0 : index
    %c128_22 = arith.constant 128 : index
    %22 = vector.load %arg8[%c0_21, %c128_22] : memref<8x512xf32, #tpu.memory_space<vmem>>, vector<8x128xf32>
    %c0_23 = arith.constant 0 : index
    %c129_24 = arith.constant 129 : index
    %23 = vector.load %arg8[%c0_23, %c129_24] : memref<8x512xf32, #tpu.memory_space<vmem>>, vector<8x128xf32>
    %c0_25 = arith.constant 0 : index
    %c133 = arith.constant 133 : index
    %24 = vector.load %arg8[%c0_25, %c133] : memref<8x512xf32, #tpu.memory_space<vmem>>, vector<8x128xf32>
    %c0_26 = arith.constant 0 : index
    %c134 = arith.constant 134 : index
    %25 = vector.load %arg8[%c0_26, %c134] : memref<8x512xf32, #tpu.memory_space<vmem>>, vector<8x128xf32>
    %c0_27 = arith.constant 0 : index
    %c135 = arith.constant 135 : index
    %26 = vector.load %arg8[%c0_27, %c135] : memref<8x512xf32, #tpu.memory_space<vmem>>, vector<8x128xf32>
    %27 = tpu.concatenate %18, %19, %20, %21, %22, %23, %24, %25, %26 in 0 : vector<8x128xf32>, vector<8x128xf32>, vector<8x128xf32>, vector<8x128xf32>, vector<8x128xf32>, vector<8x128xf32>, vector<8x128xf32>, vector<8x128xf32>, vector<8x128xf32> -> vector<72x128xf32>
    %28 = arith.truncf %27 : vector<72x128xf32> to vector<72x128xbf16>
    %cst_28 = arith.constant dense<0.000000e+00> : vector<8x128xf32>
    %29 = tpu.matmul %16, %28, %cst_28 {dimension_numbers = #tpu.dot_dimension_numbers<[1], [0], [0], [1], [0, 0, 1, 1], [], []>} : vector<8x72xbf16>, vector<72x128xbf16>, vector<8x128xf32> -> vector<8x128xf32>
    %c0_29 = arith.constant 0 : index
    %c0_30 = arith.constant 0 : index
    %30 = vector.load %arg4[%c0_29, %c0_30] : memref<8x1xf32, #tpu.memory_space<vmem>>, vector<8x1xf32>
    %31 = vector.broadcast %30 : vector<8x1xf32> to vector<8x128xf32>
    %32 = arith.addf %29, %31 : vector<8x128xf32>
    %cst_31 = arith.constant 0.000000e+00 : f32
    %33 = vector.broadcast %cst_31 : f32 to vector<8x128xf32>
    %34 = arith.maximumf %32, %33 : vector<8x128xf32>
    %35 = vector.broadcast %0 : vector<1x128xf32> to vector<8x128xf32>
    %36 = arith.mulf %34, %35 : vector<8x128xf32>
    %c0_32 = arith.constant 0 : index
    %c0_33 = arith.constant 0 : index
    %37 = vector.load %arg5[%c0_32, %c0_33] : memref<8x72xbf16, #tpu.memory_space<vmem>>, vector<8x72xbf16>
    %c0_34 = arith.constant 0 : index
    %c128_35 = arith.constant 128 : index
    %38 = vector.load %arg8[%c0_34, %c128_35] : memref<8x512xf32, #tpu.memory_space<vmem>>, vector<8x128xf32>
    tpu.vector_store %arg8[%c0_34, %c128_35], %36 {strides = array<i32>} : memref<8x512xf32, #tpu.memory_space<vmem>>, vector<8x128xf32>,
    %c0_36 = arith.constant 0 : index
    %c121_37 = arith.constant 121 : index
    %39 = vector.load %arg8[%c0_36, %c121_37] : memref<8x512xf32, #tpu.memory_space<vmem>>, vector<8x128xf32>
    %c0_38 = arith.constant 0 : index
    %c122_39 = arith.constant 122 : index
    %40 = vector.load %arg8[%c0_38, %c122_39] : memref<8x512xf32, #tpu.memory_space<vmem>>, vector<8x128xf32>
    %c0_40 = arith.constant 0 : index
    %c123_41 = arith.constant 123 : index
    %41 = vector.load %arg8[%c0_40, %c123_41] : memref<8x512xf32, #tpu.memory_space<vmem>>, vector<8x128xf32>
    %c0_42 = arith.constant 0 : index
    %c127_43 = arith.constant 127 : index
    %42 = vector.load %arg8[%c0_42, %c127_43] : memref<8x512xf32, #tpu.memory_space<vmem>>, vector<8x128xf32>
    %c0_44 = arith.constant 0 : index
    %c128_45 = arith.constant 128 : index
    %43 = vector.load %arg8[%c0_44, %c128_45] : memref<8x512xf32, #tpu.memory_space<vmem>>, vector<8x128xf32>
    %c0_46 = arith.constant 0 : index
    %c129_47 = arith.constant 129 : index
    %44 = vector.load %arg8[%c0_46, %c129_47] : memref<8x512xf32, #tpu.memory_space<vmem>>, vector<8x128xf32>
    %c0_48 = arith.constant 0 : index
    %c133_49 = arith.constant 133 : index
    %45 = vector.load %arg8[%c0_48, %c133_49] : memref<8x512xf32, #tpu.memory_space<vmem>>, vector<8x128xf32>
    %c0_50 = arith.constant 0 : index
    %c134_51 = arith.constant 134 : index
    %46 = vector.load %arg8[%c0_50, %c134_51] : memref<8x512xf32, #tpu.memory_space<vmem>>, vector<8x128xf32>
    %c0_52 = arith.constant 0 : index
    %c135_53 = arith.constant 135 : index
    %47 = vector.load %arg8[%c0_52, %c135_53] : memref<8x512xf32, #tpu.memory_space<vmem>>, vector<8x128xf32>
    %48 = tpu.concatenate %39, %40, %41, %42, %43, %44, %45, %46, %47 in 0 : vector<8x128xf32>, vector<8x128xf32>, vector<8x128xf32>, vector<8x128xf32>, vector<8x128xf32>, vector<8x128xf32>, vector<8x128xf32>, vector<8x128xf32>, vector<8x128xf32> -> vector<72x128xf32>
    %49 = arith.truncf %48 : vector<72x128xf32> to vector<72x128xbf16>
    %cst_54 = arith.constant dense<0.000000e+00> : vector<8x128xf32>
    %50 = tpu.matmul %37, %49, %cst_54 {dimension_numbers = #tpu.dot_dimension_numbers<[1], [0], [0], [1], [0, 0, 1, 1], [], []>} : vector<8x72xbf16>, vector<72x128xbf16>, vector<8x128xf32> -> vector<8x128xf32>
    %c0_55 = arith.constant 0 : index
    %c0_56 = arith.constant 0 : index
    %51 = vector.load %arg6[%c0_55, %c0_56] : memref<8x1xf32, #tpu.memory_space<vmem>>, vector<8x1xf32>
    %52 = vector.broadcast %51 : vector<8x1xf32> to vector<8x128xf32>
    %53 = arith.addf %50, %52 : vector<8x128xf32>
    %cst_57 = arith.constant 0.000000e+00 : f32
    %54 = vector.broadcast %cst_57 : f32 to vector<8x128xf32>
    %55 = arith.maximumf %53, %54 : vector<8x128xf32>
    %56 = arith.addf %55, %15 : vector<8x128xf32>
    %57 = vector.broadcast %0 : vector<1x128xf32> to vector<8x128xf32>
    %58 = arith.mulf %56, %57 : vector<8x128xf32>
    %c0_58 = arith.constant 0 : index
    %c0_59 = arith.constant 0 : index
    %59 = vector.load %arg7[%c0_58, %c0_59] : memref<8x128xf32, #tpu.memory_space<vmem>>, vector<8x128xf32>
    tpu.vector_store %arg7[%c0_58, %c0_59], %58 {strides = array<i32>} : memref<8x128xf32, #tpu.memory_space<vmem>>, vector<8x128xf32>,
    return
  }
}

module attributes {stable_mosaic.version = 11 : i64} {
  func.func @_resblock_kernel(%arg0: memref<8x768xf32, #tpu.memory_space<vmem>>, %arg1: memref<768x256xbf16, #tpu.memory_space<vmem>>, %arg2: memref<1x256xf32, #tpu.memory_space<vmem>>, %arg3: memref<8x72xbf16, #tpu.memory_space<vmem>>, %arg4: memref<8x1xf32, #tpu.memory_space<vmem>>, %arg5: memref<8x72xbf16, #tpu.memory_space<vmem>>, %arg6: memref<8x1xf32, #tpu.memory_space<vmem>>, %arg7: memref<8x256xf32, #tpu.memory_space<vmem>>, %arg8: memref<8x1024xf32, #tpu.memory_space<vmem>>) attributes {dimension_semantics = [], scalar_prefetch = 0 : i64, scratch_operands = 1 : i64, tpu.core_type = #tpu.core_type<tc>} {
    %c0 = arith.constant 0 : index
    %c0_0 = arith.constant 0 : index
    %0 = vector.load %arg2[%c0, %c0_0] : memref<1x256xf32, #tpu.memory_space<vmem>>, vector<1x256xf32>
    %cst = arith.constant 0.000000e+00 : f32
    %1 = vector.broadcast %cst : f32 to vector<8x1024xf32>
    %c0_1 = arith.constant 0 : index
    %c0_2 = arith.constant 0 : index
    %2 = vector.load %arg8[%c0_1, %c0_2] : memref<8x1024xf32, #tpu.memory_space<vmem>>, vector<8x1024xf32>
    tpu.vector_store %arg8[%c0_1, %c0_2], %1 {strides = array<i32>} : memref<8x1024xf32, #tpu.memory_space<vmem>>, vector<8x1024xf32>,
    %c0_3 = arith.constant 0 : index
    %c0_4 = arith.constant 0 : index
    %3 = vector.load %arg0[%c0_3, %c0_4] : memref<8x768xf32, #tpu.memory_space<vmem>>, vector<8x768xf32>
    %c0_5 = arith.constant 0 : index
    %c128 = arith.constant 128 : index
    %4 = vector.load %arg8[%c0_5, %c128] : memref<8x1024xf32, #tpu.memory_space<vmem>>, vector<8x768xf32>
    tpu.vector_store %arg8[%c0_5, %c128], %3 {strides = array<i32>} : memref<8x1024xf32, #tpu.memory_space<vmem>>, vector<8x768xf32>,
    %c0_6 = arith.constant 0 : index
    %c129 = arith.constant 129 : index
    %5 = vector.load %arg8[%c0_6, %c129] : memref<8x1024xf32, #tpu.memory_space<vmem>>, vector<8x768xf32>
    %6 = arith.maximumf %3, %5 : vector<8x768xf32>
    %c0_7 = arith.constant 0 : index
    %c146 = arith.constant 146 : index
    %7 = vector.load %arg8[%c0_7, %c146] : memref<8x1024xf32, #tpu.memory_space<vmem>>, vector<8x768xf32>
    %8 = arith.maximumf %6, %7 : vector<8x768xf32>
    %c0_8 = arith.constant 0 : index
    %c147 = arith.constant 147 : index
    %9 = vector.load %arg8[%c0_8, %c147] : memref<8x1024xf32, #tpu.memory_space<vmem>>, vector<8x768xf32>
    %10 = arith.maximumf %8, %9 : vector<8x768xf32>
    %cst_9 = arith.constant 0.000000e+00 : f32
    %11 = vector.broadcast %cst_9 : f32 to vector<8x768xf32>
    %12 = arith.maximumf %10, %11 : vector<8x768xf32>
    %13 = arith.truncf %12 : vector<8x768xf32> to vector<8x768xbf16>
    %c0_10 = arith.constant 0 : index
    %c0_11 = arith.constant 0 : index
    %14 = vector.load %arg1[%c0_10, %c0_11] : memref<768x256xbf16, #tpu.memory_space<vmem>>, vector<768x256xbf16>
    %cst_12 = arith.constant dense<0.000000e+00> : vector<8x256xf32>
    %15 = tpu.matmul %13, %14, %cst_12 {dimension_numbers = #tpu.dot_dimension_numbers<[1], [0], [0], [1], [0, 0, 1, 1], [], []>} : vector<8x768xbf16>, vector<768x256xbf16>, vector<8x256xf32> -> vector<8x256xf32>
    %c0_13 = arith.constant 0 : index
    %c0_14 = arith.constant 0 : index
    %16 = vector.load %arg3[%c0_13, %c0_14] : memref<8x72xbf16, #tpu.memory_space<vmem>>, vector<8x72xbf16>
    %c0_15 = arith.constant 0 : index
    %c128_16 = arith.constant 128 : index
    %17 = vector.load %arg8[%c0_15, %c128_16] : memref<8x1024xf32, #tpu.memory_space<vmem>>, vector<8x256xf32>
    tpu.vector_store %arg8[%c0_15, %c128_16], %15 {strides = array<i32>} : memref<8x1024xf32, #tpu.memory_space<vmem>>, vector<8x256xf32>,
    %c0_17 = arith.constant 0 : index
    %c117 = arith.constant 117 : index
    %18 = vector.load %arg8[%c0_17, %c117] : memref<8x1024xf32, #tpu.memory_space<vmem>>, vector<8x256xf32>
    %c0_18 = arith.constant 0 : index
    %c118 = arith.constant 118 : index
    %19 = vector.load %arg8[%c0_18, %c118] : memref<8x1024xf32, #tpu.memory_space<vmem>>, vector<8x256xf32>
    %c0_19 = arith.constant 0 : index
    %c119 = arith.constant 119 : index
    %20 = vector.load %arg8[%c0_19, %c119] : memref<8x1024xf32, #tpu.memory_space<vmem>>, vector<8x256xf32>
    %c0_20 = arith.constant 0 : index
    %c127 = arith.constant 127 : index
    %21 = vector.load %arg8[%c0_20, %c127] : memref<8x1024xf32, #tpu.memory_space<vmem>>, vector<8x256xf32>
    %c0_21 = arith.constant 0 : index
    %c128_22 = arith.constant 128 : index
    %22 = vector.load %arg8[%c0_21, %c128_22] : memref<8x1024xf32, #tpu.memory_space<vmem>>, vector<8x256xf32>
    %c0_23 = arith.constant 0 : index
    %c129_24 = arith.constant 129 : index
    %23 = vector.load %arg8[%c0_23, %c129_24] : memref<8x1024xf32, #tpu.memory_space<vmem>>, vector<8x256xf32>
    %c0_25 = arith.constant 0 : index
    %c137 = arith.constant 137 : index
    %24 = vector.load %arg8[%c0_25, %c137] : memref<8x1024xf32, #tpu.memory_space<vmem>>, vector<8x256xf32>
    %c0_26 = arith.constant 0 : index
    %c138 = arith.constant 138 : index
    %25 = vector.load %arg8[%c0_26, %c138] : memref<8x1024xf32, #tpu.memory_space<vmem>>, vector<8x256xf32>
    %c0_27 = arith.constant 0 : index
    %c139 = arith.constant 139 : index
    %26 = vector.load %arg8[%c0_27, %c139] : memref<8x1024xf32, #tpu.memory_space<vmem>>, vector<8x256xf32>
    %27 = tpu.concatenate %18, %19, %20, %21, %22, %23, %24, %25, %26 in 0 : vector<8x256xf32>, vector<8x256xf32>, vector<8x256xf32>, vector<8x256xf32>, vector<8x256xf32>, vector<8x256xf32>, vector<8x256xf32>, vector<8x256xf32>, vector<8x256xf32> -> vector<72x256xf32>
    %28 = arith.truncf %27 : vector<72x256xf32> to vector<72x256xbf16>
    %cst_28 = arith.constant dense<0.000000e+00> : vector<8x256xf32>
    %29 = tpu.matmul %16, %28, %cst_28 {dimension_numbers = #tpu.dot_dimension_numbers<[1], [0], [0], [1], [0, 0, 1, 1], [], []>} : vector<8x72xbf16>, vector<72x256xbf16>, vector<8x256xf32> -> vector<8x256xf32>
    %c0_29 = arith.constant 0 : index
    %c0_30 = arith.constant 0 : index
    %30 = vector.load %arg4[%c0_29, %c0_30] : memref<8x1xf32, #tpu.memory_space<vmem>>, vector<8x1xf32>
    %31 = vector.broadcast %30 : vector<8x1xf32> to vector<8x256xf32>
    %32 = arith.addf %29, %31 : vector<8x256xf32>
    %cst_31 = arith.constant 0.000000e+00 : f32
    %33 = vector.broadcast %cst_31 : f32 to vector<8x256xf32>
    %34 = arith.maximumf %32, %33 : vector<8x256xf32>
    %35 = vector.broadcast %0 : vector<1x256xf32> to vector<8x256xf32>
    %36 = arith.mulf %34, %35 : vector<8x256xf32>
    %c0_32 = arith.constant 0 : index
    %c0_33 = arith.constant 0 : index
    %37 = vector.load %arg5[%c0_32, %c0_33] : memref<8x72xbf16, #tpu.memory_space<vmem>>, vector<8x72xbf16>
    %c0_34 = arith.constant 0 : index
    %c128_35 = arith.constant 128 : index
    %38 = vector.load %arg8[%c0_34, %c128_35] : memref<8x1024xf32, #tpu.memory_space<vmem>>, vector<8x256xf32>
    tpu.vector_store %arg8[%c0_34, %c128_35], %36 {strides = array<i32>} : memref<8x1024xf32, #tpu.memory_space<vmem>>, vector<8x256xf32>,
    %c0_36 = arith.constant 0 : index
    %c117_37 = arith.constant 117 : index
    %39 = vector.load %arg8[%c0_36, %c117_37] : memref<8x1024xf32, #tpu.memory_space<vmem>>, vector<8x256xf32>
    %c0_38 = arith.constant 0 : index
    %c118_39 = arith.constant 118 : index
    %40 = vector.load %arg8[%c0_38, %c118_39] : memref<8x1024xf32, #tpu.memory_space<vmem>>, vector<8x256xf32>
    %c0_40 = arith.constant 0 : index
    %c119_41 = arith.constant 119 : index
    %41 = vector.load %arg8[%c0_40, %c119_41] : memref<8x1024xf32, #tpu.memory_space<vmem>>, vector<8x256xf32>
    %c0_42 = arith.constant 0 : index
    %c127_43 = arith.constant 127 : index
    %42 = vector.load %arg8[%c0_42, %c127_43] : memref<8x1024xf32, #tpu.memory_space<vmem>>, vector<8x256xf32>
    %c0_44 = arith.constant 0 : index
    %c128_45 = arith.constant 128 : index
    %43 = vector.load %arg8[%c0_44, %c128_45] : memref<8x1024xf32, #tpu.memory_space<vmem>>, vector<8x256xf32>
    %c0_46 = arith.constant 0 : index
    %c129_47 = arith.constant 129 : index
    %44 = vector.load %arg8[%c0_46, %c129_47] : memref<8x1024xf32, #tpu.memory_space<vmem>>, vector<8x256xf32>
    %c0_48 = arith.constant 0 : index
    %c137_49 = arith.constant 137 : index
    %45 = vector.load %arg8[%c0_48, %c137_49] : memref<8x1024xf32, #tpu.memory_space<vmem>>, vector<8x256xf32>
    %c0_50 = arith.constant 0 : index
    %c138_51 = arith.constant 138 : index
    %46 = vector.load %arg8[%c0_50, %c138_51] : memref<8x1024xf32, #tpu.memory_space<vmem>>, vector<8x256xf32>
    %c0_52 = arith.constant 0 : index
    %c139_53 = arith.constant 139 : index
    %47 = vector.load %arg8[%c0_52, %c139_53] : memref<8x1024xf32, #tpu.memory_space<vmem>>, vector<8x256xf32>
    %48 = tpu.concatenate %39, %40, %41, %42, %43, %44, %45, %46, %47 in 0 : vector<8x256xf32>, vector<8x256xf32>, vector<8x256xf32>, vector<8x256xf32>, vector<8x256xf32>, vector<8x256xf32>, vector<8x256xf32>, vector<8x256xf32>, vector<8x256xf32> -> vector<72x256xf32>
    %49 = arith.truncf %48 : vector<72x256xf32> to vector<72x256xbf16>
    %cst_54 = arith.constant dense<0.000000e+00> : vector<8x256xf32>
    %50 = tpu.matmul %37, %49, %cst_54 {dimension_numbers = #tpu.dot_dimension_numbers<[1], [0], [0], [1], [0, 0, 1, 1], [], []>} : vector<8x72xbf16>, vector<72x256xbf16>, vector<8x256xf32> -> vector<8x256xf32>
    %c0_55 = arith.constant 0 : index
    %c0_56 = arith.constant 0 : index
    %51 = vector.load %arg6[%c0_55, %c0_56] : memref<8x1xf32, #tpu.memory_space<vmem>>, vector<8x1xf32>
    %52 = vector.broadcast %51 : vector<8x1xf32> to vector<8x256xf32>
    %53 = arith.addf %50, %52 : vector<8x256xf32>
    %cst_57 = arith.constant 0.000000e+00 : f32
    %54 = vector.broadcast %cst_57 : f32 to vector<8x256xf32>
    %55 = arith.maximumf %53, %54 : vector<8x256xf32>
    %56 = arith.addf %55, %15 : vector<8x256xf32>
    %57 = vector.broadcast %0 : vector<1x256xf32> to vector<8x256xf32>
    %58 = arith.mulf %56, %57 : vector<8x256xf32>
    %c0_58 = arith.constant 0 : index
    %c0_59 = arith.constant 0 : index
    %59 = vector.load %arg7[%c0_58, %c0_59] : memref<8x256xf32, #tpu.memory_space<vmem>>, vector<8x256xf32>
    tpu.vector_store %arg7[%c0_58, %c0_59], %58 {strides = array<i32>} : memref<8x256xf32, #tpu.memory_space<vmem>>, vector<8x256xf32>,
    return
  }
}

module attributes {stable_mosaic.version = 11 : i64} {
  func.func @_resblock_kernel(%arg0: memref<8x768xf32, #tpu.memory_space<vmem>>, %arg1: memref<1x768xf32, #tpu.memory_space<vmem>>, %arg2: memref<8x72xbf16, #tpu.memory_space<vmem>>, %arg3: memref<8x1xf32, #tpu.memory_space<vmem>>, %arg4: memref<8x72xbf16, #tpu.memory_space<vmem>>, %arg5: memref<8x1xf32, #tpu.memory_space<vmem>>, %arg6: memref<8x8xbf16, #tpu.memory_space<vmem>>, %arg7: memref<8x1xf32, #tpu.memory_space<vmem>>, %arg8: memref<8x768xf32, #tpu.memory_space<vmem>>, %arg9: memref<8x1024xf32, #tpu.memory_space<vmem>>) attributes {dimension_semantics = [], scalar_prefetch = 0 : i64, scratch_operands = 1 : i64, tpu.core_type = #tpu.core_type<tc>} {
    %c0 = arith.constant 0 : index
    %c0_0 = arith.constant 0 : index
    %0 = vector.load %arg1[%c0, %c0_0] : memref<1x768xf32, #tpu.memory_space<vmem>>, vector<1x768xf32>
    %cst = arith.constant 0.000000e+00 : f32
    %1 = vector.broadcast %cst : f32 to vector<8x1024xf32>
    %c0_1 = arith.constant 0 : index
    %c0_2 = arith.constant 0 : index
    %2 = vector.load %arg9[%c0_1, %c0_2] : memref<8x1024xf32, #tpu.memory_space<vmem>>, vector<8x1024xf32>
    tpu.vector_store %arg9[%c0_1, %c0_2], %1 {strides = array<i32>} : memref<8x1024xf32, #tpu.memory_space<vmem>>, vector<8x1024xf32>,
    %c0_3 = arith.constant 0 : index
    %c0_4 = arith.constant 0 : index
    %3 = vector.load %arg0[%c0_3, %c0_4] : memref<8x768xf32, #tpu.memory_space<vmem>>, vector<8x768xf32>
    %c0_5 = arith.constant 0 : index
    %c0_6 = arith.constant 0 : index
    %4 = vector.load %arg2[%c0_5, %c0_6] : memref<8x72xbf16, #tpu.memory_space<vmem>>, vector<8x72xbf16>
    %c0_7 = arith.constant 0 : index
    %c128 = arith.constant 128 : index
    %5 = vector.load %arg9[%c0_7, %c128] : memref<8x1024xf32, #tpu.memory_space<vmem>>, vector<8x768xf32>
    tpu.vector_store %arg9[%c0_7, %c128], %3 {strides = array<i32>} : memref<8x1024xf32, #tpu.memory_space<vmem>>, vector<8x768xf32>,
    %c0_8 = arith.constant 0 : index
    %c109 = arith.constant 109 : index
    %6 = vector.load %arg9[%c0_8, %c109] : memref<8x1024xf32, #tpu.memory_space<vmem>>, vector<8x768xf32>
    %c0_9 = arith.constant 0 : index
    %c110 = arith.constant 110 : index
    %7 = vector.load %arg9[%c0_9, %c110] : memref<8x1024xf32, #tpu.memory_space<vmem>>, vector<8x768xf32>
    %c0_10 = arith.constant 0 : index
    %c111 = arith.constant 111 : index
    %8 = vector.load %arg9[%c0_10, %c111] : memref<8x1024xf32, #tpu.memory_space<vmem>>, vector<8x768xf32>
    %c0_11 = arith.constant 0 : index
    %c127 = arith.constant 127 : index
    %9 = vector.load %arg9[%c0_11, %c127] : memref<8x1024xf32, #tpu.memory_space<vmem>>, vector<8x768xf32>
    %c0_12 = arith.constant 0 : index
    %c128_13 = arith.constant 128 : index
    %10 = vector.load %arg9[%c0_12, %c128_13] : memref<8x1024xf32, #tpu.memory_space<vmem>>, vector<8x768xf32>
    %c0_14 = arith.constant 0 : index
    %c129 = arith.constant 129 : index
    %11 = vector.load %arg9[%c0_14, %c129] : memref<8x1024xf32, #tpu.memory_space<vmem>>, vector<8x768xf32>
    %c0_15 = arith.constant 0 : index
    %c145 = arith.constant 145 : index
    %12 = vector.load %arg9[%c0_15, %c145] : memref<8x1024xf32, #tpu.memory_space<vmem>>, vector<8x768xf32>
    %c0_16 = arith.constant 0 : index
    %c146 = arith.constant 146 : index
    %13 = vector.load %arg9[%c0_16, %c146] : memref<8x1024xf32, #tpu.memory_space<vmem>>, vector<8x768xf32>
    %c0_17 = arith.constant 0 : index
    %c147 = arith.constant 147 : index
    %14 = vector.load %arg9[%c0_17, %c147] : memref<8x1024xf32, #tpu.memory_space<vmem>>, vector<8x768xf32>
    %15 = tpu.concatenate %6, %7, %8, %9, %10, %11, %12, %13, %14 in 0 : vector<8x768xf32>, vector<8x768xf32>, vector<8x768xf32>, vector<8x768xf32>, vector<8x768xf32>, vector<8x768xf32>, vector<8x768xf32>, vector<8x768xf32>, vector<8x768xf32> -> vector<72x768xf32>
    %16 = arith.truncf %15 : vector<72x768xf32> to vector<72x768xbf16>
    %cst_18 = arith.constant dense<0.000000e+00> : vector<8x768xf32>
    %17 = tpu.matmul %4, %16, %cst_18 {dimension_numbers = #tpu.dot_dimension_numbers<[1], [0], [0], [1], [0, 0, 1, 1], [], []>} : vector<8x72xbf16>, vector<72x768xbf16>, vector<8x768xf32> -> vector<8x768xf32>
    %c0_19 = arith.constant 0 : index
    %c0_20 = arith.constant 0 : index
    %18 = vector.load %arg3[%c0_19, %c0_20] : memref<8x1xf32, #tpu.memory_space<vmem>>, vector<8x1xf32>
    %19 = vector.broadcast %18 : vector<8x1xf32> to vector<8x768xf32>
    %20 = arith.addf %17, %19 : vector<8x768xf32>
    %cst_21 = arith.constant 0.000000e+00 : f32
    %21 = vector.broadcast %cst_21 : f32 to vector<8x768xf32>
    %22 = arith.maximumf %20, %21 : vector<8x768xf32>
    %23 = vector.broadcast %0 : vector<1x768xf32> to vector<8x768xf32>
    %24 = arith.mulf %22, %23 : vector<8x768xf32>
    %c0_22 = arith.constant 0 : index
    %c0_23 = arith.constant 0 : index
    %25 = vector.load %arg4[%c0_22, %c0_23] : memref<8x72xbf16, #tpu.memory_space<vmem>>, vector<8x72xbf16>
    %c0_24 = arith.constant 0 : index
    %c128_25 = arith.constant 128 : index
    %26 = vector.load %arg9[%c0_24, %c128_25] : memref<8x1024xf32, #tpu.memory_space<vmem>>, vector<8x768xf32>
    tpu.vector_store %arg9[%c0_24, %c128_25], %24 {strides = array<i32>} : memref<8x1024xf32, #tpu.memory_space<vmem>>, vector<8x768xf32>,
    %c0_26 = arith.constant 0 : index
    %c109_27 = arith.constant 109 : index
    %27 = vector.load %arg9[%c0_26, %c109_27] : memref<8x1024xf32, #tpu.memory_space<vmem>>, vector<8x768xf32>
    %c0_28 = arith.constant 0 : index
    %c110_29 = arith.constant 110 : index
    %28 = vector.load %arg9[%c0_28, %c110_29] : memref<8x1024xf32, #tpu.memory_space<vmem>>, vector<8x768xf32>
    %c0_30 = arith.constant 0 : index
    %c111_31 = arith.constant 111 : index
    %29 = vector.load %arg9[%c0_30, %c111_31] : memref<8x1024xf32, #tpu.memory_space<vmem>>, vector<8x768xf32>
    %c0_32 = arith.constant 0 : index
    %c127_33 = arith.constant 127 : index
    %30 = vector.load %arg9[%c0_32, %c127_33] : memref<8x1024xf32, #tpu.memory_space<vmem>>, vector<8x768xf32>
    %c0_34 = arith.constant 0 : index
    %c128_35 = arith.constant 128 : index
    %31 = vector.load %arg9[%c0_34, %c128_35] : memref<8x1024xf32, #tpu.memory_space<vmem>>, vector<8x768xf32>
    %c0_36 = arith.constant 0 : index
    %c129_37 = arith.constant 129 : index
    %32 = vector.load %arg9[%c0_36, %c129_37] : memref<8x1024xf32, #tpu.memory_space<vmem>>, vector<8x768xf32>
    %c0_38 = arith.constant 0 : index
    %c145_39 = arith.constant 145 : index
    %33 = vector.load %arg9[%c0_38, %c145_39] : memref<8x1024xf32, #tpu.memory_space<vmem>>, vector<8x768xf32>
    %c0_40 = arith.constant 0 : index
    %c146_41 = arith.constant 146 : index
    %34 = vector.load %arg9[%c0_40, %c146_41] : memref<8x1024xf32, #tpu.memory_space<vmem>>, vector<8x768xf32>
    %c0_42 = arith.constant 0 : index
    %c147_43 = arith.constant 147 : index
    %35 = vector.load %arg9[%c0_42, %c147_43] : memref<8x1024xf32, #tpu.memory_space<vmem>>, vector<8x768xf32>
    %36 = tpu.concatenate %27, %28, %29, %30, %31, %32, %33, %34, %35 in 0 : vector<8x768xf32>, vector<8x768xf32>, vector<8x768xf32>, vector<8x768xf32>, vector<8x768xf32>, vector<8x768xf32>, vector<8x768xf32>, vector<8x768xf32>, vector<8x768xf32> -> vector<72x768xf32>
    %37 = arith.truncf %36 : vector<72x768xf32> to vector<72x768xbf16>
    %cst_44 = arith.constant dense<0.000000e+00> : vector<8x768xf32>
    %38 = tpu.matmul %25, %37, %cst_44 {dimension_numbers = #tpu.dot_dimension_numbers<[1], [0], [0], [1], [0, 0, 1, 1], [], []>} : vector<8x72xbf16>, vector<72x768xbf16>, vector<8x768xf32> -> vector<8x768xf32>
    %c0_45 = arith.constant 0 : index
    %c0_46 = arith.constant 0 : index
    %39 = vector.load %arg5[%c0_45, %c0_46] : memref<8x1xf32, #tpu.memory_space<vmem>>, vector<8x1xf32>
    %40 = vector.broadcast %39 : vector<8x1xf32> to vector<8x768xf32>
    %41 = arith.addf %38, %40 : vector<8x768xf32>
    %cst_47 = arith.constant 0.000000e+00 : f32
    %42 = vector.broadcast %cst_47 : f32 to vector<8x768xf32>
    %43 = arith.maximumf %41, %42 : vector<8x768xf32>
    %c0_48 = arith.constant 0 : index
    %c0_49 = arith.constant 0 : index
    %44 = vector.load %arg6[%c0_48, %c0_49] : memref<8x8xbf16, #tpu.memory_space<vmem>>, vector<8x8xbf16>
    %45 = arith.truncf %3 : vector<8x768xf32> to vector<8x768xbf16>
    %cst_50 = arith.constant dense<0.000000e+00> : vector<8x768xf32>
    %46 = tpu.matmul %44, %45, %cst_50 {dimension_numbers = #tpu.dot_dimension_numbers<[1], [0], [0], [1], [0, 0, 1, 1], [], []>} : vector<8x8xbf16>, vector<8x768xbf16>, vector<8x768xf32> -> vector<8x768xf32>
    %47 = arith.addf %43, %46 : vector<8x768xf32>
    %c0_51 = arith.constant 0 : index
    %c0_52 = arith.constant 0 : index
    %48 = vector.load %arg7[%c0_51, %c0_52] : memref<8x1xf32, #tpu.memory_space<vmem>>, vector<8x1xf32>
    %49 = vector.broadcast %48 : vector<8x1xf32> to vector<8x768xf32>
    %50 = arith.addf %47, %49 : vector<8x768xf32>
    %51 = vector.broadcast %0 : vector<1x768xf32> to vector<8x768xf32>
    %52 = arith.mulf %50, %51 : vector<8x768xf32>
    %c0_53 = arith.constant 0 : index
    %c0_54 = arith.constant 0 : index
    %53 = vector.load %arg8[%c0_53, %c0_54] : memref<8x768xf32, #tpu.memory_space<vmem>>, vector<8x768xf32>
    tpu.vector_store %arg8[%c0_53, %c0_54], %52 {strides = array<i32>} : memref<8x768xf32, #tpu.memory_space<vmem>>, vector<8x768xf32>,
    return
  }
}

module attributes {stable_mosaic.version = 11 : i64} {
  func.func @_resblock_kernel(%arg0: memref<8x128xf32, #tpu.memory_space<vmem>>, %arg1: memref<128x128xbf16, #tpu.memory_space<vmem>>, %arg2: memref<1x128xf32, #tpu.memory_space<vmem>>, %arg3: memref<8x72xbf16, #tpu.memory_space<vmem>>, %arg4: memref<8x1xf32, #tpu.memory_space<vmem>>, %arg5: memref<8x72xbf16, #tpu.memory_space<vmem>>, %arg6: memref<8x1xf32, #tpu.memory_space<vmem>>, %arg7: memref<8x128xf32, #tpu.memory_space<vmem>>, %arg8: memref<8x384xf32, #tpu.memory_space<vmem>>) attributes {dimension_semantics = [], scalar_prefetch = 0 : i64, scratch_operands = 1 : i64, tpu.core_type = #tpu.core_type<tc>} {
    %c0 = arith.constant 0 : index
    %c0_0 = arith.constant 0 : index
    %0 = vector.load %arg2[%c0, %c0_0] : memref<1x128xf32, #tpu.memory_space<vmem>>, vector<1x128xf32>
    %cst = arith.constant 0.000000e+00 : f32
    %1 = vector.broadcast %cst : f32 to vector<8x384xf32>
    %c0_1 = arith.constant 0 : index
    %c0_2 = arith.constant 0 : index
    %2 = vector.load %arg8[%c0_1, %c0_2] : memref<8x384xf32, #tpu.memory_space<vmem>>, vector<8x384xf32>
    tpu.vector_store %arg8[%c0_1, %c0_2], %1 {strides = array<i32>} : memref<8x384xf32, #tpu.memory_space<vmem>>, vector<8x384xf32>,
    %c0_3 = arith.constant 0 : index
    %c0_4 = arith.constant 0 : index
    %3 = vector.load %arg0[%c0_3, %c0_4] : memref<8x128xf32, #tpu.memory_space<vmem>>, vector<8x128xf32>
    %c0_5 = arith.constant 0 : index
    %c128 = arith.constant 128 : index
    %4 = vector.load %arg8[%c0_5, %c128] : memref<8x384xf32, #tpu.memory_space<vmem>>, vector<8x128xf32>
    tpu.vector_store %arg8[%c0_5, %c128], %3 {strides = array<i32>} : memref<8x384xf32, #tpu.memory_space<vmem>>, vector<8x128xf32>,
    %c0_6 = arith.constant 0 : index
    %c129 = arith.constant 129 : index
    %5 = vector.load %arg8[%c0_6, %c129] : memref<8x384xf32, #tpu.memory_space<vmem>>, vector<8x128xf32>
    %6 = arith.maximumf %3, %5 : vector<8x128xf32>
    %c0_7 = arith.constant 0 : index
    %c134 = arith.constant 134 : index
    %7 = vector.load %arg8[%c0_7, %c134] : memref<8x384xf32, #tpu.memory_space<vmem>>, vector<8x128xf32>
    %8 = arith.maximumf %6, %7 : vector<8x128xf32>
    %c0_8 = arith.constant 0 : index
    %c135 = arith.constant 135 : index
    %9 = vector.load %arg8[%c0_8, %c135] : memref<8x384xf32, #tpu.memory_space<vmem>>, vector<8x128xf32>
    %10 = arith.maximumf %8, %9 : vector<8x128xf32>
    %cst_9 = arith.constant 0.000000e+00 : f32
    %11 = vector.broadcast %cst_9 : f32 to vector<8x128xf32>
    %12 = arith.maximumf %10, %11 : vector<8x128xf32>
    %13 = arith.truncf %12 : vector<8x128xf32> to vector<8x128xbf16>
    %c0_10 = arith.constant 0 : index
    %c0_11 = arith.constant 0 : index
    %14 = vector.load %arg1[%c0_10, %c0_11] : memref<128x128xbf16, #tpu.memory_space<vmem>>, vector<128x128xbf16>
    %cst_12 = arith.constant dense<0.000000e+00> : vector<8x128xf32>
    %15 = tpu.matmul %13, %14, %cst_12 {dimension_numbers = #tpu.dot_dimension_numbers<[1], [0], [0], [1], [0, 0, 1, 1], [], []>} : vector<8x128xbf16>, vector<128x128xbf16>, vector<8x128xf32> -> vector<8x128xf32>
    %c0_13 = arith.constant 0 : index
    %c0_14 = arith.constant 0 : index
    %16 = vector.load %arg3[%c0_13, %c0_14] : memref<8x72xbf16, #tpu.memory_space<vmem>>, vector<8x72xbf16>
    %c0_15 = arith.constant 0 : index
    %c128_16 = arith.constant 128 : index
    %17 = vector.load %arg8[%c0_15, %c128_16] : memref<8x384xf32, #tpu.memory_space<vmem>>, vector<8x128xf32>
    tpu.vector_store %arg8[%c0_15, %c128_16], %15 {strides = array<i32>} : memref<8x384xf32, #tpu.memory_space<vmem>>, vector<8x128xf32>,
    %c0_17 = arith.constant 0 : index
    %c123 = arith.constant 123 : index
    %18 = vector.load %arg8[%c0_17, %c123] : memref<8x384xf32, #tpu.memory_space<vmem>>, vector<8x128xf32>
    %c0_18 = arith.constant 0 : index
    %c124 = arith.constant 124 : index
    %19 = vector.load %arg8[%c0_18, %c124] : memref<8x384xf32, #tpu.memory_space<vmem>>, vector<8x128xf32>
    %c0_19 = arith.constant 0 : index
    %c125 = arith.constant 125 : index
    %20 = vector.load %arg8[%c0_19, %c125] : memref<8x384xf32, #tpu.memory_space<vmem>>, vector<8x128xf32>
    %c0_20 = arith.constant 0 : index
    %c127 = arith.constant 127 : index
    %21 = vector.load %arg8[%c0_20, %c127] : memref<8x384xf32, #tpu.memory_space<vmem>>, vector<8x128xf32>
    %c0_21 = arith.constant 0 : index
    %c128_22 = arith.constant 128 : index
    %22 = vector.load %arg8[%c0_21, %c128_22] : memref<8x384xf32, #tpu.memory_space<vmem>>, vector<8x128xf32>
    %c0_23 = arith.constant 0 : index
    %c129_24 = arith.constant 129 : index
    %23 = vector.load %arg8[%c0_23, %c129_24] : memref<8x384xf32, #tpu.memory_space<vmem>>, vector<8x128xf32>
    %c0_25 = arith.constant 0 : index
    %c131 = arith.constant 131 : index
    %24 = vector.load %arg8[%c0_25, %c131] : memref<8x384xf32, #tpu.memory_space<vmem>>, vector<8x128xf32>
    %c0_26 = arith.constant 0 : index
    %c132 = arith.constant 132 : index
    %25 = vector.load %arg8[%c0_26, %c132] : memref<8x384xf32, #tpu.memory_space<vmem>>, vector<8x128xf32>
    %c0_27 = arith.constant 0 : index
    %c133 = arith.constant 133 : index
    %26 = vector.load %arg8[%c0_27, %c133] : memref<8x384xf32, #tpu.memory_space<vmem>>, vector<8x128xf32>
    %27 = tpu.concatenate %18, %19, %20, %21, %22, %23, %24, %25, %26 in 0 : vector<8x128xf32>, vector<8x128xf32>, vector<8x128xf32>, vector<8x128xf32>, vector<8x128xf32>, vector<8x128xf32>, vector<8x128xf32>, vector<8x128xf32>, vector<8x128xf32> -> vector<72x128xf32>
    %28 = arith.truncf %27 : vector<72x128xf32> to vector<72x128xbf16>
    %cst_28 = arith.constant dense<0.000000e+00> : vector<8x128xf32>
    %29 = tpu.matmul %16, %28, %cst_28 {dimension_numbers = #tpu.dot_dimension_numbers<[1], [0], [0], [1], [0, 0, 1, 1], [], []>} : vector<8x72xbf16>, vector<72x128xbf16>, vector<8x128xf32> -> vector<8x128xf32>
    %c0_29 = arith.constant 0 : index
    %c0_30 = arith.constant 0 : index
    %30 = vector.load %arg4[%c0_29, %c0_30] : memref<8x1xf32, #tpu.memory_space<vmem>>, vector<8x1xf32>
    %31 = vector.broadcast %30 : vector<8x1xf32> to vector<8x128xf32>
    %32 = arith.addf %29, %31 : vector<8x128xf32>
    %cst_31 = arith.constant 0.000000e+00 : f32
    %33 = vector.broadcast %cst_31 : f32 to vector<8x128xf32>
    %34 = arith.maximumf %32, %33 : vector<8x128xf32>
    %35 = vector.broadcast %0 : vector<1x128xf32> to vector<8x128xf32>
    %36 = arith.mulf %34, %35 : vector<8x128xf32>
    %c0_32 = arith.constant 0 : index
    %c0_33 = arith.constant 0 : index
    %37 = vector.load %arg5[%c0_32, %c0_33] : memref<8x72xbf16, #tpu.memory_space<vmem>>, vector<8x72xbf16>
    %c0_34 = arith.constant 0 : index
    %c128_35 = arith.constant 128 : index
    %38 = vector.load %arg8[%c0_34, %c128_35] : memref<8x384xf32, #tpu.memory_space<vmem>>, vector<8x128xf32>
    tpu.vector_store %arg8[%c0_34, %c128_35], %36 {strides = array<i32>} : memref<8x384xf32, #tpu.memory_space<vmem>>, vector<8x128xf32>,
    %c0_36 = arith.constant 0 : index
    %c123_37 = arith.constant 123 : index
    %39 = vector.load %arg8[%c0_36, %c123_37] : memref<8x384xf32, #tpu.memory_space<vmem>>, vector<8x128xf32>
    %c0_38 = arith.constant 0 : index
    %c124_39 = arith.constant 124 : index
    %40 = vector.load %arg8[%c0_38, %c124_39] : memref<8x384xf32, #tpu.memory_space<vmem>>, vector<8x128xf32>
    %c0_40 = arith.constant 0 : index
    %c125_41 = arith.constant 125 : index
    %41 = vector.load %arg8[%c0_40, %c125_41] : memref<8x384xf32, #tpu.memory_space<vmem>>, vector<8x128xf32>
    %c0_42 = arith.constant 0 : index
    %c127_43 = arith.constant 127 : index
    %42 = vector.load %arg8[%c0_42, %c127_43] : memref<8x384xf32, #tpu.memory_space<vmem>>, vector<8x128xf32>
    %c0_44 = arith.constant 0 : index
    %c128_45 = arith.constant 128 : index
    %43 = vector.load %arg8[%c0_44, %c128_45] : memref<8x384xf32, #tpu.memory_space<vmem>>, vector<8x128xf32>
    %c0_46 = arith.constant 0 : index
    %c129_47 = arith.constant 129 : index
    %44 = vector.load %arg8[%c0_46, %c129_47] : memref<8x384xf32, #tpu.memory_space<vmem>>, vector<8x128xf32>
    %c0_48 = arith.constant 0 : index
    %c131_49 = arith.constant 131 : index
    %45 = vector.load %arg8[%c0_48, %c131_49] : memref<8x384xf32, #tpu.memory_space<vmem>>, vector<8x128xf32>
    %c0_50 = arith.constant 0 : index
    %c132_51 = arith.constant 132 : index
    %46 = vector.load %arg8[%c0_50, %c132_51] : memref<8x384xf32, #tpu.memory_space<vmem>>, vector<8x128xf32>
    %c0_52 = arith.constant 0 : index
    %c133_53 = arith.constant 133 : index
    %47 = vector.load %arg8[%c0_52, %c133_53] : memref<8x384xf32, #tpu.memory_space<vmem>>, vector<8x128xf32>
    %48 = tpu.concatenate %39, %40, %41, %42, %43, %44, %45, %46, %47 in 0 : vector<8x128xf32>, vector<8x128xf32>, vector<8x128xf32>, vector<8x128xf32>, vector<8x128xf32>, vector<8x128xf32>, vector<8x128xf32>, vector<8x128xf32>, vector<8x128xf32> -> vector<72x128xf32>
    %49 = arith.truncf %48 : vector<72x128xf32> to vector<72x128xbf16>
    %cst_54 = arith.constant dense<0.000000e+00> : vector<8x128xf32>
    %50 = tpu.matmul %37, %49, %cst_54 {dimension_numbers = #tpu.dot_dimension_numbers<[1], [0], [0], [1], [0, 0, 1, 1], [], []>} : vector<8x72xbf16>, vector<72x128xbf16>, vector<8x128xf32> -> vector<8x128xf32>
    %c0_55 = arith.constant 0 : index
    %c0_56 = arith.constant 0 : index
    %51 = vector.load %arg6[%c0_55, %c0_56] : memref<8x1xf32, #tpu.memory_space<vmem>>, vector<8x1xf32>
    %52 = vector.broadcast %51 : vector<8x1xf32> to vector<8x128xf32>
    %53 = arith.addf %50, %52 : vector<8x128xf32>
    %cst_57 = arith.constant 0.000000e+00 : f32
    %54 = vector.broadcast %cst_57 : f32 to vector<8x128xf32>
    %55 = arith.maximumf %53, %54 : vector<8x128xf32>
    %56 = arith.addf %55, %15 : vector<8x128xf32>
    %57 = vector.broadcast %0 : vector<1x128xf32> to vector<8x128xf32>
    %58 = arith.mulf %56, %57 : vector<8x128xf32>
    %c0_58 = arith.constant 0 : index
    %c0_59 = arith.constant 0 : index
    %59 = vector.load %arg7[%c0_58, %c0_59] : memref<8x128xf32, #tpu.memory_space<vmem>>, vector<8x128xf32>
    tpu.vector_store %arg7[%c0_58, %c0_59], %58 {strides = array<i32>} : memref<8x128xf32, #tpu.memory_space<vmem>>, vector<8x128xf32>,
    return
  }
}

module attributes {stable_mosaic.version = 11 : i64} {
  func.func @_resblock_kernel(%arg0: memref<8x128xf32, #tpu.memory_space<vmem>>, %arg1: memref<128x128xbf16, #tpu.memory_space<vmem>>, %arg2: memref<1x128xf32, #tpu.memory_space<vmem>>, %arg3: memref<8x72xbf16, #tpu.memory_space<vmem>>, %arg4: memref<8x1xf32, #tpu.memory_space<vmem>>, %arg5: memref<8x72xbf16, #tpu.memory_space<vmem>>, %arg6: memref<8x1xf32, #tpu.memory_space<vmem>>, %arg7: memref<8x128xf32, #tpu.memory_space<vmem>>, %arg8: memref<8x384xf32, #tpu.memory_space<vmem>>) attributes {dimension_semantics = [], scalar_prefetch = 0 : i64, scratch_operands = 1 : i64, tpu.core_type = #tpu.core_type<tc>} {
    %c0 = arith.constant 0 : index
    %c0_0 = arith.constant 0 : index
    %0 = vector.load %arg2[%c0, %c0_0] : memref<1x128xf32, #tpu.memory_space<vmem>>, vector<1x128xf32>
    %cst = arith.constant 0.000000e+00 : f32
    %1 = vector.broadcast %cst : f32 to vector<8x384xf32>
    %c0_1 = arith.constant 0 : index
    %c0_2 = arith.constant 0 : index
    %2 = vector.load %arg8[%c0_1, %c0_2] : memref<8x384xf32, #tpu.memory_space<vmem>>, vector<8x384xf32>
    tpu.vector_store %arg8[%c0_1, %c0_2], %1 {strides = array<i32>} : memref<8x384xf32, #tpu.memory_space<vmem>>, vector<8x384xf32>,
    %c0_3 = arith.constant 0 : index
    %c0_4 = arith.constant 0 : index
    %3 = vector.load %arg0[%c0_3, %c0_4] : memref<8x128xf32, #tpu.memory_space<vmem>>, vector<8x128xf32>
    %c0_5 = arith.constant 0 : index
    %c128 = arith.constant 128 : index
    %4 = vector.load %arg8[%c0_5, %c128] : memref<8x384xf32, #tpu.memory_space<vmem>>, vector<8x128xf32>
    tpu.vector_store %arg8[%c0_5, %c128], %3 {strides = array<i32>} : memref<8x384xf32, #tpu.memory_space<vmem>>, vector<8x128xf32>,
    %c0_6 = arith.constant 0 : index
    %c129 = arith.constant 129 : index
    %5 = vector.load %arg8[%c0_6, %c129] : memref<8x384xf32, #tpu.memory_space<vmem>>, vector<8x128xf32>
    %6 = arith.maximumf %3, %5 : vector<8x128xf32>
    %c0_7 = arith.constant 0 : index
    %c132 = arith.constant 132 : index
    %7 = vector.load %arg8[%c0_7, %c132] : memref<8x384xf32, #tpu.memory_space<vmem>>, vector<8x128xf32>
    %8 = arith.maximumf %6, %7 : vector<8x128xf32>
    %c0_8 = arith.constant 0 : index
    %c133 = arith.constant 133 : index
    %9 = vector.load %arg8[%c0_8, %c133] : memref<8x384xf32, #tpu.memory_space<vmem>>, vector<8x128xf32>
    %10 = arith.maximumf %8, %9 : vector<8x128xf32>
    %cst_9 = arith.constant 0.000000e+00 : f32
    %11 = vector.broadcast %cst_9 : f32 to vector<8x128xf32>
    %12 = arith.maximumf %10, %11 : vector<8x128xf32>
    %13 = arith.truncf %12 : vector<8x128xf32> to vector<8x128xbf16>
    %c0_10 = arith.constant 0 : index
    %c0_11 = arith.constant 0 : index
    %14 = vector.load %arg1[%c0_10, %c0_11] : memref<128x128xbf16, #tpu.memory_space<vmem>>, vector<128x128xbf16>
    %cst_12 = arith.constant dense<0.000000e+00> : vector<8x128xf32>
    %15 = tpu.matmul %13, %14, %cst_12 {dimension_numbers = #tpu.dot_dimension_numbers<[1], [0], [0], [1], [0, 0, 1, 1], [], []>} : vector<8x128xbf16>, vector<128x128xbf16>, vector<8x128xf32> -> vector<8x128xf32>
    %c0_13 = arith.constant 0 : index
    %c0_14 = arith.constant 0 : index
    %16 = vector.load %arg3[%c0_13, %c0_14] : memref<8x72xbf16, #tpu.memory_space<vmem>>, vector<8x72xbf16>
    %c0_15 = arith.constant 0 : index
    %c128_16 = arith.constant 128 : index
    %17 = vector.load %arg8[%c0_15, %c128_16] : memref<8x384xf32, #tpu.memory_space<vmem>>, vector<8x128xf32>
    tpu.vector_store %arg8[%c0_15, %c128_16], %15 {strides = array<i32>} : memref<8x384xf32, #tpu.memory_space<vmem>>, vector<8x128xf32>,
    %c0_17 = arith.constant 0 : index
    %c124 = arith.constant 124 : index
    %18 = vector.load %arg8[%c0_17, %c124] : memref<8x384xf32, #tpu.memory_space<vmem>>, vector<8x128xf32>
    %c0_18 = arith.constant 0 : index
    %c125 = arith.constant 125 : index
    %19 = vector.load %arg8[%c0_18, %c125] : memref<8x384xf32, #tpu.memory_space<vmem>>, vector<8x128xf32>
    %c0_19 = arith.constant 0 : index
    %c126 = arith.constant 126 : index
    %20 = vector.load %arg8[%c0_19, %c126] : memref<8x384xf32, #tpu.memory_space<vmem>>, vector<8x128xf32>
    %c0_20 = arith.constant 0 : index
    %c127 = arith.constant 127 : index
    %21 = vector.load %arg8[%c0_20, %c127] : memref<8x384xf32, #tpu.memory_space<vmem>>, vector<8x128xf32>
    %c0_21 = arith.constant 0 : index
    %c128_22 = arith.constant 128 : index
    %22 = vector.load %arg8[%c0_21, %c128_22] : memref<8x384xf32, #tpu.memory_space<vmem>>, vector<8x128xf32>
    %c0_23 = arith.constant 0 : index
    %c129_24 = arith.constant 129 : index
    %23 = vector.load %arg8[%c0_23, %c129_24] : memref<8x384xf32, #tpu.memory_space<vmem>>, vector<8x128xf32>
    %c0_25 = arith.constant 0 : index
    %c130 = arith.constant 130 : index
    %24 = vector.load %arg8[%c0_25, %c130] : memref<8x384xf32, #tpu.memory_space<vmem>>, vector<8x128xf32>
    %c0_26 = arith.constant 0 : index
    %c131 = arith.constant 131 : index
    %25 = vector.load %arg8[%c0_26, %c131] : memref<8x384xf32, #tpu.memory_space<vmem>>, vector<8x128xf32>
    %c0_27 = arith.constant 0 : index
    %c132_28 = arith.constant 132 : index
    %26 = vector.load %arg8[%c0_27, %c132_28] : memref<8x384xf32, #tpu.memory_space<vmem>>, vector<8x128xf32>
    %27 = tpu.concatenate %18, %19, %20, %21, %22, %23, %24, %25, %26 in 0 : vector<8x128xf32>, vector<8x128xf32>, vector<8x128xf32>, vector<8x128xf32>, vector<8x128xf32>, vector<8x128xf32>, vector<8x128xf32>, vector<8x128xf32>, vector<8x128xf32> -> vector<72x128xf32>
    %28 = arith.truncf %27 : vector<72x128xf32> to vector<72x128xbf16>
    %cst_29 = arith.constant dense<0.000000e+00> : vector<8x128xf32>
    %29 = tpu.matmul %16, %28, %cst_29 {dimension_numbers = #tpu.dot_dimension_numbers<[1], [0], [0], [1], [0, 0, 1, 1], [], []>} : vector<8x72xbf16>, vector<72x128xbf16>, vector<8x128xf32> -> vector<8x128xf32>
    %c0_30 = arith.constant 0 : index
    %c0_31 = arith.constant 0 : index
    %30 = vector.load %arg4[%c0_30, %c0_31] : memref<8x1xf32, #tpu.memory_space<vmem>>, vector<8x1xf32>
    %31 = vector.broadcast %30 : vector<8x1xf32> to vector<8x128xf32>
    %32 = arith.addf %29, %31 : vector<8x128xf32>
    %cst_32 = arith.constant 0.000000e+00 : f32
    %33 = vector.broadcast %cst_32 : f32 to vector<8x128xf32>
    %34 = arith.maximumf %32, %33 : vector<8x128xf32>
    %35 = vector.broadcast %0 : vector<1x128xf32> to vector<8x128xf32>
    %36 = arith.mulf %34, %35 : vector<8x128xf32>
    %c0_33 = arith.constant 0 : index
    %c0_34 = arith.constant 0 : index
    %37 = vector.load %arg5[%c0_33, %c0_34] : memref<8x72xbf16, #tpu.memory_space<vmem>>, vector<8x72xbf16>
    %c0_35 = arith.constant 0 : index
    %c128_36 = arith.constant 128 : index
    %38 = vector.load %arg8[%c0_35, %c128_36] : memref<8x384xf32, #tpu.memory_space<vmem>>, vector<8x128xf32>
    tpu.vector_store %arg8[%c0_35, %c128_36], %36 {strides = array<i32>} : memref<8x384xf32, #tpu.memory_space<vmem>>, vector<8x128xf32>,
    %c0_37 = arith.constant 0 : index
    %c124_38 = arith.constant 124 : index
    %39 = vector.load %arg8[%c0_37, %c124_38] : memref<8x384xf32, #tpu.memory_space<vmem>>, vector<8x128xf32>
    %c0_39 = arith.constant 0 : index
    %c125_40 = arith.constant 125 : index
    %40 = vector.load %arg8[%c0_39, %c125_40] : memref<8x384xf32, #tpu.memory_space<vmem>>, vector<8x128xf32>
    %c0_41 = arith.constant 0 : index
    %c126_42 = arith.constant 126 : index
    %41 = vector.load %arg8[%c0_41, %c126_42] : memref<8x384xf32, #tpu.memory_space<vmem>>, vector<8x128xf32>
    %c0_43 = arith.constant 0 : index
    %c127_44 = arith.constant 127 : index
    %42 = vector.load %arg8[%c0_43, %c127_44] : memref<8x384xf32, #tpu.memory_space<vmem>>, vector<8x128xf32>
    %c0_45 = arith.constant 0 : index
    %c128_46 = arith.constant 128 : index
    %43 = vector.load %arg8[%c0_45, %c128_46] : memref<8x384xf32, #tpu.memory_space<vmem>>, vector<8x128xf32>
    %c0_47 = arith.constant 0 : index
    %c129_48 = arith.constant 129 : index
    %44 = vector.load %arg8[%c0_47, %c129_48] : memref<8x384xf32, #tpu.memory_space<vmem>>, vector<8x128xf32>
    %c0_49 = arith.constant 0 : index
    %c130_50 = arith.constant 130 : index
    %45 = vector.load %arg8[%c0_49, %c130_50] : memref<8x384xf32, #tpu.memory_space<vmem>>, vector<8x128xf32>
    %c0_51 = arith.constant 0 : index
    %c131_52 = arith.constant 131 : index
    %46 = vector.load %arg8[%c0_51, %c131_52] : memref<8x384xf32, #tpu.memory_space<vmem>>, vector<8x128xf32>
    %c0_53 = arith.constant 0 : index
    %c132_54 = arith.constant 132 : index
    %47 = vector.load %arg8[%c0_53, %c132_54] : memref<8x384xf32, #tpu.memory_space<vmem>>, vector<8x128xf32>
    %48 = tpu.concatenate %39, %40, %41, %42, %43, %44, %45, %46, %47 in 0 : vector<8x128xf32>, vector<8x128xf32>, vector<8x128xf32>, vector<8x128xf32>, vector<8x128xf32>, vector<8x128xf32>, vector<8x128xf32>, vector<8x128xf32>, vector<8x128xf32> -> vector<72x128xf32>
    %49 = arith.truncf %48 : vector<72x128xf32> to vector<72x128xbf16>
    %cst_55 = arith.constant dense<0.000000e+00> : vector<8x128xf32>
    %50 = tpu.matmul %37, %49, %cst_55 {dimension_numbers = #tpu.dot_dimension_numbers<[1], [0], [0], [1], [0, 0, 1, 1], [], []>} : vector<8x72xbf16>, vector<72x128xbf16>, vector<8x128xf32> -> vector<8x128xf32>
    %c0_56 = arith.constant 0 : index
    %c0_57 = arith.constant 0 : index
    %51 = vector.load %arg6[%c0_56, %c0_57] : memref<8x1xf32, #tpu.memory_space<vmem>>, vector<8x1xf32>
    %52 = vector.broadcast %51 : vector<8x1xf32> to vector<8x128xf32>
    %53 = arith.addf %50, %52 : vector<8x128xf32>
    %cst_58 = arith.constant 0.000000e+00 : f32
    %54 = vector.broadcast %cst_58 : f32 to vector<8x128xf32>
    %55 = arith.maximumf %53, %54 : vector<8x128xf32>
    %56 = arith.addf %55, %15 : vector<8x128xf32>
    %57 = vector.broadcast %0 : vector<1x128xf32> to vector<8x128xf32>
    %58 = arith.mulf %56, %57 : vector<8x128xf32>
    %c0_59 = arith.constant 0 : index
    %c0_60 = arith.constant 0 : index
    %59 = vector.load %arg7[%c0_59, %c0_60] : memref<8x128xf32, #tpu.memory_space<vmem>>, vector<8x128xf32>
    tpu.vector_store %arg7[%c0_59, %c0_60], %58 {strides = array<i32>} : memref<8x128xf32, #tpu.memory_space<vmem>>, vector<8x128xf32>,
    return
  }
}

module attributes {stable_mosaic.version = 11 : i64} {
  func.func @_resblock_kernel(%arg0: memref<8x128xf32, #tpu.memory_space<vmem>>, %arg1: memref<128x128xbf16, #tpu.memory_space<vmem>>, %arg2: memref<8x128xf32, #tpu.memory_space<vmem>>, %arg3: memref<1x128xf32, #tpu.memory_space<vmem>>, %arg4: memref<8x72xbf16, #tpu.memory_space<vmem>>, %arg5: memref<8x72xbf16, #tpu.memory_space<vmem>>, %arg6: memref<8x1xf32, #tpu.memory_space<vmem>>, %arg7: memref<8x72xbf16, #tpu.memory_space<vmem>>, %arg8: memref<8x1xf32, #tpu.memory_space<vmem>>, %arg9: memref<8x8xbf16, #tpu.memory_space<vmem>>, %arg10: memref<8x8xbf16, #tpu.memory_space<vmem>>, %arg11: memref<8x1xf32, #tpu.memory_space<vmem>>, %arg12: memref<8x128xf32, #tpu.memory_space<vmem>>, %arg13: memref<8x384xf32, #tpu.memory_space<vmem>>) attributes {dimension_semantics = [], scalar_prefetch = 0 : i64, scratch_operands = 1 : i64, tpu.core_type = #tpu.core_type<tc>} {
    %c0 = arith.constant 0 : index
    %c0_0 = arith.constant 0 : index
    %0 = vector.load %arg3[%c0, %c0_0] : memref<1x128xf32, #tpu.memory_space<vmem>>, vector<1x128xf32>
    %cst = arith.constant 0.000000e+00 : f32
    %1 = vector.broadcast %cst : f32 to vector<8x384xf32>
    %c0_1 = arith.constant 0 : index
    %c0_2 = arith.constant 0 : index
    %2 = vector.load %arg13[%c0_1, %c0_2] : memref<8x384xf32, #tpu.memory_space<vmem>>, vector<8x384xf32>
    tpu.vector_store %arg13[%c0_1, %c0_2], %1 {strides = array<i32>} : memref<8x384xf32, #tpu.memory_space<vmem>>, vector<8x384xf32>,
    %c0_3 = arith.constant 0 : index
    %c0_4 = arith.constant 0 : index
    %3 = vector.load %arg0[%c0_3, %c0_4] : memref<8x128xf32, #tpu.memory_space<vmem>>, vector<8x128xf32>
    %4 = arith.truncf %3 : vector<8x128xf32> to vector<8x128xbf16>
    %c0_5 = arith.constant 0 : index
    %c0_6 = arith.constant 0 : index
    %5 = vector.load %arg1[%c0_5, %c0_6] : memref<128x128xbf16, #tpu.memory_space<vmem>>, vector<128x128xbf16>
    %cst_7 = arith.constant dense<0.000000e+00> : vector<8x128xf32>
    %6 = tpu.matmul %4, %5, %cst_7 {dimension_numbers = #tpu.dot_dimension_numbers<[1], [0], [0], [1], [0, 0, 1, 1], [], []>} : vector<8x128xbf16>, vector<128x128xbf16>, vector<8x128xf32> -> vector<8x128xf32>
    %cst_8 = arith.constant 0.000000e+00 : f32
    %7 = vector.broadcast %cst_8 : f32 to vector<8x128xf32>
    %8 = arith.maximumf %6, %7 : vector<8x128xf32>
    %c0_9 = arith.constant 0 : index
    %c0_10 = arith.constant 0 : index
    %9 = vector.load %arg4[%c0_9, %c0_10] : memref<8x72xbf16, #tpu.memory_space<vmem>>, vector<8x72xbf16>
    %c0_11 = arith.constant 0 : index
    %c128 = arith.constant 128 : index
    %10 = vector.load %arg13[%c0_11, %c128] : memref<8x384xf32, #tpu.memory_space<vmem>>, vector<8x128xf32>
    tpu.vector_store %arg13[%c0_11, %c128], %8 {strides = array<i32>} : memref<8x384xf32, #tpu.memory_space<vmem>>, vector<8x128xf32>,
    %c0_12 = arith.constant 0 : index
    %c123 = arith.constant 123 : index
    %11 = vector.load %arg13[%c0_12, %c123] : memref<8x384xf32, #tpu.memory_space<vmem>>, vector<8x128xf32>
    %c0_13 = arith.constant 0 : index
    %c124 = arith.constant 124 : index
    %12 = vector.load %arg13[%c0_13, %c124] : memref<8x384xf32, #tpu.memory_space<vmem>>, vector<8x128xf32>
    %c0_14 = arith.constant 0 : index
    %c125 = arith.constant 125 : index
    %13 = vector.load %arg13[%c0_14, %c125] : memref<8x384xf32, #tpu.memory_space<vmem>>, vector<8x128xf32>
    %c0_15 = arith.constant 0 : index
    %c127 = arith.constant 127 : index
    %14 = vector.load %arg13[%c0_15, %c127] : memref<8x384xf32, #tpu.memory_space<vmem>>, vector<8x128xf32>
    %c0_16 = arith.constant 0 : index
    %c128_17 = arith.constant 128 : index
    %15 = vector.load %arg13[%c0_16, %c128_17] : memref<8x384xf32, #tpu.memory_space<vmem>>, vector<8x128xf32>
    %c0_18 = arith.constant 0 : index
    %c129 = arith.constant 129 : index
    %16 = vector.load %arg13[%c0_18, %c129] : memref<8x384xf32, #tpu.memory_space<vmem>>, vector<8x128xf32>
    %c0_19 = arith.constant 0 : index
    %c131 = arith.constant 131 : index
    %17 = vector.load %arg13[%c0_19, %c131] : memref<8x384xf32, #tpu.memory_space<vmem>>, vector<8x128xf32>
    %c0_20 = arith.constant 0 : index
    %c132 = arith.constant 132 : index
    %18 = vector.load %arg13[%c0_20, %c132] : memref<8x384xf32, #tpu.memory_space<vmem>>, vector<8x128xf32>
    %c0_21 = arith.constant 0 : index
    %c133 = arith.constant 133 : index
    %19 = vector.load %arg13[%c0_21, %c133] : memref<8x384xf32, #tpu.memory_space<vmem>>, vector<8x128xf32>
    %20 = tpu.concatenate %11, %12, %13, %14, %15, %16, %17, %18, %19 in 0 : vector<8x128xf32>, vector<8x128xf32>, vector<8x128xf32>, vector<8x128xf32>, vector<8x128xf32>, vector<8x128xf32>, vector<8x128xf32>, vector<8x128xf32>, vector<8x128xf32> -> vector<72x128xf32>
    %21 = arith.truncf %20 : vector<72x128xf32> to vector<72x128xbf16>
    %cst_22 = arith.constant dense<0.000000e+00> : vector<8x128xf32>
    %22 = tpu.matmul %9, %21, %cst_22 {dimension_numbers = #tpu.dot_dimension_numbers<[1], [0], [0], [1], [0, 0, 1, 1], [], []>} : vector<8x72xbf16>, vector<72x128xbf16>, vector<8x128xf32> -> vector<8x128xf32>
    %c0_23 = arith.constant 0 : index
    %c0_24 = arith.constant 0 : index
    %23 = vector.load %arg2[%c0_23, %c0_24] : memref<8x128xf32, #tpu.memory_space<vmem>>, vector<8x128xf32>
    %c0_25 = arith.constant 0 : index
    %c0_26 = arith.constant 0 : index
    %24 = vector.load %arg5[%c0_25, %c0_26] : memref<8x72xbf16, #tpu.memory_space<vmem>>, vector<8x72xbf16>
    %c0_27 = arith.constant 0 : index
    %c128_28 = arith.constant 128 : index
    %25 = vector.load %arg13[%c0_27, %c128_28] : memref<8x384xf32, #tpu.memory_space<vmem>>, vector<8x128xf32>
    tpu.vector_store %arg13[%c0_27, %c128_28], %23 {strides = array<i32>} : memref<8x384xf32, #tpu.memory_space<vmem>>, vector<8x128xf32>,
    %c0_29 = arith.constant 0 : index
    %c123_30 = arith.constant 123 : index
    %26 = vector.load %arg13[%c0_29, %c123_30] : memref<8x384xf32, #tpu.memory_space<vmem>>, vector<8x128xf32>
    %c0_31 = arith.constant 0 : index
    %c124_32 = arith.constant 124 : index
    %27 = vector.load %arg13[%c0_31, %c124_32] : memref<8x384xf32, #tpu.memory_space<vmem>>, vector<8x128xf32>
    %c0_33 = arith.constant 0 : index
    %c125_34 = arith.constant 125 : index
    %28 = vector.load %arg13[%c0_33, %c125_34] : memref<8x384xf32, #tpu.memory_space<vmem>>, vector<8x128xf32>
    %c0_35 = arith.constant 0 : index
    %c127_36 = arith.constant 127 : index
    %29 = vector.load %arg13[%c0_35, %c127_36] : memref<8x384xf32, #tpu.memory_space<vmem>>, vector<8x128xf32>
    %c0_37 = arith.constant 0 : index
    %c128_38 = arith.constant 128 : index
    %30 = vector.load %arg13[%c0_37, %c128_38] : memref<8x384xf32, #tpu.memory_space<vmem>>, vector<8x128xf32>
    %c0_39 = arith.constant 0 : index
    %c129_40 = arith.constant 129 : index
    %31 = vector.load %arg13[%c0_39, %c129_40] : memref<8x384xf32, #tpu.memory_space<vmem>>, vector<8x128xf32>
    %c0_41 = arith.constant 0 : index
    %c131_42 = arith.constant 131 : index
    %32 = vector.load %arg13[%c0_41, %c131_42] : memref<8x384xf32, #tpu.memory_space<vmem>>, vector<8x128xf32>
    %c0_43 = arith.constant 0 : index
    %c132_44 = arith.constant 132 : index
    %33 = vector.load %arg13[%c0_43, %c132_44] : memref<8x384xf32, #tpu.memory_space<vmem>>, vector<8x128xf32>
    %c0_45 = arith.constant 0 : index
    %c133_46 = arith.constant 133 : index
    %34 = vector.load %arg13[%c0_45, %c133_46] : memref<8x384xf32, #tpu.memory_space<vmem>>, vector<8x128xf32>
    %35 = tpu.concatenate %26, %27, %28, %29, %30, %31, %32, %33, %34 in 0 : vector<8x128xf32>, vector<8x128xf32>, vector<8x128xf32>, vector<8x128xf32>, vector<8x128xf32>, vector<8x128xf32>, vector<8x128xf32>, vector<8x128xf32>, vector<8x128xf32> -> vector<72x128xf32>
    %36 = arith.truncf %35 : vector<72x128xf32> to vector<72x128xbf16>
    %cst_47 = arith.constant dense<0.000000e+00> : vector<8x128xf32>
    %37 = tpu.matmul %24, %36, %cst_47 {dimension_numbers = #tpu.dot_dimension_numbers<[1], [0], [0], [1], [0, 0, 1, 1], [], []>} : vector<8x72xbf16>, vector<72x128xbf16>, vector<8x128xf32> -> vector<8x128xf32>
    %38 = arith.addf %22, %37 : vector<8x128xf32>
    %c0_48 = arith.constant 0 : index
    %c0_49 = arith.constant 0 : index
    %39 = vector.load %arg6[%c0_48, %c0_49] : memref<8x1xf32, #tpu.memory_space<vmem>>, vector<8x1xf32>
    %40 = vector.broadcast %39 : vector<8x1xf32> to vector<8x128xf32>
    %41 = arith.addf %38, %40 : vector<8x128xf32>
    %cst_50 = arith.constant 0.000000e+00 : f32
    %42 = vector.broadcast %cst_50 : f32 to vector<8x128xf32>
    %43 = arith.maximumf %41, %42 : vector<8x128xf32>
    %44 = vector.broadcast %0 : vector<1x128xf32> to vector<8x128xf32>
    %45 = arith.mulf %43, %44 : vector<8x128xf32>
    %c0_51 = arith.constant 0 : index
    %c0_52 = arith.constant 0 : index
    %46 = vector.load %arg7[%c0_51, %c0_52] : memref<8x72xbf16, #tpu.memory_space<vmem>>, vector<8x72xbf16>
    %c0_53 = arith.constant 0 : index
    %c128_54 = arith.constant 128 : index
    %47 = vector.load %arg13[%c0_53, %c128_54] : memref<8x384xf32, #tpu.memory_space<vmem>>, vector<8x128xf32>
    tpu.vector_store %arg13[%c0_53, %c128_54], %45 {strides = array<i32>} : memref<8x384xf32, #tpu.memory_space<vmem>>, vector<8x128xf32>,
    %c0_55 = arith.constant 0 : index
    %c123_56 = arith.constant 123 : index
    %48 = vector.load %arg13[%c0_55, %c123_56] : memref<8x384xf32, #tpu.memory_space<vmem>>, vector<8x128xf32>
    %c0_57 = arith.constant 0 : index
    %c124_58 = arith.constant 124 : index
    %49 = vector.load %arg13[%c0_57, %c124_58] : memref<8x384xf32, #tpu.memory_space<vmem>>, vector<8x128xf32>
    %c0_59 = arith.constant 0 : index
    %c125_60 = arith.constant 125 : index
    %50 = vector.load %arg13[%c0_59, %c125_60] : memref<8x384xf32, #tpu.memory_space<vmem>>, vector<8x128xf32>
    %c0_61 = arith.constant 0 : index
    %c127_62 = arith.constant 127 : index
    %51 = vector.load %arg13[%c0_61, %c127_62] : memref<8x384xf32, #tpu.memory_space<vmem>>, vector<8x128xf32>
    %c0_63 = arith.constant 0 : index
    %c128_64 = arith.constant 128 : index
    %52 = vector.load %arg13[%c0_63, %c128_64] : memref<8x384xf32, #tpu.memory_space<vmem>>, vector<8x128xf32>
    %c0_65 = arith.constant 0 : index
    %c129_66 = arith.constant 129 : index
    %53 = vector.load %arg13[%c0_65, %c129_66] : memref<8x384xf32, #tpu.memory_space<vmem>>, vector<8x128xf32>
    %c0_67 = arith.constant 0 : index
    %c131_68 = arith.constant 131 : index
    %54 = vector.load %arg13[%c0_67, %c131_68] : memref<8x384xf32, #tpu.memory_space<vmem>>, vector<8x128xf32>
    %c0_69 = arith.constant 0 : index
    %c132_70 = arith.constant 132 : index
    %55 = vector.load %arg13[%c0_69, %c132_70] : memref<8x384xf32, #tpu.memory_space<vmem>>, vector<8x128xf32>
    %c0_71 = arith.constant 0 : index
    %c133_72 = arith.constant 133 : index
    %56 = vector.load %arg13[%c0_71, %c133_72] : memref<8x384xf32, #tpu.memory_space<vmem>>, vector<8x128xf32>
    %57 = tpu.concatenate %48, %49, %50, %51, %52, %53, %54, %55, %56 in 0 : vector<8x128xf32>, vector<8x128xf32>, vector<8x128xf32>, vector<8x128xf32>, vector<8x128xf32>, vector<8x128xf32>, vector<8x128xf32>, vector<8x128xf32>, vector<8x128xf32> -> vector<72x128xf32>
    %58 = arith.truncf %57 : vector<72x128xf32> to vector<72x128xbf16>
    %cst_73 = arith.constant dense<0.000000e+00> : vector<8x128xf32>
    %59 = tpu.matmul %46, %58, %cst_73 {dimension_numbers = #tpu.dot_dimension_numbers<[1], [0], [0], [1], [0, 0, 1, 1], [], []>} : vector<8x72xbf16>, vector<72x128xbf16>, vector<8x128xf32> -> vector<8x128xf32>
    %c0_74 = arith.constant 0 : index
    %c0_75 = arith.constant 0 : index
    %60 = vector.load %arg8[%c0_74, %c0_75] : memref<8x1xf32, #tpu.memory_space<vmem>>, vector<8x1xf32>
    %61 = vector.broadcast %60 : vector<8x1xf32> to vector<8x128xf32>
    %62 = arith.addf %59, %61 : vector<8x128xf32>
    %cst_76 = arith.constant 0.000000e+00 : f32
    %63 = vector.broadcast %cst_76 : f32 to vector<8x128xf32>
    %64 = arith.maximumf %62, %63 : vector<8x128xf32>
    %c0_77 = arith.constant 0 : index
    %c0_78 = arith.constant 0 : index
    %65 = vector.load %arg9[%c0_77, %c0_78] : memref<8x8xbf16, #tpu.memory_space<vmem>>, vector<8x8xbf16>
    %66 = arith.truncf %8 : vector<8x128xf32> to vector<8x128xbf16>
    %cst_79 = arith.constant dense<0.000000e+00> : vector<8x128xf32>
    %67 = tpu.matmul %65, %66, %cst_79 {dimension_numbers = #tpu.dot_dimension_numbers<[1], [0], [0], [1], [0, 0, 1, 1], [], []>} : vector<8x8xbf16>, vector<8x128xbf16>, vector<8x128xf32> -> vector<8x128xf32>
    %c0_80 = arith.constant 0 : index
    %c0_81 = arith.constant 0 : index
    %68 = vector.load %arg10[%c0_80, %c0_81] : memref<8x8xbf16, #tpu.memory_space<vmem>>, vector<8x8xbf16>
    %69 = arith.truncf %23 : vector<8x128xf32> to vector<8x128xbf16>
    %cst_82 = arith.constant dense<0.000000e+00> : vector<8x128xf32>
    %70 = tpu.matmul %68, %69, %cst_82 {dimension_numbers = #tpu.dot_dimension_numbers<[1], [0], [0], [1], [0, 0, 1, 1], [], []>} : vector<8x8xbf16>, vector<8x128xbf16>, vector<8x128xf32> -> vector<8x128xf32>
    %71 = arith.addf %67, %70 : vector<8x128xf32>
    %72 = arith.addf %64, %71 : vector<8x128xf32>
    %c0_83 = arith.constant 0 : index
    %c0_84 = arith.constant 0 : index
    %73 = vector.load %arg11[%c0_83, %c0_84] : memref<8x1xf32, #tpu.memory_space<vmem>>, vector<8x1xf32>
    %74 = vector.broadcast %73 : vector<8x1xf32> to vector<8x128xf32>
    %75 = arith.addf %72, %74 : vector<8x128xf32>
    %76 = vector.broadcast %0 : vector<1x128xf32> to vector<8x128xf32>
    %77 = arith.mulf %75, %76 : vector<8x128xf32>
    %c0_85 = arith.constant 0 : index
    %c0_86 = arith.constant 0 : index
    %78 = vector.load %arg12[%c0_85, %c0_86] : memref<8x128xf32, #tpu.memory_space<vmem>>, vector<8x128xf32>
    tpu.vector_store %arg12[%c0_85, %c0_86], %77 {strides = array<i32>} : memref<8x128xf32, #tpu.memory_space<vmem>>, vector<8x128xf32>,
    return
  }
}

module attributes {stable_mosaic.version = 11 : i64} {
  func.func @_resblock_kernel(%arg0: memref<8x128xf32, #tpu.memory_space<vmem>>, %arg1: memref<128x128xbf16, #tpu.memory_space<vmem>>, %arg2: memref<8x128xf32, #tpu.memory_space<vmem>>, %arg3: memref<1x128xf32, #tpu.memory_space<vmem>>, %arg4: memref<8x72xbf16, #tpu.memory_space<vmem>>, %arg5: memref<8x72xbf16, #tpu.memory_space<vmem>>, %arg6: memref<8x1xf32, #tpu.memory_space<vmem>>, %arg7: memref<8x72xbf16, #tpu.memory_space<vmem>>, %arg8: memref<8x1xf32, #tpu.memory_space<vmem>>, %arg9: memref<8x8xbf16, #tpu.memory_space<vmem>>, %arg10: memref<8x8xbf16, #tpu.memory_space<vmem>>, %arg11: memref<8x1xf32, #tpu.memory_space<vmem>>, %arg12: memref<8x128xf32, #tpu.memory_space<vmem>>, %arg13: memref<8x384xf32, #tpu.memory_space<vmem>>) attributes {dimension_semantics = [], scalar_prefetch = 0 : i64, scratch_operands = 1 : i64, tpu.core_type = #tpu.core_type<tc>} {
    %c0 = arith.constant 0 : index
    %c0_0 = arith.constant 0 : index
    %0 = vector.load %arg3[%c0, %c0_0] : memref<1x128xf32, #tpu.memory_space<vmem>>, vector<1x128xf32>
    %cst = arith.constant 0.000000e+00 : f32
    %1 = vector.broadcast %cst : f32 to vector<8x384xf32>
    %c0_1 = arith.constant 0 : index
    %c0_2 = arith.constant 0 : index
    %2 = vector.load %arg13[%c0_1, %c0_2] : memref<8x384xf32, #tpu.memory_space<vmem>>, vector<8x384xf32>
    tpu.vector_store %arg13[%c0_1, %c0_2], %1 {strides = array<i32>} : memref<8x384xf32, #tpu.memory_space<vmem>>, vector<8x384xf32>,
    %c0_3 = arith.constant 0 : index
    %c0_4 = arith.constant 0 : index
    %3 = vector.load %arg0[%c0_3, %c0_4] : memref<8x128xf32, #tpu.memory_space<vmem>>, vector<8x128xf32>
    %4 = arith.truncf %3 : vector<8x128xf32> to vector<8x128xbf16>
    %c0_5 = arith.constant 0 : index
    %c0_6 = arith.constant 0 : index
    %5 = vector.load %arg1[%c0_5, %c0_6] : memref<128x128xbf16, #tpu.memory_space<vmem>>, vector<128x128xbf16>
    %cst_7 = arith.constant dense<0.000000e+00> : vector<8x128xf32>
    %6 = tpu.matmul %4, %5, %cst_7 {dimension_numbers = #tpu.dot_dimension_numbers<[1], [0], [0], [1], [0, 0, 1, 1], [], []>} : vector<8x128xbf16>, vector<128x128xbf16>, vector<8x128xf32> -> vector<8x128xf32>
    %cst_8 = arith.constant 0.000000e+00 : f32
    %7 = vector.broadcast %cst_8 : f32 to vector<8x128xf32>
    %8 = arith.maximumf %6, %7 : vector<8x128xf32>
    %c0_9 = arith.constant 0 : index
    %c0_10 = arith.constant 0 : index
    %9 = vector.load %arg4[%c0_9, %c0_10] : memref<8x72xbf16, #tpu.memory_space<vmem>>, vector<8x72xbf16>
    %c0_11 = arith.constant 0 : index
    %c128 = arith.constant 128 : index
    %10 = vector.load %arg13[%c0_11, %c128] : memref<8x384xf32, #tpu.memory_space<vmem>>, vector<8x128xf32>
    tpu.vector_store %arg13[%c0_11, %c128], %8 {strides = array<i32>} : memref<8x384xf32, #tpu.memory_space<vmem>>, vector<8x128xf32>,
    %c0_12 = arith.constant 0 : index
    %c121 = arith.constant 121 : index
    %11 = vector.load %arg13[%c0_12, %c121] : memref<8x384xf32, #tpu.memory_space<vmem>>, vector<8x128xf32>
    %c0_13 = arith.constant 0 : index
    %c122 = arith.constant 122 : index
    %12 = vector.load %arg13[%c0_13, %c122] : memref<8x384xf32, #tpu.memory_space<vmem>>, vector<8x128xf32>
    %c0_14 = arith.constant 0 : index
    %c123 = arith.constant 123 : index
    %13 = vector.load %arg13[%c0_14, %c123] : memref<8x384xf32, #tpu.memory_space<vmem>>, vector<8x128xf32>
    %c0_15 = arith.constant 0 : index
    %c127 = arith.constant 127 : index
    %14 = vector.load %arg13[%c0_15, %c127] : memref<8x384xf32, #tpu.memory_space<vmem>>, vector<8x128xf32>
    %c0_16 = arith.constant 0 : index
    %c128_17 = arith.constant 128 : index
    %15 = vector.load %arg13[%c0_16, %c128_17] : memref<8x384xf32, #tpu.memory_space<vmem>>, vector<8x128xf32>
    %c0_18 = arith.constant 0 : index
    %c129 = arith.constant 129 : index
    %16 = vector.load %arg13[%c0_18, %c129] : memref<8x384xf32, #tpu.memory_space<vmem>>, vector<8x128xf32>
    %c0_19 = arith.constant 0 : index
    %c133 = arith.constant 133 : index
    %17 = vector.load %arg13[%c0_19, %c133] : memref<8x384xf32, #tpu.memory_space<vmem>>, vector<8x128xf32>
    %c0_20 = arith.constant 0 : index
    %c134 = arith.constant 134 : index
    %18 = vector.load %arg13[%c0_20, %c134] : memref<8x384xf32, #tpu.memory_space<vmem>>, vector<8x128xf32>
    %c0_21 = arith.constant 0 : index
    %c135 = arith.constant 135 : index
    %19 = vector.load %arg13[%c0_21, %c135] : memref<8x384xf32, #tpu.memory_space<vmem>>, vector<8x128xf32>
    %20 = tpu.concatenate %11, %12, %13, %14, %15, %16, %17, %18, %19 in 0 : vector<8x128xf32>, vector<8x128xf32>, vector<8x128xf32>, vector<8x128xf32>, vector<8x128xf32>, vector<8x128xf32>, vector<8x128xf32>, vector<8x128xf32>, vector<8x128xf32> -> vector<72x128xf32>
    %21 = arith.truncf %20 : vector<72x128xf32> to vector<72x128xbf16>
    %cst_22 = arith.constant dense<0.000000e+00> : vector<8x128xf32>
    %22 = tpu.matmul %9, %21, %cst_22 {dimension_numbers = #tpu.dot_dimension_numbers<[1], [0], [0], [1], [0, 0, 1, 1], [], []>} : vector<8x72xbf16>, vector<72x128xbf16>, vector<8x128xf32> -> vector<8x128xf32>
    %c0_23 = arith.constant 0 : index
    %c0_24 = arith.constant 0 : index
    %23 = vector.load %arg2[%c0_23, %c0_24] : memref<8x128xf32, #tpu.memory_space<vmem>>, vector<8x128xf32>
    %c0_25 = arith.constant 0 : index
    %c0_26 = arith.constant 0 : index
    %24 = vector.load %arg5[%c0_25, %c0_26] : memref<8x72xbf16, #tpu.memory_space<vmem>>, vector<8x72xbf16>
    %c0_27 = arith.constant 0 : index
    %c128_28 = arith.constant 128 : index
    %25 = vector.load %arg13[%c0_27, %c128_28] : memref<8x384xf32, #tpu.memory_space<vmem>>, vector<8x128xf32>
    tpu.vector_store %arg13[%c0_27, %c128_28], %23 {strides = array<i32>} : memref<8x384xf32, #tpu.memory_space<vmem>>, vector<8x128xf32>,
    %c0_29 = arith.constant 0 : index
    %c121_30 = arith.constant 121 : index
    %26 = vector.load %arg13[%c0_29, %c121_30] : memref<8x384xf32, #tpu.memory_space<vmem>>, vector<8x128xf32>
    %c0_31 = arith.constant 0 : index
    %c122_32 = arith.constant 122 : index
    %27 = vector.load %arg13[%c0_31, %c122_32] : memref<8x384xf32, #tpu.memory_space<vmem>>, vector<8x128xf32>
    %c0_33 = arith.constant 0 : index
    %c123_34 = arith.constant 123 : index
    %28 = vector.load %arg13[%c0_33, %c123_34] : memref<8x384xf32, #tpu.memory_space<vmem>>, vector<8x128xf32>
    %c0_35 = arith.constant 0 : index
    %c127_36 = arith.constant 127 : index
    %29 = vector.load %arg13[%c0_35, %c127_36] : memref<8x384xf32, #tpu.memory_space<vmem>>, vector<8x128xf32>
    %c0_37 = arith.constant 0 : index
    %c128_38 = arith.constant 128 : index
    %30 = vector.load %arg13[%c0_37, %c128_38] : memref<8x384xf32, #tpu.memory_space<vmem>>, vector<8x128xf32>
    %c0_39 = arith.constant 0 : index
    %c129_40 = arith.constant 129 : index
    %31 = vector.load %arg13[%c0_39, %c129_40] : memref<8x384xf32, #tpu.memory_space<vmem>>, vector<8x128xf32>
    %c0_41 = arith.constant 0 : index
    %c133_42 = arith.constant 133 : index
    %32 = vector.load %arg13[%c0_41, %c133_42] : memref<8x384xf32, #tpu.memory_space<vmem>>, vector<8x128xf32>
    %c0_43 = arith.constant 0 : index
    %c134_44 = arith.constant 134 : index
    %33 = vector.load %arg13[%c0_43, %c134_44] : memref<8x384xf32, #tpu.memory_space<vmem>>, vector<8x128xf32>
    %c0_45 = arith.constant 0 : index
    %c135_46 = arith.constant 135 : index
    %34 = vector.load %arg13[%c0_45, %c135_46] : memref<8x384xf32, #tpu.memory_space<vmem>>, vector<8x128xf32>
    %35 = tpu.concatenate %26, %27, %28, %29, %30, %31, %32, %33, %34 in 0 : vector<8x128xf32>, vector<8x128xf32>, vector<8x128xf32>, vector<8x128xf32>, vector<8x128xf32>, vector<8x128xf32>, vector<8x128xf32>, vector<8x128xf32>, vector<8x128xf32> -> vector<72x128xf32>
    %36 = arith.truncf %35 : vector<72x128xf32> to vector<72x128xbf16>
    %cst_47 = arith.constant dense<0.000000e+00> : vector<8x128xf32>
    %37 = tpu.matmul %24, %36, %cst_47 {dimension_numbers = #tpu.dot_dimension_numbers<[1], [0], [0], [1], [0, 0, 1, 1], [], []>} : vector<8x72xbf16>, vector<72x128xbf16>, vector<8x128xf32> -> vector<8x128xf32>
    %38 = arith.addf %22, %37 : vector<8x128xf32>
    %c0_48 = arith.constant 0 : index
    %c0_49 = arith.constant 0 : index
    %39 = vector.load %arg6[%c0_48, %c0_49] : memref<8x1xf32, #tpu.memory_space<vmem>>, vector<8x1xf32>
    %40 = vector.broadcast %39 : vector<8x1xf32> to vector<8x128xf32>
    %41 = arith.addf %38, %40 : vector<8x128xf32>
    %cst_50 = arith.constant 0.000000e+00 : f32
    %42 = vector.broadcast %cst_50 : f32 to vector<8x128xf32>
    %43 = arith.maximumf %41, %42 : vector<8x128xf32>
    %44 = vector.broadcast %0 : vector<1x128xf32> to vector<8x128xf32>
    %45 = arith.mulf %43, %44 : vector<8x128xf32>
    %c0_51 = arith.constant 0 : index
    %c0_52 = arith.constant 0 : index
    %46 = vector.load %arg7[%c0_51, %c0_52] : memref<8x72xbf16, #tpu.memory_space<vmem>>, vector<8x72xbf16>
    %c0_53 = arith.constant 0 : index
    %c128_54 = arith.constant 128 : index
    %47 = vector.load %arg13[%c0_53, %c128_54] : memref<8x384xf32, #tpu.memory_space<vmem>>, vector<8x128xf32>
    tpu.vector_store %arg13[%c0_53, %c128_54], %45 {strides = array<i32>} : memref<8x384xf32, #tpu.memory_space<vmem>>, vector<8x128xf32>,
    %c0_55 = arith.constant 0 : index
    %c121_56 = arith.constant 121 : index
    %48 = vector.load %arg13[%c0_55, %c121_56] : memref<8x384xf32, #tpu.memory_space<vmem>>, vector<8x128xf32>
    %c0_57 = arith.constant 0 : index
    %c122_58 = arith.constant 122 : index
    %49 = vector.load %arg13[%c0_57, %c122_58] : memref<8x384xf32, #tpu.memory_space<vmem>>, vector<8x128xf32>
    %c0_59 = arith.constant 0 : index
    %c123_60 = arith.constant 123 : index
    %50 = vector.load %arg13[%c0_59, %c123_60] : memref<8x384xf32, #tpu.memory_space<vmem>>, vector<8x128xf32>
    %c0_61 = arith.constant 0 : index
    %c127_62 = arith.constant 127 : index
    %51 = vector.load %arg13[%c0_61, %c127_62] : memref<8x384xf32, #tpu.memory_space<vmem>>, vector<8x128xf32>
    %c0_63 = arith.constant 0 : index
    %c128_64 = arith.constant 128 : index
    %52 = vector.load %arg13[%c0_63, %c128_64] : memref<8x384xf32, #tpu.memory_space<vmem>>, vector<8x128xf32>
    %c0_65 = arith.constant 0 : index
    %c129_66 = arith.constant 129 : index
    %53 = vector.load %arg13[%c0_65, %c129_66] : memref<8x384xf32, #tpu.memory_space<vmem>>, vector<8x128xf32>
    %c0_67 = arith.constant 0 : index
    %c133_68 = arith.constant 133 : index
    %54 = vector.load %arg13[%c0_67, %c133_68] : memref<8x384xf32, #tpu.memory_space<vmem>>, vector<8x128xf32>
    %c0_69 = arith.constant 0 : index
    %c134_70 = arith.constant 134 : index
    %55 = vector.load %arg13[%c0_69, %c134_70] : memref<8x384xf32, #tpu.memory_space<vmem>>, vector<8x128xf32>
    %c0_71 = arith.constant 0 : index
    %c135_72 = arith.constant 135 : index
    %56 = vector.load %arg13[%c0_71, %c135_72] : memref<8x384xf32, #tpu.memory_space<vmem>>, vector<8x128xf32>
    %57 = tpu.concatenate %48, %49, %50, %51, %52, %53, %54, %55, %56 in 0 : vector<8x128xf32>, vector<8x128xf32>, vector<8x128xf32>, vector<8x128xf32>, vector<8x128xf32>, vector<8x128xf32>, vector<8x128xf32>, vector<8x128xf32>, vector<8x128xf32> -> vector<72x128xf32>
    %58 = arith.truncf %57 : vector<72x128xf32> to vector<72x128xbf16>
    %cst_73 = arith.constant dense<0.000000e+00> : vector<8x128xf32>
    %59 = tpu.matmul %46, %58, %cst_73 {dimension_numbers = #tpu.dot_dimension_numbers<[1], [0], [0], [1], [0, 0, 1, 1], [], []>} : vector<8x72xbf16>, vector<72x128xbf16>, vector<8x128xf32> -> vector<8x128xf32>
    %c0_74 = arith.constant 0 : index
    %c0_75 = arith.constant 0 : index
    %60 = vector.load %arg8[%c0_74, %c0_75] : memref<8x1xf32, #tpu.memory_space<vmem>>, vector<8x1xf32>
    %61 = vector.broadcast %60 : vector<8x1xf32> to vector<8x128xf32>
    %62 = arith.addf %59, %61 : vector<8x128xf32>
    %cst_76 = arith.constant 0.000000e+00 : f32
    %63 = vector.broadcast %cst_76 : f32 to vector<8x128xf32>
    %64 = arith.maximumf %62, %63 : vector<8x128xf32>
    %c0_77 = arith.constant 0 : index
    %c0_78 = arith.constant 0 : index
    %65 = vector.load %arg9[%c0_77, %c0_78] : memref<8x8xbf16, #tpu.memory_space<vmem>>, vector<8x8xbf16>
    %66 = arith.truncf %8 : vector<8x128xf32> to vector<8x128xbf16>
    %cst_79 = arith.constant dense<0.000000e+00> : vector<8x128xf32>
    %67 = tpu.matmul %65, %66, %cst_79 {dimension_numbers = #tpu.dot_dimension_numbers<[1], [0], [0], [1], [0, 0, 1, 1], [], []>} : vector<8x8xbf16>, vector<8x128xbf16>, vector<8x128xf32> -> vector<8x128xf32>
    %c0_80 = arith.constant 0 : index
    %c0_81 = arith.constant 0 : index
    %68 = vector.load %arg10[%c0_80, %c0_81] : memref<8x8xbf16, #tpu.memory_space<vmem>>, vector<8x8xbf16>
    %69 = arith.truncf %23 : vector<8x128xf32> to vector<8x128xbf16>
    %cst_82 = arith.constant dense<0.000000e+00> : vector<8x128xf32>
    %70 = tpu.matmul %68, %69, %cst_82 {dimension_numbers = #tpu.dot_dimension_numbers<[1], [0], [0], [1], [0, 0, 1, 1], [], []>} : vector<8x8xbf16>, vector<8x128xbf16>, vector<8x128xf32> -> vector<8x128xf32>
    %71 = arith.addf %67, %70 : vector<8x128xf32>
    %72 = arith.addf %64, %71 : vector<8x128xf32>
    %c0_83 = arith.constant 0 : index
    %c0_84 = arith.constant 0 : index
    %73 = vector.load %arg11[%c0_83, %c0_84] : memref<8x1xf32, #tpu.memory_space<vmem>>, vector<8x1xf32>
    %74 = vector.broadcast %73 : vector<8x1xf32> to vector<8x128xf32>
    %75 = arith.addf %72, %74 : vector<8x128xf32>
    %76 = vector.broadcast %0 : vector<1x128xf32> to vector<8x128xf32>
    %77 = arith.mulf %75, %76 : vector<8x128xf32>
    %c0_85 = arith.constant 0 : index
    %c0_86 = arith.constant 0 : index
    %78 = vector.load %arg12[%c0_85, %c0_86] : memref<8x128xf32, #tpu.memory_space<vmem>>, vector<8x128xf32>
    tpu.vector_store %arg12[%c0_85, %c0_86], %77 {strides = array<i32>} : memref<8x128xf32, #tpu.memory_space<vmem>>, vector<8x128xf32>,
    return
  }
}

module attributes {stable_mosaic.version = 11 : i64} {
  func.func @_resblock_kernel(%arg0: memref<8x128xf32, #tpu.memory_space<vmem>>, %arg1: memref<128x256xbf16, #tpu.memory_space<vmem>>, %arg2: memref<8x256xf32, #tpu.memory_space<vmem>>, %arg3: memref<1x256xf32, #tpu.memory_space<vmem>>, %arg4: memref<8x72xbf16, #tpu.memory_space<vmem>>, %arg5: memref<8x72xbf16, #tpu.memory_space<vmem>>, %arg6: memref<8x1xf32, #tpu.memory_space<vmem>>, %arg7: memref<8x72xbf16, #tpu.memory_space<vmem>>, %arg8: memref<8x1xf32, #tpu.memory_space<vmem>>, %arg9: memref<8x8xbf16, #tpu.memory_space<vmem>>, %arg10: memref<8x8xbf16, #tpu.memory_space<vmem>>, %arg11: memref<8x1xf32, #tpu.memory_space<vmem>>, %arg12: memref<8x256xf32, #tpu.memory_space<vmem>>, %arg13: memref<8x512xf32, #tpu.memory_space<vmem>>) attributes {dimension_semantics = [], scalar_prefetch = 0 : i64, scratch_operands = 1 : i64, tpu.core_type = #tpu.core_type<tc>} {
    %c0 = arith.constant 0 : index
    %c0_0 = arith.constant 0 : index
    %0 = vector.load %arg3[%c0, %c0_0] : memref<1x256xf32, #tpu.memory_space<vmem>>, vector<1x256xf32>
    %cst = arith.constant 0.000000e+00 : f32
    %1 = vector.broadcast %cst : f32 to vector<8x512xf32>
    %c0_1 = arith.constant 0 : index
    %c0_2 = arith.constant 0 : index
    %2 = vector.load %arg13[%c0_1, %c0_2] : memref<8x512xf32, #tpu.memory_space<vmem>>, vector<8x512xf32>
    tpu.vector_store %arg13[%c0_1, %c0_2], %1 {strides = array<i32>} : memref<8x512xf32, #tpu.memory_space<vmem>>, vector<8x512xf32>,
    %c0_3 = arith.constant 0 : index
    %c0_4 = arith.constant 0 : index
    %3 = vector.load %arg0[%c0_3, %c0_4] : memref<8x128xf32, #tpu.memory_space<vmem>>, vector<8x128xf32>
    %4 = arith.truncf %3 : vector<8x128xf32> to vector<8x128xbf16>
    %c0_5 = arith.constant 0 : index
    %c0_6 = arith.constant 0 : index
    %5 = vector.load %arg1[%c0_5, %c0_6] : memref<128x256xbf16, #tpu.memory_space<vmem>>, vector<128x256xbf16>
    %cst_7 = arith.constant dense<0.000000e+00> : vector<8x256xf32>
    %6 = tpu.matmul %4, %5, %cst_7 {dimension_numbers = #tpu.dot_dimension_numbers<[1], [0], [0], [1], [0, 0, 1, 1], [], []>} : vector<8x128xbf16>, vector<128x256xbf16>, vector<8x256xf32> -> vector<8x256xf32>
    %cst_8 = arith.constant 0.000000e+00 : f32
    %7 = vector.broadcast %cst_8 : f32 to vector<8x256xf32>
    %8 = arith.maximumf %6, %7 : vector<8x256xf32>
    %c0_9 = arith.constant 0 : index
    %c0_10 = arith.constant 0 : index
    %9 = vector.load %arg4[%c0_9, %c0_10] : memref<8x72xbf16, #tpu.memory_space<vmem>>, vector<8x72xbf16>
    %c0_11 = arith.constant 0 : index
    %c128 = arith.constant 128 : index
    %10 = vector.load %arg13[%c0_11, %c128] : memref<8x512xf32, #tpu.memory_space<vmem>>, vector<8x256xf32>
    tpu.vector_store %arg13[%c0_11, %c128], %8 {strides = array<i32>} : memref<8x512xf32, #tpu.memory_space<vmem>>, vector<8x256xf32>,
    %c0_12 = arith.constant 0 : index
    %c117 = arith.constant 117 : index
    %11 = vector.load %arg13[%c0_12, %c117] : memref<8x512xf32, #tpu.memory_space<vmem>>, vector<8x256xf32>
    %c0_13 = arith.constant 0 : index
    %c118 = arith.constant 118 : index
    %12 = vector.load %arg13[%c0_13, %c118] : memref<8x512xf32, #tpu.memory_space<vmem>>, vector<8x256xf32>
    %c0_14 = arith.constant 0 : index
    %c119 = arith.constant 119 : index
    %13 = vector.load %arg13[%c0_14, %c119] : memref<8x512xf32, #tpu.memory_space<vmem>>, vector<8x256xf32>
    %c0_15 = arith.constant 0 : index
    %c127 = arith.constant 127 : index
    %14 = vector.load %arg13[%c0_15, %c127] : memref<8x512xf32, #tpu.memory_space<vmem>>, vector<8x256xf32>
    %c0_16 = arith.constant 0 : index
    %c128_17 = arith.constant 128 : index
    %15 = vector.load %arg13[%c0_16, %c128_17] : memref<8x512xf32, #tpu.memory_space<vmem>>, vector<8x256xf32>
    %c0_18 = arith.constant 0 : index
    %c129 = arith.constant 129 : index
    %16 = vector.load %arg13[%c0_18, %c129] : memref<8x512xf32, #tpu.memory_space<vmem>>, vector<8x256xf32>
    %c0_19 = arith.constant 0 : index
    %c137 = arith.constant 137 : index
    %17 = vector.load %arg13[%c0_19, %c137] : memref<8x512xf32, #tpu.memory_space<vmem>>, vector<8x256xf32>
    %c0_20 = arith.constant 0 : index
    %c138 = arith.constant 138 : index
    %18 = vector.load %arg13[%c0_20, %c138] : memref<8x512xf32, #tpu.memory_space<vmem>>, vector<8x256xf32>
    %c0_21 = arith.constant 0 : index
    %c139 = arith.constant 139 : index
    %19 = vector.load %arg13[%c0_21, %c139] : memref<8x512xf32, #tpu.memory_space<vmem>>, vector<8x256xf32>
    %20 = tpu.concatenate %11, %12, %13, %14, %15, %16, %17, %18, %19 in 0 : vector<8x256xf32>, vector<8x256xf32>, vector<8x256xf32>, vector<8x256xf32>, vector<8x256xf32>, vector<8x256xf32>, vector<8x256xf32>, vector<8x256xf32>, vector<8x256xf32> -> vector<72x256xf32>
    %21 = arith.truncf %20 : vector<72x256xf32> to vector<72x256xbf16>
    %cst_22 = arith.constant dense<0.000000e+00> : vector<8x256xf32>
    %22 = tpu.matmul %9, %21, %cst_22 {dimension_numbers = #tpu.dot_dimension_numbers<[1], [0], [0], [1], [0, 0, 1, 1], [], []>} : vector<8x72xbf16>, vector<72x256xbf16>, vector<8x256xf32> -> vector<8x256xf32>
    %c0_23 = arith.constant 0 : index
    %c0_24 = arith.constant 0 : index
    %23 = vector.load %arg2[%c0_23, %c0_24] : memref<8x256xf32, #tpu.memory_space<vmem>>, vector<8x256xf32>
    %c0_25 = arith.constant 0 : index
    %c0_26 = arith.constant 0 : index
    %24 = vector.load %arg5[%c0_25, %c0_26] : memref<8x72xbf16, #tpu.memory_space<vmem>>, vector<8x72xbf16>
    %c0_27 = arith.constant 0 : index
    %c128_28 = arith.constant 128 : index
    %25 = vector.load %arg13[%c0_27, %c128_28] : memref<8x512xf32, #tpu.memory_space<vmem>>, vector<8x256xf32>
    tpu.vector_store %arg13[%c0_27, %c128_28], %23 {strides = array<i32>} : memref<8x512xf32, #tpu.memory_space<vmem>>, vector<8x256xf32>,
    %c0_29 = arith.constant 0 : index
    %c117_30 = arith.constant 117 : index
    %26 = vector.load %arg13[%c0_29, %c117_30] : memref<8x512xf32, #tpu.memory_space<vmem>>, vector<8x256xf32>
    %c0_31 = arith.constant 0 : index
    %c118_32 = arith.constant 118 : index
    %27 = vector.load %arg13[%c0_31, %c118_32] : memref<8x512xf32, #tpu.memory_space<vmem>>, vector<8x256xf32>
    %c0_33 = arith.constant 0 : index
    %c119_34 = arith.constant 119 : index
    %28 = vector.load %arg13[%c0_33, %c119_34] : memref<8x512xf32, #tpu.memory_space<vmem>>, vector<8x256xf32>
    %c0_35 = arith.constant 0 : index
    %c127_36 = arith.constant 127 : index
    %29 = vector.load %arg13[%c0_35, %c127_36] : memref<8x512xf32, #tpu.memory_space<vmem>>, vector<8x256xf32>
    %c0_37 = arith.constant 0 : index
    %c128_38 = arith.constant 128 : index
    %30 = vector.load %arg13[%c0_37, %c128_38] : memref<8x512xf32, #tpu.memory_space<vmem>>, vector<8x256xf32>
    %c0_39 = arith.constant 0 : index
    %c129_40 = arith.constant 129 : index
    %31 = vector.load %arg13[%c0_39, %c129_40] : memref<8x512xf32, #tpu.memory_space<vmem>>, vector<8x256xf32>
    %c0_41 = arith.constant 0 : index
    %c137_42 = arith.constant 137 : index
    %32 = vector.load %arg13[%c0_41, %c137_42] : memref<8x512xf32, #tpu.memory_space<vmem>>, vector<8x256xf32>
    %c0_43 = arith.constant 0 : index
    %c138_44 = arith.constant 138 : index
    %33 = vector.load %arg13[%c0_43, %c138_44] : memref<8x512xf32, #tpu.memory_space<vmem>>, vector<8x256xf32>
    %c0_45 = arith.constant 0 : index
    %c139_46 = arith.constant 139 : index
    %34 = vector.load %arg13[%c0_45, %c139_46] : memref<8x512xf32, #tpu.memory_space<vmem>>, vector<8x256xf32>
    %35 = tpu.concatenate %26, %27, %28, %29, %30, %31, %32, %33, %34 in 0 : vector<8x256xf32>, vector<8x256xf32>, vector<8x256xf32>, vector<8x256xf32>, vector<8x256xf32>, vector<8x256xf32>, vector<8x256xf32>, vector<8x256xf32>, vector<8x256xf32> -> vector<72x256xf32>
    %36 = arith.truncf %35 : vector<72x256xf32> to vector<72x256xbf16>
    %cst_47 = arith.constant dense<0.000000e+00> : vector<8x256xf32>
    %37 = tpu.matmul %24, %36, %cst_47 {dimension_numbers = #tpu.dot_dimension_numbers<[1], [0], [0], [1], [0, 0, 1, 1], [], []>} : vector<8x72xbf16>, vector<72x256xbf16>, vector<8x256xf32> -> vector<8x256xf32>
    %38 = arith.addf %22, %37 : vector<8x256xf32>
    %c0_48 = arith.constant 0 : index
    %c0_49 = arith.constant 0 : index
    %39 = vector.load %arg6[%c0_48, %c0_49] : memref<8x1xf32, #tpu.memory_space<vmem>>, vector<8x1xf32>
    %40 = vector.broadcast %39 : vector<8x1xf32> to vector<8x256xf32>
    %41 = arith.addf %38, %40 : vector<8x256xf32>
    %cst_50 = arith.constant 0.000000e+00 : f32
    %42 = vector.broadcast %cst_50 : f32 to vector<8x256xf32>
    %43 = arith.maximumf %41, %42 : vector<8x256xf32>
    %44 = vector.broadcast %0 : vector<1x256xf32> to vector<8x256xf32>
    %45 = arith.mulf %43, %44 : vector<8x256xf32>
    %c0_51 = arith.constant 0 : index
    %c0_52 = arith.constant 0 : index
    %46 = vector.load %arg7[%c0_51, %c0_52] : memref<8x72xbf16, #tpu.memory_space<vmem>>, vector<8x72xbf16>
    %c0_53 = arith.constant 0 : index
    %c128_54 = arith.constant 128 : index
    %47 = vector.load %arg13[%c0_53, %c128_54] : memref<8x512xf32, #tpu.memory_space<vmem>>, vector<8x256xf32>
    tpu.vector_store %arg13[%c0_53, %c128_54], %45 {strides = array<i32>} : memref<8x512xf32, #tpu.memory_space<vmem>>, vector<8x256xf32>,
    %c0_55 = arith.constant 0 : index
    %c117_56 = arith.constant 117 : index
    %48 = vector.load %arg13[%c0_55, %c117_56] : memref<8x512xf32, #tpu.memory_space<vmem>>, vector<8x256xf32>
    %c0_57 = arith.constant 0 : index
    %c118_58 = arith.constant 118 : index
    %49 = vector.load %arg13[%c0_57, %c118_58] : memref<8x512xf32, #tpu.memory_space<vmem>>, vector<8x256xf32>
    %c0_59 = arith.constant 0 : index
    %c119_60 = arith.constant 119 : index
    %50 = vector.load %arg13[%c0_59, %c119_60] : memref<8x512xf32, #tpu.memory_space<vmem>>, vector<8x256xf32>
    %c0_61 = arith.constant 0 : index
    %c127_62 = arith.constant 127 : index
    %51 = vector.load %arg13[%c0_61, %c127_62] : memref<8x512xf32, #tpu.memory_space<vmem>>, vector<8x256xf32>
    %c0_63 = arith.constant 0 : index
    %c128_64 = arith.constant 128 : index
    %52 = vector.load %arg13[%c0_63, %c128_64] : memref<8x512xf32, #tpu.memory_space<vmem>>, vector<8x256xf32>
    %c0_65 = arith.constant 0 : index
    %c129_66 = arith.constant 129 : index
    %53 = vector.load %arg13[%c0_65, %c129_66] : memref<8x512xf32, #tpu.memory_space<vmem>>, vector<8x256xf32>
    %c0_67 = arith.constant 0 : index
    %c137_68 = arith.constant 137 : index
    %54 = vector.load %arg13[%c0_67, %c137_68] : memref<8x512xf32, #tpu.memory_space<vmem>>, vector<8x256xf32>
    %c0_69 = arith.constant 0 : index
    %c138_70 = arith.constant 138 : index
    %55 = vector.load %arg13[%c0_69, %c138_70] : memref<8x512xf32, #tpu.memory_space<vmem>>, vector<8x256xf32>
    %c0_71 = arith.constant 0 : index
    %c139_72 = arith.constant 139 : index
    %56 = vector.load %arg13[%c0_71, %c139_72] : memref<8x512xf32, #tpu.memory_space<vmem>>, vector<8x256xf32>
    %57 = tpu.concatenate %48, %49, %50, %51, %52, %53, %54, %55, %56 in 0 : vector<8x256xf32>, vector<8x256xf32>, vector<8x256xf32>, vector<8x256xf32>, vector<8x256xf32>, vector<8x256xf32>, vector<8x256xf32>, vector<8x256xf32>, vector<8x256xf32> -> vector<72x256xf32>
    %58 = arith.truncf %57 : vector<72x256xf32> to vector<72x256xbf16>
    %cst_73 = arith.constant dense<0.000000e+00> : vector<8x256xf32>
    %59 = tpu.matmul %46, %58, %cst_73 {dimension_numbers = #tpu.dot_dimension_numbers<[1], [0], [0], [1], [0, 0, 1, 1], [], []>} : vector<8x72xbf16>, vector<72x256xbf16>, vector<8x256xf32> -> vector<8x256xf32>
    %c0_74 = arith.constant 0 : index
    %c0_75 = arith.constant 0 : index
    %60 = vector.load %arg8[%c0_74, %c0_75] : memref<8x1xf32, #tpu.memory_space<vmem>>, vector<8x1xf32>
    %61 = vector.broadcast %60 : vector<8x1xf32> to vector<8x256xf32>
    %62 = arith.addf %59, %61 : vector<8x256xf32>
    %cst_76 = arith.constant 0.000000e+00 : f32
    %63 = vector.broadcast %cst_76 : f32 to vector<8x256xf32>
    %64 = arith.maximumf %62, %63 : vector<8x256xf32>
    %c0_77 = arith.constant 0 : index
    %c0_78 = arith.constant 0 : index
    %65 = vector.load %arg9[%c0_77, %c0_78] : memref<8x8xbf16, #tpu.memory_space<vmem>>, vector<8x8xbf16>
    %66 = arith.truncf %8 : vector<8x256xf32> to vector<8x256xbf16>
    %cst_79 = arith.constant dense<0.000000e+00> : vector<8x256xf32>
    %67 = tpu.matmul %65, %66, %cst_79 {dimension_numbers = #tpu.dot_dimension_numbers<[1], [0], [0], [1], [0, 0, 1, 1], [], []>} : vector<8x8xbf16>, vector<8x256xbf16>, vector<8x256xf32> -> vector<8x256xf32>
    %c0_80 = arith.constant 0 : index
    %c0_81 = arith.constant 0 : index
    %68 = vector.load %arg10[%c0_80, %c0_81] : memref<8x8xbf16, #tpu.memory_space<vmem>>, vector<8x8xbf16>
    %69 = arith.truncf %23 : vector<8x256xf32> to vector<8x256xbf16>
    %cst_82 = arith.constant dense<0.000000e+00> : vector<8x256xf32>
    %70 = tpu.matmul %68, %69, %cst_82 {dimension_numbers = #tpu.dot_dimension_numbers<[1], [0], [0], [1], [0, 0, 1, 1], [], []>} : vector<8x8xbf16>, vector<8x256xbf16>, vector<8x256xf32> -> vector<8x256xf32>
    %71 = arith.addf %67, %70 : vector<8x256xf32>
    %72 = arith.addf %64, %71 : vector<8x256xf32>
    %c0_83 = arith.constant 0 : index
    %c0_84 = arith.constant 0 : index
    %73 = vector.load %arg11[%c0_83, %c0_84] : memref<8x1xf32, #tpu.memory_space<vmem>>, vector<8x1xf32>
    %74 = vector.broadcast %73 : vector<8x1xf32> to vector<8x256xf32>
    %75 = arith.addf %72, %74 : vector<8x256xf32>
    %76 = vector.broadcast %0 : vector<1x256xf32> to vector<8x256xf32>
    %77 = arith.mulf %75, %76 : vector<8x256xf32>
    %c0_85 = arith.constant 0 : index
    %c0_86 = arith.constant 0 : index
    %78 = vector.load %arg12[%c0_85, %c0_86] : memref<8x256xf32, #tpu.memory_space<vmem>>, vector<8x256xf32>
    tpu.vector_store %arg12[%c0_85, %c0_86], %77 {strides = array<i32>} : memref<8x256xf32, #tpu.memory_space<vmem>>, vector<8x256xf32>,
    return
  }
}

module attributes {stable_mosaic.version = 11 : i64} {
  func.func @_resblock_kernel(%arg0: memref<8x256xf32, #tpu.memory_space<vmem>>, %arg1: memref<256x768xbf16, #tpu.memory_space<vmem>>, %arg2: memref<8x768xf32, #tpu.memory_space<vmem>>, %arg3: memref<1x768xf32, #tpu.memory_space<vmem>>, %arg4: memref<8x72xbf16, #tpu.memory_space<vmem>>, %arg5: memref<8x72xbf16, #tpu.memory_space<vmem>>, %arg6: memref<8x1xf32, #tpu.memory_space<vmem>>, %arg7: memref<8x72xbf16, #tpu.memory_space<vmem>>, %arg8: memref<8x1xf32, #tpu.memory_space<vmem>>, %arg9: memref<8x8xbf16, #tpu.memory_space<vmem>>, %arg10: memref<8x8xbf16, #tpu.memory_space<vmem>>, %arg11: memref<8x1xf32, #tpu.memory_space<vmem>>, %arg12: memref<2x8xbf16, #tpu.memory_space<vmem>>, %arg13: memref<2x1xf32, #tpu.memory_space<vmem>>, %arg14: memref<2x768xf32, #tpu.memory_space<vmem>>, %arg15: memref<8x1024xf32, #tpu.memory_space<vmem>>) attributes {dimension_semantics = [], scalar_prefetch = 0 : i64, scratch_operands = 1 : i64, tpu.core_type = #tpu.core_type<tc>} {
    %c0 = arith.constant 0 : index
    %c0_0 = arith.constant 0 : index
    %0 = vector.load %arg3[%c0, %c0_0] : memref<1x768xf32, #tpu.memory_space<vmem>>, vector<1x768xf32>
    %cst = arith.constant 0.000000e+00 : f32
    %1 = vector.broadcast %cst : f32 to vector<8x1024xf32>
    %c0_1 = arith.constant 0 : index
    %c0_2 = arith.constant 0 : index
    %2 = vector.load %arg15[%c0_1, %c0_2] : memref<8x1024xf32, #tpu.memory_space<vmem>>, vector<8x1024xf32>
    tpu.vector_store %arg15[%c0_1, %c0_2], %1 {strides = array<i32>} : memref<8x1024xf32, #tpu.memory_space<vmem>>, vector<8x1024xf32>,
    %c0_3 = arith.constant 0 : index
    %c0_4 = arith.constant 0 : index
    %3 = vector.load %arg0[%c0_3, %c0_4] : memref<8x256xf32, #tpu.memory_space<vmem>>, vector<8x256xf32>
    %4 = arith.truncf %3 : vector<8x256xf32> to vector<8x256xbf16>
    %c0_5 = arith.constant 0 : index
    %c0_6 = arith.constant 0 : index
    %5 = vector.load %arg1[%c0_5, %c0_6] : memref<256x768xbf16, #tpu.memory_space<vmem>>, vector<256x768xbf16>
    %cst_7 = arith.constant dense<0.000000e+00> : vector<8x768xf32>
    %6 = tpu.matmul %4, %5, %cst_7 {dimension_numbers = #tpu.dot_dimension_numbers<[1], [0], [0], [1], [0, 0, 1, 1], [], []>} : vector<8x256xbf16>, vector<256x768xbf16>, vector<8x768xf32> -> vector<8x768xf32>
    %cst_8 = arith.constant 0.000000e+00 : f32
    %7 = vector.broadcast %cst_8 : f32 to vector<8x768xf32>
    %8 = arith.maximumf %6, %7 : vector<8x768xf32>
    %c0_9 = arith.constant 0 : index
    %c0_10 = arith.constant 0 : index
    %9 = vector.load %arg4[%c0_9, %c0_10] : memref<8x72xbf16, #tpu.memory_space<vmem>>, vector<8x72xbf16>
    %c0_11 = arith.constant 0 : index
    %c128 = arith.constant 128 : index
    %10 = vector.load %arg15[%c0_11, %c128] : memref<8x1024xf32, #tpu.memory_space<vmem>>, vector<8x768xf32>
    tpu.vector_store %arg15[%c0_11, %c128], %8 {strides = array<i32>} : memref<8x1024xf32, #tpu.memory_space<vmem>>, vector<8x768xf32>,
    %c0_12 = arith.constant 0 : index
    %c109 = arith.constant 109 : index
    %11 = vector.load %arg15[%c0_12, %c109] : memref<8x1024xf32, #tpu.memory_space<vmem>>, vector<8x768xf32>
    %c0_13 = arith.constant 0 : index
    %c110 = arith.constant 110 : index
    %12 = vector.load %arg15[%c0_13, %c110] : memref<8x1024xf32, #tpu.memory_space<vmem>>, vector<8x768xf32>
    %c0_14 = arith.constant 0 : index
    %c111 = arith.constant 111 : index
    %13 = vector.load %arg15[%c0_14, %c111] : memref<8x1024xf32, #tpu.memory_space<vmem>>, vector<8x768xf32>
    %c0_15 = arith.constant 0 : index
    %c127 = arith.constant 127 : index
    %14 = vector.load %arg15[%c0_15, %c127] : memref<8x1024xf32, #tpu.memory_space<vmem>>, vector<8x768xf32>
    %c0_16 = arith.constant 0 : index
    %c128_17 = arith.constant 128 : index
    %15 = vector.load %arg15[%c0_16, %c128_17] : memref<8x1024xf32, #tpu.memory_space<vmem>>, vector<8x768xf32>
    %c0_18 = arith.constant 0 : index
    %c129 = arith.constant 129 : index
    %16 = vector.load %arg15[%c0_18, %c129] : memref<8x1024xf32, #tpu.memory_space<vmem>>, vector<8x768xf32>
    %c0_19 = arith.constant 0 : index
    %c145 = arith.constant 145 : index
    %17 = vector.load %arg15[%c0_19, %c145] : memref<8x1024xf32, #tpu.memory_space<vmem>>, vector<8x768xf32>
    %c0_20 = arith.constant 0 : index
    %c146 = arith.constant 146 : index
    %18 = vector.load %arg15[%c0_20, %c146] : memref<8x1024xf32, #tpu.memory_space<vmem>>, vector<8x768xf32>
    %c0_21 = arith.constant 0 : index
    %c147 = arith.constant 147 : index
    %19 = vector.load %arg15[%c0_21, %c147] : memref<8x1024xf32, #tpu.memory_space<vmem>>, vector<8x768xf32>
    %20 = tpu.concatenate %11, %12, %13, %14, %15, %16, %17, %18, %19 in 0 : vector<8x768xf32>, vector<8x768xf32>, vector<8x768xf32>, vector<8x768xf32>, vector<8x768xf32>, vector<8x768xf32>, vector<8x768xf32>, vector<8x768xf32>, vector<8x768xf32> -> vector<72x768xf32>
    %21 = arith.truncf %20 : vector<72x768xf32> to vector<72x768xbf16>
    %cst_22 = arith.constant dense<0.000000e+00> : vector<8x768xf32>
    %22 = tpu.matmul %9, %21, %cst_22 {dimension_numbers = #tpu.dot_dimension_numbers<[1], [0], [0], [1], [0, 0, 1, 1], [], []>} : vector<8x72xbf16>, vector<72x768xbf16>, vector<8x768xf32> -> vector<8x768xf32>
    %c0_23 = arith.constant 0 : index
    %c0_24 = arith.constant 0 : index
    %23 = vector.load %arg2[%c0_23, %c0_24] : memref<8x768xf32, #tpu.memory_space<vmem>>, vector<8x768xf32>
    %c0_25 = arith.constant 0 : index
    %c0_26 = arith.constant 0 : index
    %24 = vector.load %arg5[%c0_25, %c0_26] : memref<8x72xbf16, #tpu.memory_space<vmem>>, vector<8x72xbf16>
    %c0_27 = arith.constant 0 : index
    %c128_28 = arith.constant 128 : index
    %25 = vector.load %arg15[%c0_27, %c128_28] : memref<8x1024xf32, #tpu.memory_space<vmem>>, vector<8x768xf32>
    tpu.vector_store %arg15[%c0_27, %c128_28], %23 {strides = array<i32>} : memref<8x1024xf32, #tpu.memory_space<vmem>>, vector<8x768xf32>,
    %c0_29 = arith.constant 0 : index
    %c109_30 = arith.constant 109 : index
    %26 = vector.load %arg15[%c0_29, %c109_30] : memref<8x1024xf32, #tpu.memory_space<vmem>>, vector<8x768xf32>
    %c0_31 = arith.constant 0 : index
    %c110_32 = arith.constant 110 : index
    %27 = vector.load %arg15[%c0_31, %c110_32] : memref<8x1024xf32, #tpu.memory_space<vmem>>, vector<8x768xf32>
    %c0_33 = arith.constant 0 : index
    %c111_34 = arith.constant 111 : index
    %28 = vector.load %arg15[%c0_33, %c111_34] : memref<8x1024xf32, #tpu.memory_space<vmem>>, vector<8x768xf32>
    %c0_35 = arith.constant 0 : index
    %c127_36 = arith.constant 127 : index
    %29 = vector.load %arg15[%c0_35, %c127_36] : memref<8x1024xf32, #tpu.memory_space<vmem>>, vector<8x768xf32>
    %c0_37 = arith.constant 0 : index
    %c128_38 = arith.constant 128 : index
    %30 = vector.load %arg15[%c0_37, %c128_38] : memref<8x1024xf32, #tpu.memory_space<vmem>>, vector<8x768xf32>
    %c0_39 = arith.constant 0 : index
    %c129_40 = arith.constant 129 : index
    %31 = vector.load %arg15[%c0_39, %c129_40] : memref<8x1024xf32, #tpu.memory_space<vmem>>, vector<8x768xf32>
    %c0_41 = arith.constant 0 : index
    %c145_42 = arith.constant 145 : index
    %32 = vector.load %arg15[%c0_41, %c145_42] : memref<8x1024xf32, #tpu.memory_space<vmem>>, vector<8x768xf32>
    %c0_43 = arith.constant 0 : index
    %c146_44 = arith.constant 146 : index
    %33 = vector.load %arg15[%c0_43, %c146_44] : memref<8x1024xf32, #tpu.memory_space<vmem>>, vector<8x768xf32>
    %c0_45 = arith.constant 0 : index
    %c147_46 = arith.constant 147 : index
    %34 = vector.load %arg15[%c0_45, %c147_46] : memref<8x1024xf32, #tpu.memory_space<vmem>>, vector<8x768xf32>
    %35 = tpu.concatenate %26, %27, %28, %29, %30, %31, %32, %33, %34 in 0 : vector<8x768xf32>, vector<8x768xf32>, vector<8x768xf32>, vector<8x768xf32>, vector<8x768xf32>, vector<8x768xf32>, vector<8x768xf32>, vector<8x768xf32>, vector<8x768xf32> -> vector<72x768xf32>
    %36 = arith.truncf %35 : vector<72x768xf32> to vector<72x768xbf16>
    %cst_47 = arith.constant dense<0.000000e+00> : vector<8x768xf32>
    %37 = tpu.matmul %24, %36, %cst_47 {dimension_numbers = #tpu.dot_dimension_numbers<[1], [0], [0], [1], [0, 0, 1, 1], [], []>} : vector<8x72xbf16>, vector<72x768xbf16>, vector<8x768xf32> -> vector<8x768xf32>
    %38 = arith.addf %22, %37 : vector<8x768xf32>
    %c0_48 = arith.constant 0 : index
    %c0_49 = arith.constant 0 : index
    %39 = vector.load %arg6[%c0_48, %c0_49] : memref<8x1xf32, #tpu.memory_space<vmem>>, vector<8x1xf32>
    %40 = vector.broadcast %39 : vector<8x1xf32> to vector<8x768xf32>
    %41 = arith.addf %38, %40 : vector<8x768xf32>
    %cst_50 = arith.constant 0.000000e+00 : f32
    %42 = vector.broadcast %cst_50 : f32 to vector<8x768xf32>
    %43 = arith.maximumf %41, %42 : vector<8x768xf32>
    %44 = vector.broadcast %0 : vector<1x768xf32> to vector<8x768xf32>
    %45 = arith.mulf %43, %44 : vector<8x768xf32>
    %c0_51 = arith.constant 0 : index
    %c0_52 = arith.constant 0 : index
    %46 = vector.load %arg7[%c0_51, %c0_52] : memref<8x72xbf16, #tpu.memory_space<vmem>>, vector<8x72xbf16>
    %c0_53 = arith.constant 0 : index
    %c128_54 = arith.constant 128 : index
    %47 = vector.load %arg15[%c0_53, %c128_54] : memref<8x1024xf32, #tpu.memory_space<vmem>>, vector<8x768xf32>
    tpu.vector_store %arg15[%c0_53, %c128_54], %45 {strides = array<i32>} : memref<8x1024xf32, #tpu.memory_space<vmem>>, vector<8x768xf32>,
    %c0_55 = arith.constant 0 : index
    %c109_56 = arith.constant 109 : index
    %48 = vector.load %arg15[%c0_55, %c109_56] : memref<8x1024xf32, #tpu.memory_space<vmem>>, vector<8x768xf32>
    %c0_57 = arith.constant 0 : index
    %c110_58 = arith.constant 110 : index
    %49 = vector.load %arg15[%c0_57, %c110_58] : memref<8x1024xf32, #tpu.memory_space<vmem>>, vector<8x768xf32>
    %c0_59 = arith.constant 0 : index
    %c111_60 = arith.constant 111 : index
    %50 = vector.load %arg15[%c0_59, %c111_60] : memref<8x1024xf32, #tpu.memory_space<vmem>>, vector<8x768xf32>
    %c0_61 = arith.constant 0 : index
    %c127_62 = arith.constant 127 : index
    %51 = vector.load %arg15[%c0_61, %c127_62] : memref<8x1024xf32, #tpu.memory_space<vmem>>, vector<8x768xf32>
    %c0_63 = arith.constant 0 : index
    %c128_64 = arith.constant 128 : index
    %52 = vector.load %arg15[%c0_63, %c128_64] : memref<8x1024xf32, #tpu.memory_space<vmem>>, vector<8x768xf32>
    %c0_65 = arith.constant 0 : index
    %c129_66 = arith.constant 129 : index
    %53 = vector.load %arg15[%c0_65, %c129_66] : memref<8x1024xf32, #tpu.memory_space<vmem>>, vector<8x768xf32>
    %c0_67 = arith.constant 0 : index
    %c145_68 = arith.constant 145 : index
    %54 = vector.load %arg15[%c0_67, %c145_68] : memref<8x1024xf32, #tpu.memory_space<vmem>>, vector<8x768xf32>
    %c0_69 = arith.constant 0 : index
    %c146_70 = arith.constant 146 : index
    %55 = vector.load %arg15[%c0_69, %c146_70] : memref<8x1024xf32, #tpu.memory_space<vmem>>, vector<8x768xf32>
    %c0_71 = arith.constant 0 : index
    %c147_72 = arith.constant 147 : index
    %56 = vector.load %arg15[%c0_71, %c147_72] : memref<8x1024xf32, #tpu.memory_space<vmem>>, vector<8x768xf32>
    %57 = tpu.concatenate %48, %49, %50, %51, %52, %53, %54, %55, %56 in 0 : vector<8x768xf32>, vector<8x768xf32>, vector<8x768xf32>, vector<8x768xf32>, vector<8x768xf32>, vector<8x768xf32>, vector<8x768xf32>, vector<8x768xf32>, vector<8x768xf32> -> vector<72x768xf32>
    %58 = arith.truncf %57 : vector<72x768xf32> to vector<72x768xbf16>
    %cst_73 = arith.constant dense<0.000000e+00> : vector<8x768xf32>
    %59 = tpu.matmul %46, %58, %cst_73 {dimension_numbers = #tpu.dot_dimension_numbers<[1], [0], [0], [1], [0, 0, 1, 1], [], []>} : vector<8x72xbf16>, vector<72x768xbf16>, vector<8x768xf32> -> vector<8x768xf32>
    %c0_74 = arith.constant 0 : index
    %c0_75 = arith.constant 0 : index
    %60 = vector.load %arg8[%c0_74, %c0_75] : memref<8x1xf32, #tpu.memory_space<vmem>>, vector<8x1xf32>
    %61 = vector.broadcast %60 : vector<8x1xf32> to vector<8x768xf32>
    %62 = arith.addf %59, %61 : vector<8x768xf32>
    %cst_76 = arith.constant 0.000000e+00 : f32
    %63 = vector.broadcast %cst_76 : f32 to vector<8x768xf32>
    %64 = arith.maximumf %62, %63 : vector<8x768xf32>
    %c0_77 = arith.constant 0 : index
    %c0_78 = arith.constant 0 : index
    %65 = vector.load %arg9[%c0_77, %c0_78] : memref<8x8xbf16, #tpu.memory_space<vmem>>, vector<8x8xbf16>
    %66 = arith.truncf %8 : vector<8x768xf32> to vector<8x768xbf16>
    %cst_79 = arith.constant dense<0.000000e+00> : vector<8x768xf32>
    %67 = tpu.matmul %65, %66, %cst_79 {dimension_numbers = #tpu.dot_dimension_numbers<[1], [0], [0], [1], [0, 0, 1, 1], [], []>} : vector<8x8xbf16>, vector<8x768xbf16>, vector<8x768xf32> -> vector<8x768xf32>
    %c0_80 = arith.constant 0 : index
    %c0_81 = arith.constant 0 : index
    %68 = vector.load %arg10[%c0_80, %c0_81] : memref<8x8xbf16, #tpu.memory_space<vmem>>, vector<8x8xbf16>
    %69 = arith.truncf %23 : vector<8x768xf32> to vector<8x768xbf16>
    %cst_82 = arith.constant dense<0.000000e+00> : vector<8x768xf32>
    %70 = tpu.matmul %68, %69, %cst_82 {dimension_numbers = #tpu.dot_dimension_numbers<[1], [0], [0], [1], [0, 0, 1, 1], [], []>} : vector<8x8xbf16>, vector<8x768xbf16>, vector<8x768xf32> -> vector<8x768xf32>
    %71 = arith.addf %67, %70 : vector<8x768xf32>
    %72 = arith.addf %64, %71 : vector<8x768xf32>
    %c0_83 = arith.constant 0 : index
    %c0_84 = arith.constant 0 : index
    %73 = vector.load %arg11[%c0_83, %c0_84] : memref<8x1xf32, #tpu.memory_space<vmem>>, vector<8x1xf32>
    %74 = vector.broadcast %73 : vector<8x1xf32> to vector<8x768xf32>
    %75 = arith.addf %72, %74 : vector<8x768xf32>
    %c0_85 = arith.constant 0 : index
    %c0_86 = arith.constant 0 : index
    %76 = vector.load %arg12[%c0_85, %c0_86] : memref<2x8xbf16, #tpu.memory_space<vmem>>, vector<2x8xbf16>
    %77 = arith.truncf %75 : vector<8x768xf32> to vector<8x768xbf16>
    %cst_87 = arith.constant dense<0.000000e+00> : vector<2x768xf32>
    %78 = tpu.matmul %76, %77, %cst_87 {dimension_numbers = #tpu.dot_dimension_numbers<[1], [0], [0], [1], [0, 0, 1, 1], [], []>} : vector<2x8xbf16>, vector<8x768xbf16>, vector<2x768xf32> -> vector<2x768xf32>
    %c0_88 = arith.constant 0 : index
    %c0_89 = arith.constant 0 : index
    %79 = vector.load %arg13[%c0_88, %c0_89] : memref<2x1xf32, #tpu.memory_space<vmem>>, vector<2x1xf32>
    %80 = vector.broadcast %79 : vector<2x1xf32> to vector<2x768xf32>
    %81 = arith.addf %78, %80 : vector<2x768xf32>
    %cst_90 = arith.constant 0.000000e+00 : f32
    %82 = vector.broadcast %cst_90 : f32 to vector<2x768xf32>
    %83 = arith.maximumf %81, %82 : vector<2x768xf32>
    %84 = vector.broadcast %0 : vector<1x768xf32> to vector<2x768xf32>
    %85 = arith.mulf %83, %84 : vector<2x768xf32>
    %c0_91 = arith.constant 0 : index
    %c0_92 = arith.constant 0 : index
    %86 = vector.load %arg14[%c0_91, %c0_92] : memref<2x768xf32, #tpu.memory_space<vmem>>, vector<2x768xf32>
    tpu.vector_store %arg14[%c0_91, %c0_92], %85 {strides = array<i32>} : memref<2x768xf32, #tpu.memory_space<vmem>>, vector<2x768xf32>,
    return
  }
}

</mosaic_0001>

<llo_original>
// kernel: resunet_forward.11
$region0: #{resunet_forward.11}
  #allocation0 [shape = 'u32[]', space=smem, size = 0x4, offset = 0x4, fixed_abs, tag = 'smem constant byte address 0x4 - core index']
  #allocation1 [shape = 'u32[144,128]{1,0:T(1,128)}', space=vmem, size = 0x12000, scoped, tag = 'internal scratch']
  #allocation2 [shape = 'f32[8,512]{1,0:T(8,128)}', space=vmem, size = 0x4000, scoped, tag = 'scratch operand']
  %s0 = inlined_call_operand.vmem [shape: f32[8,256], index: 0, kind: input, shape index: {}]
  %s1 = inlined_call_operand.vmem [shape: bf16[256,128], index: 1, kind: input, shape index: {}]
  %s2 = inlined_call_operand.vmem [shape: f32[1,128], index: 2, kind: input, shape index: {}]
  %s3 = inlined_call_operand.vmem [shape: bf16[8,72], index: 3, kind: input, shape index: {}]
  %s4 = inlined_call_operand.vmem [shape: f32[8,1], index: 4, kind: input, shape index: {}]
  %s5 = inlined_call_operand.vmem [shape: bf16[8,72], index: 5, kind: input, shape index: {}]
  %s6 = inlined_call_operand.vmem [shape: f32[8,1], index: 6, kind: input, shape index: {}]
  %s7 = inlined_call_operand.vmem [shape: f32[8,128], index: 7, kind: output, shape index: {}]
  %s8 = sld [smem:[#allocation0]]
  $region38: #{resunet_forward.11} parent=0
    _
  %s10 = ssub.s32 1, %s8
  %s11 = scalar_select 0, %s10, %s8
  // Predicated region
  $region2: #{resunet_forward.11} parent=0 // pred_check
    _
  $region3: #{resunet_forward.11} parent=0 // pred_check_branch
    %13 = sbr.rel (0) target = $region5
  $region4: #{resunet_forward.11} parent=0 // pred_region
    _
  $region5: #{resunet_forward.11} parent=0 // pred_fallthru
    _
  // Predicated region
  $region6: #{resunet_forward.11} parent=0 // pred_check
    _
  $region7: #{resunet_forward.11} parent=0 // pred_check_branch
    %15 = sbr.rel (0) target = $region9
  $region8: #{resunet_forward.11} parent=0 // pred_region
    _
  $region9: #{resunet_forward.11} parent=0 // pred_fallthru
    _
  // Predicated region
  $region10: #{resunet_forward.11} parent=0 // pred_check
    _
  $region11: #{resunet_forward.11} parent=0 // pred_check_branch
    %17 = sbr.rel (0) target = $region13
  $region12: #{resunet_forward.11} parent=0 // pred_region
    _
  $region13: #{resunet_forward.11} parent=0 // pred_fallthru
    _
  // Predicated region
  $region14: #{resunet_forward.11} parent=0 // pred_check
    _
  $region15: #{resunet_forward.11} parent=0 // pred_check_branch
    %19 = sbr.rel (0) target = $region17
  $region16: #{resunet_forward.11} parent=0 // pred_region
    _
  $region17: #{resunet_forward.11} parent=0 // pred_fallthru
    _
  // Predicated region
  $region18: #{resunet_forward.11} parent=0 // pred_check
    _
  $region19: #{resunet_forward.11} parent=0 // pred_check_branch
    %21 = sbr.rel (0) target = $region21
  $region20: #{resunet_forward.11} parent=0 // pred_region
    _
  $region21: #{resunet_forward.11} parent=0 // pred_fallthru
    _
  // Predicated region
  $region22: #{resunet_forward.11} parent=0 // pred_check
    _
  $region23: #{resunet_forward.11} parent=0 // pred_check_branch
    %23 = sbr.rel (0) target = $region25
  $region24: #{resunet_forward.11} parent=0 // pred_region
    _
  $region25: #{resunet_forward.11} parent=0 // pred_fallthru
    _
  // Predicated region
  $region26: #{resunet_forward.11} parent=0 // pred_check
    _
  $region27: #{resunet_forward.11} parent=0 // pred_check_branch
    %25 = sbr.rel (0) target = $region29
  $region28: #{resunet_forward.11} parent=0 // pred_region
    _
  $region29: #{resunet_forward.11} parent=0 // pred_fallthru
    _
  %v27 = vld [vmem:[%s2] sm:$0x1]
  %28 = vst [vmem:[#allocation2] sm:$0xff] 0.0
  %29 = vst [vmem:[#allocation2 + $0x8] sm:$0xff] 0.0
  %30 = vst [vmem:[#allocation2 + $0x10] sm:$0xff] 0.0
  %31 = vst [vmem:[#allocation2 + $0x18] sm:$0xff] 0.0
  %v32 = vld [vmem:[%s0] sm:$0xff]
  %v33 = vld [vmem:[%s0 + $0x8] sm:$0xff]
  %34 = vst [vmem:[#allocation2 + $0x8] sm:$0xff] %v32
  %35 = vst [vmem:[#allocation2 + $0x10] sm:$0xff] %v33
  %v36 = vld [vmem:[#allocation2 + $0x8] sm:$0xff]
  %v37 = vld [vmem:[#allocation2 + $0x10] sm:$0xff]
  %v38 = vld [vmem:[#allocation2 + $0x18] sm:$0xff]
  %42 = vrot.lane.b32.xlu0 %v36, 127
  %v43 = vpop.permute.xlu0 %42
  %44 = vrot.lane.b32.xlu0 %v37, 127
  %v45 = vpop.permute.xlu0 %44
  %46 = vrot.lane.b32.xlu0 %v38, 127
  %v47 = vpop.permute.xlu0 %46
  %vm48 = vcmask 1039360
  %v49 = vsel %vm48, %v43, %v45
  %v50 = vsel %vm48, %v45, %v47
  %v53 = vmax.f32 %v32, %v49
  %v54 = vmax.f32 %v33, %v50
  %55 = vrot.lane.b32.xlu0 %v36, 118
  %v56 = vpop.permute.xlu0 %55
  %57 = vrot.lane.b32.xlu0 %v37, 118
  %v58 = vpop.permute.xlu0 %57
  %59 = vrot.lane.b32.xlu0 %v38, 118
  %v60 = vpop.permute.xlu0 %59
  %vm61 = vcmask 965632
  %v62 = vsel %vm61, %v56, %v58
  %v63 = vsel %vm61, %v58, %v60
  %v66 = vmax.f32 %v53, %v62
  %v67 = vmax.f32 %v54, %v63
  %68 = vrot.lane.b32.xlu0 %v36, 117
  %v69 = vpop.permute.xlu0 %68
  %70 = vrot.lane.b32.xlu0 %v37, 117
  %v71 = vpop.permute.xlu0 %70
  %72 = vrot.lane.b32.xlu0 %v38, 117
  %v73 = vpop.permute.xlu0 %72
  %vm74 = vcmask 957440
  %v75 = vsel %vm74, %v69, %v71
  %v76 = vsel %vm74, %v71, %v73
  %v79 = vmax.f32 %v66, %v75
  %v80 = vmax.f32 %v67, %v76
  %v81 = vmax.f32 %v79, 0.0
  %v82 = vmax.f32 %v80, 0.0
  %v83 = vpack.c.bf16 %v81, %v81
  %v84 = vpack.c.bf16 %v82, %v82
  %v85 = vld [vmem:[%s1] sm:$0xf]
  %v86 = vld [vmem:[%s1 + $0x4] sm:$0xf]
  %v87 = vld [vmem:[%s1 + $0x8] sm:$0xf]
  %v88 = vld [vmem:[%s1 + $0xc] sm:$0xf]
  %v89 = vld [vmem:[%s1 + $0x10] sm:$0xf]
  %v90 = vld [vmem:[%s1 + $0x14] sm:$0xf]
  %v91 = vld [vmem:[%s1 + $0x18] sm:$0xf]
  %v92 = vld [vmem:[%s1 + $0x1c] sm:$0xf]
  %v93 = vld [vmem:[%s1 + $0x20] sm:$0xf]
  %v94 = vld [vmem:[%s1 + $0x24] sm:$0xf]
  %v95 = vld [vmem:[%s1 + $0x28] sm:$0xf]
  %v96 = vld [vmem:[%s1 + $0x2c] sm:$0xf]
  %v97 = vld [vmem:[%s1 + $0x30] sm:$0xf]
  %v98 = vld [vmem:[%s1 + $0x34] sm:$0xf]
  %v99 = vld [vmem:[%s1 + $0x38] sm:$0xf]
  %v100 = vld [vmem:[%s1 + $0x3c] sm:$0xf]
  %v101 = vld [vmem:[%s1 + $0x40] sm:$0xf]
  %v102 = vld [vmem:[%s1 + $0x44] sm:$0xf]
  %v103 = vld [vmem:[%s1 + $0x48] sm:$0xf]
  %v104 = vld [vmem:[%s1 + $0x4c] sm:$0xf]
  %v105 = vld [vmem:[%s1 + $0x50] sm:$0xf]
  %v106 = vld [vmem:[%s1 + $0x54] sm:$0xf]
  %v107 = vld [vmem:[%s1 + $0x58] sm:$0xf]
  %v108 = vld [vmem:[%s1 + $0x5c] sm:$0xf]
  %v109 = vld [vmem:[%s1 + $0x60] sm:$0xf]
  %v110 = vld [vmem:[%s1 + $0x64] sm:$0xf]
  %v111 = vld [vmem:[%s1 + $0x68] sm:$0xf]
  %v112 = vld [vmem:[%s1 + $0x6c] sm:$0xf]
  %v113 = vld [vmem:[%s1 + $0x70] sm:$0xf]
  %v114 = vld [vmem:[%s1 + $0x74] sm:$0xf]
  %v115 = vld [vmem:[%s1 + $0x78] sm:$0xf]
  %v116 = vld [vmem:[%s1 + $0x7c] sm:$0xf]
  %v149 = vunpack.c.l.b16 %v85
  %v150 = vunpack.c.l.b16 %v86
  %v151 = vunpack.c.l.b16 %v87
  %v152 = vunpack.c.l.b16 %v88
  %v153 = vunpack.c.l.b16 %v89
  %v154 = vunpack.c.l.b16 %v90
  %v155 = vunpack.c.l.b16 %v91
  %v156 = vunpack.c.l.b16 %v92
  %v157 = vunpack.c.l.b16 %v93
  %v158 = vunpack.c.l.b16 %v94
  %v159 = vunpack.c.l.b16 %v95
  %v160 = vunpack.c.l.b16 %v96
  %v161 = vunpack.c.l.b16 %v97
  %v162 = vunpack.c.l.b16 %v98
  %v163 = vunpack.c.l.b16 %v99
  %v164 = vunpack.c.l.b16 %v100
  %v165 = vunpack.c.l.b16 %v101
  %v166 = vunpack.c.l.b16 %v102
  %v167 = vunpack.c.l.b16 %v103
  %v168 = vunpack.c.l.b16 %v104
  %v169 = vunpack.c.l.b16 %v105
  %v170 = vunpack.c.l.b16 %v106
  %v171 = vunpack.c.l.b16 %v107
  %v172 = vunpack.c.l.b16 %v108
  %v173 = vunpack.c.l.b16 %v109
  %v174 = vunpack.c.l.b16 %v110
  %v175 = vunpack.c.l.b16 %v111
  %v176 = vunpack.c.l.b16 %v112
  %v177 = vunpack.c.l.b16 %v113
  %v178 = vunpack.c.l.b16 %v114
  %v179 = vunpack.c.l.b16 %v115
  %v180 = vunpack.c.l.b16 %v116
  %v181 = vpack.c.b16 %v150, %v149
  %v182 = vpack.c.b16 %v152, %v151
  %v183 = vpack.c.b16 %v154, %v153
  %v184 = vpack.c.b16 %v156, %v155
  %v185 = vpack.c.b16 %v158, %v157
  %v186 = vpack.c.b16 %v160, %v159
  %v187 = vpack.c.b16 %v162, %v161
  %v188 = vpack.c.b16 %v164, %v163
  %v189 = vpack.c.b16 %v166, %v165
  %v190 = vpack.c.b16 %v168, %v167
  %v191 = vpack.c.b16 %v170, %v169
  %v192 = vpack.c.b16 %v172, %v171
  %v193 = vpack.c.b16 %v174, %v173
  %v194 = vpack.c.b16 %v176, %v175
  %v195 = vpack.c.b16 %v178, %v177
  %v196 = vpack.c.b16 %v180, %v179
  %213 = vmatprep.subr.bf16.mxu0 0
  %214 = vmatpush1.bf16.msra.mxu0 %v181
  %215 = vmatprep.subr.bf16.mxu0 0
  %216 = vmatpush1.bf16.msra.mxu0 %v182
  %217 = vmatprep.subr.bf16.mxu0 0
  %218 = vmatpush1.bf16.msra.mxu0 %v183
  %219 = vmatprep.subr.bf16.mxu0 0
  %220 = vmatpush1.bf16.msra.mxu0 %v184
  %221 = vmatprep.subr.bf16.mxu0 0
  %222 = vmatpush1.bf16.msra.mxu0 %v185
  %223 = vmatprep.subr.bf16.mxu0 0
  %224 = vmatpush1.bf16.msra.mxu0 %v186
  %225 = vmatprep.subr.bf16.mxu0 0
  %226 = vmatpush1.bf16.msra.mxu0 %v187
  %227 = vmatprep.subr.bf16.mxu0 0
  %228 = vmatpush1.bf16.msra.mxu0 %v188
  %229 = vmatprep.subr.bf16.mxu0 0
  %230 = vmatpush1.bf16.msra.mxu0 %v189
  %231 = vmatprep.subr.bf16.mxu0 0
  %232 = vmatpush1.bf16.msra.mxu0 %v190
  %233 = vmatprep.subr.bf16.mxu0 0
  %234 = vmatpush1.bf16.msra.mxu0 %v191
  %235 = vmatprep.subr.bf16.mxu0 0
  %236 = vmatpush1.bf16.msra.mxu0 %v192
  %237 = vmatprep.subr.bf16.mxu0 0
  %238 = vmatpush1.bf16.msra.mxu0 %v193
  %239 = vmatprep.subr.bf16.mxu0 0
  %240 = vmatpush1.bf16.msra.mxu0 %v194
  %241 = vmatprep.subr.bf16.mxu0 0
  %242 = vmatpush1.bf16.msra.mxu0 %v195
  %243 = vmatprep.subr.bf16.mxu0 0
  %244 = vmatpush1.bf16.msra.mxu0 %v196
  %245 = vmatprep.mubr.bf16.mxu0 %v84
  %246 = vmatmul.mubr.bf16.gmra.mrb[0].mxu0 %v83
  %v247 = vpop.f32.mrb[0].mxu0
  %v248 = vadd.f32 0.0, %v247
  %v249 = vpop.f32.mrb[0].mxu0
  %v250 = vpop.f32.mrb[0].mxu0
  %v251 = vpop.f32.mrb[0].mxu0
  %252 = vdwg.mxu0
  %v253 = vld [vmem:[%s3] sm:$0xf]
  %254 = vst [vmem:[#allocation2 + $0x8] sm:$0xff] %v248
  %v255 = vld [vmem:[#allocation2] sm:$0xff]
  %v256 = vld [vmem:[#allocation2 + $0x8] sm:$0xff]
  %v257 = vld [vmem:[#allocation2 + $0x10] sm:$0xff]
  %260 = vrot.lane.b32.xlu0 %v255, 127
  %v261 = vpop.permute.xlu0 %260
  %262 = vrot.lane.b32.xlu0 %v256, 127
  %v263 = vpop.permute.xlu0 %262
  %v264 = vsel %vm48, %v261, %v263
  %267 = vrot.lane.b32.xlu0 %v255, 126
  %v268 = vpop.permute.xlu0 %267
  %269 = vrot.lane.b32.xlu0 %v256, 126
  %v270 = vpop.permute.xlu0 %269
  %vm271 = vcmask 1031168
  %v272 = vsel %vm271, %v268, %v270
  %275 = vrot.lane.b32.xlu0 %v255, 122
  %v276 = vpop.permute.xlu0 %275
  %277 = vrot.lane.b32.xlu0 %v256, 122
  %v278 = vpop.permute.xlu0 %277
  %vm279 = vcmask 998400
  %v280 = vsel %vm279, %v276, %v278
  %283 = vrot.lane.b32.xlu0 %v256, 121
  %v284 = vpop.permute.xlu0 %283
  %287 = vrot.lane.b32.xlu0 %v256, 120
  %v288 = vpop.permute.xlu0 %287
  %289 = vrot.lane.b32.xlu0 %v257, 120
  %v290 = vpop.permute.xlu0 %289
  %vm291 = vcmask 982016
  %v292 = vsel %vm291, %v288, %v290
  %295 = vrot.lane.b32.xlu0 %v256, 116
  %v296 = vpop.permute.xlu0 %295
  %297 = vrot.lane.b32.xlu0 %v257, 116
  %v298 = vpop.permute.xlu0 %297
  %vm299 = vcmask 949248
  %v300 = vsel %vm299, %v296, %v298
  %303 = vrot.lane.b32.xlu0 %v256, 115
  %v304 = vpop.permute.xlu0 %303
  %305 = vrot.lane.b32.xlu0 %v257, 115
  %v306 = vpop.permute.xlu0 %305
  %vm307 = vcmask 941056
  %v308 = vsel %vm307, %v304, %v306
  %311 = vrot.lane.b32.xlu0 %v256, 114
  %v312 = vpop.permute.xlu0 %311
  %313 = vrot.lane.b32.xlu0 %v257, 114
  %v314 = vpop.permute.xlu0 %313
  %vm315 = vcmask 932864
  %v316 = vsel %vm315, %v312, %v314
  %v319 = vpack.c.bf16 %v264, %v255
  %v320 = vpack.c.bf16 %v263, %v256
  %v321 = vpack.c.bf16 %v280, %v272
  %v322 = vpack.c.bf16 %v278, %v270
  %v323 = vpack.c.bf16 %v288, %v284
  %v324 = vpack.c.bf16 %v292, %v284
  %v325 = vpack.c.bf16 %v304, %v296
  %v326 = vpack.c.bf16 %v308, %v300
  %v327 = vpack.c.bf16 %v312, %v312
  %v328 = vpack.c.bf16 %v316, %v316
  %v329 = vld [vmem:[%s4] sm:$0xff]
  %331 = vset.pattern.permute.xlu0 0
  %332 = vperm.xlu0 %331, %v329
  %v333 = vpop.permute.xlu0 %332
  %345 = vrot.lane.b32.xlu0 %v319, 7
  %v346 = vpop.permute.xlu0 %345
  %347 = vrot.lane.b32.xlu0 %v320, 7
  %v348 = vpop.permute.xlu0 %347
  %349 = vrot.lane.b32.xlu0 %v321, 7
  %v350 = vpop.permute.xlu0 %349
  %351 = vrot.lane.b32.xlu0 %v322, 7
  %v352 = vpop.permute.xlu0 %351
  %353 = vrot.lane.b32.xlu0 %v323, 7
  %v354 = vpop.permute.xlu0 %353
  %355 = vrot.lane.b32.xlu0 %v324, 7
  %v356 = vpop.permute.xlu0 %355
  %357 = vrot.lane.b32.xlu0 %v325, 7
  %v358 = vpop.permute.xlu0 %357
  %359 = vrot.lane.b32.xlu0 %v326, 7
  %v360 = vpop.permute.xlu0 %359
  %361 = vrot.lane.b32.xlu0 %v327, 7
  %v362 = vpop.permute.xlu0 %361
  %363 = vrot.lane.b32.xlu0 %v328, 7
  %v364 = vpop.permute.xlu0 %363
  %vm365 = vcmask 56320
  %v366 = vsel %vm365, %v346, %v348
  %v367 = vsel %vm365, %v350, %v352
  %v368 = vsel %vm365, %v354, %v356
  %v369 = vsel %vm365, %v358, %v360
  %v370 = vsel %vm365, %v362, %v364
  %vm375 = vcmask 588800
  %v377 = vsel %vm375, %v253, 0
  %vm379 = vcmask 1043456
  %v381 = vsel %vm379, %v370, 0
  %383 = vmatprep.subr.bf16.mxu0 0
  %384 = vmatpush1.bf16.msra.mxu0 %v366
  %385 = vmatprep.subr.bf16.mxu0 0
  %386 = vmatpush1.bf16.msra.mxu0 %v367
  %387 = vmatprep.subr.bf16.mxu0 0
  %388 = vmatpush1.bf16.msra.mxu0 %v368
  %389 = vmatprep.subr.bf16.mxu0 0
  %390 = vmatpush1.bf16.msra.mxu0 %v369
  %391 = vmatprep.subr.bf16.mxu0 0
  %392 = vmatpush1.bf16.msra.mxu0 %v381
  %393 = vmatprep.subr.bf16.mxu0 0
  %394 = vmatpush1.bf16.msra.mxu0 0
  %395 = vmatprep.subr.bf16.mxu0 0
  %396 = vmatpush1.bf16.msra.mxu0 0
  %397 = vmatprep.subr.bf16.mxu0 0
  %398 = vmatpush1.bf16.msra.mxu0 0
  %399 = vmatprep.subr.bf16.mxu0 0
  %400 = vmatpush1.bf16.msra.mxu0 0
  %401 = vmatprep.subr.bf16.mxu0 0
  %402 = vmatpush1.bf16.msra.mxu0 0
  %403 = vmatprep.subr.bf16.mxu0 0
  %404 = vmatpush1.bf16.msra.mxu0 0
  %405 = vmatprep.subr.bf16.mxu0 0
  %406 = vmatpush1.bf16.msra.mxu0 0
  %407 = vmatprep.subr.bf16.mxu0 0
  %408 = vmatpush1.bf16.msra.mxu0 0
  %409 = vmatprep.subr.bf16.mxu0 0
  %410 = vmatpush1.bf16.msra.mxu0 0
  %411 = vmatprep.subr.bf16.mxu0 0
  %412 = vmatpush1.bf16.msra.mxu0 0
  %413 = vmatprep.subr.bf16.mxu0 0
  %414 = vmatpush1.bf16.msra.mxu0 0
  %415 = vmatprep.mubr.bf16.mxu0 0
  %416 = vmatmul.mubr.bf16.gmra.mrb[0].mxu0 %v377
  %v417 = vpop.f32.mrb[0].mxu0
  %v418 = vadd.f32 %v333, %v417
  %v419 = vpop.f32.mrb[0].mxu0
  %v420 = vpop.f32.mrb[0].mxu0
  %v421 = vpop.f32.mrb[0].mxu0
  %422 = vdwg.mxu0
  %v423 = vmax.f32 %v418, 0.0
  %v425 = vlaneseq
  %v426 = vshrl.u32 %v425, 7
  %v427 = vsub.s32 0, %v426
  %v428 = vrot.slane %v27, %v427
  %v430 = vmul.f32 %v423, %v428
  %v431 = vld [vmem:[%s5] sm:$0xf]
  %432 = vst [vmem:[#allocation2 + $0x8] sm:$0xff] %v430
  %v433 = vld [vmem:[#allocation2] sm:$0xff]
  %v434 = vld [vmem:[#allocation2 + $0x8] sm:$0xff]
  %v435 = vld [vmem:[#allocation2 + $0x10] sm:$0xff]
  %438 = vrot.lane.b32.xlu0 %v433, 127
  %v439 = vpop.permute.xlu0 %438
  %440 = vrot.lane.b32.xlu0 %v434, 127
  %v441 = vpop.permute.xlu0 %440
  %v442 = vsel %vm48, %v439, %v441
  %445 = vrot.lane.b32.xlu0 %v433, 126
  %v446 = vpop.permute.xlu0 %445
  %447 = vrot.lane.b32.xlu0 %v434, 126
  %v448 = vpop.permute.xlu0 %447
  %v449 = vsel %vm271, %v446, %v448
  %452 = vrot.lane.b32.xlu0 %v433, 122
  %v453 = vpop.permute.xlu0 %452
  %454 = vrot.lane.b32.xlu0 %v434, 122
  %v455 = vpop.permute.xlu0 %454
  %v456 = vsel %vm279, %v453, %v455
  %459 = vrot.lane.b32.xlu0 %v434, 121
  %v460 = vpop.permute.xlu0 %459
  %463 = vrot.lane.b32.xlu0 %v434, 120
  %v464 = vpop.permute.xlu0 %463
  %465 = vrot.lane.b32.xlu0 %v435, 120
  %v466 = vpop.permute.xlu0 %465
  %v467 = vsel %vm291, %v464, %v466
  %470 = vrot.lane.b32.xlu0 %v434, 116
  %v471 = vpop.permute.xlu0 %470
  %472 = vrot.lane.b32.xlu0 %v435, 116
  %v473 = vpop.permute.xlu0 %472
  %v474 = vsel %vm299, %v471, %v473
  %477 = vrot.lane.b32.xlu0 %v434, 115
  %v478 = vpop.permute.xlu0 %477
  %479 = vrot.lane.b32.xlu0 %v435, 115
  %v480 = vpop.permute.xlu0 %479
  %v481 = vsel %vm307, %v478, %v480
  %484 = vrot.lane.b32.xlu0 %v434, 114
  %v485 = vpop.permute.xlu0 %484
  %486 = vrot.lane.b32.xlu0 %v435, 114
  %v487 = vpop.permute.xlu0 %486
  %v488 = vsel %vm315, %v485, %v487
  %v491 = vpack.c.bf16 %v442, %v433
  %v492 = vpack.c.bf16 %v441, %v434
  %v493 = vpack.c.bf16 %v456, %v449
  %v494 = vpack.c.bf16 %v455, %v448
  %v495 = vpack.c.bf16 %v464, %v460
  %v496 = vpack.c.bf16 %v467, %v460
  %v497 = vpack.c.bf16 %v478, %v471
  %v498 = vpack.c.bf16 %v481, %v474
  %v499 = vpack.c.bf16 %v485, %v485
  %v500 = vpack.c.bf16 %v488, %v488
  %v501 = vld [vmem:[%s6] sm:$0xff]
  %503 = vset.pattern.permute.xlu0 0
  %504 = vperm.xlu0 %503, %v501
  %v505 = vpop.permute.xlu0 %504
  %517 = vrot.lane.b32.xlu0 %v491, 7
  %v518 = vpop.permute.xlu0 %517
  %519 = vrot.lane.b32.xlu0 %v492, 7
  %v520 = vpop.permute.xlu0 %519
  %521 = vrot.lane.b32.xlu0 %v493, 7
  %v522 = vpop.permute.xlu0 %521
  %523 = vrot.lane.b32.xlu0 %v494, 7
  %v524 = vpop.permute.xlu0 %523
  %525 = vrot.lane.b32.xlu0 %v495, 7
  %v526 = vpop.permute.xlu0 %525
  %527 = vrot.lane.b32.xlu0 %v496, 7
  %v528 = vpop.permute.xlu0 %527
  %529 = vrot.lane.b32.xlu0 %v497, 7
  %v530 = vpop.permute.xlu0 %529
  %531 = vrot.lane.b32.xlu0 %v498, 7
  %v532 = vpop.permute.xlu0 %531
  %533 = vrot.lane.b32.xlu0 %v499, 7
  %v534 = vpop.permute.xlu0 %533
  %535 = vrot.lane.b32.xlu0 %v500, 7
  %v536 = vpop.permute.xlu0 %535
  %v537 = vsel %vm365, %v518, %v520
  %v538 = vsel %vm365, %v522, %v524
  %v539 = vsel %vm365, %v526, %v528
  %v540 = vsel %vm365, %v530, %v532
  %v541 = vsel %vm365, %v534, %v536
  %v547 = vsel %vm375, %v431, 0
  %v550 = vsel %vm379, %v541, 0
  %552 = vmatprep.subr.bf16.mxu0 0
  %553 = vmatpush1.bf16.msra.mxu0 %v537
  %554 = vmatprep.subr.bf16.mxu0 0
  %555 = vmatpush1.bf16.msra.mxu0 %v538
  %556 = vmatprep.subr.bf16.mxu0 0
  %557 = vmatpush1.bf16.msra.mxu0 %v539
  %558 = vmatprep.subr.bf16.mxu0 0
  %559 = vmatpush1.bf16.msra.mxu0 %v540
  %560 = vmatprep.subr.bf16.mxu0 0
  %561 = vmatpush1.bf16.msra.mxu0 %v550
  %562 = vmatprep.subr.bf16.mxu0 0
  %563 = vmatpush1.bf16.msra.mxu0 0
  %564 = vmatprep.subr.bf16.mxu0 0
  %565 = vmatpush1.bf16.msra.mxu0 0
  %566 = vmatprep.subr.bf16.mxu0 0
  %567 = vmatpush1.bf16.msra.mxu0 0
  %568 = vmatprep.subr.bf16.mxu0 0
  %569 = vmatpush1.bf16.msra.mxu0 0
  %570 = vmatprep.subr.bf16.mxu0 0
  %571 = vmatpush1.bf16.msra.mxu0 0
  %572 = vmatprep.subr.bf16.mxu0 0
  %573 = vmatpush1.bf16.msra.mxu0 0
  %574 = vmatprep.subr.bf16.mxu0 0
  %575 = vmatpush1.bf16.msra.mxu0 0
  %576 = vmatprep.subr.bf16.mxu0 0
  %577 = vmatpush1.bf16.msra.mxu0 0
  %578 = vmatprep.subr.bf16.mxu0 0
  %579 = vmatpush1.bf16.msra.mxu0 0
  %580 = vmatprep.subr.bf16.mxu0 0
  %581 = vmatpush1.bf16.msra.mxu0 0
  %582 = vmatprep.subr.bf16.mxu0 0
  %583 = vmatpush1.bf16.msra.mxu0 0
  %584 = vmatprep.mubr.bf16.mxu0 0
  %585 = vmatmul.mubr.bf16.gmra.mrb[0].mxu0 %v547
  %v586 = vpop.f32.mrb[0].mxu0
  %v587 = vadd.f32 %v505, %v586
  %v588 = vpop.f32.mrb[0].mxu0
  %v589 = vpop.f32.mrb[0].mxu0
  %v590 = vpop.f32.mrb[0].mxu0
  %591 = vdwg.mxu0
  %v592 = vmax.f32 %v587, 0.0
  %v593 = vadd.f32 %v592, %v248
  %v594 = vmul.f32 %v593, %v428
  %595 = vst [vmem:[%s7] sm:$0xff] %v594
  // Predicated region
  $region30: #{resunet_forward.11} parent=0 // pred_check
    _
  $region31: #{resunet_forward.11} parent=0 // pred_check_branch
    %597 = sbr.rel (0) target = $region33
  $region32: #{resunet_forward.11} parent=0 // pred_region
    _
  $region33: #{resunet_forward.11} parent=0 // pred_fallthru
    _
  // Predicated region
  $region34: #{resunet_forward.11} parent=0 // pred_check
    _
  $region35: #{resunet_forward.11} parent=0 // pred_check_branch
    %599 = sbr.rel (0) target = $region37
  $region36: #{resunet_forward.11} parent=0 // pred_region
    _
  $region37: #{resunet_forward.11} parent=0 // pred_fallthru
    _

// kernel: resunet_forward.12
$region0: #{resunet_forward.12}
  #allocation0 [shape = 'u32[]', space=smem, size = 0x4, offset = 0x4, fixed_abs, tag = 'smem constant byte address 0x4 - core index']
  #allocation1 [shape = 'u32[144,128]{1,0:T(1,128)}', space=vmem, size = 0x12000, scoped, tag = 'internal scratch']
  #allocation2 [shape = 'f32[8,384]{1,0:T(8,128)}', space=vmem, size = 0x3000, scoped, tag = 'scratch operand']
  %s0 = inlined_call_operand.vmem [shape: f32[8,128], index: 0, kind: input, shape index: {}]
  %s1 = inlined_call_operand.vmem [shape: bf16[128,128], index: 1, kind: input, shape index: {}]
  %s2 = inlined_call_operand.vmem [shape: f32[1,128], index: 2, kind: input, shape index: {}]
  %s3 = inlined_call_operand.vmem [shape: bf16[8,72], index: 3, kind: input, shape index: {}]
  %s4 = inlined_call_operand.vmem [shape: f32[8,1], index: 4, kind: input, shape index: {}]
  %s5 = inlined_call_operand.vmem [shape: bf16[8,72], index: 5, kind: input, shape index: {}]
  %s6 = inlined_call_operand.vmem [shape: f32[8,1], index: 6, kind: input, shape index: {}]
  %s7 = inlined_call_operand.vmem [shape: f32[8,128], index: 7, kind: output, shape index: {}]
  %s8 = sld [smem:[#allocation0]]
  $region38: #{resunet_forward.12} parent=0
    _
  %s10 = ssub.s32 1, %s8
  %s11 = scalar_select 0, %s10, %s8
  // Predicated region
  $region2: #{resunet_forward.12} parent=0 // pred_check
    _
  $region3: #{resunet_forward.12} parent=0 // pred_check_branch
    %13 = sbr.rel (0) target = $region5
  $region4: #{resunet_forward.12} parent=0 // pred_region
    _
  $region5: #{resunet_forward.12} parent=0 // pred_fallthru
    _
  // Predicated region
  $region6: #{resunet_forward.12} parent=0 // pred_check
    _
  $region7: #{resunet_forward.12} parent=0 // pred_check_branch
    %15 = sbr.rel (0) target = $region9
  $region8: #{resunet_forward.12} parent=0 // pred_region
    _
  $region9: #{resunet_forward.12} parent=0 // pred_fallthru
    _
  // Predicated region
  $region10: #{resunet_forward.12} parent=0 // pred_check
    _
  $region11: #{resunet_forward.12} parent=0 // pred_check_branch
    %17 = sbr.rel (0) target = $region13
  $region12: #{resunet_forward.12} parent=0 // pred_region
    _
  $region13: #{resunet_forward.12} parent=0 // pred_fallthru
    _
  // Predicated region
  $region14: #{resunet_forward.12} parent=0 // pred_check
    _
  $region15: #{resunet_forward.12} parent=0 // pred_check_branch
    %19 = sbr.rel (0) target = $region17
  $region16: #{resunet_forward.12} parent=0 // pred_region
    _
  $region17: #{resunet_forward.12} parent=0 // pred_fallthru
    _
  // Predicated region
  $region18: #{resunet_forward.12} parent=0 // pred_check
    _
  $region19: #{resunet_forward.12} parent=0 // pred_check_branch
    %21 = sbr.rel (0) target = $region21
  $region20: #{resunet_forward.12} parent=0 // pred_region
    _
  $region21: #{resunet_forward.12} parent=0 // pred_fallthru
    _
  // Predicated region
  $region22: #{resunet_forward.12} parent=0 // pred_check
    _
  $region23: #{resunet_forward.12} parent=0 // pred_check_branch
    %23 = sbr.rel (0) target = $region25
  $region24: #{resunet_forward.12} parent=0 // pred_region
    _
  $region25: #{resunet_forward.12} parent=0 // pred_fallthru
    _
  // Predicated region
  $region26: #{resunet_forward.12} parent=0 // pred_check
    _
  $region27: #{resunet_forward.12} parent=0 // pred_check_branch
    %25 = sbr.rel (0) target = $region29
  $region28: #{resunet_forward.12} parent=0 // pred_region
    _
  $region29: #{resunet_forward.12} parent=0 // pred_fallthru
    _
  %v27 = vld [vmem:[%s2] sm:$0x1]
  %28 = vst [vmem:[#allocation2] sm:$0xff] 0.0
  %29 = vst [vmem:[#allocation2 + $0x8] sm:$0xff] 0.0
  %30 = vst [vmem:[#allocation2 + $0x10] sm:$0xff] 0.0
  %v31 = vld [vmem:[%s0] sm:$0xff]
  %32 = vst [vmem:[#allocation2 + $0x8] sm:$0xff] %v31
  %v33 = vld [vmem:[#allocation2 + $0x8] sm:$0xff]
  %v34 = vld [vmem:[#allocation2 + $0x10] sm:$0xff]
  %37 = vrot.lane.b32.xlu0 %v33, 127
  %v38 = vpop.permute.xlu0 %37
  %39 = vrot.lane.b32.xlu0 %v34, 127
  %v40 = vpop.permute.xlu0 %39
  %vm41 = vcmask 1039360
  %v42 = vsel %vm41, %v38, %v40
  %v44 = vmax.f32 %v31, %v42
  %45 = vrot.lane.b32.xlu0 %v33, 122
  %v46 = vpop.permute.xlu0 %45
  %47 = vrot.lane.b32.xlu0 %v34, 122
  %v48 = vpop.permute.xlu0 %47
  %vm49 = vcmask 998400
  %v50 = vsel %vm49, %v46, %v48
  %v52 = vmax.f32 %v44, %v50
  %53 = vrot.lane.b32.xlu0 %v33, 121
  %v54 = vpop.permute.xlu0 %53
  %55 = vrot.lane.b32.xlu0 %v34, 121
  %v56 = vpop.permute.xlu0 %55
  %vm57 = vcmask 990208
  %v58 = vsel %vm57, %v54, %v56
  %v60 = vmax.f32 %v52, %v58
  %v61 = vmax.f32 %v60, 0.0
  %v62 = vpack.c.bf16 %v61, %v61
  %v63 = vld [vmem:[%s1] sm:$0xf]
  %v64 = vld [vmem:[%s1 + $0x4] sm:$0xf]
  %v65 = vld [vmem:[%s1 + $0x8] sm:$0xf]
  %v66 = vld [vmem:[%s1 + $0xc] sm:$0xf]
  %v67 = vld [vmem:[%s1 + $0x10] sm:$0xf]
  %v68 = vld [vmem:[%s1 + $0x14] sm:$0xf]
  %v69 = vld [vmem:[%s1 + $0x18] sm:$0xf]
  %v70 = vld [vmem:[%s1 + $0x1c] sm:$0xf]
  %v71 = vld [vmem:[%s1 + $0x20] sm:$0xf]
  %v72 = vld [vmem:[%s1 + $0x24] sm:$0xf]
  %v73 = vld [vmem:[%s1 + $0x28] sm:$0xf]
  %v74 = vld [vmem:[%s1 + $0x2c] sm:$0xf]
  %v75 = vld [vmem:[%s1 + $0x30] sm:$0xf]
  %v76 = vld [vmem:[%s1 + $0x34] sm:$0xf]
  %v77 = vld [vmem:[%s1 + $0x38] sm:$0xf]
  %v78 = vld [vmem:[%s1 + $0x3c] sm:$0xf]
  %v95 = vunpack.c.l.b16 %v63
  %v96 = vunpack.c.l.b16 %v64
  %v97 = vunpack.c.l.b16 %v65
  %v98 = vunpack.c.l.b16 %v66
  %v99 = vunpack.c.l.b16 %v67
  %v100 = vunpack.c.l.b16 %v68
  %v101 = vunpack.c.l.b16 %v69
  %v102 = vunpack.c.l.b16 %v70
  %v103 = vunpack.c.l.b16 %v71
  %v104 = vunpack.c.l.b16 %v72
  %v105 = vunpack.c.l.b16 %v73
  %v106 = vunpack.c.l.b16 %v74
  %v107 = vunpack.c.l.b16 %v75
  %v108 = vunpack.c.l.b16 %v76
  %v109 = vunpack.c.l.b16 %v77
  %v110 = vunpack.c.l.b16 %v78
  %v111 = vpack.c.b16 %v96, %v95
  %v112 = vpack.c.b16 %v98, %v97
  %v113 = vpack.c.b16 %v100, %v99
  %v114 = vpack.c.b16 %v102, %v101
  %v115 = vpack.c.b16 %v104, %v103
  %v116 = vpack.c.b16 %v106, %v105
  %v117 = vpack.c.b16 %v108, %v107
  %v118 = vpack.c.b16 %v110, %v109
  %127 = vmatprep.subr.bf16.mxu0 0
  %128 = vmatpush1.bf16.msra.mxu0 %v111
  %129 = vmatprep.subr.bf16.mxu0 0
  %130 = vmatpush1.bf16.msra.mxu0 %v112
  %131 = vmatprep.subr.bf16.mxu0 0
  %132 = vmatpush1.bf16.msra.mxu0 %v113
  %133 = vmatprep.subr.bf16.mxu0 0
  %134 = vmatpush1.bf16.msra.mxu0 %v114
  %135 = vmatprep.subr.bf16.mxu0 0
  %136 = vmatpush1.bf16.msra.mxu0 %v115
  %137 = vmatprep.subr.bf16.mxu0 0
  %138 = vmatpush1.bf16.msra.mxu0 %v116
  %139 = vmatprep.subr.bf16.mxu0 0
  %140 = vmatpush1.bf16.msra.mxu0 %v117
  %141 = vmatprep.subr.bf16.mxu0 0
  %142 = vmatpush1.bf16.msra.mxu0 %v118
  %143 = vmatprep.subr.bf16.mxu0 0
  %144 = vmatpush1.bf16.msra.mxu0 0
  %145 = vmatprep.subr.bf16.mxu0 0
  %146 = vmatpush1.bf16.msra.mxu0 0
  %147 = vmatprep.subr.bf16.mxu0 0
  %148 = vmatpush1.bf16.msra.mxu0 0
  %149 = vmatprep.subr.bf16.mxu0 0
  %150 = vmatpush1.bf16.msra.mxu0 0
  %151 = vmatprep.subr.bf16.mxu0 0
  %152 = vmatpush1.bf16.msra.mxu0 0
  %153 = vmatprep.subr.bf16.mxu0 0
  %154 = vmatpush1.bf16.msra.mxu0 0
  %155 = vmatprep.subr.bf16.mxu0 0
  %156 = vmatpush1.bf16.msra.mxu0 0
  %157 = vmatprep.subr.bf16.mxu0 0
  %158 = vmatpush1.bf16.msra.mxu0 0
  %159 = vmatprep.mubr.bf16.mxu0 0
  %160 = vmatmul.mubr.bf16.gmra.mrb[0].mxu0 %v62
  %v161 = vpop.f32.mrb[0].mxu0
  %v162 = vadd.f32 0.0, %v161
  %v163 = vpop.f32.mrb[0].mxu0
  %v164 = vpop.f32.mrb[0].mxu0
  %v165 = vpop.f32.mrb[0].mxu0
  %166 = vdwg.mxu0
  %v167 = vld [vmem:[%s3] sm:$0xf]
  %168 = vst [vmem:[#allocation2 + $0x8] sm:$0xff] %v162
  %v169 = vld [vmem:[#allocation2] sm:$0xff]
  %v170 = vld [vmem:[#allocation2 + $0x8] sm:$0xff]
  %v171 = vld [vmem:[#allocation2 + $0x8] sm:$0xff]
  %v172 = vld [vmem:[#allocation2 + $0x10] sm:$0xff]
  %175 = vrot.lane.b32.xlu0 %v169, 127
  %v176 = vpop.permute.xlu0 %175
  %177 = vrot.lane.b32.xlu0 %v170, 127
  %v178 = vpop.permute.xlu0 %177
  %v179 = vsel %vm41, %v176, %v178
  %182 = vrot.lane.b32.xlu0 %v169, 126
  %v183 = vpop.permute.xlu0 %182
  %184 = vrot.lane.b32.xlu0 %v170, 126
  %v185 = vpop.permute.xlu0 %184
  %vm186 = vcmask 1031168
  %v187 = vsel %vm186, %v183, %v185
  %190 = vrot.lane.b32.xlu0 %v169, 124
  %v191 = vpop.permute.xlu0 %190
  %192 = vrot.lane.b32.xlu0 %v170, 124
  %v193 = vpop.permute.xlu0 %192
  %vm194 = vcmask 1014784
  %v195 = vsel %vm194, %v191, %v193
  %198 = vrot.lane.b32.xlu0 %v170, 123
  %v199 = vpop.permute.xlu0 %198
  %203 = vrot.lane.b32.xlu0 %v171, 122
  %v204 = vpop.permute.xlu0 %203
  %205 = vrot.lane.b32.xlu0 %v172, 122
  %v206 = vpop.permute.xlu0 %205
  %v207 = vsel %vm49, %v204, %v206
  %210 = vrot.lane.b32.xlu0 %v171, 120
  %v211 = vpop.permute.xlu0 %210
  %212 = vrot.lane.b32.xlu0 %v172, 120
  %v213 = vpop.permute.xlu0 %212
  %vm214 = vcmask 982016
  %v215 = vsel %vm214, %v211, %v213
  %218 = vrot.lane.b32.xlu0 %v171, 119
  %v219 = vpop.permute.xlu0 %218
  %220 = vrot.lane.b32.xlu0 %v172, 119
  %v221 = vpop.permute.xlu0 %220
  %vm222 = vcmask 973824
  %v223 = vsel %vm222, %v219, %v221
  %226 = vrot.lane.b32.xlu0 %v171, 118
  %v227 = vpop.permute.xlu0 %226
  %228 = vrot.lane.b32.xlu0 %v172, 118
  %v229 = vpop.permute.xlu0 %228
  %vm230 = vcmask 965632
  %v231 = vsel %vm230, %v227, %v229
  %v234 = vpack.c.bf16 %v179, %v169
  %v235 = vpack.c.bf16 %v178, %v170
  %v236 = vpack.c.bf16 %v195, %v187
  %v237 = vpack.c.bf16 %v193, %v185
  %v238 = vpack.c.bf16 %v204, %v199
  %v239 = vpack.c.bf16 %v207, %v199
  %v240 = vpack.c.bf16 %v219, %v211
  %v241 = vpack.c.bf16 %v223, %v215
  %v242 = vpack.c.bf16 %v227, %v227
  %v243 = vpack.c.bf16 %v231, %v231
  %v244 = vld [vmem:[%s4] sm:$0xff]
  %246 = vset.pattern.permute.xlu0 0
  %247 = vperm.xlu0 %246, %v244
  %v248 = vpop.permute.xlu0 %247
  %260 = vrot.lane.b32.xlu0 %v234, 5
  %v261 = vpop.permute.xlu0 %260
  %262 = vrot.lane.b32.xlu0 %v235, 5
  %v263 = vpop.permute.xlu0 %262
  %264 = vrot.lane.b32.xlu0 %v236, 5
  %v265 = vpop.permute.xlu0 %264
  %266 = vrot.lane.b32.xlu0 %v237, 5
  %v267 = vpop.permute.xlu0 %266
  %268 = vrot.lane.b32.xlu0 %v238, 5
  %v269 = vpop.permute.xlu0 %268
  %270 = vrot.lane.b32.xlu0 %v239, 5
  %v271 = vpop.permute.xlu0 %270
  %272 = vrot.lane.b32.xlu0 %v240, 5
  %v273 = vpop.permute.xlu0 %272
  %274 = vrot.lane.b32.xlu0 %v241, 5
  %v275 = vpop.permute.xlu0 %274
  %276 = vrot.lane.b32.xlu0 %v242, 5
  %v277 = vpop.permute.xlu0 %276
  %278 = vrot.lane.b32.xlu0 %v243, 5
  %v279 = vpop.permute.xlu0 %278
  %vm280 = vcmask 39936
  %v281 = vsel %vm280, %v261, %v263
  %v282 = vsel %vm280, %v265, %v267
  %v283 = vsel %vm280, %v269, %v271
  %v284 = vsel %vm280, %v273, %v275
  %v285 = vsel %vm280, %v277, %v279
  %vm290 = vcmask 588800
  %v292 = vsel %vm290, %v167, 0
  %vm294 = vcmask 1043456
  %v296 = vsel %vm294, %v285, 0
  %298 = vmatprep.subr.bf16.mxu0 0
  %299 = vmatpush1.bf16.msra.mxu0 %v281
  %300 = vmatprep.subr.bf16.mxu0 0
  %301 = vmatpush1.bf16.msra.mxu0 %v282
  %302 = vmatprep.subr.bf16.mxu0 0
  %303 = vmatpush1.bf16.msra.mxu0 %v283
  %304 = vmatprep.subr.bf16.mxu0 0
  %305 = vmatpush1.bf16.msra.mxu0 %v284
  %306 = vmatprep.subr.bf16.mxu0 0
  %307 = vmatpush1.bf16.msra.mxu0 %v296
  %308 = vmatprep.subr.bf16.mxu0 0
  %309 = vmatpush1.bf16.msra.mxu0 0
  %310 = vmatprep.subr.bf16.mxu0 0
  %311 = vmatpush1.bf16.msra.mxu0 0
  %312 = vmatprep.subr.bf16.mxu0 0
  %313 = vmatpush1.bf16.msra.mxu0 0
  %314 = vmatprep.subr.bf16.mxu0 0
  %315 = vmatpush1.bf16.msra.mxu0 0
  %316 = vmatprep.subr.bf16.mxu0 0
  %317 = vmatpush1.bf16.msra.mxu0 0
  %318 = vmatprep.subr.bf16.mxu0 0
  %319 = vmatpush1.bf16.msra.mxu0 0
  %320 = vmatprep.subr.bf16.mxu0 0
  %321 = vmatpush1.bf16.msra.mxu0 0
  %322 = vmatprep.subr.bf16.mxu0 0
  %323 = vmatpush1.bf16.msra.mxu0 0
  %324 = vmatprep.subr.bf16.mxu0 0
  %325 = vmatpush1.bf16.msra.mxu0 0
  %326 = vmatprep.subr.bf16.mxu0 0
  %327 = vmatpush1.bf16.msra.mxu0 0
  %328 = vmatprep.subr.bf16.mxu0 0
  %329 = vmatpush1.bf16.msra.mxu0 0
  %330 = vmatprep.mubr.bf16.mxu0 0
  %331 = vmatmul.mubr.bf16.gmra.mrb[0].mxu0 %v292
  %v332 = vpop.f32.mrb[0].mxu0
  %v333 = vadd.f32 %v248, %v332
  %v334 = vpop.f32.mrb[0].mxu0
  %v335 = vpop.f32.mrb[0].mxu0
  %v336 = vpop.f32.mrb[0].mxu0
  %337 = vdwg.mxu0
  %v338 = vmax.f32 %v333, 0.0
  %v340 = vlaneseq
  %v341 = vshrl.u32 %v340, 7
  %v342 = vsub.s32 0, %v341
  %v343 = vrot.slane %v27, %v342
  %v345 = vmul.f32 %v338, %v343
  %v346 = vld [vmem:[%s5] sm:$0xf]
  %347 = vst [vmem:[#allocation2 + $0x8] sm:$0xff] %v345
  %v348 = vld [vmem:[#allocation2] sm:$0xff]
  %v349 = vld [vmem:[#allocation2 + $0x8] sm:$0xff]
  %v350 = vld [vmem:[#allocation2 + $0x8] sm:$0xff]
  %v351 = vld [vmem:[#allocation2 + $0x10] sm:$0xff]
  %354 = vrot.lane.b32.xlu0 %v348, 127
  %v355 = vpop.permute.xlu0 %354
  %356 = vrot.lane.b32.xlu0 %v349, 127
  %v357 = vpop.permute.xlu0 %356
  %v358 = vsel %vm41, %v355, %v357
  %361 = vrot.lane.b32.xlu0 %v348, 126
  %v362 = vpop.permute.xlu0 %361
  %363 = vrot.lane.b32.xlu0 %v349, 126
  %v364 = vpop.permute.xlu0 %363
  %v365 = vsel %vm186, %v362, %v364
  %368 = vrot.lane.b32.xlu0 %v348, 124
  %v369 = vpop.permute.xlu0 %368
  %370 = vrot.lane.b32.xlu0 %v349, 124
  %v371 = vpop.permute.xlu0 %370
  %v372 = vsel %vm194, %v369, %v371
  %375 = vrot.lane.b32.xlu0 %v349, 123
  %v376 = vpop.permute.xlu0 %375
  %380 = vrot.lane.b32.xlu0 %v350, 122
  %v381 = vpop.permute.xlu0 %380
  %382 = vrot.lane.b32.xlu0 %v351, 122
  %v383 = vpop.permute.xlu0 %382
  %v384 = vsel %vm49, %v381, %v383
  %387 = vrot.lane.b32.xlu0 %v350, 120
  %v388 = vpop.permute.xlu0 %387
  %389 = vrot.lane.b32.xlu0 %v351, 120
  %v390 = vpop.permute.xlu0 %389
  %v391 = vsel %vm214, %v388, %v390
  %394 = vrot.lane.b32.xlu0 %v350, 119
  %v395 = vpop.permute.xlu0 %394
  %396 = vrot.lane.b32.xlu0 %v351, 119
  %v397 = vpop.permute.xlu0 %396
  %v398 = vsel %vm222, %v395, %v397
  %401 = vrot.lane.b32.xlu0 %v350, 118
  %v402 = vpop.permute.xlu0 %401
  %403 = vrot.lane.b32.xlu0 %v351, 118
  %v404 = vpop.permute.xlu0 %403
  %v405 = vsel %vm230, %v402, %v404
  %v408 = vpack.c.bf16 %v358, %v348
  %v409 = vpack.c.bf16 %v357, %v349
  %v410 = vpack.c.bf16 %v372, %v365
  %v411 = vpack.c.bf16 %v371, %v364
  %v412 = vpack.c.bf16 %v381, %v376
  %v413 = vpack.c.bf16 %v384, %v376
  %v414 = vpack.c.bf16 %v395, %v388
  %v415 = vpack.c.bf16 %v398, %v391
  %v416 = vpack.c.bf16 %v402, %v402
  %v417 = vpack.c.bf16 %v405, %v405
  %v418 = vld [vmem:[%s6] sm:$0xff]
  %420 = vset.pattern.permute.xlu0 0
  %421 = vperm.xlu0 %420, %v418
  %v422 = vpop.permute.xlu0 %421
  %434 = vrot.lane.b32.xlu0 %v408, 5
  %v435 = vpop.permute.xlu0 %434
  %436 = vrot.lane.b32.xlu0 %v409, 5
  %v437 = vpop.permute.xlu0 %436
  %438 = vrot.lane.b32.xlu0 %v410, 5
  %v439 = vpop.permute.xlu0 %438
  %440 = vrot.lane.b32.xlu0 %v411, 5
  %v441 = vpop.permute.xlu0 %440
  %442 = vrot.lane.b32.xlu0 %v412, 5
  %v443 = vpop.permute.xlu0 %442
  %444 = vrot.lane.b32.xlu0 %v413, 5
  %v445 = vpop.permute.xlu0 %444
  %446 = vrot.lane.b32.xlu0 %v414, 5
  %v447 = vpop.permute.xlu0 %446
  %448 = vrot.lane.b32.xlu0 %v415, 5
  %v449 = vpop.permute.xlu0 %448
  %450 = vrot.lane.b32.xlu0 %v416, 5
  %v451 = vpop.permute.xlu0 %450
  %452 = vrot.lane.b32.xlu0 %v417, 5
  %v453 = vpop.permute.xlu0 %452
  %v454 = vsel %vm280, %v435, %v437
  %v455 = vsel %vm280, %v439, %v441
  %v456 = vsel %vm280, %v443, %v445
  %v457 = vsel %vm280, %v447, %v449
  %v458 = vsel %vm280, %v451, %v453
  %v464 = vsel %vm290, %v346, 0
  %v467 = vsel %vm294, %v458, 0
  %469 = vmatprep.subr.bf16.mxu0 0
  %470 = vmatpush1.bf16.msra.mxu0 %v454
  %471 = vmatprep.subr.bf16.mxu0 0
  %472 = vmatpush1.bf16.msra.mxu0 %v455
  %473 = vmatprep.subr.bf16.mxu0 0
  %474 = vmatpush1.bf16.msra.mxu0 %v456
  %475 = vmatprep.subr.bf16.mxu0 0
  %476 = vmatpush1.bf16.msra.mxu0 %v457
  %477 = vmatprep.subr.bf16.mxu0 0
  %478 = vmatpush1.bf16.msra.mxu0 %v467
  %479 = vmatprep.subr.bf16.mxu0 0
  %480 = vmatpush1.bf16.msra.mxu0 0
  %481 = vmatprep.subr.bf16.mxu0 0
  %482 = vmatpush1.bf16.msra.mxu0 0
  %483 = vmatprep.subr.bf16.mxu0 0
  %484 = vmatpush1.bf16.msra.mxu0 0
  %485 = vmatprep.subr.bf16.mxu0 0
  %486 = vmatpush1.bf16.msra.mxu0 0
  %487 = vmatprep.subr.bf16.mxu0 0
  %488 = vmatpush1.bf16.msra.mxu0 0
  %489 = vmatprep.subr.bf16.mxu0 0
  %490 = vmatpush1.bf16.msra.mxu0 0
  %491 = vmatprep.subr.bf16.mxu0 0
  %492 = vmatpush1.bf16.msra.mxu0 0
  %493 = vmatprep.subr.bf16.mxu0 0
  %494 = vmatpush1.bf16.msra.mxu0 0
  %495 = vmatprep.subr.bf16.mxu0 0
  %496 = vmatpush1.bf16.msra.mxu0 0
  %497 = vmatprep.subr.bf16.mxu0 0
  %498 = vmatpush1.bf16.msra.mxu0 0
  %499 = vmatprep.subr.bf16.mxu0 0
  %500 = vmatpush1.bf16.msra.mxu0 0
  %501 = vmatprep.mubr.bf16.mxu0 0
  %502 = vmatmul.mubr.bf16.gmra.mrb[0].mxu0 %v464
  %v503 = vpop.f32.mrb[0].mxu0
  %v504 = vadd.f32 %v422, %v503
  %v505 = vpop.f32.mrb[0].mxu0
  %v506 = vpop.f32.mrb[0].mxu0
  %v507 = vpop.f32.mrb[0].mxu0
  %508 = vdwg.mxu0
  %v509 = vmax.f32 %v504, 0.0
  %v510 = vadd.f32 %v509, %v162
  %v511 = vmul.f32 %v510, %v343
  %512 = vst [vmem:[%s7] sm:$0xff] %v511
  // Predicated region
  $region30: #{resunet_forward.12} parent=0 // pred_check
    _
  $region31: #{resunet_forward.12} parent=0 // pred_check_branch
    %514 = sbr.rel (0) target = $region33
  $region32: #{resunet_forward.12} parent=0 // pred_region
    _
  $region33: #{resunet_forward.12} parent=0 // pred_fallthru
    _
  // Predicated region
  $region34: #{resunet_forward.12} parent=0 // pred_check
    _
  $region35: #{resunet_forward.12} parent=0 // pred_check_branch
    %516 = sbr.rel (0) target = $region37
  $region36: #{resunet_forward.12} parent=0 // pred_region
    _
  $region37: #{resunet_forward.12} parent=0 // pred_fallthru
    _

// kernel: resunet_forward.9
$region0: #{resunet_forward.9}
  #allocation0 [shape = 'u32[]', space=smem, size = 0x4, offset = 0x4, fixed_abs, tag = 'smem constant byte address 0x4 - core index']
  #allocation1 [shape = 'u32[144,128]{1,0:T(1,128)}', space=vmem, size = 0x12000, scoped, tag = 'internal scratch']
  #allocation2 [shape = 'f32[8,1024]{1,0:T(8,128)}', space=vmem, size = 0x8000, scoped, tag = 'scratch operand']
  %s0 = inlined_call_operand.vmem [shape: f32[8,768], index: 0, kind: input, shape index: {}]
  %s1 = inlined_call_operand.vmem [shape: f32[1,768], index: 1, kind: input, shape index: {}]
  %s2 = inlined_call_operand.vmem [shape: bf16[8,72], index: 2, kind: input, shape index: {}]
  %s3 = inlined_call_operand.vmem [shape: f32[8,1], index: 3, kind: input, shape index: {}]
  %s4 = inlined_call_operand.vmem [shape: bf16[8,72], index: 4, kind: input, shape index: {}]
  %s5 = inlined_call_operand.vmem [shape: f32[8,1], index: 5, kind: input, shape index: {}]
  %s6 = inlined_call_operand.vmem [shape: bf16[8,8], index: 6, kind: input, shape index: {}]
  %s7 = inlined_call_operand.vmem [shape: f32[8,1], index: 7, kind: input, shape index: {}]
  %s8 = inlined_call_operand.vmem [shape: f32[8,768], index: 8, kind: output, shape index: {}]
  %s9 = sld [smem:[#allocation0]]
  $region42: #{resunet_forward.9} parent=0
    _
  %s11 = ssub.s32 1, %s9
  %s12 = scalar_select 0, %s11, %s9
  // Predicated region
  $region2: #{resunet_forward.9} parent=0 // pred_check
    _
  $region3: #{resunet_forward.9} parent=0 // pred_check_branch
    %14 = sbr.rel (0) target = $region5
  $region4: #{resunet_forward.9} parent=0 // pred_region
    _
  $region5: #{resunet_forward.9} parent=0 // pred_fallthru
    _
  // Predicated region
  $region6: #{resunet_forward.9} parent=0 // pred_check
    _
  $region7: #{resunet_forward.9} parent=0 // pred_check_branch
    %16 = sbr.rel (0) target = $region9
  $region8: #{resunet_forward.9} parent=0 // pred_region
    _
  $region9: #{resunet_forward.9} parent=0 // pred_fallthru
    _
  // Predicated region
  $region10: #{resunet_forward.9} parent=0 // pred_check
    _
  $region11: #{resunet_forward.9} parent=0 // pred_check_branch
    %18 = sbr.rel (0) target = $region13
  $region12: #{resunet_forward.9} parent=0 // pred_region
    _
  $region13: #{resunet_forward.9} parent=0 // pred_fallthru
    _
  // Predicated region
  $region14: #{resunet_forward.9} parent=0 // pred_check
    _
  $region15: #{resunet_forward.9} parent=0 // pred_check_branch
    %20 = sbr.rel (0) target = $region17
  $region16: #{resunet_forward.9} parent=0 // pred_region
    _
  $region17: #{resunet_forward.9} parent=0 // pred_fallthru
    _
  // Predicated region
  $region18: #{resunet_forward.9} parent=0 // pred_check
    _
  $region19: #{resunet_forward.9} parent=0 // pred_check_branch
    %22 = sbr.rel (0) target = $region21
  $region20: #{resunet_forward.9} parent=0 // pred_region
    _
  $region21: #{resunet_forward.9} parent=0 // pred_fallthru
    _
  // Predicated region
  $region22: #{resunet_forward.9} parent=0 // pred_check
    _
  $region23: #{resunet_forward.9} parent=0 // pred_check_branch
    %24 = sbr.rel (0) target = $region25
  $region24: #{resunet_forward.9} parent=0 // pred_region
    _
  $region25: #{resunet_forward.9} parent=0 // pred_fallthru
    _
  // Predicated region
  $region26: #{resunet_forward.9} parent=0 // pred_check
    _
  $region27: #{resunet_forward.9} parent=0 // pred_check_branch
    %26 = sbr.rel (0) target = $region29
  $region28: #{resunet_forward.9} parent=0 // pred_region
    _
  $region29: #{resunet_forward.9} parent=0 // pred_fallthru
    _
  // Predicated region
  $region30: #{resunet_forward.9} parent=0 // pred_check
    _
  $region31: #{resunet_forward.9} parent=0 // pred_check_branch
    %28 = sbr.rel (0) target = $region33
  $region32: #{resunet_forward.9} parent=0 // pred_region
    _
  $region33: #{resunet_forward.9} parent=0 // pred_fallthru
    _
  %v30 = vld [vmem:[%s1] sm:$0x3f]
  %31 = vst [vmem:[#allocation2] sm:$0xff] 0.0
  %32 = vst [vmem:[#allocation2 + $0x8] sm:$0xff] 0.0
  %33 = vst [vmem:[#allocation2 + $0x10] sm:$0xff] 0.0
  %34 = vst [vmem:[#allocation2 + $0x18] sm:$0xff] 0.0
  %35 = vst [vmem:[#allocation2 + $0x20] sm:$0xff] 0.0
  %36 = vst [vmem:[#allocation2 + $0x28] sm:$0xff] 0.0
  %37 = vst [vmem:[#allocation2 + $0x30] sm:$0xff] 0.0
  %38 = vst [vmem:[#allocation2 + $0x38] sm:$0xff] 0.0
  %v39 = vld [vmem:[%s0] sm:$0xff]
  %v40 = vld [vmem:[%s0 + $0x8] sm:$0xff]
  %v41 = vld [vmem:[%s0 + $0x10] sm:$0xff]
  %v42 = vld [vmem:[%s0 + $0x18] sm:$0xff]
  %v43 = vld [vmem:[%s0 + $0x20] sm:$0xff]
  %v44 = vld [vmem:[%s0 + $0x28] sm:$0xff]
  %v45 = vld [vmem:[%s2] sm:$0xf]
  %46 = vst [vmem:[#allocation2 + $0x8] sm:$0xff] %v39
  %47 = vst [vmem:[#allocation2 + $0x10] sm:$0xff] %v40
  %48 = vst [vmem:[#allocation2 + $0x18] sm:$0xff] %v41
  %49 = vst [vmem:[#allocation2 + $0x20] sm:$0xff] %v42
  %50 = vst [vmem:[#allocation2 + $0x28] sm:$0xff] %v43
  %51 = vst [vmem:[#allocation2 + $0x30] sm:$0xff] %v44
  %v52 = vld [vmem:[#allocation2] sm:$0xff]
  %v53 = vld [vmem:[#allocation2 + $0x8] sm:$0xff]
  %v54 = vld [vmem:[#allocation2 + $0x10] sm:$0xff]
  %v55 = vld [vmem:[#allocation2 + $0x18] sm:$0xff]
  %v56 = vld [vmem:[#allocation2 + $0x20] sm:$0xff]
  %v57 = vld [vmem:[#allocation2 + $0x28] sm:$0xff]
  %v58 = vld [vmem:[#allocation2 + $0x30] sm:$0xff]
  %v59 = vld [vmem:[#allocation2 + $0x8] sm:$0xff]
  %v60 = vld [vmem:[#allocation2 + $0x10] sm:$0xff]
  %v61 = vld [vmem:[#allocation2 + $0x18] sm:$0xff]
  %v62 = vld [vmem:[#allocation2 + $0x20] sm:$0xff]
  %v63 = vld [vmem:[#allocation2 + $0x28] sm:$0xff]
  %v64 = vld [vmem:[#allocation2 + $0x30] sm:$0xff]
  %v65 = vld [vmem:[#allocation2 + $0x38] sm:$0xff]
  %73 = vrot.lane.b32.xlu0 %v52, 127
  %v74 = vpop.permute.xlu0 %73
  %75 = vrot.lane.b32.xlu0 %v53, 127
  %v76 = vpop.permute.xlu0 %75
  %77 = vrot.lane.b32.xlu0 %v54, 127
  %v78 = vpop.permute.xlu0 %77
  %79 = vrot.lane.b32.xlu0 %v55, 127
  %v80 = vpop.permute.xlu0 %79
  %81 = vrot.lane.b32.xlu0 %v56, 127
  %v82 = vpop.permute.xlu0 %81
  %83 = vrot.lane.b32.xlu0 %v57, 127
  %v84 = vpop.permute.xlu0 %83
  %85 = vrot.lane.b32.xlu0 %v58, 127
  %v86 = vpop.permute.xlu0 %85
  %vm87 = vcmask 1039360
  %v88 = vsel %vm87, %v74, %v76
  %v89 = vsel %vm87, %v76, %v78
  %v90 = vsel %vm87, %v78, %v80
  %v91 = vsel %vm87, %v80, %v82
  %v92 = vsel %vm87, %v82, %v84
  %v93 = vsel %vm87, %v84, %v86
  %101 = vrot.lane.b32.xlu0 %v52, 126
  %v102 = vpop.permute.xlu0 %101
  %103 = vrot.lane.b32.xlu0 %v53, 126
  %v104 = vpop.permute.xlu0 %103
  %105 = vrot.lane.b32.xlu0 %v54, 126
  %v106 = vpop.permute.xlu0 %105
  %107 = vrot.lane.b32.xlu0 %v55, 126
  %v108 = vpop.permute.xlu0 %107
  %109 = vrot.lane.b32.xlu0 %v56, 126
  %v110 = vpop.permute.xlu0 %109
  %111 = vrot.lane.b32.xlu0 %v57, 126
  %v112 = vpop.permute.xlu0 %111
  %113 = vrot.lane.b32.xlu0 %v58, 126
  %v114 = vpop.permute.xlu0 %113
  %vm115 = vcmask 1031168
  %v116 = vsel %vm115, %v102, %v104
  %v117 = vsel %vm115, %v104, %v106
  %v118 = vsel %vm115, %v106, %v108
  %v119 = vsel %vm115, %v108, %v110
  %v120 = vsel %vm115, %v110, %v112
  %v121 = vsel %vm115, %v112, %v114
  %129 = vrot.lane.b32.xlu0 %v52, 110
  %v130 = vpop.permute.xlu0 %129
  %131 = vrot.lane.b32.xlu0 %v53, 110
  %v132 = vpop.permute.xlu0 %131
  %133 = vrot.lane.b32.xlu0 %v54, 110
  %v134 = vpop.permute.xlu0 %133
  %135 = vrot.lane.b32.xlu0 %v55, 110
  %v136 = vpop.permute.xlu0 %135
  %137 = vrot.lane.b32.xlu0 %v56, 110
  %v138 = vpop.permute.xlu0 %137
  %139 = vrot.lane.b32.xlu0 %v57, 110
  %v140 = vpop.permute.xlu0 %139
  %141 = vrot.lane.b32.xlu0 %v58, 110
  %v142 = vpop.permute.xlu0 %141
  %vm143 = vcmask 900096
  %v144 = vsel %vm143, %v130, %v132
  %v145 = vsel %vm143, %v132, %v134
  %v146 = vsel %vm143, %v134, %v136
  %v147 = vsel %vm143, %v136, %v138
  %v148 = vsel %vm143, %v138, %v140
  %v149 = vsel %vm143, %v140, %v142
  %157 = vrot.lane.b32.xlu0 %v53, 109
  %v158 = vpop.permute.xlu0 %157
  %159 = vrot.lane.b32.xlu0 %v54, 109
  %v160 = vpop.permute.xlu0 %159
  %161 = vrot.lane.b32.xlu0 %v55, 109
  %v162 = vpop.permute.xlu0 %161
  %163 = vrot.lane.b32.xlu0 %v56, 109
  %v164 = vpop.permute.xlu0 %163
  %165 = vrot.lane.b32.xlu0 %v57, 109
  %v166 = vpop.permute.xlu0 %165
  %167 = vrot.lane.b32.xlu0 %v58, 109
  %v168 = vpop.permute.xlu0 %167
  %vm169 = vcmask 891904
  %v170 = vsel %vm169, %v158, %v160
  %v171 = vsel %vm169, %v160, %v162
  %v172 = vsel %vm169, %v162, %v164
  %v173 = vsel %vm169, %v164, %v166
  %v174 = vsel %vm169, %v166, %v168
  %189 = vrot.lane.b32.xlu0 %v59, 108
  %v190 = vpop.permute.xlu0 %189
  %191 = vrot.lane.b32.xlu0 %v60, 108
  %v192 = vpop.permute.xlu0 %191
  %193 = vrot.lane.b32.xlu0 %v61, 108
  %v194 = vpop.permute.xlu0 %193
  %195 = vrot.lane.b32.xlu0 %v62, 108
  %v196 = vpop.permute.xlu0 %195
  %197 = vrot.lane.b32.xlu0 %v63, 108
  %v198 = vpop.permute.xlu0 %197
  %199 = vrot.lane.b32.xlu0 %v64, 108
  %v200 = vpop.permute.xlu0 %199
  %201 = vrot.lane.b32.xlu0 %v65, 108
  %v202 = vpop.permute.xlu0 %201
  %vm203 = vcmask 883712
  %v204 = vsel %vm203, %v190, %v192
  %v205 = vsel %vm203, %v192, %v194
  %v206 = vsel %vm203, %v194, %v196
  %v207 = vsel %vm203, %v196, %v198
  %v208 = vsel %vm203, %v198, %v200
  %v209 = vsel %vm203, %v200, %v202
  %217 = vrot.lane.b32.xlu0 %v59, 92
  %v218 = vpop.permute.xlu0 %217
  %219 = vrot.lane.b32.xlu0 %v60, 92
  %v220 = vpop.permute.xlu0 %219
  %221 = vrot.lane.b32.xlu0 %v61, 92
  %v222 = vpop.permute.xlu0 %221
  %223 = vrot.lane.b32.xlu0 %v62, 92
  %v224 = vpop.permute.xlu0 %223
  %225 = vrot.lane.b32.xlu0 %v63, 92
  %v226 = vpop.permute.xlu0 %225
  %227 = vrot.lane.b32.xlu0 %v64, 92
  %v228 = vpop.permute.xlu0 %227
  %229 = vrot.lane.b32.xlu0 %v65, 92
  %v230 = vpop.permute.xlu0 %229
  %vm231 = vcmask 752640
  %v232 = vsel %vm231, %v218, %v220
  %v233 = vsel %vm231, %v220, %v222
  %v234 = vsel %vm231, %v222, %v224
  %v235 = vsel %vm231, %v224, %v226
  %v236 = vsel %vm231, %v226, %v228
  %v237 = vsel %vm231, %v228, %v230
  %245 = vrot.lane.b32.xlu0 %v59, 91
  %v246 = vpop.permute.xlu0 %245
  %247 = vrot.lane.b32.xlu0 %v60, 91
  %v248 = vpop.permute.xlu0 %247
  %249 = vrot.lane.b32.xlu0 %v61, 91
  %v250 = vpop.permute.xlu0 %249
  %251 = vrot.lane.b32.xlu0 %v62, 91
  %v252 = vpop.permute.xlu0 %251
  %253 = vrot.lane.b32.xlu0 %v63, 91
  %v254 = vpop.permute.xlu0 %253
  %255 = vrot.lane.b32.xlu0 %v64, 91
  %v256 = vpop.permute.xlu0 %255
  %257 = vrot.lane.b32.xlu0 %v65, 91
  %v258 = vpop.permute.xlu0 %257
  %vm259 = vcmask 744448
  %v260 = vsel %vm259, %v246, %v248
  %v261 = vsel %vm259, %v248, %v250
  %v262 = vsel %vm259, %v250, %v252
  %v263 = vsel %vm259, %v252, %v254
  %v264 = vsel %vm259, %v254, %v256
  %v265 = vsel %vm259, %v256, %v258
  %273 = vrot.lane.b32.xlu0 %v59, 90
  %v274 = vpop.permute.xlu0 %273
  %275 = vrot.lane.b32.xlu0 %v60, 90
  %v276 = vpop.permute.xlu0 %275
  %277 = vrot.lane.b32.xlu0 %v61, 90
  %v278 = vpop.permute.xlu0 %277
  %279 = vrot.lane.b32.xlu0 %v62, 90
  %v280 = vpop.permute.xlu0 %279
  %281 = vrot.lane.b32.xlu0 %v63, 90
  %v282 = vpop.permute.xlu0 %281
  %283 = vrot.lane.b32.xlu0 %v64, 90
  %v284 = vpop.permute.xlu0 %283
  %285 = vrot.lane.b32.xlu0 %v65, 90
  %v286 = vpop.permute.xlu0 %285
  %vm287 = vcmask 736256
  %v288 = vsel %vm287, %v274, %v276
  %v289 = vsel %vm287, %v276, %v278
  %v290 = vsel %vm287, %v278, %v280
  %v291 = vsel %vm287, %v280, %v282
  %v292 = vsel %vm287, %v282, %v284
  %v293 = vsel %vm287, %v284, %v286
  %v301 = vpack.c.bf16 %v88, %v52
  %v302 = vpack.c.bf16 %v89, %v53
  %v303 = vpack.c.bf16 %v90, %v54
  %v304 = vpack.c.bf16 %v91, %v55
  %v305 = vpack.c.bf16 %v92, %v56
  %v306 = vpack.c.bf16 %v93, %v57
  %v307 = vpack.c.bf16 %v86, %v58
  %v308 = vpack.c.bf16 %v144, %v116
  %v309 = vpack.c.bf16 %v145, %v117
  %v310 = vpack.c.bf16 %v146, %v118
  %v311 = vpack.c.bf16 %v147, %v119
  %v312 = vpack.c.bf16 %v148, %v120
  %v313 = vpack.c.bf16 %v149, %v121
  %v314 = vpack.c.bf16 %v142, %v114
  %v315 = vpack.c.bf16 %v190, %v158
  %v316 = vpack.c.bf16 %v204, %v170
  %v317 = vpack.c.bf16 %v205, %v171
  %v318 = vpack.c.bf16 %v206, %v172
  %v319 = vpack.c.bf16 %v207, %v173
  %v320 = vpack.c.bf16 %v208, %v174
  %v321 = vpack.c.bf16 %v209, %v168
  %v322 = vpack.c.bf16 %v246, %v218
  %v323 = vpack.c.bf16 %v260, %v232
  %v324 = vpack.c.bf16 %v261, %v233
  %v325 = vpack.c.bf16 %v262, %v234
  %v326 = vpack.c.bf16 %v263, %v235
  %v327 = vpack.c.bf16 %v264, %v236
  %v328 = vpack.c.bf16 %v265, %v237
  %v329 = vpack.c.bf16 %v274, %v274
  %v330 = vpack.c.bf16 %v288, %v288
  %v331 = vpack.c.bf16 %v289, %v289
  %v332 = vpack.c.bf16 %v290, %v290
  %v333 = vpack.c.bf16 %v291, %v291
  %v334 = vpack.c.bf16 %v292, %v292
  %v335 = vpack.c.bf16 %v293, %v293
  %v336 = vld [vmem:[%s3] sm:$0xff]
  %338 = vset.pattern.permute.xlu0 0
  %339 = vperm.xlu0 %338, %v336
  %v340 = vpop.permute.xlu0 %339
  %377 = vrot.lane.b32.xlu0 %v301, 19
  %v378 = vpop.permute.xlu0 %377
  %379 = vrot.lane.b32.xlu0 %v302, 19
  %v380 = vpop.permute.xlu0 %379
  %381 = vrot.lane.b32.xlu0 %v303, 19
  %v382 = vpop.permute.xlu0 %381
  %383 = vrot.lane.b32.xlu0 %v304, 19
  %v384 = vpop.permute.xlu0 %383
  %385 = vrot.lane.b32.xlu0 %v305, 19
  %v386 = vpop.permute.xlu0 %385
  %387 = vrot.lane.b32.xlu0 %v306, 19
  %v388 = vpop.permute.xlu0 %387
  %389 = vrot.lane.b32.xlu0 %v307, 19
  %v390 = vpop.permute.xlu0 %389
  %391 = vrot.lane.b32.xlu0 %v308, 19
  %v392 = vpop.permute.xlu0 %391
  %393 = vrot.lane.b32.xlu0 %v309, 19
  %v394 = vpop.permute.xlu0 %393
  %395 = vrot.lane.b32.xlu0 %v310, 19
  %v396 = vpop.permute.xlu0 %395
  %397 = vrot.lane.b32.xlu0 %v311, 19
  %v398 = vpop.permute.xlu0 %397
  %399 = vrot.lane.b32.xlu0 %v312, 19
  %v400 = vpop.permute.xlu0 %399
  %401 = vrot.lane.b32.xlu0 %v313, 19
  %v402 = vpop.permute.xlu0 %401
  %403 = vrot.lane.b32.xlu0 %v314, 19
  %v404 = vpop.permute.xlu0 %403
  %405 = vrot.lane.b32.xlu0 %v315, 19
  %v406 = vpop.permute.xlu0 %405
  %407 = vrot.lane.b32.xlu0 %v316, 19
  %v408 = vpop.permute.xlu0 %407
  %409 = vrot.lane.b32.xlu0 %v317, 19
  %v410 = vpop.permute.xlu0 %409
  %411 = vrot.lane.b32.xlu0 %v318, 19
  %v412 = vpop.permute.xlu0 %411
  %413 = vrot.lane.b32.xlu0 %v319, 19
  %v414 = vpop.permute.xlu0 %413
  %415 = vrot.lane.b32.xlu0 %v320, 19
  %v416 = vpop.permute.xlu0 %415
  %417 = vrot.lane.b32.xlu0 %v321, 19
  %v418 = vpop.permute.xlu0 %417
  %419 = vrot.lane.b32.xlu0 %v322, 19
  %v420 = vpop.permute.xlu0 %419
  %421 = vrot.lane.b32.xlu0 %v323, 19
  %v422 = vpop.permute.xlu0 %421
  %423 = vrot.lane.b32.xlu0 %v324, 19
  %v424 = vpop.permute.xlu0 %423
  %425 = vrot.lane.b32.xlu0 %v325, 19
  %v426 = vpop.permute.xlu0 %425
  %427 = vrot.lane.b32.xlu0 %v326, 19
  %v428 = vpop.permute.xlu0 %427
  %429 = vrot.lane.b32.xlu0 %v327, 19
  %v430 = vpop.permute.xlu0 %429
  %431 = vrot.lane.b32.xlu0 %v328, 19
  %v432 = vpop.permute.xlu0 %431
  %433 = vrot.lane.b32.xlu0 %v329, 19
  %v434 = vpop.permute.xlu0 %433
  %435 = vrot.lane.b32.xlu0 %v330, 19
  %v436 = vpop.permute.xlu0 %435
  %437 = vrot.lane.b32.xlu0 %v331, 19
  %v438 = vpop.permute.xlu0 %437
  %439 = vrot.lane.b32.xlu0 %v332, 19
  %v440 = vpop.permute.xlu0 %439
  %441 = vrot.lane.b32.xlu0 %v333, 19
  %v442 = vpop.permute.xlu0 %441
  %443 = vrot.lane.b32.xlu0 %v334, 19
  %v444 = vpop.permute.xlu0 %443
  %445 = vrot.lane.b32.xlu0 %v335, 19
  %v446 = vpop.permute.xlu0 %445
  %vm447 = vcmask 154624
  %v448 = vsel %vm447, %v378, %v380
  %v449 = vsel %vm447, %v380, %v382
  %v450 = vsel %vm447, %v382, %v384
  %v451 = vsel %vm447, %v384, %v386
  %v452 = vsel %vm447, %v386, %v388
  %v453 = vsel %vm447, %v388, %v390
  %v454 = vsel %vm447, %v392, %v394
  %v455 = vsel %vm447, %v394, %v396
  %v456 = vsel %vm447, %v396, %v398
  %v457 = vsel %vm447, %v398, %v400
  %v458 = vsel %vm447, %v400, %v402
  %v459 = vsel %vm447, %v402, %v404
  %v460 = vsel %vm447, %v406, %v408
  %v461 = vsel %vm447, %v408, %v410
  %v462 = vsel %vm447, %v410, %v412
  %v463 = vsel %vm447, %v412, %v414
  %v464 = vsel %vm447, %v414, %v416
  %v465 = vsel %vm447, %v416, %v418
  %v466 = vsel %vm447, %v420, %v422
  %v467 = vsel %vm447, %v422, %v424
  %v468 = vsel %vm447, %v424, %v426
  %v469 = vsel %vm447, %v426, %v428
  %v470 = vsel %vm447, %v428, %v430
  %v471 = vsel %vm447, %v430, %v432
  %v472 = vsel %vm447, %v434, %v436
  %v473 = vsel %vm447, %v436, %v438
  %v474 = vsel %vm447, %v438, %v440
  %v475 = vsel %vm447, %v440, %v442
  %v476 = vsel %vm447, %v442, %v444
  %v477 = vsel %vm447, %v444, %v446
  %vm502 = vcmask 588800
  %v504 = vsel %vm502, %v45, 0
  %vm506 = vcmask 1043456
  %v508 = vsel %vm506, %v472, 0
  %v511 = vsel %vm506, %v473, 0
  %v514 = vsel %vm506, %v474, 0
  %v517 = vsel %vm506, %v475, 0
  %v520 = vsel %vm506, %v476, 0
  %v523 = vsel %vm506, %v477, 0
  %525 = vmatprep.subr.bf16.mxu0 %v449
  %526 = vmatpush1.bf16.msra.mxu0 %v448
  %527 = vmatprep.subr.bf16.mxu0 %v455
  %528 = vmatpush1.bf16.msra.mxu0 %v454
  %529 = vmatprep.subr.bf16.mxu0 %v461
  %530 = vmatpush1.bf16.msra.mxu0 %v460
  %531 = vmatprep.subr.bf16.mxu0 %v467
  %532 = vmatpush1.bf16.msra.mxu0 %v466
  %533 = vmatprep.subr.bf16.mxu0 %v511
  %534 = vmatpush1.bf16.msra.mxu0 %v508
  %535 = vmatprep.subr.bf16.mxu0 0
  %536 = vmatpush1.bf16.msra.mxu0 0
  %537 = vmatprep.subr.bf16.mxu0 0
  %538 = vmatpush1.bf16.msra.mxu0 0
  %539 = vmatprep.subr.bf16.mxu0 0
  %540 = vmatpush1.bf16.msra.mxu0 0
  %541 = vmatprep.subr.bf16.mxu0 0
  %542 = vmatpush1.bf16.msra.mxu0 0
  %543 = vmatprep.subr.bf16.mxu0 0
  %544 = vmatpush1.bf16.msra.mxu0 0
  %545 = vmatprep.subr.bf16.mxu0 0
  %546 = vmatpush1.bf16.msra.mxu0 0
  %547 = vmatprep.subr.bf16.mxu0 0
  %548 = vmatpush1.bf16.msra.mxu0 0
  %549 = vmatprep.subr.bf16.mxu0 0
  %550 = vmatpush1.bf16.msra.mxu0 0
  %551 = vmatprep.subr.bf16.mxu0 0
  %552 = vmatpush1.bf16.msra.mxu0 0
  %553 = vmatprep.subr.bf16.mxu0 0
  %554 = vmatpush1.bf16.msra.mxu0 0
  %555 = vmatprep.subr.bf16.mxu0 0
  %556 = vmatpush1.bf16.msra.mxu0 0
  %557 = vmatprep.mubr.bf16.mxu0 0
  %558 = vmatmul.mubr.bf16.gmra.mrb[0].mxu0 %v504
  %v559 = vpop.f32.mrb[0].mxu0
  %v560 = vadd.f32 %v340, %v559
  %v561 = vpop.f32.mrb[0].mxu0
  %v562 = vadd.f32 %v340, %v561
  %v563 = vpop.f32.mrb[0].mxu0
  %v564 = vpop.f32.mrb[0].mxu0
  %565 = vdwg.mxu0
  %566 = vmatprep.subr.bf16.mxu0 %v451
  %567 = vmatpush1.bf16.msra.mxu0 %v450
  %568 = vmatprep.subr.bf16.mxu0 %v457
  %569 = vmatpush1.bf16.msra.mxu0 %v456
  %570 = vmatprep.subr.bf16.mxu0 %v463
  %571 = vmatpush1.bf16.msra.mxu0 %v462
  %572 = vmatprep.subr.bf16.mxu0 %v469
  %573 = vmatpush1.bf16.msra.mxu0 %v468
  %574 = vmatprep.subr.bf16.mxu0 %v517
  %575 = vmatpush1.bf16.msra.mxu0 %v514
  %576 = vmatprep.subr.bf16.mxu0 0
  %577 = vmatpush1.bf16.msra.mxu0 0
  %578 = vmatprep.subr.bf16.mxu0 0
  %579 = vmatpush1.bf16.msra.mxu0 0
  %580 = vmatprep.subr.bf16.mxu0 0
  %581 = vmatpush1.bf16.msra.mxu0 0
  %582 = vmatprep.subr.bf16.mxu0 0
  %583 = vmatpush1.bf16.msra.mxu0 0
  %584 = vmatprep.subr.bf16.mxu0 0
  %585 = vmatpush1.bf16.msra.mxu0 0
  %586 = vmatprep.subr.bf16.mxu0 0
  %587 = vmatpush1.bf16.msra.mxu0 0
  %588 = vmatprep.subr.bf16.mxu0 0
  %589 = vmatpush1.bf16.msra.mxu0 0
  %590 = vmatprep.subr.bf16.mxu0 0
  %591 = vmatpush1.bf16.msra.mxu0 0
  %592 = vmatprep.subr.bf16.mxu0 0
  %593 = vmatpush1.bf16.msra.mxu0 0
  %594 = vmatprep.subr.bf16.mxu0 0
  %595 = vmatpush1.bf16.msra.mxu0 0
  %596 = vmatprep.subr.bf16.mxu0 0
  %597 = vmatpush1.bf16.msra.mxu0 0
  %598 = vmatprep.mubr.bf16.mxu0 0
  %599 = vmatmul.mubr.bf16.gmra.mrb[0].mxu0 %v504
  %v600 = vpop.f32.mrb[0].mxu0
  %v601 = vadd.f32 %v340, %v600
  %v602 = vpop.f32.mrb[0].mxu0
  %v603 = vadd.f32 %v340, %v602
  %v604 = vpop.f32.mrb[0].mxu0
  %v605 = vpop.f32.mrb[0].mxu0
  %606 = vdwg.mxu0
  %607 = vmatprep.subr.bf16.mxu0 %v453
  %608 = vmatpush1.bf16.msra.mxu0 %v452
  %609 = vmatprep.subr.bf16.mxu0 %v459
  %610 = vmatpush1.bf16.msra.mxu0 %v458
  %611 = vmatprep.subr.bf16.mxu0 %v465
  %612 = vmatpush1.bf16.msra.mxu0 %v464
  %613 = vmatprep.subr.bf16.mxu0 %v471
  %614 = vmatpush1.bf16.msra.mxu0 %v470
  %615 = vmatprep.subr.bf16.mxu0 %v523
  %616 = vmatpush1.bf16.msra.mxu0 %v520
  %617 = vmatprep.subr.bf16.mxu0 0
  %618 = vmatpush1.bf16.msra.mxu0 0
  %619 = vmatprep.subr.bf16.mxu0 0
  %620 = vmatpush1.bf16.msra.mxu0 0
  %621 = vmatprep.subr.bf16.mxu0 0
  %622 = vmatpush1.bf16.msra.mxu0 0
  %623 = vmatprep.subr.bf16.mxu0 0
  %624 = vmatpush1.bf16.msra.mxu0 0
  %625 = vmatprep.subr.bf16.mxu0 0
  %626 = vmatpush1.bf16.msra.mxu0 0
  %627 = vmatprep.subr.bf16.mxu0 0
  %628 = vmatpush1.bf16.msra.mxu0 0
  %629 = vmatprep.subr.bf16.mxu0 0
  %630 = vmatpush1.bf16.msra.mxu0 0
  %631 = vmatprep.subr.bf16.mxu0 0
  %632 = vmatpush1.bf16.msra.mxu0 0
  %633 = vmatprep.subr.bf16.mxu0 0
  %634 = vmatpush1.bf16.msra.mxu0 0
  %635 = vmatprep.subr.bf16.mxu0 0
  %636 = vmatpush1.bf16.msra.mxu0 0
  %637 = vmatprep.subr.bf16.mxu0 0
  %638 = vmatpush1.bf16.msra.mxu0 0
  %639 = vmatprep.mubr.bf16.mxu0 0
  %640 = vmatmul.mubr.bf16.gmra.mrb[0].mxu0 %v504
  %v641 = vpop.f32.mrb[0].mxu0
  %v642 = vadd.f32 %v340, %v641
  %v643 = vpop.f32.mrb[0].mxu0
  %v644 = vadd.f32 %v340, %v643
  %v645 = vpop.f32.mrb[0].mxu0
  %v646 = vpop.f32.mrb[0].mxu0
  %647 = vdwg.mxu0
  %v648 = vmax.f32 %v560, 0.0
  %v649 = vmax.f32 %v562, 0.0
  %v650 = vmax.f32 %v601, 0.0
  %v651 = vmax.f32 %v603, 0.0
  %v652 = vmax.f32 %v642, 0.0
  %v653 = vmax.f32 %v644, 0.0
  %v655 = vlaneseq
  %v656 = vshrl.u32 %v655, 7
  %v657 = vsub.s32 0, %v656
  %v658 = vrot.slane %v30, %v657
  %v659 = vlaneseq
  %v660 = vshrl.u32 %v659, 7
  %v661 = vsub.s32 1, %v660
  %v662 = vrot.slane %v30, %v661
  %v663 = vlaneseq
  %v664 = vshrl.u32 %v663, 7
  %v665 = vsub.s32 2, %v664
  %v666 = vrot.slane %v30, %v665
  %v667 = vlaneseq
  %v668 = vshrl.u32 %v667, 7
  %v669 = vsub.s32 3, %v668
  %v670 = vrot.slane %v30, %v669
  %v671 = vlaneseq
  %v672 = vshrl.u32 %v671, 7
  %v673 = vsub.s32 4, %v672
  %v674 = vrot.slane %v30, %v673
  %v675 = vlaneseq
  %v676 = vshrl.u32 %v675, 7
  %v677 = vsub.s32 5, %v676
  %v678 = vrot.slane %v30, %v677
  %v685 = vmul.f32 %v648, %v658
  %v686 = vmul.f32 %v649, %v662
  %v687 = vmul.f32 %v650, %v666
  %v688 = vmul.f32 %v651, %v670
  %v689 = vmul.f32 %v652, %v674
  %v690 = vmul.f32 %v653, %v678
  %v691 = vld [vmem:[%s4] sm:$0xf]
  %692 = vst [vmem:[#allocation2 + $0x8] sm:$0xff] %v685
  %693 = vst [vmem:[#allocation2 + $0x10] sm:$0xff] %v686
  %694 = vst [vmem:[#allocation2 + $0x18] sm:$0xff] %v687
  %695 = vst [vmem:[#allocation2 + $0x20] sm:$0xff] %v688
  %696 = vst [vmem:[#allocation2 + $0x28] sm:$0xff] %v689
  %697 = vst [vmem:[#allocation2 + $0x30] sm:$0xff] %v690
  %v698 = vld [vmem:[#allocation2] sm:$0xff]
  %v699 = vld [vmem:[#allocation2 + $0x8] sm:$0xff]
  %v700 = vld [vmem:[#allocation2 + $0x10] sm:$0xff]
  %v701 = vld [vmem:[#allocation2 + $0x18] sm:$0xff]
  %v702 = vld [vmem:[#allocation2 + $0x20] sm:$0xff]
  %v703 = vld [vmem:[#allocation2 + $0x28] sm:$0xff]
  %v704 = vld [vmem:[#allocation2 + $0x30] sm:$0xff]
  %v705 = vld [vmem:[#allocation2 + $0x8] sm:$0xff]
  %v706 = vld [vmem:[#allocation2 + $0x10] sm:$0xff]
  %v707 = vld [vmem:[#allocation2 + $0x18] sm:$0xff]
  %v708 = vld [vmem:[#allocation2 + $0x20] sm:$0xff]
  %v709 = vld [vmem:[#allocation2 + $0x28] sm:$0xff]
  %v710 = vld [vmem:[#allocation2 + $0x30] sm:$0xff]
  %v711 = vld [vmem:[#allocation2 + $0x38] sm:$0xff]
  %719 = vrot.lane.b32.xlu0 %v698, 127
  %v720 = vpop.permute.xlu0 %719
  %721 = vrot.lane.b32.xlu0 %v699, 127
  %v722 = vpop.permute.xlu0 %721
  %723 = vrot.lane.b32.xlu0 %v700, 127
  %v724 = vpop.permute.xlu0 %723
  %725 = vrot.lane.b32.xlu0 %v701, 127
  %v726 = vpop.permute.xlu0 %725
  %727 = vrot.lane.b32.xlu0 %v702, 127
  %v728 = vpop.permute.xlu0 %727
  %729 = vrot.lane.b32.xlu0 %v703, 127
  %v730 = vpop.permute.xlu0 %729
  %731 = vrot.lane.b32.xlu0 %v704, 127
  %v732 = vpop.permute.xlu0 %731
  %v733 = vsel %vm87, %v720, %v722
  %v734 = vsel %vm87, %v722, %v724
  %v735 = vsel %vm87, %v724, %v726
  %v736 = vsel %vm87, %v726, %v728
  %v737 = vsel %vm87, %v728, %v730
  %v738 = vsel %vm87, %v730, %v732
  %746 = vrot.lane.b32.xlu0 %v698, 126
  %v747 = vpop.permute.xlu0 %746
  %748 = vrot.lane.b32.xlu0 %v699, 126
  %v749 = vpop.permute.xlu0 %748
  %750 = vrot.lane.b32.xlu0 %v700, 126
  %v751 = vpop.permute.xlu0 %750
  %752 = vrot.lane.b32.xlu0 %v701, 126
  %v753 = vpop.permute.xlu0 %752
  %754 = vrot.lane.b32.xlu0 %v702, 126
  %v755 = vpop.permute.xlu0 %754
  %756 = vrot.lane.b32.xlu0 %v703, 126
  %v757 = vpop.permute.xlu0 %756
  %758 = vrot.lane.b32.xlu0 %v704, 126
  %v759 = vpop.permute.xlu0 %758
  %v760 = vsel %vm115, %v747, %v749
  %v761 = vsel %vm115, %v749, %v751
  %v762 = vsel %vm115, %v751, %v753
  %v763 = vsel %vm115, %v753, %v755
  %v764 = vsel %vm115, %v755, %v757
  %v765 = vsel %vm115, %v757, %v759
  %773 = vrot.lane.b32.xlu0 %v698, 110
  %v774 = vpop.permute.xlu0 %773
  %775 = vrot.lane.b32.xlu0 %v699, 110
  %v776 = vpop.permute.xlu0 %775
  %777 = vrot.lane.b32.xlu0 %v700, 110
  %v778 = vpop.permute.xlu0 %777
  %779 = vrot.lane.b32.xlu0 %v701, 110
  %v780 = vpop.permute.xlu0 %779
  %781 = vrot.lane.b32.xlu0 %v702, 110
  %v782 = vpop.permute.xlu0 %781
  %783 = vrot.lane.b32.xlu0 %v703, 110
  %v784 = vpop.permute.xlu0 %783
  %785 = vrot.lane.b32.xlu0 %v704, 110
  %v786 = vpop.permute.xlu0 %785
  %v787 = vsel %vm143, %v774, %v776
  %v788 = vsel %vm143, %v776, %v778
  %v789 = vsel %vm143, %v778, %v780
  %v790 = vsel %vm143, %v780, %v782
  %v791 = vsel %vm143, %v782, %v784
  %v792 = vsel %vm143, %v784, %v786
  %800 = vrot.lane.b32.xlu0 %v699, 109
  %v801 = vpop.permute.xlu0 %800
  %802 = vrot.lane.b32.xlu0 %v700, 109
  %v803 = vpop.permute.xlu0 %802
  %804 = vrot.lane.b32.xlu0 %v701, 109
  %v805 = vpop.permute.xlu0 %804
  %806 = vrot.lane.b32.xlu0 %v702, 109
  %v807 = vpop.permute.xlu0 %806
  %808 = vrot.lane.b32.xlu0 %v703, 109
  %v809 = vpop.permute.xlu0 %808
  %810 = vrot.lane.b32.xlu0 %v704, 109
  %v811 = vpop.permute.xlu0 %810
  %v812 = vsel %vm169, %v801, %v803
  %v813 = vsel %vm169, %v803, %v805
  %v814 = vsel %vm169, %v805, %v807
  %v815 = vsel %vm169, %v807, %v809
  %v816 = vsel %vm169, %v809, %v811
  %831 = vrot.lane.b32.xlu0 %v705, 108
  %v832 = vpop.permute.xlu0 %831
  %833 = vrot.lane.b32.xlu0 %v706, 108
  %v834 = vpop.permute.xlu0 %833
  %835 = vrot.lane.b32.xlu0 %v707, 108
  %v836 = vpop.permute.xlu0 %835
  %837 = vrot.lane.b32.xlu0 %v708, 108
  %v838 = vpop.permute.xlu0 %837
  %839 = vrot.lane.b32.xlu0 %v709, 108
  %v840 = vpop.permute.xlu0 %839
  %841 = vrot.lane.b32.xlu0 %v710, 108
  %v842 = vpop.permute.xlu0 %841
  %843 = vrot.lane.b32.xlu0 %v711, 108
  %v844 = vpop.permute.xlu0 %843
  %v845 = vsel %vm203, %v832, %v834
  %v846 = vsel %vm203, %v834, %v836
  %v847 = vsel %vm203, %v836, %v838
  %v848 = vsel %vm203, %v838, %v840
  %v849 = vsel %vm203, %v840, %v842
  %v850 = vsel %vm203, %v842, %v844
  %858 = vrot.lane.b32.xlu0 %v705, 92
  %v859 = vpop.permute.xlu0 %858
  %860 = vrot.lane.b32.xlu0 %v706, 92
  %v861 = vpop.permute.xlu0 %860
  %862 = vrot.lane.b32.xlu0 %v707, 92
  %v863 = vpop.permute.xlu0 %862
  %864 = vrot.lane.b32.xlu0 %v708, 92
  %v865 = vpop.permute.xlu0 %864
  %866 = vrot.lane.b32.xlu0 %v709, 92
  %v867 = vpop.permute.xlu0 %866
  %868 = vrot.lane.b32.xlu0 %v710, 92
  %v869 = vpop.permute.xlu0 %868
  %870 = vrot.lane.b32.xlu0 %v711, 92
  %v871 = vpop.permute.xlu0 %870
  %v872 = vsel %vm231, %v859, %v861
  %v873 = vsel %vm231, %v861, %v863
  %v874 = vsel %vm231, %v863, %v865
  %v875 = vsel %vm231, %v865, %v867
  %v876 = vsel %vm231, %v867, %v869
  %v877 = vsel %vm231, %v869, %v871
  %885 = vrot.lane.b32.xlu0 %v705, 91
  %v886 = vpop.permute.xlu0 %885
  %887 = vrot.lane.b32.xlu0 %v706, 91
  %v888 = vpop.permute.xlu0 %887
  %889 = vrot.lane.b32.xlu0 %v707, 91
  %v890 = vpop.permute.xlu0 %889
  %891 = vrot.lane.b32.xlu0 %v708, 91
  %v892 = vpop.permute.xlu0 %891
  %893 = vrot.lane.b32.xlu0 %v709, 91
  %v894 = vpop.permute.xlu0 %893
  %895 = vrot.lane.b32.xlu0 %v710, 91
  %v896 = vpop.permute.xlu0 %895
  %897 = vrot.lane.b32.xlu0 %v711, 91
  %v898 = vpop.permute.xlu0 %897
  %v899 = vsel %vm259, %v886, %v888
  %v900 = vsel %vm259, %v888, %v890
  %v901 = vsel %vm259, %v890, %v892
  %v902 = vsel %vm259, %v892, %v894
  %v903 = vsel %vm259, %v894, %v896
  %v904 = vsel %vm259, %v896, %v898
  %912 = vrot.lane.b32.xlu0 %v705, 90
  %v913 = vpop.permute.xlu0 %912
  %914 = vrot.lane.b32.xlu0 %v706, 90
  %v915 = vpop.permute.xlu0 %914
  %916 = vrot.lane.b32.xlu0 %v707, 90
  %v917 = vpop.permute.xlu0 %916
  %918 = vrot.lane.b32.xlu0 %v708, 90
  %v919 = vpop.permute.xlu0 %918
  %920 = vrot.lane.b32.xlu0 %v709, 90
  %v921 = vpop.permute.xlu0 %920
  %922 = vrot.lane.b32.xlu0 %v710, 90
  %v923 = vpop.permute.xlu0 %922
  %924 = vrot.lane.b32.xlu0 %v711, 90
  %v925 = vpop.permute.xlu0 %924
  %v926 = vsel %vm287, %v913, %v915
  %v927 = vsel %vm287, %v915, %v917
  %v928 = vsel %vm287, %v917, %v919
  %v929 = vsel %vm287, %v919, %v921
  %v930 = vsel %vm287, %v921, %v923
  %v931 = vsel %vm287, %v923, %v925
  %v939 = vpack.c.bf16 %v733, %v698
  %v940 = vpack.c.bf16 %v734, %v699
  %v941 = vpack.c.bf16 %v735, %v700
  %v942 = vpack.c.bf16 %v736, %v701
  %v943 = vpack.c.bf16 %v737, %v702
  %v944 = vpack.c.bf16 %v738, %v703
  %v945 = vpack.c.bf16 %v732, %v704
  %v946 = vpack.c.bf16 %v787, %v760
  %v947 = vpack.c.bf16 %v788, %v761
  %v948 = vpack.c.bf16 %v789, %v762
  %v949 = vpack.c.bf16 %v790, %v763
  %v950 = vpack.c.bf16 %v791, %v764
  %v951 = vpack.c.bf16 %v792, %v765
  %v952 = vpack.c.bf16 %v786, %v759
  %v953 = vpack.c.bf16 %v832, %v801
  %v954 = vpack.c.bf16 %v845, %v812
  %v955 = vpack.c.bf16 %v846, %v813
  %v956 = vpack.c.bf16 %v847, %v814
  %v957 = vpack.c.bf16 %v848, %v815
  %v958 = vpack.c.bf16 %v849, %v816
  %v959 = vpack.c.bf16 %v850, %v811
  %v960 = vpack.c.bf16 %v886, %v859
  %v961 = vpack.c.bf16 %v899, %v872
  %v962 = vpack.c.bf16 %v900, %v873
  %v963 = vpack.c.bf16 %v901, %v874
  %v964 = vpack.c.bf16 %v902, %v875
  %v965 = vpack.c.bf16 %v903, %v876
  %v966 = vpack.c.bf16 %v904, %v877
  %v967 = vpack.c.bf16 %v913, %v913
  %v968 = vpack.c.bf16 %v926, %v926
  %v969 = vpack.c.bf16 %v927, %v927
  %v970 = vpack.c.bf16 %v928, %v928
  %v971 = vpack.c.bf16 %v929, %v929
  %v972 = vpack.c.bf16 %v930, %v930
  %v973 = vpack.c.bf16 %v931, %v931
  %v974 = vld [vmem:[%s5] sm:$0xff]
  %976 = vset.pattern.permute.xlu0 0
  %977 = vperm.xlu0 %976, %v974
  %v978 = vpop.permute.xlu0 %977
  %1015 = vrot.lane.b32.xlu0 %v939, 19
  %v1016 = vpop.permute.xlu0 %1015
  %1017 = vrot.lane.b32.xlu0 %v940, 19
  %v1018 = vpop.permute.xlu0 %1017
  %1019 = vrot.lane.b32.xlu0 %v941, 19
  %v1020 = vpop.permute.xlu0 %1019
  %1021 = vrot.lane.b32.xlu0 %v942, 19
  %v1022 = vpop.permute.xlu0 %1021
  %1023 = vrot.lane.b32.xlu0 %v943, 19
  %v1024 = vpop.permute.xlu0 %1023
  %1025 = vrot.lane.b32.xlu0 %v944, 19
  %v1026 = vpop.permute.xlu0 %1025
  %1027 = vrot.lane.b32.xlu0 %v945, 19
  %v1028 = vpop.permute.xlu0 %1027
  %1029 = vrot.lane.b32.xlu0 %v946, 19
  %v1030 = vpop.permute.xlu0 %1029
  %1031 = vrot.lane.b32.xlu0 %v947, 19
  %v1032 = vpop.permute.xlu0 %1031
  %1033 = vrot.lane.b32.xlu0 %v948, 19
  %v1034 = vpop.permute.xlu0 %1033
  %1035 = vrot.lane.b32.xlu0 %v949, 19
  %v1036 = vpop.permute.xlu0 %1035
  %1037 = vrot.lane.b32.xlu0 %v950, 19
  %v1038 = vpop.permute.xlu0 %1037
  %1039 = vrot.lane.b32.xlu0 %v951, 19
  %v1040 = vpop.permute.xlu0 %1039
  %1041 = vrot.lane.b32.xlu0 %v952, 19
  %v1042 = vpop.permute.xlu0 %1041
  %1043 = vrot.lane.b32.xlu0 %v953, 19
  %v1044 = vpop.permute.xlu0 %1043
  %1045 = vrot.lane.b32.xlu0 %v954, 19
  %v1046 = vpop.permute.xlu0 %1045
  %1047 = vrot.lane.b32.xlu0 %v955, 19
  %v1048 = vpop.permute.xlu0 %1047
  %1049 = vrot.lane.b32.xlu0 %v956, 19
  %v1050 = vpop.permute.xlu0 %1049
  %1051 = vrot.lane.b32.xlu0 %v957, 19
  %v1052 = vpop.permute.xlu0 %1051
  %1053 = vrot.lane.b32.xlu0 %v958, 19
  %v1054 = vpop.permute.xlu0 %1053
  %1055 = vrot.lane.b32.xlu0 %v959, 19
  %v1056 = vpop.permute.xlu0 %1055
  %1057 = vrot.lane.b32.xlu0 %v960, 19
  %v1058 = vpop.permute.xlu0 %1057
  %1059 = vrot.lane.b32.xlu0 %v961, 19
  %v1060 = vpop.permute.xlu0 %1059
  %1061 = vrot.lane.b32.xlu0 %v962, 19
  %v1062 = vpop.permute.xlu0 %1061
  %1063 = vrot.lane.b32.xlu0 %v963, 19
  %v1064 = vpop.permute.xlu0 %1063
  %1065 = vrot.lane.b32.xlu0 %v964, 19
  %v1066 = vpop.permute.xlu0 %1065
  %1067 = vrot.lane.b32.xlu0 %v965, 19
  %v1068 = vpop.permute.xlu0 %1067
  %1069 = vrot.lane.b32.xlu0 %v966, 19
  %v1070 = vpop.permute.xlu0 %1069
  %1071 = vrot.lane.b32.xlu0 %v967, 19
  %v1072 = vpop.permute.xlu0 %1071
  %1073 = vrot.lane.b32.xlu0 %v968, 19
  %v1074 = vpop.permute.xlu0 %1073
  %1075 = vrot.lane.b32.xlu0 %v969, 19
  %v1076 = vpop.permute.xlu0 %1075
  %1077 = vrot.lane.b32.xlu0 %v970, 19
  %v1078 = vpop.permute.xlu0 %1077
  %1079 = vrot.lane.b32.xlu0 %v971, 19
  %v1080 = vpop.permute.xlu0 %1079
  %1081 = vrot.lane.b32.xlu0 %v972, 19
  %v1082 = vpop.permute.xlu0 %1081
  %1083 = vrot.lane.b32.xlu0 %v973, 19
  %v1084 = vpop.permute.xlu0 %1083
  %v1085 = vsel %vm447, %v1016, %v1018
  %v1086 = vsel %vm447, %v1018, %v1020
  %v1087 = vsel %vm447, %v1020, %v1022
  %v1088 = vsel %vm447, %v1022, %v1024
  %v1089 = vsel %vm447, %v1024, %v1026
  %v1090 = vsel %vm447, %v1026, %v1028
  %v1091 = vsel %vm447, %v1030, %v1032
  %v1092 = vsel %vm447, %v1032, %v1034
  %v1093 = vsel %vm447, %v1034, %v1036
  %v1094 = vsel %vm447, %v1036, %v1038
  %v1095 = vsel %vm447, %v1038, %v1040
  %v1096 = vsel %vm447, %v1040, %v1042
  %v1097 = vsel %vm447, %v1044, %v1046
  %v1098 = vsel %vm447, %v1046, %v1048
  %v1099 = vsel %vm447, %v1048, %v1050
  %v1100 = vsel %vm447, %v1050, %v1052
  %v1101 = vsel %vm447, %v1052, %v1054
  %v1102 = vsel %vm447, %v1054, %v1056
  %v1103 = vsel %vm447, %v1058, %v1060
  %v1104 = vsel %vm447, %v1060, %v1062
  %v1105 = vsel %vm447, %v1062, %v1064
  %v1106 = vsel %vm447, %v1064, %v1066
  %v1107 = vsel %vm447, %v1066, %v1068
  %v1108 = vsel %vm447, %v1068, %v1070
  %v1109 = vsel %vm447, %v1072, %v1074
  %v1110 = vsel %vm447, %v1074, %v1076
  %v1111 = vsel %vm447, %v1076, %v1078
  %v1112 = vsel %vm447, %v1078, %v1080
  %v1113 = vsel %vm447, %v1080, %v1082
  %v1114 = vsel %vm447, %v1082, %v1084
  %v1140 = vsel %vm502, %v691, 0
  %v1143 = vsel %vm506, %v1109, 0
  %v1146 = vsel %vm506, %v1110, 0
  %v1149 = vsel %vm506, %v1111, 0
  %v1152 = vsel %vm506, %v1112, 0
  %v1155 = vsel %vm506, %v1113, 0
  %v1158 = vsel %vm506, %v1114, 0
  %1160 = vmatprep.subr.bf16.mxu0 %v1086
  %1161 = vmatpush1.bf16.msra.mxu0 %v1085
  %1162 = vmatprep.subr.bf16.mxu0 %v1092
  %1163 = vmatpush1.bf16.msra.mxu0 %v1091
  %1164 = vmatprep.subr.bf16.mxu0 %v1098
  %1165 = vmatpush1.bf16.msra.mxu0 %v1097
  %1166 = vmatprep.subr.bf16.mxu0 %v1104
  %1167 = vmatpush1.bf16.msra.mxu0 %v1103
  %1168 = vmatprep.subr.bf16.mxu0 %v1146
  %1169 = vmatpush1.bf16.msra.mxu0 %v1143
  %1170 = vmatprep.subr.bf16.mxu0 0
  %1171 = vmatpush1.bf16.msra.mxu0 0
  %1172 = vmatprep.subr.bf16.mxu0 0
  %1173 = vmatpush1.bf16.msra.mxu0 0
  %1174 = vmatprep.subr.bf16.mxu0 0
  %1175 = vmatpush1.bf16.msra.mxu0 0
  %1176 = vmatprep.subr.bf16.mxu0 0
  %1177 = vmatpush1.bf16.msra.mxu0 0
  %1178 = vmatprep.subr.bf16.mxu0 0
  %1179 = vmatpush1.bf16.msra.mxu0 0
  %1180 = vmatprep.subr.bf16.mxu0 0
  %1181 = vmatpush1.bf16.msra.mxu0 0
  %1182 = vmatprep.subr.bf16.mxu0 0
  %1183 = vmatpush1.bf16.msra.mxu0 0
  %1184 = vmatprep.subr.bf16.mxu0 0
  %1185 = vmatpush1.bf16.msra.mxu0 0
  %1186 = vmatprep.subr.bf16.mxu0 0
  %1187 = vmatpush1.bf16.msra.mxu0 0
  %1188 = vmatprep.subr.bf16.mxu0 0
  %1189 = vmatpush1.bf16.msra.mxu0 0
  %1190 = vmatprep.subr.bf16.mxu0 0
  %1191 = vmatpush1.bf16.msra.mxu0 0
  %1192 = vmatprep.mubr.bf16.mxu0 0
  %1193 = vmatmul.mubr.bf16.gmra.mrb[0].mxu0 %v1140
  %v1194 = vpop.f32.mrb[0].mxu0
  %v1195 = vadd.f32 %v978, %v1194
  %v1196 = vpop.f32.mrb[0].mxu0
  %v1197 = vadd.f32 %v978, %v1196
  %v1198 = vpop.f32.mrb[0].mxu0
  %v1199 = vpop.f32.mrb[0].mxu0
  %1200 = vdwg.mxu0
  %1201 = vmatprep.subr.bf16.mxu0 %v1088
  %1202 = vmatpush1.bf16.msra.mxu0 %v1087
  %1203 = vmatprep.subr.bf16.mxu0 %v1094
  %1204 = vmatpush1.bf16.msra.mxu0 %v1093
  %1205 = vmatprep.subr.bf16.mxu0 %v1100
  %1206 = vmatpush1.bf16.msra.mxu0 %v1099
  %1207 = vmatprep.subr.bf16.mxu0 %v1106
  %1208 = vmatpush1.bf16.msra.mxu0 %v1105
  %1209 = vmatprep.subr.bf16.mxu0 %v1152
  %1210 = vmatpush1.bf16.msra.mxu0 %v1149
  %1211 = vmatprep.subr.bf16.mxu0 0
  %1212 = vmatpush1.bf16.msra.mxu0 0
  %1213 = vmatprep.subr.bf16.mxu0 0
  %1214 = vmatpush1.bf16.msra.mxu0 0
  %1215 = vmatprep.subr.bf16.mxu0 0
  %1216 = vmatpush1.bf16.msra.mxu0 0
  %1217 = vmatprep.subr.bf16.mxu0 0
  %1218 = vmatpush1.bf16.msra.mxu0 0
  %1219 = vmatprep.subr.bf16.mxu0 0
  %1220 = vmatpush1.bf16.msra.mxu0 0
  %1221 = vmatprep.subr.bf16.mxu0 0
  %1222 = vmatpush1.bf16.msra.mxu0 0
  %1223 = vmatprep.subr.bf16.mxu0 0
  %1224 = vmatpush1.bf16.msra.mxu0 0
  %1225 = vmatprep.subr.bf16.mxu0 0
  %1226 = vmatpush1.bf16.msra.mxu0 0
  %1227 = vmatprep.subr.bf16.mxu0 0
  %1228 = vmatpush1.bf16.msra.mxu0 0
  %1229 = vmatprep.subr.bf16.mxu0 0
  %1230 = vmatpush1.bf16.msra.mxu0 0
  %1231 = vmatprep.subr.bf16.mxu0 0
  %1232 = vmatpush1.bf16.msra.mxu0 0
  %1233 = vmatprep.mubr.bf16.mxu0 0
  %1234 = vmatmul.mubr.bf16.gmra.mrb[0].mxu0 %v1140
  %v1235 = vpop.f32.mrb[0].mxu0
  %v1236 = vadd.f32 %v978, %v1235
  %v1237 = vpop.f32.mrb[0].mxu0
  %v1238 = vadd.f32 %v978, %v1237
  %v1239 = vpop.f32.mrb[0].mxu0
  %v1240 = vpop.f32.mrb[0].mxu0
  %1241 = vdwg.mxu0
  %1242 = vmatprep.subr.bf16.mxu0 %v1090
  %1243 = vmatpush1.bf16.msra.mxu0 %v1089
  %1244 = vmatprep.subr.bf16.mxu0 %v1096
  %1245 = vmatpush1.bf16.msra.mxu0 %v1095
  %1246 = vmatprep.subr.bf16.mxu0 %v1102
  %1247 = vmatpush1.bf16.msra.mxu0 %v1101
  %1248 = vmatprep.subr.bf16.mxu0 %v1108
  %1249 = vmatpush1.bf16.msra.mxu0 %v1107
  %1250 = vmatprep.subr.bf16.mxu0 %v1158
  %1251 = vmatpush1.bf16.msra.mxu0 %v1155
  %1252 = vmatprep.subr.bf16.mxu0 0
  %1253 = vmatpush1.bf16.msra.mxu0 0
  %1254 = vmatprep.subr.bf16.mxu0 0
  %1255 = vmatpush1.bf16.msra.mxu0 0
  %1256 = vmatprep.subr.bf16.mxu0 0
  %1257 = vmatpush1.bf16.msra.mxu0 0
  %1258 = vmatprep.subr.bf16.mxu0 0
  %1259 = vmatpush1.bf16.msra.mxu0 0
  %1260 = vmatprep.subr.bf16.mxu0 0
  %1261 = vmatpush1.bf16.msra.mxu0 0
  %1262 = vmatprep.subr.bf16.mxu0 0
  %1263 = vmatpush1.bf16.msra.mxu0 0
  %1264 = vmatprep.subr.bf16.mxu0 0
  %1265 = vmatpush1.bf16.msra.mxu0 0
  %1266 = vmatprep.subr.bf16.mxu0 0
  %1267 = vmatpush1.bf16.msra.mxu0 0
  %1268 = vmatprep.subr.bf16.mxu0 0
  %1269 = vmatpush1.bf16.msra.mxu0 0
  %1270 = vmatprep.subr.bf16.mxu0 0
  %1271 = vmatpush1.bf16.msra.mxu0 0
  %1272 = vmatprep.subr.bf16.mxu0 0
  %1273 = vmatpush1.bf16.msra.mxu0 0
  %1274 = vmatprep.mubr.bf16.mxu0 0
  %1275 = vmatmul.mubr.bf16.gmra.mrb[0].mxu0 %v1140
  %v1276 = vpop.f32.mrb[0].mxu0
  %v1277 = vadd.f32 %v978, %v1276
  %v1278 = vpop.f32.mrb[0].mxu0
  %v1279 = vadd.f32 %v978, %v1278
  %v1280 = vpop.f32.mrb[0].mxu0
  %v1281 = vpop.f32.mrb[0].mxu0
  %1282 = vdwg.mxu0
  %v1283 = vmax.f32 %v1195, 0.0
  %v1284 = vmax.f32 %v1197, 0.0
  %v1285 = vmax.f32 %v1236, 0.0
  %v1286 = vmax.f32 %v1238, 0.0
  %v1287 = vmax.f32 %v1277, 0.0
  %v1288 = vmax.f32 %v1279, 0.0
  %v1289 = vld [vmem:[%s6] sm:$0xf]
  %v1290 = vpack.c.bf16 %v39, %v39
  %v1291 = vpack.c.bf16 %v40, %v40
  %v1292 = vpack.c.bf16 %v41, %v41
  %v1293 = vpack.c.bf16 %v42, %v42
  %v1294 = vpack.c.bf16 %v43, %v43
  %v1295 = vpack.c.bf16 %v44, %v44
  %vm1296 = vcmask 64512
  %v1298 = vsel %vm1296, %v1289, 0
  %v1301 = vsel %vm506, %v1290, 0
  %v1304 = vsel %vm506, %v1291, 0
  %v1307 = vsel %vm506, %v1292, 0
  %v1310 = vsel %vm506, %v1293, 0
  %v1313 = vsel %vm506, %v1294, 0
  %v1316 = vsel %vm506, %v1295, 0
  %1318 = vmatprep.subr.bf16.mxu0 %v1304
  %1319 = vmatpush1.bf16.msra.mxu0 %v1301
  %1320 = vmatprep.subr.bf16.mxu0 0
  %1321 = vmatpush1.bf16.msra.mxu0 0
  %1322 = vmatprep.subr.bf16.mxu0 0
  %1323 = vmatpush1.bf16.msra.mxu0 0
  %1324 = vmatprep.subr.bf16.mxu0 0
  %1325 = vmatpush1.bf16.msra.mxu0 0
  %1326 = vmatprep.subr.bf16.mxu0 0
  %1327 = vmatpush1.bf16.msra.mxu0 0
  %1328 = vmatprep.subr.bf16.mxu0 0
  %1329 = vmatpush1.bf16.msra.mxu0 0
  %1330 = vmatprep.subr.bf16.mxu0 0
  %1331 = vmatpush1.bf16.msra.mxu0 0
  %1332 = vmatprep.subr.bf16.mxu0 0
  %1333 = vmatpush1.bf16.msra.mxu0 0
  %1334 = vmatprep.subr.bf16.mxu0 0
  %1335 = vmatpush1.bf16.msra.mxu0 0
  %1336 = vmatprep.subr.bf16.mxu0 0
  %1337 = vmatpush1.bf16.msra.mxu0 0
  %1338 = vmatprep.subr.bf16.mxu0 0
  %1339 = vmatpush1.bf16.msra.mxu0 0
  %1340 = vmatprep.subr.bf16.mxu0 0
  %1341 = vmatpush1.bf16.msra.mxu0 0
  %1342 = vmatprep.subr.bf16.mxu0 0
  %1343 = vmatpush1.bf16.msra.mxu0 0
  %1344 = vmatprep.subr.bf16.mxu0 0
  %1345 = vmatpush1.bf16.msra.mxu0 0
  %1346 = vmatprep.subr.bf16.mxu0 0
  %1347 = vmatpush1.bf16.msra.mxu0 0
  %1348 = vmatprep.subr.bf16.mxu0 0
  %1349 = vmatpush1.bf16.msra.mxu0 0
  %1350 = vmatprep.mubr.bf16.mxu0 0
  %1351 = vmatmul.mubr.bf16.gmra.mrb[0].mxu0 %v1298
  %v1352 = vpop.f32.mrb[0].mxu0
  %v1353 = vadd.f32 0.0, %v1352
  %v1354 = vpop.f32.mrb[0].mxu0
  %v1355 = vadd.f32 0.0, %v1354
  %v1356 = vpop.f32.mrb[0].mxu0
  %v1357 = vpop.f32.mrb[0].mxu0
  %1358 = vdwg.mxu0
  %1359 = vmatprep.subr.bf16.mxu0 %v1310
  %1360 = vmatpush1.bf16.msra.mxu0 %v1307
  %1361 = vmatprep.subr.bf16.mxu0 0
  %1362 = vmatpush1.bf16.msra.mxu0 0
  %1363 = vmatprep.subr.bf16.mxu0 0
  %1364 = vmatpush1.bf16.msra.mxu0 0
  %1365 = vmatprep.subr.bf16.mxu0 0
  %1366 = vmatpush1.bf16.msra.mxu0 0
  %1367 = vmatprep.subr.bf16.mxu0 0
  %1368 = vmatpush1.bf16.msra.mxu0 0
  %1369 = vmatprep.subr.bf16.mxu0 0
  %1370 = vmatpush1.bf16.msra.mxu0 0
  %1371 = vmatprep.subr.bf16.mxu0 0
  %1372 = vmatpush1.bf16.msra.mxu0 0
  %1373 = vmatprep.subr.bf16.mxu0 0
  %1374 = vmatpush1.bf16.msra.mxu0 0
  %1375 = vmatprep.subr.bf16.mxu0 0
  %1376 = vmatpush1.bf16.msra.mxu0 0
  %1377 = vmatprep.subr.bf16.mxu0 0
  %1378 = vmatpush1.bf16.msra.mxu0 0
  %1379 = vmatprep.subr.bf16.mxu0 0
  %1380 = vmatpush1.bf16.msra.mxu0 0
  %1381 = vmatprep.subr.bf16.mxu0 0
  %1382 = vmatpush1.bf16.msra.mxu0 0
  %1383 = vmatprep.subr.bf16.mxu0 0
  %1384 = vmatpush1.bf16.msra.mxu0 0
  %1385 = vmatprep.subr.bf16.mxu0 0
  %1386 = vmatpush1.bf16.msra.mxu0 0
  %1387 = vmatprep.subr.bf16.mxu0 0
  %1388 = vmatpush1.bf16.msra.mxu0 0
  %1389 = vmatprep.subr.bf16.mxu0 0
  %1390 = vmatpush1.bf16.msra.mxu0 0
  %1391 = vmatprep.mubr.bf16.mxu0 0
  %1392 = vmatmul.mubr.bf16.gmra.mrb[0].mxu0 %v1298
  %v1393 = vpop.f32.mrb[0].mxu0
  %v1394 = vadd.f32 0.0, %v1393
  %v1395 = vpop.f32.mrb[0].mxu0
  %v1396 = vadd.f32 0.0, %v1395
  %v1397 = vpop.f32.mrb[0].mxu0
  %v1398 = vpop.f32.mrb[0].mxu0
  %1399 = vdwg.mxu0
  %1400 = vmatprep.subr.bf16.mxu0 %v1316
  %1401 = vmatpush1.bf16.msra.mxu0 %v1313
  %1402 = vmatprep.subr.bf16.mxu0 0
  %1403 = vmatpush1.bf16.msra.mxu0 0
  %1404 = vmatprep.subr.bf16.mxu0 0
  %1405 = vmatpush1.bf16.msra.mxu0 0
  %1406 = vmatprep.subr.bf16.mxu0 0
  %1407 = vmatpush1.bf16.msra.mxu0 0
  %1408 = vmatprep.subr.bf16.mxu0 0
  %1409 = vmatpush1.bf16.msra.mxu0 0
  %1410 = vmatprep.subr.bf16.mxu0 0
  %1411 = vmatpush1.bf16.msra.mxu0 0
  %1412 = vmatprep.subr.bf16.mxu0 0
  %1413 = vmatpush1.bf16.msra.mxu0 0
  %1414 = vmatprep.subr.bf16.mxu0 0
  %1415 = vmatpush1.bf16.msra.mxu0 0
  %1416 = vmatprep.subr.bf16.mxu0 0
  %1417 = vmatpush1.bf16.msra.mxu0 0
  %1418 = vmatprep.subr.bf16.mxu0 0
  %1419 = vmatpush1.bf16.msra.mxu0 0
  %1420 = vmatprep.subr.bf16.mxu0 0
  %1421 = vmatpush1.bf16.msra.mxu0 0
  %1422 = vmatprep.subr.bf16.mxu0 0
  %1423 = vmatpush1.bf16.msra.mxu0 0
  %1424 = vmatprep.subr.bf16.mxu0 0
  %1425 = vmatpush1.bf16.msra.mxu0 0
  %1426 = vmatprep.subr.bf16.mxu0 0
  %1427 = vmatpush1.bf16.msra.mxu0 0
  %1428 = vmatprep.subr.bf16.mxu0 0
  %1429 = vmatpush1.bf16.msra.mxu0 0
  %1430 = vmatprep.subr.bf16.mxu0 0
  %1431 = vmatpush1.bf16.msra.mxu0 0
  %1432 = vmatprep.mubr.bf16.mxu0 0
  %1433 = vmatmul.mubr.bf16.gmra.mrb[0].mxu0 %v1298
  %v1434 = vpop.f32.mrb[0].mxu0
  %v1435 = vadd.f32 0.0, %v1434
  %v1436 = vpop.f32.mrb[0].mxu0
  %v1437 = vadd.f32 0.0, %v1436
  %v1438 = vpop.f32.mrb[0].mxu0
  %v1439 = vpop.f32.mrb[0].mxu0
  %1440 = vdwg.mxu0
  %v1441 = vadd.f32 %v1283, %v1353
  %v1442 = vadd.f32 %v1284, %v1355
  %v1443 = vadd.f32 %v1285, %v1394
  %v1444 = vadd.f32 %v1286, %v1396
  %v1445 = vadd.f32 %v1287, %v1435
  %v1446 = vadd.f32 %v1288, %v1437
  %v1447 = vld [vmem:[%s7] sm:$0xff]
  %1449 = vset.pattern.permute.xlu0 0
  %1450 = vperm.xlu0 %1449, %v1447
  %v1451 = vpop.permute.xlu0 %1450
  %v1453 = vadd.f32 %v1441, %v1451
  %v1454 = vadd.f32 %v1442, %v1451
  %v1455 = vadd.f32 %v1443, %v1451
  %v1456 = vadd.f32 %v1444, %v1451
  %v1457 = vadd.f32 %v1445, %v1451
  %v1458 = vadd.f32 %v1446, %v1451
  %v1459 = vmul.f32 %v1453, %v658
  %v1460 = vmul.f32 %v1454, %v662
  %v1461 = vmul.f32 %v1455, %v666
  %v1462 = vmul.f32 %v1456, %v670
  %v1463 = vmul.f32 %v1457, %v674
  %v1464 = vmul.f32 %v1458, %v678
  %1465 = vst [vmem:[%s8] sm:$0xff] %v1459
  %1466 = vst [vmem:[%s8 + $0x8] sm:$0xff] %v1460
  %1467 = vst [vmem:[%s8 + $0x10] sm:$0xff] %v1461
  %1468 = vst [vmem:[%s8 + $0x18] sm:$0xff] %v1462
  %1469 = vst [vmem:[%s8 + $0x20] sm:$0xff] %v1463
  %1470 = vst [vmem:[%s8 + $0x28] sm:$0xff] %v1464
  // Predicated region
  $region34: #{resunet_forward.9} parent=0 // pred_check
    _
  $region35: #{resunet_forward.9} parent=0 // pred_check_branch
    %1472 = sbr.rel (0) target = $region37
  $region36: #{resunet_forward.9} parent=0 // pred_region
    _
  $region37: #{resunet_forward.9} parent=0 // pred_fallthru
    _
  // Predicated region
  $region38: #{resunet_forward.9} parent=0 // pred_check
    _
  $region39: #{resunet_forward.9} parent=0 // pred_check_branch
    %1474 = sbr.rel (0) target = $region41
  $region40: #{resunet_forward.9} parent=0 // pred_region
    _
  $region41: #{resunet_forward.9} parent=0 // pred_fallthru
    _

// kernel: resunet_forward.10
$region0: #{resunet_forward.10}
  #allocation0 [shape = 'u32[]', space=smem, size = 0x4, offset = 0x4, fixed_abs, tag = 'smem constant byte address 0x4 - core index']
  #allocation1 [shape = 'u32[144,128]{1,0:T(1,128)}', space=vmem, size = 0x12000, scoped, tag = 'internal scratch']
  #allocation2 [shape = 'f32[8,1024]{1,0:T(8,128)}', space=vmem, size = 0x8000, scoped, tag = 'scratch operand']
  %s0 = inlined_call_operand.vmem [shape: f32[8,768], index: 0, kind: input, shape index: {}]
  %s1 = inlined_call_operand.vmem [shape: bf16[768,256], index: 1, kind: input, shape index: {}]
  %s2 = inlined_call_operand.vmem [shape: f32[1,256], index: 2, kind: input, shape index: {}]
  %s3 = inlined_call_operand.vmem [shape: bf16[8,72], index: 3, kind: input, shape index: {}]
  %s4 = inlined_call_operand.vmem [shape: f32[8,1], index: 4, kind: input, shape index: {}]
  %s5 = inlined_call_operand.vmem [shape: bf16[8,72], index: 5, kind: input, shape index: {}]
  %s6 = inlined_call_operand.vmem [shape: f32[8,1], index: 6, kind: input, shape index: {}]
  %s7 = inlined_call_operand.vmem [shape: f32[8,256], index: 7, kind: output, shape index: {}]
  %s8 = sld [smem:[#allocation0]]
  $region38: #{resunet_forward.10} parent=0
    _
  %s10 = ssub.s32 1, %s8
  %s11 = scalar_select 0, %s10, %s8
  // Predicated region
  $region2: #{resunet_forward.10} parent=0 // pred_check
    _
  $region3: #{resunet_forward.10} parent=0 // pred_check_branch
    %13 = sbr.rel (0) target = $region5
  $region4: #{resunet_forward.10} parent=0 // pred_region
    _
  $region5: #{resunet_forward.10} parent=0 // pred_fallthru
    _
  // Predicated region
  $region6: #{resunet_forward.10} parent=0 // pred_check
    _
  $region7: #{resunet_forward.10} parent=0 // pred_check_branch
    %15 = sbr.rel (0) target = $region9
  $region8: #{resunet_forward.10} parent=0 // pred_region
    _
  $region9: #{resunet_forward.10} parent=0 // pred_fallthru
    _
  // Predicated region
  $region10: #{resunet_forward.10} parent=0 // pred_check
    _
  $region11: #{resunet_forward.10} parent=0 // pred_check_branch
    %17 = sbr.rel (0) target = $region13
  $region12: #{resunet_forward.10} parent=0 // pred_region
    _
  $region13: #{resunet_forward.10} parent=0 // pred_fallthru
    _
  // Predicated region
  $region14: #{resunet_forward.10} parent=0 // pred_check
    _
  $region15: #{resunet_forward.10} parent=0 // pred_check_branch
    %19 = sbr.rel (0) target = $region17
  $region16: #{resunet_forward.10} parent=0 // pred_region
    _
  $region17: #{resunet_forward.10} parent=0 // pred_fallthru
    _
  // Predicated region
  $region18: #{resunet_forward.10} parent=0 // pred_check
    _
  $region19: #{resunet_forward.10} parent=0 // pred_check_branch
    %21 = sbr.rel (0) target = $region21
  $region20: #{resunet_forward.10} parent=0 // pred_region
    _
  $region21: #{resunet_forward.10} parent=0 // pred_fallthru
    _
  // Predicated region
  $region22: #{resunet_forward.10} parent=0 // pred_check
    _
  $region23: #{resunet_forward.10} parent=0 // pred_check_branch
    %23 = sbr.rel (0) target = $region25
  $region24: #{resunet_forward.10} parent=0 // pred_region
    _
  $region25: #{resunet_forward.10} parent=0 // pred_fallthru
    _
  // Predicated region
  $region26: #{resunet_forward.10} parent=0 // pred_check
    _
  $region27: #{resunet_forward.10} parent=0 // pred_check_branch
    %25 = sbr.rel (0) target = $region29
  $region28: #{resunet_forward.10} parent=0 // pred_region
    _
  $region29: #{resunet_forward.10} parent=0 // pred_fallthru
    _
  %v27 = vld [vmem:[%s2] sm:$0x3]
  %28 = vst [vmem:[#allocation2] sm:$0xff] 0.0
  %29 = vst [vmem:[#allocation2 + $0x8] sm:$0xff] 0.0
  %30 = vst [vmem:[#allocation2 + $0x10] sm:$0xff] 0.0
  %31 = vst [vmem:[#allocation2 + $0x18] sm:$0xff] 0.0
  %32 = vst [vmem:[#allocation2 + $0x20] sm:$0xff] 0.0
  %33 = vst [vmem:[#allocation2 + $0x28] sm:$0xff] 0.0
  %34 = vst [vmem:[#allocation2 + $0x30] sm:$0xff] 0.0
  %35 = vst [vmem:[#allocation2 + $0x38] sm:$0xff] 0.0
  %v36 = vld [vmem:[%s0] sm:$0xff]
  %v37 = vld [vmem:[%s0 + $0x8] sm:$0xff]
  %v38 = vld [vmem:[%s0 + $0x10] sm:$0xff]
  %v39 = vld [vmem:[%s0 + $0x18] sm:$0xff]
  %v40 = vld [vmem:[%s0 + $0x20] sm:$0xff]
  %v41 = vld [vmem:[%s0 + $0x28] sm:$0xff]
  %42 = vst [vmem:[#allocation2 + $0x8] sm:$0xff] %v36
  %43 = vst [vmem:[#allocation2 + $0x10] sm:$0xff] %v37
  %44 = vst [vmem:[#allocation2 + $0x18] sm:$0xff] %v38
  %45 = vst [vmem:[#allocation2 + $0x20] sm:$0xff] %v39
  %46 = vst [vmem:[#allocation2 + $0x28] sm:$0xff] %v40
  %47 = vst [vmem:[#allocation2 + $0x30] sm:$0xff] %v41
  %v48 = vld [vmem:[#allocation2 + $0x8] sm:$0xff]
  %v49 = vld [vmem:[#allocation2 + $0x10] sm:$0xff]
  %v50 = vld [vmem:[#allocation2 + $0x18] sm:$0xff]
  %v51 = vld [vmem:[#allocation2 + $0x20] sm:$0xff]
  %v52 = vld [vmem:[#allocation2 + $0x28] sm:$0xff]
  %v53 = vld [vmem:[#allocation2 + $0x30] sm:$0xff]
  %v54 = vld [vmem:[#allocation2 + $0x38] sm:$0xff]
  %62 = vrot.lane.b32.xlu0 %v48, 127
  %v63 = vpop.permute.xlu0 %62
  %64 = vrot.lane.b32.xlu0 %v49, 127
  %v65 = vpop.permute.xlu0 %64
  %66 = vrot.lane.b32.xlu0 %v50, 127
  %v67 = vpop.permute.xlu0 %66
  %68 = vrot.lane.b32.xlu0 %v51, 127
  %v69 = vpop.permute.xlu0 %68
  %70 = vrot.lane.b32.xlu0 %v52, 127
  %v71 = vpop.permute.xlu0 %70
  %72 = vrot.lane.b32.xlu0 %v53, 127
  %v73 = vpop.permute.xlu0 %72
  %74 = vrot.lane.b32.xlu0 %v54, 127
  %v75 = vpop.permute.xlu0 %74
  %vm76 = vcmask 1039360
  %v77 = vsel %vm76, %v63, %v65
  %v78 = vsel %vm76, %v65, %v67
  %v79 = vsel %vm76, %v67, %v69
  %v80 = vsel %vm76, %v69, %v71
  %v81 = vsel %vm76, %v71, %v73
  %v82 = vsel %vm76, %v73, %v75
  %v89 = vmax.f32 %v36, %v77
  %v90 = vmax.f32 %v37, %v78
  %v91 = vmax.f32 %v38, %v79
  %v92 = vmax.f32 %v39, %v80
  %v93 = vmax.f32 %v40, %v81
  %v94 = vmax.f32 %v41, %v82
  %95 = vrot.lane.b32.xlu0 %v48, 110
  %v96 = vpop.permute.xlu0 %95
  %97 = vrot.lane.b32.xlu0 %v49, 110
  %v98 = vpop.permute.xlu0 %97
  %99 = vrot.lane.b32.xlu0 %v50, 110
  %v100 = vpop.permute.xlu0 %99
  %101 = vrot.lane.b32.xlu0 %v51, 110
  %v102 = vpop.permute.xlu0 %101
  %103 = vrot.lane.b32.xlu0 %v52, 110
  %v104 = vpop.permute.xlu0 %103
  %105 = vrot.lane.b32.xlu0 %v53, 110
  %v106 = vpop.permute.xlu0 %105
  %107 = vrot.lane.b32.xlu0 %v54, 110
  %v108 = vpop.permute.xlu0 %107
  %vm109 = vcmask 900096
  %v110 = vsel %vm109, %v96, %v98
  %v111 = vsel %vm109, %v98, %v100
  %v112 = vsel %vm109, %v100, %v102
  %v113 = vsel %vm109, %v102, %v104
  %v114 = vsel %vm109, %v104, %v106
  %v115 = vsel %vm109, %v106, %v108
  %v122 = vmax.f32 %v89, %v110
  %v123 = vmax.f32 %v90, %v111
  %v124 = vmax.f32 %v91, %v112
  %v125 = vmax.f32 %v92, %v113
  %v126 = vmax.f32 %v93, %v114
  %v127 = vmax.f32 %v94, %v115
  %128 = vrot.lane.b32.xlu0 %v48, 109
  %v129 = vpop.permute.xlu0 %128
  %130 = vrot.lane.b32.xlu0 %v49, 109
  %v131 = vpop.permute.xlu0 %130
  %132 = vrot.lane.b32.xlu0 %v50, 109
  %v133 = vpop.permute.xlu0 %132
  %134 = vrot.lane.b32.xlu0 %v51, 109
  %v135 = vpop.permute.xlu0 %134
  %136 = vrot.lane.b32.xlu0 %v52, 109
  %v137 = vpop.permute.xlu0 %136
  %138 = vrot.lane.b32.xlu0 %v53, 109
  %v139 = vpop.permute.xlu0 %138
  %140 = vrot.lane.b32.xlu0 %v54, 109
  %v141 = vpop.permute.xlu0 %140
  %vm142 = vcmask 891904
  %v143 = vsel %vm142, %v129, %v131
  %v144 = vsel %vm142, %v131, %v133
  %v145 = vsel %vm142, %v133, %v135
  %v146 = vsel %vm142, %v135, %v137
  %v147 = vsel %vm142, %v137, %v139
  %v148 = vsel %vm142, %v139, %v141
  %v155 = vmax.f32 %v122, %v143
  %v156 = vmax.f32 %v123, %v144
  %v157 = vmax.f32 %v124, %v145
  %v158 = vmax.f32 %v125, %v146
  %v159 = vmax.f32 %v126, %v147
  %v160 = vmax.f32 %v127, %v148
  %v161 = vmax.f32 %v155, 0.0
  %v162 = vmax.f32 %v156, 0.0
  %v163 = vmax.f32 %v157, 0.0
  %v164 = vmax.f32 %v158, 0.0
  %v165 = vmax.f32 %v159, 0.0
  %v166 = vmax.f32 %v160, 0.0
  %v167 = vpack.c.bf16 %v161, %v161
  %v168 = vpack.c.bf16 %v162, %v162
  %v169 = vpack.c.bf16 %v163, %v163
  %v170 = vpack.c.bf16 %v164, %v164
  %v171 = vpack.c.bf16 %v165, %v165
  %v172 = vpack.c.bf16 %v166, %v166
  %v173 = vld [vmem:[%s1] sm:$0xff]
  %v174 = vld [vmem:[%s1 + $0x8] sm:$0xff]
  %v175 = vld [vmem:[%s1 + $0x10] sm:$0xff]
  %v176 = vld [vmem:[%s1 + $0x18] sm:$0xff]
  %v177 = vld [vmem:[%s1 + $0x20] sm:$0xff]
  %v178 = vld [vmem:[%s1 + $0x28] sm:$0xff]
  %v179 = vld [vmem:[%s1 + $0x30] sm:$0xff]
  %v180 = vld [vmem:[%s1 + $0x38] sm:$0xff]
  %v181 = vld [vmem:[%s1 + $0x40] sm:$0xff]
  %v182 = vld [vmem:[%s1 + $0x48] sm:$0xff]
  %v183 = vld [vmem:[%s1 + $0x50] sm:$0xff]
  %v184 = vld [vmem:[%s1 + $0x58] sm:$0xff]
  %v185 = vld [vmem:[%s1 + $0x60] sm:$0xff]
  %v186 = vld [vmem:[%s1 + $0x68] sm:$0xff]
  %v187 = vld [vmem:[%s1 + $0x70] sm:$0xff]
  %v188 = vld [vmem:[%s1 + $0x78] sm:$0xff]
  %v189 = vld [vmem:[%s1 + $0x80] sm:$0xff]
  %v190 = vld [vmem:[%s1 + $0x88] sm:$0xff]
  %v191 = vld [vmem:[%s1 + $0x90] sm:$0xff]
  %v192 = vld [vmem:[%s1 + $0x98] sm:$0xff]
  %v193 = vld [vmem:[%s1 + $0xa0] sm:$0xff]
  %v194 = vld [vmem:[%s1 + $0xa8] sm:$0xff]
  %v195 = vld [vmem:[%s1 + $0xb0] sm:$0xff]
  %v196 = vld [vmem:[%s1 + $0xb8] sm:$0xff]
  %v197 = vld [vmem:[%s1 + $0xc0] sm:$0xff]
  %v198 = vld [vmem:[%s1 + $0xc8] sm:$0xff]
  %v199 = vld [vmem:[%s1 + $0xd0] sm:$0xff]
  %v200 = vld [vmem:[%s1 + $0xd8] sm:$0xff]
  %v201 = vld [vmem:[%s1 + $0xe0] sm:$0xff]
  %v202 = vld [vmem:[%s1 + $0xe8] sm:$0xff]
  %v203 = vld [vmem:[%s1 + $0xf0] sm:$0xff]
  %v204 = vld [vmem:[%s1 + $0xf8] sm:$0xff]
  %v205 = vld [vmem:[%s1 + $0x100] sm:$0xff]
  %v206 = vld [vmem:[%s1 + $0x108] sm:$0xff]
  %v207 = vld [vmem:[%s1 + $0x110] sm:$0xff]
  %v208 = vld [vmem:[%s1 + $0x118] sm:$0xff]
  %v209 = vld [vmem:[%s1 + $0x120] sm:$0xff]
  %v210 = vld [vmem:[%s1 + $0x128] sm:$0xff]
  %v211 = vld [vmem:[%s1 + $0x130] sm:$0xff]
  %v212 = vld [vmem:[%s1 + $0x138] sm:$0xff]
  %v213 = vld [vmem:[%s1 + $0x140] sm:$0xff]
  %v214 = vld [vmem:[%s1 + $0x148] sm:$0xff]
  %v215 = vld [vmem:[%s1 + $0x150] sm:$0xff]
  %v216 = vld [vmem:[%s1 + $0x158] sm:$0xff]
  %v217 = vld [vmem:[%s1 + $0x160] sm:$0xff]
  %v218 = vld [vmem:[%s1 + $0x168] sm:$0xff]
  %v219 = vld [vmem:[%s1 + $0x170] sm:$0xff]
  %v220 = vld [vmem:[%s1 + $0x178] sm:$0xff]
  %v221 = vld [vmem:[%s1 + $0x180] sm:$0xff]
  %v222 = vld [vmem:[%s1 + $0x188] sm:$0xff]
  %v223 = vld [vmem:[%s1 + $0x190] sm:$0xff]
  %v224 = vld [vmem:[%s1 + $0x198] sm:$0xff]
  %v225 = vld [vmem:[%s1 + $0x1a0] sm:$0xff]
  %v226 = vld [vmem:[%s1 + $0x1a8] sm:$0xff]
  %v227 = vld [vmem:[%s1 + $0x1b0] sm:$0xff]
  %v228 = vld [vmem:[%s1 + $0x1b8] sm:$0xff]
  %v229 = vld [vmem:[%s1 + $0x1c0] sm:$0xff]
  %v230 = vld [vmem:[%s1 + $0x1c8] sm:$0xff]
  %v231 = vld [vmem:[%s1 + $0x1d0] sm:$0xff]
  %v232 = vld [vmem:[%s1 + $0x1d8] sm:$0xff]
  %v233 = vld [vmem:[%s1 + $0x1e0] sm:$0xff]
  %v234 = vld [vmem:[%s1 + $0x1e8] sm:$0xff]
  %v235 = vld [vmem:[%s1 + $0x1f0] sm:$0xff]
  %v236 = vld [vmem:[%s1 + $0x1f8] sm:$0xff]
  %v237 = vld [vmem:[%s1 + $0x200] sm:$0xff]
  %v238 = vld [vmem:[%s1 + $0x208] sm:$0xff]
  %v239 = vld [vmem:[%s1 + $0x210] sm:$0xff]
  %v240 = vld [vmem:[%s1 + $0x218] sm:$0xff]
  %v241 = vld [vmem:[%s1 + $0x220] sm:$0xff]
  %v242 = vld [vmem:[%s1 + $0x228] sm:$0xff]
  %v243 = vld [vmem:[%s1 + $0x230] sm:$0xff]
  %v244 = vld [vmem:[%s1 + $0x238] sm:$0xff]
  %v245 = vld [vmem:[%s1 + $0x240] sm:$0xff]
  %v246 = vld [vmem:[%s1 + $0x248] sm:$0xff]
  %v247 = vld [vmem:[%s1 + $0x250] sm:$0xff]
  %v248 = vld [vmem:[%s1 + $0x258] sm:$0xff]
  %v249 = vld [vmem:[%s1 + $0x260] sm:$0xff]
  %v250 = vld [vmem:[%s1 + $0x268] sm:$0xff]
  %v251 = vld [vmem:[%s1 + $0x270] sm:$0xff]
  %v252 = vld [vmem:[%s1 + $0x278] sm:$0xff]
  %v253 = vld [vmem:[%s1 + $0x280] sm:$0xff]
  %v254 = vld [vmem:[%s1 + $0x288] sm:$0xff]
  %v255 = vld [vmem:[%s1 + $0x290] sm:$0xff]
  %v256 = vld [vmem:[%s1 + $0x298] sm:$0xff]
  %v257 = vld [vmem:[%s1 + $0x2a0] sm:$0xff]
  %v258 = vld [vmem:[%s1 + $0x2a8] sm:$0xff]
  %v259 = vld [vmem:[%s1 + $0x2b0] sm:$0xff]
  %v260 = vld [vmem:[%s1 + $0x2b8] sm:$0xff]
  %v261 = vld [vmem:[%s1 + $0x2c0] sm:$0xff]
  %v262 = vld [vmem:[%s1 + $0x2c8] sm:$0xff]
  %v263 = vld [vmem:[%s1 + $0x2d0] sm:$0xff]
  %v264 = vld [vmem:[%s1 + $0x2d8] sm:$0xff]
  %v265 = vld [vmem:[%s1 + $0x2e0] sm:$0xff]
  %v266 = vld [vmem:[%s1 + $0x2e8] sm:$0xff]
  %v267 = vld [vmem:[%s1 + $0x2f0] sm:$0xff]
  %v268 = vld [vmem:[%s1 + $0x2f8] sm:$0xff]
  %v365 = vunpack.c.l.b16 %v173
  %v366 = vunpack.c.h.b16 %v173
  %v367 = vunpack.c.l.b16 %v174
  %v368 = vunpack.c.h.b16 %v174
  %v369 = vunpack.c.l.b16 %v175
  %v370 = vunpack.c.h.b16 %v175
  %v371 = vunpack.c.l.b16 %v176
  %v372 = vunpack.c.h.b16 %v176
  %v373 = vunpack.c.l.b16 %v177
  %v374 = vunpack.c.h.b16 %v177
  %v375 = vunpack.c.l.b16 %v178
  %v376 = vunpack.c.h.b16 %v178
  %v377 = vunpack.c.l.b16 %v179
  %v378 = vunpack.c.h.b16 %v179
  %v379 = vunpack.c.l.b16 %v180
  %v380 = vunpack.c.h.b16 %v180
  %v381 = vunpack.c.l.b16 %v181
  %v382 = vunpack.c.h.b16 %v181
  %v383 = vunpack.c.l.b16 %v182
  %v384 = vunpack.c.h.b16 %v182
  %v385 = vunpack.c.l.b16 %v183
  %v386 = vunpack.c.h.b16 %v183
  %v387 = vunpack.c.l.b16 %v184
  %v388 = vunpack.c.h.b16 %v184
  %v389 = vunpack.c.l.b16 %v185
  %v390 = vunpack.c.h.b16 %v185
  %v391 = vunpack.c.l.b16 %v186
  %v392 = vunpack.c.h.b16 %v186
  %v393 = vunpack.c.l.b16 %v187
  %v394 = vunpack.c.h.b16 %v187
  %v395 = vunpack.c.l.b16 %v188
  %v396 = vunpack.c.h.b16 %v188
  %v397 = vunpack.c.l.b16 %v189
  %v398 = vunpack.c.h.b16 %v189
  %v399 = vunpack.c.l.b16 %v190
  %v400 = vunpack.c.h.b16 %v190
  %v401 = vunpack.c.l.b16 %v191
  %v402 = vunpack.c.h.b16 %v191
  %v403 = vunpack.c.l.b16 %v192
  %v404 = vunpack.c.h.b16 %v192
  %v405 = vunpack.c.l.b16 %v193
  %v406 = vunpack.c.h.b16 %v193
  %v407 = vunpack.c.l.b16 %v194
  %v408 = vunpack.c.h.b16 %v194
  %v409 = vunpack.c.l.b16 %v195
  %v410 = vunpack.c.h.b16 %v195
  %v411 = vunpack.c.l.b16 %v196
  %v412 = vunpack.c.h.b16 %v196
  %v413 = vunpack.c.l.b16 %v197
  %v414 = vunpack.c.h.b16 %v197
  %v415 = vunpack.c.l.b16 %v198
  %v416 = vunpack.c.h.b16 %v198
  %v417 = vunpack.c.l.b16 %v199
  %v418 = vunpack.c.h.b16 %v199
  %v419 = vunpack.c.l.b16 %v200
  %v420 = vunpack.c.h.b16 %v200
  %v421 = vunpack.c.l.b16 %v201
  %v422 = vunpack.c.h.b16 %v201
  %v423 = vunpack.c.l.b16 %v202
  %v424 = vunpack.c.h.b16 %v202
  %v425 = vunpack.c.l.b16 %v203
  %v426 = vunpack.c.h.b16 %v203
  %v427 = vunpack.c.l.b16 %v204
  %v428 = vunpack.c.h.b16 %v204
  %v429 = vunpack.c.l.b16 %v205
  %v430 = vunpack.c.h.b16 %v205
  %v431 = vunpack.c.l.b16 %v206
  %v432 = vunpack.c.h.b16 %v206
  %v433 = vunpack.c.l.b16 %v207
  %v434 = vunpack.c.h.b16 %v207
  %v435 = vunpack.c.l.b16 %v208
  %v436 = vunpack.c.h.b16 %v208
  %v437 = vunpack.c.l.b16 %v209
  %v438 = vunpack.c.h.b16 %v209
  %v439 = vunpack.c.l.b16 %v210
  %v440 = vunpack.c.h.b16 %v210
  %v441 = vunpack.c.l.b16 %v211
  %v442 = vunpack.c.h.b16 %v211
  %v443 = vunpack.c.l.b16 %v212
  %v444 = vunpack.c.h.b16 %v212
  %v445 = vunpack.c.l.b16 %v213
  %v446 = vunpack.c.h.b16 %v213
  %v447 = vunpack.c.l.b16 %v214
  %v448 = vunpack.c.h.b16 %v214
  %v449 = vunpack.c.l.b16 %v215
  %v450 = vunpack.c.h.b16 %v215
  %v451 = vunpack.c.l.b16 %v216
  %v452 = vunpack.c.h.b16 %v216
  %v453 = vunpack.c.l.b16 %v217
  %v454 = vunpack.c.h.b16 %v217
  %v455 = vunpack.c.l.b16 %v218
  %v456 = vunpack.c.h.b16 %v218
  %v457 = vunpack.c.l.b16 %v219
  %v458 = vunpack.c.h.b16 %v219
  %v459 = vunpack.c.l.b16 %v220
  %v460 = vunpack.c.h.b16 %v220
  %v461 = vunpack.c.l.b16 %v221
  %v462 = vunpack.c.h.b16 %v221
  %v463 = vunpack.c.l.b16 %v222
  %v464 = vunpack.c.h.b16 %v222
  %v465 = vunpack.c.l.b16 %v223
  %v466 = vunpack.c.h.b16 %v223
  %v467 = vunpack.c.l.b16 %v224
  %v468 = vunpack.c.h.b16 %v224
  %v469 = vunpack.c.l.b16 %v225
  %v470 = vunpack.c.h.b16 %v225
  %v471 = vunpack.c.l.b16 %v226
  %v472 = vunpack.c.h.b16 %v226
  %v473 = vunpack.c.l.b16 %v227
  %v474 = vunpack.c.h.b16 %v227
  %v475 = vunpack.c.l.b16 %v228
  %v476 = vunpack.c.h.b16 %v228
  %v477 = vunpack.c.l.b16 %v229
  %v478 = vunpack.c.h.b16 %v229
  %v479 = vunpack.c.l.b16 %v230
  %v480 = vunpack.c.h.b16 %v230
  %v481 = vunpack.c.l.b16 %v231
  %v482 = vunpack.c.h.b16 %v231
  %v483 = vunpack.c.l.b16 %v232
  %v484 = vunpack.c.h.b16 %v232
  %v485 = vunpack.c.l.b16 %v233
  %v486 = vunpack.c.h.b16 %v233
  %v487 = vunpack.c.l.b16 %v234
  %v488 = vunpack.c.h.b16 %v234
  %v489 = vunpack.c.l.b16 %v235
  %v490 = vunpack.c.h.b16 %v235
  %v491 = vunpack.c.l.b16 %v236
  %v492 = vunpack.c.h.b16 %v236
  %v493 = vunpack.c.l.b16 %v237
  %v494 = vunpack.c.h.b16 %v237
  %v495 = vunpack.c.l.b16 %v238
  %v496 = vunpack.c.h.b16 %v238
  %v497 = vunpack.c.l.b16 %v239
  %v498 = vunpack.c.h.b16 %v239
  %v499 = vunpack.c.l.b16 %v240
  %v500 = vunpack.c.h.b16 %v240
  %v501 = vunpack.c.l.b16 %v241
  %v502 = vunpack.c.h.b16 %v241
  %v503 = vunpack.c.l.b16 %v242
  %v504 = vunpack.c.h.b16 %v242
  %v505 = vunpack.c.l.b16 %v243
  %v506 = vunpack.c.h.b16 %v243
  %v507 = vunpack.c.l.b16 %v244
  %v508 = vunpack.c.h.b16 %v244
  %v509 = vunpack.c.l.b16 %v245
  %v510 = vunpack.c.h.b16 %v245
  %v511 = vunpack.c.l.b16 %v246
  %v512 = vunpack.c.h.b16 %v246
  %v513 = vunpack.c.l.b16 %v247
  %v514 = vunpack.c.h.b16 %v247
  %v515 = vunpack.c.l.b16 %v248
  %v516 = vunpack.c.h.b16 %v248
  %v517 = vunpack.c.l.b16 %v249
  %v518 = vunpack.c.h.b16 %v249
  %v519 = vunpack.c.l.b16 %v250
  %v520 = vunpack.c.h.b16 %v250
  %v521 = vunpack.c.l.b16 %v251
  %v522 = vunpack.c.h.b16 %v251
  %v523 = vunpack.c.l.b16 %v252
  %v524 = vunpack.c.h.b16 %v252
  %v525 = vunpack.c.l.b16 %v253
  %v526 = vunpack.c.h.b16 %v253
  %v527 = vunpack.c.l.b16 %v254
  %v528 = vunpack.c.h.b16 %v254
  %v529 = vunpack.c.l.b16 %v255
  %v530 = vunpack.c.h.b16 %v255
  %v531 = vunpack.c.l.b16 %v256
  %v532 = vunpack.c.h.b16 %v256
  %v533 = vunpack.c.l.b16 %v257
  %v534 = vunpack.c.h.b16 %v257
  %v535 = vunpack.c.l.b16 %v258
  %v536 = vunpack.c.h.b16 %v258
  %v537 = vunpack.c.l.b16 %v259
  %v538 = vunpack.c.h.b16 %v259
  %v539 = vunpack.c.l.b16 %v260
  %v540 = vunpack.c.h.b16 %v260
  %v541 = vunpack.c.l.b16 %v261
  %v542 = vunpack.c.h.b16 %v261
  %v543 = vunpack.c.l.b16 %v262
  %v544 = vunpack.c.h.b16 %v262
  %v545 = vunpack.c.l.b16 %v263
  %v546 = vunpack.c.h.b16 %v263
  %v547 = vunpack.c.l.b16 %v264
  %v548 = vunpack.c.h.b16 %v264
  %v549 = vunpack.c.l.b16 %v265
  %v550 = vunpack.c.h.b16 %v265
  %v551 = vunpack.c.l.b16 %v266
  %v552 = vunpack.c.h.b16 %v266
  %v553 = vunpack.c.l.b16 %v267
  %v554 = vunpack.c.h.b16 %v267
  %v555 = vunpack.c.l.b16 %v268
  %v556 = vunpack.c.h.b16 %v268
  %v557 = vpack.c.b16 %v367, %v365
  %v558 = vpack.c.b16 %v368, %v366
  %v559 = vpack.c.b16 %v371, %v369
  %v560 = vpack.c.b16 %v372, %v370
  %v561 = vpack.c.b16 %v375, %v373
  %v562 = vpack.c.b16 %v376, %v374
  %v563 = vpack.c.b16 %v379, %v377
  %v564 = vpack.c.b16 %v380, %v378
  %v565 = vpack.c.b16 %v383, %v381
  %v566 = vpack.c.b16 %v384, %v382
  %v567 = vpack.c.b16 %v387, %v385
  %v568 = vpack.c.b16 %v388, %v386
  %v569 = vpack.c.b16 %v391, %v389
  %v570 = vpack.c.b16 %v392, %v390
  %v571 = vpack.c.b16 %v395, %v393
  %v572 = vpack.c.b16 %v396, %v394
  %v573 = vpack.c.b16 %v399, %v397
  %v574 = vpack.c.b16 %v400, %v398
  %v575 = vpack.c.b16 %v403, %v401
  %v576 = vpack.c.b16 %v404, %v402
  %v577 = vpack.c.b16 %v407, %v405
  %v578 = vpack.c.b16 %v408, %v406
  %v579 = vpack.c.b16 %v411, %v409
  %v580 = vpack.c.b16 %v412, %v410
  %v581 = vpack.c.b16 %v415, %v413
  %v582 = vpack.c.b16 %v416, %v414
  %v583 = vpack.c.b16 %v419, %v417
  %v584 = vpack.c.b16 %v420, %v418
  %v585 = vpack.c.b16 %v423, %v421
  %v586 = vpack.c.b16 %v424, %v422
  %v587 = vpack.c.b16 %v427, %v425
  %v588 = vpack.c.b16 %v428, %v426
  %v589 = vpack.c.b16 %v431, %v429
  %v590 = vpack.c.b16 %v432, %v430
  %v591 = vpack.c.b16 %v435, %v433
  %v592 = vpack.c.b16 %v436, %v434
  %v593 = vpack.c.b16 %v439, %v437
  %v594 = vpack.c.b16 %v440, %v438
  %v595 = vpack.c.b16 %v443, %v441
  %v596 = vpack.c.b16 %v444, %v442
  %v597 = vpack.c.b16 %v447, %v445
  %v598 = vpack.c.b16 %v448, %v446
  %v599 = vpack.c.b16 %v451, %v449
  %v600 = vpack.c.b16 %v452, %v450
  %v601 = vpack.c.b16 %v455, %v453
  %v602 = vpack.c.b16 %v456, %v454
  %v603 = vpack.c.b16 %v459, %v457
  %v604 = vpack.c.b16 %v460, %v458
  %v605 = vpack.c.b16 %v463, %v461
  %v606 = vpack.c.b16 %v464, %v462
  %v607 = vpack.c.b16 %v467, %v465
  %v608 = vpack.c.b16 %v468, %v466
  %v609 = vpack.c.b16 %v471, %v469
  %v610 = vpack.c.b16 %v472, %v470
  %v611 = vpack.c.b16 %v475, %v473
  %v612 = vpack.c.b16 %v476, %v474
  %v613 = vpack.c.b16 %v479, %v477
  %v614 = vpack.c.b16 %v480, %v478
  %v615 = vpack.c.b16 %v483, %v481
  %v616 = vpack.c.b16 %v484, %v482
  %v617 = vpack.c.b16 %v487, %v485
  %v618 = vpack.c.b16 %v488, %v486
  %v619 = vpack.c.b16 %v491, %v489
  %v620 = vpack.c.b16 %v492, %v490
  %v621 = vpack.c.b16 %v495, %v493
  %v622 = vpack.c.b16 %v496, %v494
  %v623 = vpack.c.b16 %v499, %v497
  %v624 = vpack.c.b16 %v500, %v498
  %v625 = vpack.c.b16 %v503, %v501
  %v626 = vpack.c.b16 %v504, %v502
  %v627 = vpack.c.b16 %v507, %v505
  %v628 = vpack.c.b16 %v508, %v506
  %v629 = vpack.c.b16 %v511, %v509
  %v630 = vpack.c.b16 %v512, %v510
  %v631 = vpack.c.b16 %v515, %v513
  %v632 = vpack.c.b16 %v516, %v514
  %v633 = vpack.c.b16 %v519, %v517
  %v634 = vpack.c.b16 %v520, %v518
  %v635 = vpack.c.b16 %v523, %v521
  %v636 = vpack.c.b16 %v524, %v522
  %v637 = vpack.c.b16 %v527, %v525
  %v638 = vpack.c.b16 %v528, %v526
  %v639 = vpack.c.b16 %v531, %v529
  %v640 = vpack.c.b16 %v532, %v530
  %v641 = vpack.c.b16 %v535, %v533
  %v642 = vpack.c.b16 %v536, %v534
  %v643 = vpack.c.b16 %v539, %v537
  %v644 = vpack.c.b16 %v540, %v538
  %v645 = vpack.c.b16 %v543, %v541
  %v646 = vpack.c.b16 %v544, %v542
  %v647 = vpack.c.b16 %v547, %v545
  %v648 = vpack.c.b16 %v548, %v546
  %v649 = vpack.c.b16 %v551, %v549
  %v650 = vpack.c.b16 %v552, %v550
  %v651 = vpack.c.b16 %v555, %v553
  %v652 = vpack.c.b16 %v556, %v554
  %749 = vmatprep.subr.bf16.mxu0 %v558
  %750 = vmatpush1.bf16.msra.mxu0 %v557
  %751 = vmatprep.subr.bf16.mxu0 %v560
  %752 = vmatpush1.bf16.msra.mxu0 %v559
  %753 = vmatprep.subr.bf16.mxu0 %v562
  %754 = vmatpush1.bf16.msra.mxu0 %v561
  %755 = vmatprep.subr.bf16.mxu0 %v564
  %756 = vmatpush1.bf16.msra.mxu0 %v563
  %757 = vmatprep.subr.bf16.mxu0 %v566
  %758 = vmatpush1.bf16.msra.mxu0 %v565
  %759 = vmatprep.subr.bf16.mxu0 %v568
  %760 = vmatpush1.bf16.msra.mxu0 %v567
  %761 = vmatprep.subr.bf16.mxu0 %v570
  %762 = vmatpush1.bf16.msra.mxu0 %v569
  %763 = vmatprep.subr.bf16.mxu0 %v572
  %764 = vmatpush1.bf16.msra.mxu0 %v571
  %765 = vmatprep.subr.bf16.mxu0 %v574
  %766 = vmatpush1.bf16.msra.mxu0 %v573
  %767 = vmatprep.subr.bf16.mxu0 %v576
  %768 = vmatpush1.bf16.msra.mxu0 %v575
  %769 = vmatprep.subr.bf16.mxu0 %v578
  %770 = vmatpush1.bf16.msra.mxu0 %v577
  %771 = vmatprep.subr.bf16.mxu0 %v580
  %772 = vmatpush1.bf16.msra.mxu0 %v579
  %773 = vmatprep.subr.bf16.mxu0 %v582
  %774 = vmatpush1.bf16.msra.mxu0 %v581
  %775 = vmatprep.subr.bf16.mxu0 %v584
  %776 = vmatpush1.bf16.msra.mxu0 %v583
  %777 = vmatprep.subr.bf16.mxu0 %v586
  %778 = vmatpush1.bf16.msra.mxu0 %v585
  %779 = vmatprep.subr.bf16.mxu0 %v588
  %780 = vmatpush1.bf16.msra.mxu0 %v587
  %781 = vmatprep.mubr.bf16.mxu0 %v168
  %782 = vmatmul.mubr.bf16.gmra.mrb[0].mxu0 %v167
  %v783 = vpop.f32.mrb[0].mxu0
  %v784 = vadd.f32 0.0, %v783
  %v785 = vpop.f32.mrb[0].mxu0
  %v786 = vadd.f32 0.0, %v785
  %v787 = vpop.f32.mrb[0].mxu0
  %v788 = vpop.f32.mrb[0].mxu0
  %789 = vdwg.mxu0
  %790 = vmatprep.subr.bf16.mxu0 %v590
  %791 = vmatpush1.bf16.msra.mxu0 %v589
  %792 = vmatprep.subr.bf16.mxu0 %v592
  %793 = vmatpush1.bf16.msra.mxu0 %v591
  %794 = vmatprep.subr.bf16.mxu0 %v594
  %795 = vmatpush1.bf16.msra.mxu0 %v593
  %796 = vmatprep.subr.bf16.mxu0 %v596
  %797 = vmatpush1.bf16.msra.mxu0 %v595
  %798 = vmatprep.subr.bf16.mxu0 %v598
  %799 = vmatpush1.bf16.msra.mxu0 %v597
  %800 = vmatprep.subr.bf16.mxu0 %v600
  %801 = vmatpush1.bf16.msra.mxu0 %v599
  %802 = vmatprep.subr.bf16.mxu0 %v602
  %803 = vmatpush1.bf16.msra.mxu0 %v601
  %804 = vmatprep.subr.bf16.mxu0 %v604
  %805 = vmatpush1.bf16.msra.mxu0 %v603
  %806 = vmatprep.subr.bf16.mxu0 %v606
  %807 = vmatpush1.bf16.msra.mxu0 %v605
  %808 = vmatprep.subr.bf16.mxu0 %v608
  %809 = vmatpush1.bf16.msra.mxu0 %v607
  %810 = vmatprep.subr.bf16.mxu0 %v610
  %811 = vmatpush1.bf16.msra.mxu0 %v609
  %812 = vmatprep.subr.bf16.mxu0 %v612
  %813 = vmatpush1.bf16.msra.mxu0 %v611
  %814 = vmatprep.subr.bf16.mxu0 %v614
  %815 = vmatpush1.bf16.msra.mxu0 %v613
  %816 = vmatprep.subr.bf16.mxu0 %v616
  %817 = vmatpush1.bf16.msra.mxu0 %v615
  %818 = vmatprep.subr.bf16.mxu0 %v618
  %819 = vmatpush1.bf16.msra.mxu0 %v617
  %820 = vmatprep.subr.bf16.mxu0 %v620
  %821 = vmatpush1.bf16.msra.mxu0 %v619
  %822 = vmatprep.mubr.bf16.mxu0 %v170
  %823 = vmatmul.mubr.bf16.gmra.mrb[0].mxu0 %v169
  %v824 = vpop.f32.mrb[0].mxu0
  %v825 = vadd.f32 %v784, %v824
  %v826 = vpop.f32.mrb[0].mxu0
  %v827 = vadd.f32 %v786, %v826
  %v828 = vpop.f32.mrb[0].mxu0
  %v829 = vpop.f32.mrb[0].mxu0
  %830 = vdwg.mxu0
  %831 = vmatprep.subr.bf16.mxu0 %v622
  %832 = vmatpush1.bf16.msra.mxu0 %v621
  %833 = vmatprep.subr.bf16.mxu0 %v624
  %834 = vmatpush1.bf16.msra.mxu0 %v623
  %835 = vmatprep.subr.bf16.mxu0 %v626
  %836 = vmatpush1.bf16.msra.mxu0 %v625
  %837 = vmatprep.subr.bf16.mxu0 %v628
  %838 = vmatpush1.bf16.msra.mxu0 %v627
  %839 = vmatprep.subr.bf16.mxu0 %v630
  %840 = vmatpush1.bf16.msra.mxu0 %v629
  %841 = vmatprep.subr.bf16.mxu0 %v632
  %842 = vmatpush1.bf16.msra.mxu0 %v631
  %843 = vmatprep.subr.bf16.mxu0 %v634
  %844 = vmatpush1.bf16.msra.mxu0 %v633
  %845 = vmatprep.subr.bf16.mxu0 %v636
  %846 = vmatpush1.bf16.msra.mxu0 %v635
  %847 = vmatprep.subr.bf16.mxu0 %v638
  %848 = vmatpush1.bf16.msra.mxu0 %v637
  %849 = vmatprep.subr.bf16.mxu0 %v640
  %850 = vmatpush1.bf16.msra.mxu0 %v639
  %851 = vmatprep.subr.bf16.mxu0 %v642
  %852 = vmatpush1.bf16.msra.mxu0 %v641
  %853 = vmatprep.subr.bf16.mxu0 %v644
  %854 = vmatpush1.bf16.msra.mxu0 %v643
  %855 = vmatprep.subr.bf16.mxu0 %v646
  %856 = vmatpush1.bf16.msra.mxu0 %v645
  %857 = vmatprep.subr.bf16.mxu0 %v648
  %858 = vmatpush1.bf16.msra.mxu0 %v647
  %859 = vmatprep.subr.bf16.mxu0 %v650
  %860 = vmatpush1.bf16.msra.mxu0 %v649
  %861 = vmatprep.subr.bf16.mxu0 %v652
  %862 = vmatpush1.bf16.msra.mxu0 %v651
  %863 = vmatprep.mubr.bf16.mxu0 %v172
  %864 = vmatmul.mubr.bf16.gmra.mrb[0].mxu0 %v171
  %v865 = vpop.f32.mrb[0].mxu0
  %v866 = vadd.f32 %v825, %v865
  %v867 = vpop.f32.mrb[0].mxu0
  %v868 = vadd.f32 %v827, %v867
  %v869 = vpop.f32.mrb[0].mxu0
  %v870 = vpop.f32.mrb[0].mxu0
  %871 = vdwg.mxu0
  %v872 = vld [vmem:[%s3] sm:$0xf]
  %873 = vst [vmem:[#allocation2 + $0x8] sm:$0xff] %v866
  %874 = vst [vmem:[#allocation2 + $0x10] sm:$0xff] %v868
  %v875 = vld [vmem:[#allocation2] sm:$0xff]
  %v876 = vld [vmem:[#allocation2 + $0x8] sm:$0xff]
  %v877 = vld [vmem:[#allocation2 + $0x10] sm:$0xff]
  %v878 = vld [vmem:[#allocation2 + $0x18] sm:$0xff]
  %882 = vrot.lane.b32.xlu0 %v875, 127
  %v883 = vpop.permute.xlu0 %882
  %884 = vrot.lane.b32.xlu0 %v876, 127
  %v885 = vpop.permute.xlu0 %884
  %886 = vrot.lane.b32.xlu0 %v877, 127
  %v887 = vpop.permute.xlu0 %886
  %v888 = vsel %vm76, %v883, %v885
  %v889 = vsel %vm76, %v885, %v887
  %893 = vrot.lane.b32.xlu0 %v875, 126
  %v894 = vpop.permute.xlu0 %893
  %895 = vrot.lane.b32.xlu0 %v876, 126
  %v896 = vpop.permute.xlu0 %895
  %897 = vrot.lane.b32.xlu0 %v877, 126
  %v898 = vpop.permute.xlu0 %897
  %vm899 = vcmask 1031168
  %v900 = vsel %vm899, %v894, %v896
  %v901 = vsel %vm899, %v896, %v898
  %905 = vrot.lane.b32.xlu0 %v875, 118
  %v906 = vpop.permute.xlu0 %905
  %907 = vrot.lane.b32.xlu0 %v876, 118
  %v908 = vpop.permute.xlu0 %907
  %909 = vrot.lane.b32.xlu0 %v877, 118
  %v910 = vpop.permute.xlu0 %909
  %vm911 = vcmask 965632
  %v912 = vsel %vm911, %v906, %v908
  %v913 = vsel %vm911, %v908, %v910
  %917 = vrot.lane.b32.xlu0 %v876, 117
  %v918 = vpop.permute.xlu0 %917
  %919 = vrot.lane.b32.xlu0 %v877, 117
  %v920 = vpop.permute.xlu0 %919
  %vm921 = vcmask 957440
  %v922 = vsel %vm921, %v918, %v920
  %927 = vrot.lane.b32.xlu0 %v876, 116
  %v928 = vpop.permute.xlu0 %927
  %929 = vrot.lane.b32.xlu0 %v877, 116
  %v930 = vpop.permute.xlu0 %929
  %931 = vrot.lane.b32.xlu0 %v878, 116
  %v932 = vpop.permute.xlu0 %931
  %vm933 = vcmask 949248
  %v934 = vsel %vm933, %v928, %v930
  %v935 = vsel %vm933, %v930, %v932
  %939 = vrot.lane.b32.xlu0 %v876, 108
  %v940 = vpop.permute.xlu0 %939
  %941 = vrot.lane.b32.xlu0 %v877, 108
  %v942 = vpop.permute.xlu0 %941
  %943 = vrot.lane.b32.xlu0 %v878, 108
  %v944 = vpop.permute.xlu0 %943
  %vm945 = vcmask 883712
  %v946 = vsel %vm945, %v940, %v942
  %v947 = vsel %vm945, %v942, %v944
  %951 = vrot.lane.b32.xlu0 %v876, 107
  %v952 = vpop.permute.xlu0 %951
  %953 = vrot.lane.b32.xlu0 %v877, 107
  %v954 = vpop.permute.xlu0 %953
  %955 = vrot.lane.b32.xlu0 %v878, 107
  %v956 = vpop.permute.xlu0 %955
  %vm957 = vcmask 875520
  %v958 = vsel %vm957, %v952, %v954
  %v959 = vsel %vm957, %v954, %v956
  %963 = vrot.lane.b32.xlu0 %v876, 106
  %v964 = vpop.permute.xlu0 %963
  %965 = vrot.lane.b32.xlu0 %v877, 106
  %v966 = vpop.permute.xlu0 %965
  %967 = vrot.lane.b32.xlu0 %v878, 106
  %v968 = vpop.permute.xlu0 %967
  %vm969 = vcmask 867328
  %v970 = vsel %vm969, %v964, %v966
  %v971 = vsel %vm969, %v966, %v968
  %v975 = vpack.c.bf16 %v888, %v875
  %v976 = vpack.c.bf16 %v889, %v876
  %v977 = vpack.c.bf16 %v887, %v877
  %v978 = vpack.c.bf16 %v912, %v900
  %v979 = vpack.c.bf16 %v913, %v901
  %v980 = vpack.c.bf16 %v910, %v898
  %v981 = vpack.c.bf16 %v928, %v918
  %v982 = vpack.c.bf16 %v934, %v922
  %v983 = vpack.c.bf16 %v935, %v920
  %v984 = vpack.c.bf16 %v952, %v940
  %v985 = vpack.c.bf16 %v958, %v946
  %v986 = vpack.c.bf16 %v959, %v947
  %v987 = vpack.c.bf16 %v964, %v964
  %v988 = vpack.c.bf16 %v970, %v970
  %v989 = vpack.c.bf16 %v971, %v971
  %v990 = vld [vmem:[%s4] sm:$0xff]
  %992 = vset.pattern.permute.xlu0 0
  %993 = vperm.xlu0 %992, %v990
  %v994 = vpop.permute.xlu0 %993
  %1011 = vrot.lane.b32.xlu0 %v975, 11
  %v1012 = vpop.permute.xlu0 %1011
  %1013 = vrot.lane.b32.xlu0 %v976, 11
  %v1014 = vpop.permute.xlu0 %1013
  %1015 = vrot.lane.b32.xlu0 %v977, 11
  %v1016 = vpop.permute.xlu0 %1015
  %1017 = vrot.lane.b32.xlu0 %v978, 11
  %v1018 = vpop.permute.xlu0 %1017
  %1019 = vrot.lane.b32.xlu0 %v979, 11
  %v1020 = vpop.permute.xlu0 %1019
  %1021 = vrot.lane.b32.xlu0 %v980, 11
  %v1022 = vpop.permute.xlu0 %1021
  %1023 = vrot.lane.b32.xlu0 %v981, 11
  %v1024 = vpop.permute.xlu0 %1023
  %1025 = vrot.lane.b32.xlu0 %v982, 11
  %v1026 = vpop.permute.xlu0 %1025
  %1027 = vrot.lane.b32.xlu0 %v983, 11
  %v1028 = vpop.permute.xlu0 %1027
  %1029 = vrot.lane.b32.xlu0 %v984, 11
  %v1030 = vpop.permute.xlu0 %1029
  %1031 = vrot.lane.b32.xlu0 %v985, 11
  %v1032 = vpop.permute.xlu0 %1031
  %1033 = vrot.lane.b32.xlu0 %v986, 11
  %v1034 = vpop.permute.xlu0 %1033
  %1035 = vrot.lane.b32.xlu0 %v987, 11
  %v1036 = vpop.permute.xlu0 %1035
  %1037 = vrot.lane.b32.xlu0 %v988, 11
  %v1038 = vpop.permute.xlu0 %1037
  %1039 = vrot.lane.b32.xlu0 %v989, 11
  %v1040 = vpop.permute.xlu0 %1039
  %vm1041 = vcmask 89088
  %v1042 = vsel %vm1041, %v1012, %v1014
  %v1043 = vsel %vm1041, %v1014, %v1016
  %v1044 = vsel %vm1041, %v1018, %v1020
  %v1045 = vsel %vm1041, %v1020, %v1022
  %v1046 = vsel %vm1041, %v1024, %v1026
  %v1047 = vsel %vm1041, %v1026, %v1028
  %v1048 = vsel %vm1041, %v1030, %v1032
  %v1049 = vsel %vm1041, %v1032, %v1034
  %v1050 = vsel %vm1041, %v1036, %v1038
  %v1051 = vsel %vm1041, %v1038, %v1040
  %vm1060 = vcmask 588800
  %v1062 = vsel %vm1060, %v872, 0
  %vm1064 = vcmask 1043456
  %v1066 = vsel %vm1064, %v1050, 0
  %v1069 = vsel %vm1064, %v1051, 0
  %1071 = vmatprep.subr.bf16.mxu0 %v1043
  %1072 = vmatpush1.bf16.msra.mxu0 %v1042
  %1073 = vmatprep.subr.bf16.mxu0 %v1045
  %1074 = vmatpush1.bf16.msra.mxu0 %v1044
  %1075 = vmatprep.subr.bf16.mxu0 %v1047
  %1076 = vmatpush1.bf16.msra.mxu0 %v1046
  %1077 = vmatprep.subr.bf16.mxu0 %v1049
  %1078 = vmatpush1.bf16.msra.mxu0 %v1048
  %1079 = vmatprep.subr.bf16.mxu0 %v1069
  %1080 = vmatpush1.bf16.msra.mxu0 %v1066
  %1081 = vmatprep.subr.bf16.mxu0 0
  %1082 = vmatpush1.bf16.msra.mxu0 0
  %1083 = vmatprep.subr.bf16.mxu0 0
  %1084 = vmatpush1.bf16.msra.mxu0 0
  %1085 = vmatprep.subr.bf16.mxu0 0
  %1086 = vmatpush1.bf16.msra.mxu0 0
  %1087 = vmatprep.subr.bf16.mxu0 0
  %1088 = vmatpush1.bf16.msra.mxu0 0
  %1089 = vmatprep.subr.bf16.mxu0 0
  %1090 = vmatpush1.bf16.msra.mxu0 0
  %1091 = vmatprep.subr.bf16.mxu0 0
  %1092 = vmatpush1.bf16.msra.mxu0 0
  %1093 = vmatprep.subr.bf16.mxu0 0
  %1094 = vmatpush1.bf16.msra.mxu0 0
  %1095 = vmatprep.subr.bf16.mxu0 0
  %1096 = vmatpush1.bf16.msra.mxu0 0
  %1097 = vmatprep.subr.bf16.mxu0 0
  %1098 = vmatpush1.bf16.msra.mxu0 0
  %1099 = vmatprep.subr.bf16.mxu0 0
  %1100 = vmatpush1.bf16.msra.mxu0 0
  %1101 = vmatprep.subr.bf16.mxu0 0
  %1102 = vmatpush1.bf16.msra.mxu0 0
  %1103 = vmatprep.mubr.bf16.mxu0 0
  %1104 = vmatmul.mubr.bf16.gmra.mrb[0].mxu0 %v1062
  %v1105 = vpop.f32.mrb[0].mxu0
  %v1106 = vadd.f32 %v994, %v1105
  %v1107 = vpop.f32.mrb[0].mxu0
  %v1108 = vadd.f32 %v994, %v1107
  %v1109 = vpop.f32.mrb[0].mxu0
  %v1110 = vpop.f32.mrb[0].mxu0
  %1111 = vdwg.mxu0
  %v1112 = vmax.f32 %v1106, 0.0
  %v1113 = vmax.f32 %v1108, 0.0
  %v1115 = vlaneseq
  %v1116 = vshrl.u32 %v1115, 7
  %v1117 = vsub.s32 0, %v1116
  %v1118 = vrot.slane %v27, %v1117
  %v1119 = vlaneseq
  %v1120 = vshrl.u32 %v1119, 7
  %v1121 = vsub.s32 1, %v1120
  %v1122 = vrot.slane %v27, %v1121
  %v1125 = vmul.f32 %v1112, %v1118
  %v1126 = vmul.f32 %v1113, %v1122
  %v1127 = vld [vmem:[%s5] sm:$0xf]
  %1128 = vst [vmem:[#allocation2 + $0x8] sm:$0xff] %v1125
  %1129 = vst [vmem:[#allocation2 + $0x10] sm:$0xff] %v1126
  %v1130 = vld [vmem:[#allocation2] sm:$0xff]
  %v1131 = vld [vmem:[#allocation2 + $0x8] sm:$0xff]
  %v1132 = vld [vmem:[#allocation2 + $0x10] sm:$0xff]
  %v1133 = vld [vmem:[#allocation2 + $0x18] sm:$0xff]
  %1137 = vrot.lane.b32.xlu0 %v1130, 127
  %v1138 = vpop.permute.xlu0 %1137
  %1139 = vrot.lane.b32.xlu0 %v1131, 127
  %v1140 = vpop.permute.xlu0 %1139
  %1141 = vrot.lane.b32.xlu0 %v1132, 127
  %v1142 = vpop.permute.xlu0 %1141
  %v1143 = vsel %vm76, %v1138, %v1140
  %v1144 = vsel %vm76, %v1140, %v1142
  %1148 = vrot.lane.b32.xlu0 %v1130, 126
  %v1149 = vpop.permute.xlu0 %1148
  %1150 = vrot.lane.b32.xlu0 %v1131, 126
  %v1151 = vpop.permute.xlu0 %1150
  %1152 = vrot.lane.b32.xlu0 %v1132, 126
  %v1153 = vpop.permute.xlu0 %1152
  %v1154 = vsel %vm899, %v1149, %v1151
  %v1155 = vsel %vm899, %v1151, %v1153
  %1159 = vrot.lane.b32.xlu0 %v1130, 118
  %v1160 = vpop.permute.xlu0 %1159
  %1161 = vrot.lane.b32.xlu0 %v1131, 118
  %v1162 = vpop.permute.xlu0 %1161
  %1163 = vrot.lane.b32.xlu0 %v1132, 118
  %v1164 = vpop.permute.xlu0 %1163
  %v1165 = vsel %vm911, %v1160, %v1162
  %v1166 = vsel %vm911, %v1162, %v1164
  %1170 = vrot.lane.b32.xlu0 %v1131, 117
  %v1171 = vpop.permute.xlu0 %1170
  %1172 = vrot.lane.b32.xlu0 %v1132, 117
  %v1173 = vpop.permute.xlu0 %1172
  %v1174 = vsel %vm921, %v1171, %v1173
  %1179 = vrot.lane.b32.xlu0 %v1131, 116
  %v1180 = vpop.permute.xlu0 %1179
  %1181 = vrot.lane.b32.xlu0 %v1132, 116
  %v1182 = vpop.permute.xlu0 %1181
  %1183 = vrot.lane.b32.xlu0 %v1133, 116
  %v1184 = vpop.permute.xlu0 %1183
  %v1185 = vsel %vm933, %v1180, %v1182
  %v1186 = vsel %vm933, %v1182, %v1184
  %1190 = vrot.lane.b32.xlu0 %v1131, 108
  %v1191 = vpop.permute.xlu0 %1190
  %1192 = vrot.lane.b32.xlu0 %v1132, 108
  %v1193 = vpop.permute.xlu0 %1192
  %1194 = vrot.lane.b32.xlu0 %v1133, 108
  %v1195 = vpop.permute.xlu0 %1194
  %v1196 = vsel %vm945, %v1191, %v1193
  %v1197 = vsel %vm945, %v1193, %v1195
  %1201 = vrot.lane.b32.xlu0 %v1131, 107
  %v1202 = vpop.permute.xlu0 %1201
  %1203 = vrot.lane.b32.xlu0 %v1132, 107
  %v1204 = vpop.permute.xlu0 %1203
  %1205 = vrot.lane.b32.xlu0 %v1133, 107
  %v1206 = vpop.permute.xlu0 %1205
  %v1207 = vsel %vm957, %v1202, %v1204
  %v1208 = vsel %vm957, %v1204, %v1206
  %1212 = vrot.lane.b32.xlu0 %v1131, 106
  %v1213 = vpop.permute.xlu0 %1212
  %1214 = vrot.lane.b32.xlu0 %v1132, 106
  %v1215 = vpop.permute.xlu0 %1214
  %1216 = vrot.lane.b32.xlu0 %v1133, 106
  %v1217 = vpop.permute.xlu0 %1216
  %v1218 = vsel %vm969, %v1213, %v1215
  %v1219 = vsel %vm969, %v1215, %v1217
  %v1223 = vpack.c.bf16 %v1143, %v1130
  %v1224 = vpack.c.bf16 %v1144, %v1131
  %v1225 = vpack.c.bf16 %v1142, %v1132
  %v1226 = vpack.c.bf16 %v1165, %v1154
  %v1227 = vpack.c.bf16 %v1166, %v1155
  %v1228 = vpack.c.bf16 %v1164, %v1153
  %v1229 = vpack.c.bf16 %v1180, %v1171
  %v1230 = vpack.c.bf16 %v1185, %v1174
  %v1231 = vpack.c.bf16 %v1186, %v1173
  %v1232 = vpack.c.bf16 %v1202, %v1191
  %v1233 = vpack.c.bf16 %v1207, %v1196
  %v1234 = vpack.c.bf16 %v1208, %v1197
  %v1235 = vpack.c.bf16 %v1213, %v1213
  %v1236 = vpack.c.bf16 %v1218, %v1218
  %v1237 = vpack.c.bf16 %v1219, %v1219
  %v1238 = vld [vmem:[%s6] sm:$0xff]
  %1240 = vset.pattern.permute.xlu0 0
  %1241 = vperm.xlu0 %1240, %v1238
  %v1242 = vpop.permute.xlu0 %1241
  %1259 = vrot.lane.b32.xlu0 %v1223, 11
  %v1260 = vpop.permute.xlu0 %1259
  %1261 = vrot.lane.b32.xlu0 %v1224, 11
  %v1262 = vpop.permute.xlu0 %1261
  %1263 = vrot.lane.b32.xlu0 %v1225, 11
  %v1264 = vpop.permute.xlu0 %1263
  %1265 = vrot.lane.b32.xlu0 %v1226, 11
  %v1266 = vpop.permute.xlu0 %1265
  %1267 = vrot.lane.b32.xlu0 %v1227, 11
  %v1268 = vpop.permute.xlu0 %1267
  %1269 = vrot.lane.b32.xlu0 %v1228, 11
  %v1270 = vpop.permute.xlu0 %1269
  %1271 = vrot.lane.b32.xlu0 %v1229, 11
  %v1272 = vpop.permute.xlu0 %1271
  %1273 = vrot.lane.b32.xlu0 %v1230, 11
  %v1274 = vpop.permute.xlu0 %1273
  %1275 = vrot.lane.b32.xlu0 %v1231, 11
  %v1276 = vpop.permute.xlu0 %1275
  %1277 = vrot.lane.b32.xlu0 %v1232, 11
  %v1278 = vpop.permute.xlu0 %1277
  %1279 = vrot.lane.b32.xlu0 %v1233, 11
  %v1280 = vpop.permute.xlu0 %1279
  %1281 = vrot.lane.b32.xlu0 %v1234, 11
  %v1282 = vpop.permute.xlu0 %1281
  %1283 = vrot.lane.b32.xlu0 %v1235, 11
  %v1284 = vpop.permute.xlu0 %1283
  %1285 = vrot.lane.b32.xlu0 %v1236, 11
  %v1286 = vpop.permute.xlu0 %1285
  %1287 = vrot.lane.b32.xlu0 %v1237, 11
  %v1288 = vpop.permute.xlu0 %1287
  %v1289 = vsel %vm1041, %v1260, %v1262
  %v1290 = vsel %vm1041, %v1262, %v1264
  %v1291 = vsel %vm1041, %v1266, %v1268
  %v1292 = vsel %vm1041, %v1268, %v1270
  %v1293 = vsel %vm1041, %v1272, %v1274
  %v1294 = vsel %vm1041, %v1274, %v1276
  %v1295 = vsel %vm1041, %v1278, %v1280
  %v1296 = vsel %vm1041, %v1280, %v1282
  %v1297 = vsel %vm1041, %v1284, %v1286
  %v1298 = vsel %vm1041, %v1286, %v1288
  %v1308 = vsel %vm1060, %v1127, 0
  %v1311 = vsel %vm1064, %v1297, 0
  %v1314 = vsel %vm1064, %v1298, 0
  %1316 = vmatprep.subr.bf16.mxu0 %v1290
  %1317 = vmatpush1.bf16.msra.mxu0 %v1289
  %1318 = vmatprep.subr.bf16.mxu0 %v1292
  %1319 = vmatpush1.bf16.msra.mxu0 %v1291
  %1320 = vmatprep.subr.bf16.mxu0 %v1294
  %1321 = vmatpush1.bf16.msra.mxu0 %v1293
  %1322 = vmatprep.subr.bf16.mxu0 %v1296
  %1323 = vmatpush1.bf16.msra.mxu0 %v1295
  %1324 = vmatprep.subr.bf16.mxu0 %v1314
  %1325 = vmatpush1.bf16.msra.mxu0 %v1311
  %1326 = vmatprep.subr.bf16.mxu0 0
  %1327 = vmatpush1.bf16.msra.mxu0 0
  %1328 = vmatprep.subr.bf16.mxu0 0
  %1329 = vmatpush1.bf16.msra.mxu0 0
  %1330 = vmatprep.subr.bf16.mxu0 0
  %1331 = vmatpush1.bf16.msra.mxu0 0
  %1332 = vmatprep.subr.bf16.mxu0 0
  %1333 = vmatpush1.bf16.msra.mxu0 0
  %1334 = vmatprep.subr.bf16.mxu0 0
  %1335 = vmatpush1.bf16.msra.mxu0 0
  %1336 = vmatprep.subr.bf16.mxu0 0
  %1337 = vmatpush1.bf16.msra.mxu0 0
  %1338 = vmatprep.subr.bf16.mxu0 0
  %1339 = vmatpush1.bf16.msra.mxu0 0
  %1340 = vmatprep.subr.bf16.mxu0 0
  %1341 = vmatpush1.bf16.msra.mxu0 0
  %1342 = vmatprep.subr.bf16.mxu0 0
  %1343 = vmatpush1.bf16.msra.mxu0 0
  %1344 = vmatprep.subr.bf16.mxu0 0
  %1345 = vmatpush1.bf16.msra.mxu0 0
  %1346 = vmatprep.subr.bf16.mxu0 0
  %1347 = vmatpush1.bf16.msra.mxu0 0
  %1348 = vmatprep.mubr.bf16.mxu0 0
  %1349 = vmatmul.mubr.bf16.gmra.mrb[0].mxu0 %v1308
  %v1350 = vpop.f32.mrb[0].mxu0
  %v1351 = vadd.f32 %v1242, %v1350
  %v1352 = vpop.f32.mrb[0].mxu0
  %v1353 = vadd.f32 %v1242, %v1352
  %v1354 = vpop.f32.mrb[0].mxu0
  %v1355 = vpop.f32.mrb[0].mxu0
  %1356 = vdwg.mxu0
  %v1357 = vmax.f32 %v1351, 0.0
  %v1358 = vmax.f32 %v1353, 0.0
  %v1359 = vadd.f32 %v1357, %v866
  %v1360 = vadd.f32 %v1358, %v868
  %v1361 = vmul.f32 %v1359, %v1118
  %v1362 = vmul.f32 %v1360, %v1122
  %1363 = vst [vmem:[%s7] sm:$0xff] %v1361
  %1364 = vst [vmem:[%s7 + $0x8] sm:$0xff] %v1362
  // Predicated region
  $region30: #{resunet_forward.10} parent=0 // pred_check
    _
  $region31: #{resunet_forward.10} parent=0 // pred_check_branch
    %1366 = sbr.rel (0) target = $region33
  $region32: #{resunet_forward.10} parent=0 // pred_region
    _
  $region33: #{resunet_forward.10} parent=0 // pred_fallthru
    _
  // Predicated region
  $region34: #{resunet_forward.10} parent=0 // pred_check
    _
  $region35: #{resunet_forward.10} parent=0 // pred_check_branch
    %1368 = sbr.rel (0) target = $region37
  $region36: #{resunet_forward.10} parent=0 // pred_region
    _
  $region37: #{resunet_forward.10} parent=0 // pred_fallthru
    _

// kernel: resunet_forward.13
$region0: #{resunet_forward.13}
  #allocation0 [shape = 'u32[]', space=smem, size = 0x4, offset = 0x4, fixed_abs, tag = 'smem constant byte address 0x4 - core index']
  #allocation1 [shape = 'u32[144,128]{1,0:T(1,128)}', space=vmem, size = 0x12000, scoped, tag = 'internal scratch']
  #allocation2 [shape = 'f32[8,384]{1,0:T(8,128)}', space=vmem, size = 0x3000, scoped, tag = 'scratch operand']
  %s0 = inlined_call_operand.vmem [shape: f32[8,128], index: 0, kind: input, shape index: {}]
  %s1 = inlined_call_operand.vmem [shape: bf16[128,128], index: 1, kind: input, shape index: {}]
  %s2 = inlined_call_operand.vmem [shape: f32[1,128], index: 2, kind: input, shape index: {}]
  %s3 = inlined_call_operand.vmem [shape: bf16[8,72], index: 3, kind: input, shape index: {}]
  %s4 = inlined_call_operand.vmem [shape: f32[8,1], index: 4, kind: input, shape index: {}]
  %s5 = inlined_call_operand.vmem [shape: bf16[8,72], index: 5, kind: input, shape index: {}]
  %s6 = inlined_call_operand.vmem [shape: f32[8,1], index: 6, kind: input, shape index: {}]
  %s7 = inlined_call_operand.vmem [shape: f32[8,128], index: 7, kind: output, shape index: {}]
  %s8 = sld [smem:[#allocation0]]
  $region38: #{resunet_forward.13} parent=0
    _
  %s10 = ssub.s32 1, %s8
  %s11 = scalar_select 0, %s10, %s8
  // Predicated region
  $region2: #{resunet_forward.13} parent=0 // pred_check
    _
  $region3: #{resunet_forward.13} parent=0 // pred_check_branch
    %13 = sbr.rel (0) target = $region5
  $region4: #{resunet_forward.13} parent=0 // pred_region
    _
  $region5: #{resunet_forward.13} parent=0 // pred_fallthru
    _
  // Predicated region
  $region6: #{resunet_forward.13} parent=0 // pred_check
    _
  $region7: #{resunet_forward.13} parent=0 // pred_check_branch
    %15 = sbr.rel (0) target = $region9
  $region8: #{resunet_forward.13} parent=0 // pred_region
    _
  $region9: #{resunet_forward.13} parent=0 // pred_fallthru
    _
  // Predicated region
  $region10: #{resunet_forward.13} parent=0 // pred_check
    _
  $region11: #{resunet_forward.13} parent=0 // pred_check_branch
    %17 = sbr.rel (0) target = $region13
  $region12: #{resunet_forward.13} parent=0 // pred_region
    _
  $region13: #{resunet_forward.13} parent=0 // pred_fallthru
    _
  // Predicated region
  $region14: #{resunet_forward.13} parent=0 // pred_check
    _
  $region15: #{resunet_forward.13} parent=0 // pred_check_branch
    %19 = sbr.rel (0) target = $region17
  $region16: #{resunet_forward.13} parent=0 // pred_region
    _
  $region17: #{resunet_forward.13} parent=0 // pred_fallthru
    _
  // Predicated region
  $region18: #{resunet_forward.13} parent=0 // pred_check
    _
  $region19: #{resunet_forward.13} parent=0 // pred_check_branch
    %21 = sbr.rel (0) target = $region21
  $region20: #{resunet_forward.13} parent=0 // pred_region
    _
  $region21: #{resunet_forward.13} parent=0 // pred_fallthru
    _
  // Predicated region
  $region22: #{resunet_forward.13} parent=0 // pred_check
    _
  $region23: #{resunet_forward.13} parent=0 // pred_check_branch
    %23 = sbr.rel (0) target = $region25
  $region24: #{resunet_forward.13} parent=0 // pred_region
    _
  $region25: #{resunet_forward.13} parent=0 // pred_fallthru
    _
  // Predicated region
  $region26: #{resunet_forward.13} parent=0 // pred_check
    _
  $region27: #{resunet_forward.13} parent=0 // pred_check_branch
    %25 = sbr.rel (0) target = $region29
  $region28: #{resunet_forward.13} parent=0 // pred_region
    _
  $region29: #{resunet_forward.13} parent=0 // pred_fallthru
    _
  %v27 = vld [vmem:[%s2] sm:$0x1]
  %28 = vst [vmem:[#allocation2] sm:$0xff] 0.0
  %29 = vst [vmem:[#allocation2 + $0x8] sm:$0xff] 0.0
  %30 = vst [vmem:[#allocation2 + $0x10] sm:$0xff] 0.0
  %v31 = vld [vmem:[%s0] sm:$0xff]
  %32 = vst [vmem:[#allocation2 + $0x8] sm:$0xff] %v31
  %v33 = vld [vmem:[#allocation2 + $0x8] sm:$0xff]
  %v34 = vld [vmem:[#allocation2 + $0x10] sm:$0xff]
  %37 = vrot.lane.b32.xlu0 %v33, 127
  %v38 = vpop.permute.xlu0 %37
  %39 = vrot.lane.b32.xlu0 %v34, 127
  %v40 = vpop.permute.xlu0 %39
  %vm41 = vcmask 1039360
  %v42 = vsel %vm41, %v38, %v40
  %v44 = vmax.f32 %v31, %v42
  %45 = vrot.lane.b32.xlu0 %v33, 124
  %v46 = vpop.permute.xlu0 %45
  %47 = vrot.lane.b32.xlu0 %v34, 124
  %v48 = vpop.permute.xlu0 %47
  %vm49 = vcmask 1014784
  %v50 = vsel %vm49, %v46, %v48
  %v52 = vmax.f32 %v44, %v50
  %53 = vrot.lane.b32.xlu0 %v33, 123
  %v54 = vpop.permute.xlu0 %53
  %55 = vrot.lane.b32.xlu0 %v34, 123
  %v56 = vpop.permute.xlu0 %55
  %vm57 = vcmask 1006592
  %v58 = vsel %vm57, %v54, %v56
  %v60 = vmax.f32 %v52, %v58
  %v61 = vmax.f32 %v60, 0.0
  %v62 = vpack.c.bf16 %v61, %v61
  %v63 = vld [vmem:[%s1] sm:$0xf]
  %v64 = vld [vmem:[%s1 + $0x4] sm:$0xf]
  %v65 = vld [vmem:[%s1 + $0x8] sm:$0xf]
  %v66 = vld [vmem:[%s1 + $0xc] sm:$0xf]
  %v67 = vld [vmem:[%s1 + $0x10] sm:$0xf]
  %v68 = vld [vmem:[%s1 + $0x14] sm:$0xf]
  %v69 = vld [vmem:[%s1 + $0x18] sm:$0xf]
  %v70 = vld [vmem:[%s1 + $0x1c] sm:$0xf]
  %v71 = vld [vmem:[%s1 + $0x20] sm:$0xf]
  %v72 = vld [vmem:[%s1 + $0x24] sm:$0xf]
  %v73 = vld [vmem:[%s1 + $0x28] sm:$0xf]
  %v74 = vld [vmem:[%s1 + $0x2c] sm:$0xf]
  %v75 = vld [vmem:[%s1 + $0x30] sm:$0xf]
  %v76 = vld [vmem:[%s1 + $0x34] sm:$0xf]
  %v77 = vld [vmem:[%s1 + $0x38] sm:$0xf]
  %v78 = vld [vmem:[%s1 + $0x3c] sm:$0xf]
  %v95 = vunpack.c.l.b16 %v63
  %v96 = vunpack.c.l.b16 %v64
  %v97 = vunpack.c.l.b16 %v65
  %v98 = vunpack.c.l.b16 %v66
  %v99 = vunpack.c.l.b16 %v67
  %v100 = vunpack.c.l.b16 %v68
  %v101 = vunpack.c.l.b16 %v69
  %v102 = vunpack.c.l.b16 %v70
  %v103 = vunpack.c.l.b16 %v71
  %v104 = vunpack.c.l.b16 %v72
  %v105 = vunpack.c.l.b16 %v73
  %v106 = vunpack.c.l.b16 %v74
  %v107 = vunpack.c.l.b16 %v75
  %v108 = vunpack.c.l.b16 %v76
  %v109 = vunpack.c.l.b16 %v77
  %v110 = vunpack.c.l.b16 %v78
  %v111 = vpack.c.b16 %v96, %v95
  %v112 = vpack.c.b16 %v98, %v97
  %v113 = vpack.c.b16 %v100, %v99
  %v114 = vpack.c.b16 %v102, %v101
  %v115 = vpack.c.b16 %v104, %v103
  %v116 = vpack.c.b16 %v106, %v105
  %v117 = vpack.c.b16 %v108, %v107
  %v118 = vpack.c.b16 %v110, %v109
  %127 = vmatprep.subr.bf16.mxu0 0
  %128 = vmatpush1.bf16.msra.mxu0 %v111
  %129 = vmatprep.subr.bf16.mxu0 0
  %130 = vmatpush1.bf16.msra.mxu0 %v112
  %131 = vmatprep.subr.bf16.mxu0 0
  %132 = vmatpush1.bf16.msra.mxu0 %v113
  %133 = vmatprep.subr.bf16.mxu0 0
  %134 = vmatpush1.bf16.msra.mxu0 %v114
  %135 = vmatprep.subr.bf16.mxu0 0
  %136 = vmatpush1.bf16.msra.mxu0 %v115
  %137 = vmatprep.subr.bf16.mxu0 0
  %138 = vmatpush1.bf16.msra.mxu0 %v116
  %139 = vmatprep.subr.bf16.mxu0 0
  %140 = vmatpush1.bf16.msra.mxu0 %v117
  %141 = vmatprep.subr.bf16.mxu0 0
  %142 = vmatpush1.bf16.msra.mxu0 %v118
  %143 = vmatprep.subr.bf16.mxu0 0
  %144 = vmatpush1.bf16.msra.mxu0 0
  %145 = vmatprep.subr.bf16.mxu0 0
  %146 = vmatpush1.bf16.msra.mxu0 0
  %147 = vmatprep.subr.bf16.mxu0 0
  %148 = vmatpush1.bf16.msra.mxu0 0
  %149 = vmatprep.subr.bf16.mxu0 0
  %150 = vmatpush1.bf16.msra.mxu0 0
  %151 = vmatprep.subr.bf16.mxu0 0
  %152 = vmatpush1.bf16.msra.mxu0 0
  %153 = vmatprep.subr.bf16.mxu0 0
  %154 = vmatpush1.bf16.msra.mxu0 0
  %155 = vmatprep.subr.bf16.mxu0 0
  %156 = vmatpush1.bf16.msra.mxu0 0
  %157 = vmatprep.subr.bf16.mxu0 0
  %158 = vmatpush1.bf16.msra.mxu0 0
  %159 = vmatprep.mubr.bf16.mxu0 0
  %160 = vmatmul.mubr.bf16.gmra.mrb[0].mxu0 %v62
  %v161 = vpop.f32.mrb[0].mxu0
  %v162 = vadd.f32 0.0, %v161
  %v163 = vpop.f32.mrb[0].mxu0
  %v164 = vpop.f32.mrb[0].mxu0
  %v165 = vpop.f32.mrb[0].mxu0
  %166 = vdwg.mxu0
  %v167 = vld [vmem:[%s3] sm:$0xf]
  %168 = vst [vmem:[#allocation2 + $0x8] sm:$0xff] %v162
  %v169 = vld [vmem:[#allocation2] sm:$0xff]
  %v170 = vld [vmem:[#allocation2 + $0x8] sm:$0xff]
  %v171 = vld [vmem:[#allocation2 + $0x8] sm:$0xff]
  %v172 = vld [vmem:[#allocation2 + $0x10] sm:$0xff]
  %175 = vrot.lane.b32.xlu0 %v169, 127
  %v176 = vpop.permute.xlu0 %175
  %177 = vrot.lane.b32.xlu0 %v170, 127
  %v178 = vpop.permute.xlu0 %177
  %v179 = vsel %vm41, %v176, %v178
  %182 = vrot.lane.b32.xlu0 %v169, 126
  %v183 = vpop.permute.xlu0 %182
  %184 = vrot.lane.b32.xlu0 %v170, 126
  %v185 = vpop.permute.xlu0 %184
  %vm186 = vcmask 1031168
  %v187 = vsel %vm186, %v183, %v185
  %190 = vrot.lane.b32.xlu0 %v169, 125
  %v191 = vpop.permute.xlu0 %190
  %192 = vrot.lane.b32.xlu0 %v170, 125
  %v193 = vpop.permute.xlu0 %192
  %vm194 = vcmask 1022976
  %v195 = vsel %vm194, %v191, %v193
  %198 = vrot.lane.b32.xlu0 %v170, 124
  %v199 = vpop.permute.xlu0 %198
  %203 = vrot.lane.b32.xlu0 %v171, 123
  %v204 = vpop.permute.xlu0 %203
  %205 = vrot.lane.b32.xlu0 %v172, 123
  %v206 = vpop.permute.xlu0 %205
  %v207 = vsel %vm57, %v204, %v206
  %210 = vrot.lane.b32.xlu0 %v171, 122
  %v211 = vpop.permute.xlu0 %210
  %212 = vrot.lane.b32.xlu0 %v172, 122
  %v213 = vpop.permute.xlu0 %212
  %vm214 = vcmask 998400
  %v215 = vsel %vm214, %v211, %v213
  %218 = vrot.lane.b32.xlu0 %v171, 121
  %v219 = vpop.permute.xlu0 %218
  %220 = vrot.lane.b32.xlu0 %v172, 121
  %v221 = vpop.permute.xlu0 %220
  %vm222 = vcmask 990208
  %v223 = vsel %vm222, %v219, %v221
  %226 = vrot.lane.b32.xlu0 %v171, 120
  %v227 = vpop.permute.xlu0 %226
  %228 = vrot.lane.b32.xlu0 %v172, 120
  %v229 = vpop.permute.xlu0 %228
  %vm230 = vcmask 982016
  %v231 = vsel %vm230, %v227, %v229
  %v234 = vpack.c.bf16 %v179, %v169
  %v235 = vpack.c.bf16 %v178, %v170
  %v236 = vpack.c.bf16 %v195, %v187
  %v237 = vpack.c.bf16 %v193, %v185
  %v238 = vpack.c.bf16 %v204, %v199
  %v239 = vpack.c.bf16 %v207, %v199
  %v240 = vpack.c.bf16 %v219, %v211
  %v241 = vpack.c.bf16 %v223, %v215
  %v242 = vpack.c.bf16 %v227, %v227
  %v243 = vpack.c.bf16 %v231, %v231
  %v244 = vld [vmem:[%s4] sm:$0xff]
  %246 = vset.pattern.permute.xlu0 0
  %247 = vperm.xlu0 %246, %v244
  %v248 = vpop.permute.xlu0 %247
  %260 = vrot.lane.b32.xlu0 %v234, 4
  %v261 = vpop.permute.xlu0 %260
  %262 = vrot.lane.b32.xlu0 %v235, 4
  %v263 = vpop.permute.xlu0 %262
  %264 = vrot.lane.b32.xlu0 %v236, 4
  %v265 = vpop.permute.xlu0 %264
  %266 = vrot.lane.b32.xlu0 %v237, 4
  %v267 = vpop.permute.xlu0 %266
  %268 = vrot.lane.b32.xlu0 %v238, 4
  %v269 = vpop.permute.xlu0 %268
  %270 = vrot.lane.b32.xlu0 %v239, 4
  %v271 = vpop.permute.xlu0 %270
  %272 = vrot.lane.b32.xlu0 %v240, 4
  %v273 = vpop.permute.xlu0 %272
  %274 = vrot.lane.b32.xlu0 %v241, 4
  %v275 = vpop.permute.xlu0 %274
  %276 = vrot.lane.b32.xlu0 %v242, 4
  %v277 = vpop.permute.xlu0 %276
  %278 = vrot.lane.b32.xlu0 %v243, 4
  %v279 = vpop.permute.xlu0 %278
  %vm280 = vcmask 31744
  %v281 = vsel %vm280, %v261, %v263
  %v282 = vsel %vm280, %v265, %v267
  %v283 = vsel %vm280, %v269, %v271
  %v284 = vsel %vm280, %v273, %v275
  %v285 = vsel %vm280, %v277, %v279
  %vm290 = vcmask 588800
  %v292 = vsel %vm290, %v167, 0
  %vm294 = vcmask 1043456
  %v296 = vsel %vm294, %v285, 0
  %298 = vmatprep.subr.bf16.mxu0 0
  %299 = vmatpush1.bf16.msra.mxu0 %v281
  %300 = vmatprep.subr.bf16.mxu0 0
  %301 = vmatpush1.bf16.msra.mxu0 %v282
  %302 = vmatprep.subr.bf16.mxu0 0
  %303 = vmatpush1.bf16.msra.mxu0 %v283
  %304 = vmatprep.subr.bf16.mxu0 0
  %305 = vmatpush1.bf16.msra.mxu0 %v284
  %306 = vmatprep.subr.bf16.mxu0 0
  %307 = vmatpush1.bf16.msra.mxu0 %v296
  %308 = vmatprep.subr.bf16.mxu0 0
  %309 = vmatpush1.bf16.msra.mxu0 0
  %310 = vmatprep.subr.bf16.mxu0 0
  %311 = vmatpush1.bf16.msra.mxu0 0
  %312 = vmatprep.subr.bf16.mxu0 0
  %313 = vmatpush1.bf16.msra.mxu0 0
  %314 = vmatprep.subr.bf16.mxu0 0
  %315 = vmatpush1.bf16.msra.mxu0 0
  %316 = vmatprep.subr.bf16.mxu0 0
  %317 = vmatpush1.bf16.msra.mxu0 0
  %318 = vmatprep.subr.bf16.mxu0 0
  %319 = vmatpush1.bf16.msra.mxu0 0
  %320 = vmatprep.subr.bf16.mxu0 0
  %321 = vmatpush1.bf16.msra.mxu0 0
  %322 = vmatprep.subr.bf16.mxu0 0
  %323 = vmatpush1.bf16.msra.mxu0 0
  %324 = vmatprep.subr.bf16.mxu0 0
  %325 = vmatpush1.bf16.msra.mxu0 0
  %326 = vmatprep.subr.bf16.mxu0 0
  %327 = vmatpush1.bf16.msra.mxu0 0
  %328 = vmatprep.subr.bf16.mxu0 0
  %329 = vmatpush1.bf16.msra.mxu0 0
  %330 = vmatprep.mubr.bf16.mxu0 0
  %331 = vmatmul.mubr.bf16.gmra.mrb[0].mxu0 %v292
  %v332 = vpop.f32.mrb[0].mxu0
  %v333 = vadd.f32 %v248, %v332
  %v334 = vpop.f32.mrb[0].mxu0
  %v335 = vpop.f32.mrb[0].mxu0
  %v336 = vpop.f32.mrb[0].mxu0
  %337 = vdwg.mxu0
  %v338 = vmax.f32 %v333, 0.0
  %v340 = vlaneseq
  %v341 = vshrl.u32 %v340, 7
  %v342 = vsub.s32 0, %v341
  %v343 = vrot.slane %v27, %v342
  %v345 = vmul.f32 %v338, %v343
  %v346 = vld [vmem:[%s5] sm:$0xf]
  %347 = vst [vmem:[#allocation2 + $0x8] sm:$0xff] %v345
  %v348 = vld [vmem:[#allocation2] sm:$0xff]
  %v349 = vld [vmem:[#allocation2 + $0x8] sm:$0xff]
  %v350 = vld [vmem:[#allocation2 + $0x8] sm:$0xff]
  %v351 = vld [vmem:[#allocation2 + $0x10] sm:$0xff]
  %354 = vrot.lane.b32.xlu0 %v348, 127
  %v355 = vpop.permute.xlu0 %354
  %356 = vrot.lane.b32.xlu0 %v349, 127
  %v357 = vpop.permute.xlu0 %356
  %v358 = vsel %vm41, %v355, %v357
  %361 = vrot.lane.b32.xlu0 %v348, 126
  %v362 = vpop.permute.xlu0 %361
  %363 = vrot.lane.b32.xlu0 %v349, 126
  %v364 = vpop.permute.xlu0 %363
  %v365 = vsel %vm186, %v362, %v364
  %368 = vrot.lane.b32.xlu0 %v348, 125
  %v369 = vpop.permute.xlu0 %368
  %370 = vrot.lane.b32.xlu0 %v349, 125
  %v371 = vpop.permute.xlu0 %370
  %v372 = vsel %vm194, %v369, %v371
  %375 = vrot.lane.b32.xlu0 %v349, 124
  %v376 = vpop.permute.xlu0 %375
  %380 = vrot.lane.b32.xlu0 %v350, 123
  %v381 = vpop.permute.xlu0 %380
  %382 = vrot.lane.b32.xlu0 %v351, 123
  %v383 = vpop.permute.xlu0 %382
  %v384 = vsel %vm57, %v381, %v383
  %387 = vrot.lane.b32.xlu0 %v350, 122
  %v388 = vpop.permute.xlu0 %387
  %389 = vrot.lane.b32.xlu0 %v351, 122
  %v390 = vpop.permute.xlu0 %389
  %v391 = vsel %vm214, %v388, %v390
  %394 = vrot.lane.b32.xlu0 %v350, 121
  %v395 = vpop.permute.xlu0 %394
  %396 = vrot.lane.b32.xlu0 %v351, 121
  %v397 = vpop.permute.xlu0 %396
  %v398 = vsel %vm222, %v395, %v397
  %401 = vrot.lane.b32.xlu0 %v350, 120
  %v402 = vpop.permute.xlu0 %401
  %403 = vrot.lane.b32.xlu0 %v351, 120
  %v404 = vpop.permute.xlu0 %403
  %v405 = vsel %vm230, %v402, %v404
  %v408 = vpack.c.bf16 %v358, %v348
  %v409 = vpack.c.bf16 %v357, %v349
  %v410 = vpack.c.bf16 %v372, %v365
  %v411 = vpack.c.bf16 %v371, %v364
  %v412 = vpack.c.bf16 %v381, %v376
  %v413 = vpack.c.bf16 %v384, %v376
  %v414 = vpack.c.bf16 %v395, %v388
  %v415 = vpack.c.bf16 %v398, %v391
  %v416 = vpack.c.bf16 %v402, %v402
  %v417 = vpack.c.bf16 %v405, %v405
  %v418 = vld [vmem:[%s6] sm:$0xff]
  %420 = vset.pattern.permute.xlu0 0
  %421 = vperm.xlu0 %420, %v418
  %v422 = vpop.permute.xlu0 %421
  %434 = vrot.lane.b32.xlu0 %v408, 4
  %v435 = vpop.permute.xlu0 %434
  %436 = vrot.lane.b32.xlu0 %v409, 4
  %v437 = vpop.permute.xlu0 %436
  %438 = vrot.lane.b32.xlu0 %v410, 4
  %v439 = vpop.permute.xlu0 %438
  %440 = vrot.lane.b32.xlu0 %v411, 4
  %v441 = vpop.permute.xlu0 %440
  %442 = vrot.lane.b32.xlu0 %v412, 4
  %v443 = vpop.permute.xlu0 %442
  %444 = vrot.lane.b32.xlu0 %v413, 4
  %v445 = vpop.permute.xlu0 %444
  %446 = vrot.lane.b32.xlu0 %v414, 4
  %v447 = vpop.permute.xlu0 %446
  %448 = vrot.lane.b32.xlu0 %v415, 4
  %v449 = vpop.permute.xlu0 %448
  %450 = vrot.lane.b32.xlu0 %v416, 4
  %v451 = vpop.permute.xlu0 %450
  %452 = vrot.lane.b32.xlu0 %v417, 4
  %v453 = vpop.permute.xlu0 %452
  %v454 = vsel %vm280, %v435, %v437
  %v455 = vsel %vm280, %v439, %v441
  %v456 = vsel %vm280, %v443, %v445
  %v457 = vsel %vm280, %v447, %v449
  %v458 = vsel %vm280, %v451, %v453
  %v464 = vsel %vm290, %v346, 0
  %v467 = vsel %vm294, %v458, 0
  %469 = vmatprep.subr.bf16.mxu0 0
  %470 = vmatpush1.bf16.msra.mxu0 %v454
  %471 = vmatprep.subr.bf16.mxu0 0
  %472 = vmatpush1.bf16.msra.mxu0 %v455
  %473 = vmatprep.subr.bf16.mxu0 0
  %474 = vmatpush1.bf16.msra.mxu0 %v456
  %475 = vmatprep.subr.bf16.mxu0 0
  %476 = vmatpush1.bf16.msra.mxu0 %v457
  %477 = vmatprep.subr.bf16.mxu0 0
  %478 = vmatpush1.bf16.msra.mxu0 %v467
  %479 = vmatprep.subr.bf16.mxu0 0
  %480 = vmatpush1.bf16.msra.mxu0 0
  %481 = vmatprep.subr.bf16.mxu0 0
  %482 = vmatpush1.bf16.msra.mxu0 0
  %483 = vmatprep.subr.bf16.mxu0 0
  %484 = vmatpush1.bf16.msra.mxu0 0
  %485 = vmatprep.subr.bf16.mxu0 0
  %486 = vmatpush1.bf16.msra.mxu0 0
  %487 = vmatprep.subr.bf16.mxu0 0
  %488 = vmatpush1.bf16.msra.mxu0 0
  %489 = vmatprep.subr.bf16.mxu0 0
  %490 = vmatpush1.bf16.msra.mxu0 0
  %491 = vmatprep.subr.bf16.mxu0 0
  %492 = vmatpush1.bf16.msra.mxu0 0
  %493 = vmatprep.subr.bf16.mxu0 0
  %494 = vmatpush1.bf16.msra.mxu0 0
  %495 = vmatprep.subr.bf16.mxu0 0
  %496 = vmatpush1.bf16.msra.mxu0 0
  %497 = vmatprep.subr.bf16.mxu0 0
  %498 = vmatpush1.bf16.msra.mxu0 0
  %499 = vmatprep.subr.bf16.mxu0 0
  %500 = vmatpush1.bf16.msra.mxu0 0
  %501 = vmatprep.mubr.bf16.mxu0 0
  %502 = vmatmul.mubr.bf16.gmra.mrb[0].mxu0 %v464
  %v503 = vpop.f32.mrb[0].mxu0
  %v504 = vadd.f32 %v422, %v503
  %v505 = vpop.f32.mrb[0].mxu0
  %v506 = vpop.f32.mrb[0].mxu0
  %v507 = vpop.f32.mrb[0].mxu0
  %508 = vdwg.mxu0
  %v509 = vmax.f32 %v504, 0.0
  %v510 = vadd.f32 %v509, %v162
  %v511 = vmul.f32 %v510, %v343
  %512 = vst [vmem:[%s7] sm:$0xff] %v511
  // Predicated region
  $region30: #{resunet_forward.13} parent=0 // pred_check
    _
  $region31: #{resunet_forward.13} parent=0 // pred_check_branch
    %514 = sbr.rel (0) target = $region33
  $region32: #{resunet_forward.13} parent=0 // pred_region
    _
  $region33: #{resunet_forward.13} parent=0 // pred_fallthru
    _
  // Predicated region
  $region34: #{resunet_forward.13} parent=0 // pred_check
    _
  $region35: #{resunet_forward.13} parent=0 // pred_check_branch
    %516 = sbr.rel (0) target = $region37
  $region36: #{resunet_forward.13} parent=0 // pred_region
    _
  $region37: #{resunet_forward.13} parent=0 // pred_fallthru
    _

// kernel: resunet_forward.15
$region0: #{resunet_forward.15}
  #allocation0 [shape = 'u32[]', space=smem, size = 0x4, offset = 0x4, fixed_abs, tag = 'smem constant byte address 0x4 - core index']
  #allocation1 [shape = 'u32[144,128]{1,0:T(1,128)}', space=vmem, size = 0x12000, scoped, tag = 'internal scratch']
  #allocation2 [shape = 'f32[8,384]{1,0:T(8,128)}', space=vmem, size = 0x3000, scoped, tag = 'scratch operand']
  %s0 = inlined_call_operand.vmem [shape: f32[8,128], index: 0, kind: input, shape index: {}]
  %s1 = inlined_call_operand.vmem [shape: bf16[128,128], index: 1, kind: input, shape index: {}]
  %s2 = inlined_call_operand.vmem [shape: f32[8,128], index: 2, kind: input, shape index: {}]
  %s3 = inlined_call_operand.vmem [shape: f32[1,128], index: 3, kind: input, shape index: {}]
  %s4 = inlined_call_operand.vmem [shape: bf16[8,72], index: 4, kind: input, shape index: {}]
  %s5 = inlined_call_operand.vmem [shape: bf16[8,72], index: 5, kind: input, shape index: {}]
  %s6 = inlined_call_operand.vmem [shape: f32[8,1], index: 6, kind: input, shape index: {}]
  %s7 = inlined_call_operand.vmem [shape: bf16[8,72], index: 7, kind: input, shape index: {}]
  %s8 = inlined_call_operand.vmem [shape: f32[8,1], index: 8, kind: input, shape index: {}]
  %s9 = inlined_call_operand.vmem [shape: bf16[8,8], index: 9, kind: input, shape index: {}]
  %s10 = inlined_call_operand.vmem [shape: bf16[8,8], index: 10, kind: input, shape index: {}]
  %s11 = inlined_call_operand.vmem [shape: f32[8,1], index: 11, kind: input, shape index: {}]
  %s12 = inlined_call_operand.vmem [shape: f32[8,128], index: 12, kind: output, shape index: {}]
  %s13 = sld [smem:[#allocation0]]
  $region58: #{resunet_forward.15} parent=0
    _
  %s15 = ssub.s32 1, %s13
  %s16 = scalar_select 0, %s15, %s13
  // Predicated region
  $region2: #{resunet_forward.15} parent=0 // pred_check
    _
  $region3: #{resunet_forward.15} parent=0 // pred_check_branch
    %18 = sbr.rel (0) target = $region5
  $region4: #{resunet_forward.15} parent=0 // pred_region
    _
  $region5: #{resunet_forward.15} parent=0 // pred_fallthru
    _
  // Predicated region
  $region6: #{resunet_forward.15} parent=0 // pred_check
    _
  $region7: #{resunet_forward.15} parent=0 // pred_check_branch
    %20 = sbr.rel (0) target = $region9
  $region8: #{resunet_forward.15} parent=0 // pred_region
    _
  $region9: #{resunet_forward.15} parent=0 // pred_fallthru
    _
  // Predicated region
  $region10: #{resunet_forward.15} parent=0 // pred_check
    _
  $region11: #{resunet_forward.15} parent=0 // pred_check_branch
    %22 = sbr.rel (0) target = $region13
  $region12: #{resunet_forward.15} parent=0 // pred_region
    _
  $region13: #{resunet_forward.15} parent=0 // pred_fallthru
    _
  // Predicated region
  $region14: #{resunet_forward.15} parent=0 // pred_check
    _
  $region15: #{resunet_forward.15} parent=0 // pred_check_branch
    %24 = sbr.rel (0) target = $region17
  $region16: #{resunet_forward.15} parent=0 // pred_region
    _
  $region17: #{resunet_forward.15} parent=0 // pred_fallthru
    _
  // Predicated region
  $region18: #{resunet_forward.15} parent=0 // pred_check
    _
  $region19: #{resunet_forward.15} parent=0 // pred_check_branch
    %26 = sbr.rel (0) target = $region21
  $region20: #{resunet_forward.15} parent=0 // pred_region
    _
  $region21: #{resunet_forward.15} parent=0 // pred_fallthru
    _
  // Predicated region
  $region22: #{resunet_forward.15} parent=0 // pred_check
    _
  $region23: #{resunet_forward.15} parent=0 // pred_check_branch
    %28 = sbr.rel (0) target = $region25
  $region24: #{resunet_forward.15} parent=0 // pred_region
    _
  $region25: #{resunet_forward.15} parent=0 // pred_fallthru
    _
  // Predicated region
  $region26: #{resunet_forward.15} parent=0 // pred_check
    _
  $region27: #{resunet_forward.15} parent=0 // pred_check_branch
    %30 = sbr.rel (0) target = $region29
  $region28: #{resunet_forward.15} parent=0 // pred_region
    _
  $region29: #{resunet_forward.15} parent=0 // pred_fallthru
    _
  // Predicated region
  $region30: #{resunet_forward.15} parent=0 // pred_check
    _
  $region31: #{resunet_forward.15} parent=0 // pred_check_branch
    %32 = sbr.rel (0) target = $region33
  $region32: #{resunet_forward.15} parent=0 // pred_region
    _
  $region33: #{resunet_forward.15} parent=0 // pred_fallthru
    _
  // Predicated region
  $region34: #{resunet_forward.15} parent=0 // pred_check
    _
  $region35: #{resunet_forward.15} parent=0 // pred_check_branch
    %34 = sbr.rel (0) target = $region37
  $region36: #{resunet_forward.15} parent=0 // pred_region
    _
  $region37: #{resunet_forward.15} parent=0 // pred_fallthru
    _
  // Predicated region
  $region38: #{resunet_forward.15} parent=0 // pred_check
    _
  $region39: #{resunet_forward.15} parent=0 // pred_check_branch
    %36 = sbr.rel (0) target = $region41
  $region40: #{resunet_forward.15} parent=0 // pred_region
    _
  $region41: #{resunet_forward.15} parent=0 // pred_fallthru
    _
  // Predicated region
  $region42: #{resunet_forward.15} parent=0 // pred_check
    _
  $region43: #{resunet_forward.15} parent=0 // pred_check_branch
    %38 = sbr.rel (0) target = $region45
  $region44: #{resunet_forward.15} parent=0 // pred_region
    _
  $region45: #{resunet_forward.15} parent=0 // pred_fallthru
    _
  // Predicated region
  $region46: #{resunet_forward.15} parent=0 // pred_check
    _
  $region47: #{resunet_forward.15} parent=0 // pred_check_branch
    %40 = sbr.rel (0) target = $region49
  $region48: #{resunet_forward.15} parent=0 // pred_region
    _
  $region49: #{resunet_forward.15} parent=0 // pred_fallthru
    _
  %v42 = vld [vmem:[%s3] sm:$0x1]
  %43 = vst [vmem:[#allocation2] sm:$0xff] 0.0
  %44 = vst [vmem:[#allocation2 + $0x8] sm:$0xff] 0.0
  %45 = vst [vmem:[#allocation2 + $0x10] sm:$0xff] 0.0
  %v46 = vld [vmem:[%s0] sm:$0xff]
  %v47 = vpack.c.bf16 %v46, %v46
  %v48 = vld [vmem:[%s1] sm:$0xf]
  %v49 = vld [vmem:[%s1 + $0x4] sm:$0xf]
  %v50 = vld [vmem:[%s1 + $0x8] sm:$0xf]
  %v51 = vld [vmem:[%s1 + $0xc] sm:$0xf]
  %v52 = vld [vmem:[%s1 + $0x10] sm:$0xf]
  %v53 = vld [vmem:[%s1 + $0x14] sm:$0xf]
  %v54 = vld [vmem:[%s1 + $0x18] sm:$0xf]
  %v55 = vld [vmem:[%s1 + $0x1c] sm:$0xf]
  %v56 = vld [vmem:[%s1 + $0x20] sm:$0xf]
  %v57 = vld [vmem:[%s1 + $0x24] sm:$0xf]
  %v58 = vld [vmem:[%s1 + $0x28] sm:$0xf]
  %v59 = vld [vmem:[%s1 + $0x2c] sm:$0xf]
  %v60 = vld [vmem:[%s1 + $0x30] sm:$0xf]
  %v61 = vld [vmem:[%s1 + $0x34] sm:$0xf]
  %v62 = vld [vmem:[%s1 + $0x38] sm:$0xf]
  %v63 = vld [vmem:[%s1 + $0x3c] sm:$0xf]
  %v80 = vunpack.c.l.b16 %v48
  %v81 = vunpack.c.l.b16 %v49
  %v82 = vunpack.c.l.b16 %v50
  %v83 = vunpack.c.l.b16 %v51
  %v84 = vunpack.c.l.b16 %v52
  %v85 = vunpack.c.l.b16 %v53
  %v86 = vunpack.c.l.b16 %v54
  %v87 = vunpack.c.l.b16 %v55
  %v88 = vunpack.c.l.b16 %v56
  %v89 = vunpack.c.l.b16 %v57
  %v90 = vunpack.c.l.b16 %v58
  %v91 = vunpack.c.l.b16 %v59
  %v92 = vunpack.c.l.b16 %v60
  %v93 = vunpack.c.l.b16 %v61
  %v94 = vunpack.c.l.b16 %v62
  %v95 = vunpack.c.l.b16 %v63
  %v96 = vpack.c.b16 %v81, %v80
  %v97 = vpack.c.b16 %v83, %v82
  %v98 = vpack.c.b16 %v85, %v84
  %v99 = vpack.c.b16 %v87, %v86
  %v100 = vpack.c.b16 %v89, %v88
  %v101 = vpack.c.b16 %v91, %v90
  %v102 = vpack.c.b16 %v93, %v92
  %v103 = vpack.c.b16 %v95, %v94
  %112 = vmatprep.subr.bf16.mxu0 0
  %113 = vmatpush1.bf16.msra.mxu0 %v96
  %114 = vmatprep.subr.bf16.mxu0 0
  %115 = vmatpush1.bf16.msra.mxu0 %v97
  %116 = vmatprep.subr.bf16.mxu0 0
  %117 = vmatpush1.bf16.msra.mxu0 %v98
  %118 = vmatprep.subr.bf16.mxu0 0
  %119 = vmatpush1.bf16.msra.mxu0 %v99
  %120 = vmatprep.subr.bf16.mxu0 0
  %121 = vmatpush1.bf16.msra.mxu0 %v100
  %122 = vmatprep.subr.bf16.mxu0 0
  %123 = vmatpush1.bf16.msra.mxu0 %v101
  %124 = vmatprep.subr.bf16.mxu0 0
  %125 = vmatpush1.bf16.msra.mxu0 %v102
  %126 = vmatprep.subr.bf16.mxu0 0
  %127 = vmatpush1.bf16.msra.mxu0 %v103
  %128 = vmatprep.subr.bf16.mxu0 0
  %129 = vmatpush1.bf16.msra.mxu0 0
  %130 = vmatprep.subr.bf16.mxu0 0
  %131 = vmatpush1.bf16.msra.mxu0 0
  %132 = vmatprep.subr.bf16.mxu0 0
  %133 = vmatpush1.bf16.msra.mxu0 0
  %134 = vmatprep.subr.bf16.mxu0 0
  %135 = vmatpush1.bf16.msra.mxu0 0
  %136 = vmatprep.subr.bf16.mxu0 0
  %137 = vmatpush1.bf16.msra.mxu0 0
  %138 = vmatprep.subr.bf16.mxu0 0
  %139 = vmatpush1.bf16.msra.mxu0 0
  %140 = vmatprep.subr.bf16.mxu0 0
  %141 = vmatpush1.bf16.msra.mxu0 0
  %142 = vmatprep.subr.bf16.mxu0 0
  %143 = vmatpush1.bf16.msra.mxu0 0
  %144 = vmatprep.mubr.bf16.mxu0 0
  %145 = vmatmul.mubr.bf16.gmra.mrb[0].mxu0 %v47
  %v146 = vpop.f32.mrb[0].mxu0
  %v147 = vadd.f32 0.0, %v146
  %v148 = vpop.f32.mrb[0].mxu0
  %v149 = vpop.f32.mrb[0].mxu0
  %v150 = vpop.f32.mrb[0].mxu0
  %151 = vdwg.mxu0
  %v152 = vmax.f32 %v147, 0.0
  %v153 = vld [vmem:[%s4] sm:$0xf]
  %154 = vst [vmem:[#allocation2 + $0x8] sm:$0xff] %v152
  %v155 = vld [vmem:[#allocation2] sm:$0xff]
  %v156 = vld [vmem:[#allocation2 + $0x8] sm:$0xff]
  %v157 = vld [vmem:[#allocation2 + $0x8] sm:$0xff]
  %v158 = vld [vmem:[#allocation2 + $0x10] sm:$0xff]
  %161 = vrot.lane.b32.xlu0 %v155, 127
  %v162 = vpop.permute.xlu0 %161
  %163 = vrot.lane.b32.xlu0 %v156, 127
  %v164 = vpop.permute.xlu0 %163
  %vm165 = vcmask 1039360
  %v166 = vsel %vm165, %v162, %v164
  %169 = vrot.lane.b32.xlu0 %v155, 126
  %v170 = vpop.permute.xlu0 %169
  %171 = vrot.lane.b32.xlu0 %v156, 126
  %v172 = vpop.permute.xlu0 %171
  %vm173 = vcmask 1031168
  %v174 = vsel %vm173, %v170, %v172
  %177 = vrot.lane.b32.xlu0 %v155, 122
  %v178 = vpop.permute.xlu0 %177
  %179 = vrot.lane.b32.xlu0 %v156, 122
  %v180 = vpop.permute.xlu0 %179
  %vm181 = vcmask 998400
  %v182 = vsel %vm181, %v178, %v180
  %185 = vrot.lane.b32.xlu0 %v156, 121
  %v186 = vpop.permute.xlu0 %185
  %190 = vrot.lane.b32.xlu0 %v157, 120
  %v191 = vpop.permute.xlu0 %190
  %192 = vrot.lane.b32.xlu0 %v158, 120
  %v193 = vpop.permute.xlu0 %192
  %vm194 = vcmask 982016
  %v195 = vsel %vm194, %v191, %v193
  %198 = vrot.lane.b32.xlu0 %v157, 116
  %v199 = vpop.permute.xlu0 %198
  %200 = vrot.lane.b32.xlu0 %v158, 116
  %v201 = vpop.permute.xlu0 %200
  %vm202 = vcmask 949248
  %v203 = vsel %vm202, %v199, %v201
  %206 = vrot.lane.b32.xlu0 %v157, 115
  %v207 = vpop.permute.xlu0 %206
  %208 = vrot.lane.b32.xlu0 %v158, 115
  %v209 = vpop.permute.xlu0 %208
  %vm210 = vcmask 941056
  %v211 = vsel %vm210, %v207, %v209
  %214 = vrot.lane.b32.xlu0 %v157, 114
  %v215 = vpop.permute.xlu0 %214
  %216 = vrot.lane.b32.xlu0 %v158, 114
  %v217 = vpop.permute.xlu0 %216
  %vm218 = vcmask 932864
  %v219 = vsel %vm218, %v215, %v217
  %v222 = vpack.c.bf16 %v166, %v155
  %v223 = vpack.c.bf16 %v164, %v156
  %v224 = vpack.c.bf16 %v182, %v174
  %v225 = vpack.c.bf16 %v180, %v172
  %v226 = vpack.c.bf16 %v191, %v186
  %v227 = vpack.c.bf16 %v195, %v186
  %v228 = vpack.c.bf16 %v207, %v199
  %v229 = vpack.c.bf16 %v211, %v203
  %v230 = vpack.c.bf16 %v215, %v215
  %v231 = vpack.c.bf16 %v219, %v219
  %v232 = vld [vmem:[%s2] sm:$0xff]
  %v233 = vld [vmem:[%s5] sm:$0xf]
  %234 = vst [vmem:[#allocation2 + $0x8] sm:$0xff] %v232
  %v235 = vld [vmem:[#allocation2] sm:$0xff]
  %v236 = vld [vmem:[#allocation2 + $0x8] sm:$0xff]
  %v237 = vld [vmem:[#allocation2 + $0x8] sm:$0xff]
  %v238 = vld [vmem:[#allocation2 + $0x10] sm:$0xff]
  %241 = vrot.lane.b32.xlu0 %v235, 127
  %v242 = vpop.permute.xlu0 %241
  %243 = vrot.lane.b32.xlu0 %v236, 127
  %v244 = vpop.permute.xlu0 %243
  %v245 = vsel %vm165, %v242, %v244
  %248 = vrot.lane.b32.xlu0 %v235, 126
  %v249 = vpop.permute.xlu0 %248
  %250 = vrot.lane.b32.xlu0 %v236, 126
  %v251 = vpop.permute.xlu0 %250
  %v252 = vsel %vm173, %v249, %v251
  %255 = vrot.lane.b32.xlu0 %v235, 122
  %v256 = vpop.permute.xlu0 %255
  %257 = vrot.lane.b32.xlu0 %v236, 122
  %v258 = vpop.permute.xlu0 %257
  %v259 = vsel %vm181, %v256, %v258
  %262 = vrot.lane.b32.xlu0 %v236, 121
  %v263 = vpop.permute.xlu0 %262
  %267 = vrot.lane.b32.xlu0 %v237, 120
  %v268 = vpop.permute.xlu0 %267
  %269 = vrot.lane.b32.xlu0 %v238, 120
  %v270 = vpop.permute.xlu0 %269
  %v271 = vsel %vm194, %v268, %v270
  %274 = vrot.lane.b32.xlu0 %v237, 116
  %v275 = vpop.permute.xlu0 %274
  %276 = vrot.lane.b32.xlu0 %v238, 116
  %v277 = vpop.permute.xlu0 %276
  %v278 = vsel %vm202, %v275, %v277
  %281 = vrot.lane.b32.xlu0 %v237, 115
  %v282 = vpop.permute.xlu0 %281
  %283 = vrot.lane.b32.xlu0 %v238, 115
  %v284 = vpop.permute.xlu0 %283
  %v285 = vsel %vm210, %v282, %v284
  %288 = vrot.lane.b32.xlu0 %v237, 114
  %v289 = vpop.permute.xlu0 %288
  %290 = vrot.lane.b32.xlu0 %v238, 114
  %v291 = vpop.permute.xlu0 %290
  %v292 = vsel %vm218, %v289, %v291
  %v295 = vpack.c.bf16 %v245, %v235
  %v296 = vpack.c.bf16 %v244, %v236
  %v297 = vpack.c.bf16 %v259, %v252
  %v298 = vpack.c.bf16 %v258, %v251
  %v299 = vpack.c.bf16 %v268, %v263
  %v300 = vpack.c.bf16 %v271, %v263
  %v301 = vpack.c.bf16 %v282, %v275
  %v302 = vpack.c.bf16 %v285, %v278
  %v303 = vpack.c.bf16 %v289, %v289
  %v304 = vpack.c.bf16 %v292, %v292
  %315 = vrot.lane.b32.xlu0 %v295, 7
  %v316 = vpop.permute.xlu0 %315
  %317 = vrot.lane.b32.xlu0 %v296, 7
  %v318 = vpop.permute.xlu0 %317
  %319 = vrot.lane.b32.xlu0 %v297, 7
  %v320 = vpop.permute.xlu0 %319
  %321 = vrot.lane.b32.xlu0 %v298, 7
  %v322 = vpop.permute.xlu0 %321
  %323 = vrot.lane.b32.xlu0 %v299, 7
  %v324 = vpop.permute.xlu0 %323
  %325 = vrot.lane.b32.xlu0 %v300, 7
  %v326 = vpop.permute.xlu0 %325
  %327 = vrot.lane.b32.xlu0 %v301, 7
  %v328 = vpop.permute.xlu0 %327
  %329 = vrot.lane.b32.xlu0 %v302, 7
  %v330 = vpop.permute.xlu0 %329
  %331 = vrot.lane.b32.xlu0 %v303, 7
  %v332 = vpop.permute.xlu0 %331
  %333 = vrot.lane.b32.xlu0 %v304, 7
  %v334 = vpop.permute.xlu0 %333
  %vm335 = vcmask 56320
  %v336 = vsel %vm335, %v316, %v318
  %v337 = vsel %vm335, %v320, %v322
  %v338 = vsel %vm335, %v324, %v326
  %v339 = vsel %vm335, %v328, %v330
  %v340 = vsel %vm335, %v332, %v334
  %vm345 = vcmask 588800
  %v347 = vsel %vm345, %v233, 0
  %vm349 = vcmask 1043456
  %v351 = vsel %vm349, %v340, 0
  %353 = vmatprep.subr.bf16.mxu0 0
  %354 = vmatpush1.bf16.msra.mxu0 %v336
  %355 = vmatprep.subr.bf16.mxu0 0
  %356 = vmatpush1.bf16.msra.mxu0 %v337
  %357 = vmatprep.subr.bf16.mxu0 0
  %358 = vmatpush1.bf16.msra.mxu0 %v338
  %359 = vmatprep.subr.bf16.mxu0 0
  %360 = vmatpush1.bf16.msra.mxu0 %v339
  %361 = vmatprep.subr.bf16.mxu0 0
  %362 = vmatpush1.bf16.msra.mxu0 %v351
  %363 = vmatprep.subr.bf16.mxu0 0
  %364 = vmatpush1.bf16.msra.mxu0 0
  %365 = vmatprep.subr.bf16.mxu0 0
  %366 = vmatpush1.bf16.msra.mxu0 0
  %367 = vmatprep.subr.bf16.mxu0 0
  %368 = vmatpush1.bf16.msra.mxu0 0
  %369 = vmatprep.subr.bf16.mxu0 0
  %370 = vmatpush1.bf16.msra.mxu0 0
  %371 = vmatprep.subr.bf16.mxu0 0
  %372 = vmatpush1.bf16.msra.mxu0 0
  %373 = vmatprep.subr.bf16.mxu0 0
  %374 = vmatpush1.bf16.msra.mxu0 0
  %375 = vmatprep.subr.bf16.mxu0 0
  %376 = vmatpush1.bf16.msra.mxu0 0
  %377 = vmatprep.subr.bf16.mxu0 0
  %378 = vmatpush1.bf16.msra.mxu0 0
  %379 = vmatprep.subr.bf16.mxu0 0
  %380 = vmatpush1.bf16.msra.mxu0 0
  %381 = vmatprep.subr.bf16.mxu0 0
  %382 = vmatpush1.bf16.msra.mxu0 0
  %383 = vmatprep.subr.bf16.mxu0 0
  %384 = vmatpush1.bf16.msra.mxu0 0
  %385 = vmatprep.mubr.bf16.mxu0 0
  %386 = vmatmul.mubr.bf16.gmra.mrb[0].mxu0 %v347
  %v387 = vpop.f32.mrb[0].mxu0
  %v388 = vadd.f32 0.0, %v387
  %v389 = vpop.f32.mrb[0].mxu0
  %v390 = vpop.f32.mrb[0].mxu0
  %v391 = vpop.f32.mrb[0].mxu0
  %392 = vdwg.mxu0
  %403 = vrot.lane.b32.xlu0 %v222, 7
  %v404 = vpop.permute.xlu0 %403
  %405 = vrot.lane.b32.xlu0 %v223, 7
  %v406 = vpop.permute.xlu0 %405
  %407 = vrot.lane.b32.xlu0 %v224, 7
  %v408 = vpop.permute.xlu0 %407
  %409 = vrot.lane.b32.xlu0 %v225, 7
  %v410 = vpop.permute.xlu0 %409
  %411 = vrot.lane.b32.xlu0 %v226, 7
  %v412 = vpop.permute.xlu0 %411
  %413 = vrot.lane.b32.xlu0 %v227, 7
  %v414 = vpop.permute.xlu0 %413
  %415 = vrot.lane.b32.xlu0 %v228, 7
  %v416 = vpop.permute.xlu0 %415
  %417 = vrot.lane.b32.xlu0 %v229, 7
  %v418 = vpop.permute.xlu0 %417
  %419 = vrot.lane.b32.xlu0 %v230, 7
  %v420 = vpop.permute.xlu0 %419
  %421 = vrot.lane.b32.xlu0 %v231, 7
  %v422 = vpop.permute.xlu0 %421
  %v423 = vsel %vm335, %v404, %v406
  %v424 = vsel %vm335, %v408, %v410
  %v425 = vsel %vm335, %v412, %v414
  %v426 = vsel %vm335, %v416, %v418
  %v427 = vsel %vm335, %v420, %v422
  %v433 = vsel %vm345, %v153, 0
  %v436 = vsel %vm349, %v427, 0
  %438 = vmatprep.subr.bf16.mxu0 0
  %439 = vmatpush1.bf16.msra.mxu0 %v423
  %440 = vmatprep.subr.bf16.mxu0 0
  %441 = vmatpush1.bf16.msra.mxu0 %v424
  %442 = vmatprep.subr.bf16.mxu0 0
  %443 = vmatpush1.bf16.msra.mxu0 %v425
  %444 = vmatprep.subr.bf16.mxu0 0
  %445 = vmatpush1.bf16.msra.mxu0 %v426
  %446 = vmatprep.subr.bf16.mxu0 0
  %447 = vmatpush1.bf16.msra.mxu0 %v436
  %448 = vmatprep.subr.bf16.mxu0 0
  %449 = vmatpush1.bf16.msra.mxu0 0
  %450 = vmatprep.subr.bf16.mxu0 0
  %451 = vmatpush1.bf16.msra.mxu0 0
  %452 = vmatprep.subr.bf16.mxu0 0
  %453 = vmatpush1.bf16.msra.mxu0 0
  %454 = vmatprep.subr.bf16.mxu0 0
  %455 = vmatpush1.bf16.msra.mxu0 0
  %456 = vmatprep.subr.bf16.mxu0 0
  %457 = vmatpush1.bf16.msra.mxu0 0
  %458 = vmatprep.subr.bf16.mxu0 0
  %459 = vmatpush1.bf16.msra.mxu0 0
  %460 = vmatprep.subr.bf16.mxu0 0
  %461 = vmatpush1.bf16.msra.mxu0 0
  %462 = vmatprep.subr.bf16.mxu0 0
  %463 = vmatpush1.bf16.msra.mxu0 0
  %464 = vmatprep.subr.bf16.mxu0 0
  %465 = vmatpush1.bf16.msra.mxu0 0
  %466 = vmatprep.subr.bf16.mxu0 0
  %467 = vmatpush1.bf16.msra.mxu0 0
  %468 = vmatprep.subr.bf16.mxu0 0
  %469 = vmatpush1.bf16.msra.mxu0 0
  %470 = vmatprep.mubr.bf16.mxu0 0
  %471 = vmatmul.mubr.bf16.gmra.mrb[0].mxu0 %v433
  %v472 = vpop.f32.mrb[0].mxu0
  %v473 = vadd.f32 %v388, %v472
  %v474 = vpop.f32.mrb[0].mxu0
  %v475 = vpop.f32.mrb[0].mxu0
  %v476 = vpop.f32.mrb[0].mxu0
  %477 = vdwg.mxu0
  %v478 = vld [vmem:[%s6] sm:$0xff]
  %480 = vset.pattern.permute.xlu0 0
  %481 = vperm.xlu0 %480, %v478
  %v482 = vpop.permute.xlu0 %481
  %v484 = vadd.f32 %v473, %v482
  %v485 = vmax.f32 %v484, 0.0
  %v487 = vlaneseq
  %v488 = vshrl.u32 %v487, 7
  %v489 = vsub.s32 0, %v488
  %v490 = vrot.slane %v42, %v489
  %v492 = vmul.f32 %v485, %v490
  %v493 = vld [vmem:[%s7] sm:$0xf]
  %494 = vst [vmem:[#allocation2 + $0x8] sm:$0xff] %v492
  %v495 = vld [vmem:[#allocation2] sm:$0xff]
  %v496 = vld [vmem:[#allocation2 + $0x8] sm:$0xff]
  %v497 = vld [vmem:[#allocation2 + $0x8] sm:$0xff]
  %v498 = vld [vmem:[#allocation2 + $0x10] sm:$0xff]
  %501 = vrot.lane.b32.xlu0 %v495, 127
  %v502 = vpop.permute.xlu0 %501
  %503 = vrot.lane.b32.xlu0 %v496, 127
  %v504 = vpop.permute.xlu0 %503
  %v505 = vsel %vm165, %v502, %v504
  %508 = vrot.lane.b32.xlu0 %v495, 126
  %v509 = vpop.permute.xlu0 %508
  %510 = vrot.lane.b32.xlu0 %v496, 126
  %v511 = vpop.permute.xlu0 %510
  %v512 = vsel %vm173, %v509, %v511
  %515 = vrot.lane.b32.xlu0 %v495, 122
  %v516 = vpop.permute.xlu0 %515
  %517 = vrot.lane.b32.xlu0 %v496, 122
  %v518 = vpop.permute.xlu0 %517
  %v519 = vsel %vm181, %v516, %v518
  %522 = vrot.lane.b32.xlu0 %v496, 121
  %v523 = vpop.permute.xlu0 %522
  %527 = vrot.lane.b32.xlu0 %v497, 120
  %v528 = vpop.permute.xlu0 %527
  %529 = vrot.lane.b32.xlu0 %v498, 120
  %v530 = vpop.permute.xlu0 %529
  %v531 = vsel %vm194, %v528, %v530
  %534 = vrot.lane.b32.xlu0 %v497, 116
  %v535 = vpop.permute.xlu0 %534
  %536 = vrot.lane.b32.xlu0 %v498, 116
  %v537 = vpop.permute.xlu0 %536
  %v538 = vsel %vm202, %v535, %v537
  %541 = vrot.lane.b32.xlu0 %v497, 115
  %v542 = vpop.permute.xlu0 %541
  %543 = vrot.lane.b32.xlu0 %v498, 115
  %v544 = vpop.permute.xlu0 %543
  %v545 = vsel %vm210, %v542, %v544
  %548 = vrot.lane.b32.xlu0 %v497, 114
  %v549 = vpop.permute.xlu0 %548
  %550 = vrot.lane.b32.xlu0 %v498, 114
  %v551 = vpop.permute.xlu0 %550
  %v552 = vsel %vm218, %v549, %v551
  %v555 = vpack.c.bf16 %v505, %v495
  %v556 = vpack.c.bf16 %v504, %v496
  %v557 = vpack.c.bf16 %v519, %v512
  %v558 = vpack.c.bf16 %v518, %v511
  %v559 = vpack.c.bf16 %v528, %v523
  %v560 = vpack.c.bf16 %v531, %v523
  %v561 = vpack.c.bf16 %v542, %v535
  %v562 = vpack.c.bf16 %v545, %v538
  %v563 = vpack.c.bf16 %v549, %v549
  %v564 = vpack.c.bf16 %v552, %v552
  %v565 = vld [vmem:[%s8] sm:$0xff]
  %567 = vset.pattern.permute.xlu0 0
  %568 = vperm.xlu0 %567, %v565
  %v569 = vpop.permute.xlu0 %568
  %581 = vrot.lane.b32.xlu0 %v555, 7
  %v582 = vpop.permute.xlu0 %581
  %583 = vrot.lane.b32.xlu0 %v556, 7
  %v584 = vpop.permute.xlu0 %583
  %585 = vrot.lane.b32.xlu0 %v557, 7
  %v586 = vpop.permute.xlu0 %585
  %587 = vrot.lane.b32.xlu0 %v558, 7
  %v588 = vpop.permute.xlu0 %587
  %589 = vrot.lane.b32.xlu0 %v559, 7
  %v590 = vpop.permute.xlu0 %589
  %591 = vrot.lane.b32.xlu0 %v560, 7
  %v592 = vpop.permute.xlu0 %591
  %593 = vrot.lane.b32.xlu0 %v561, 7
  %v594 = vpop.permute.xlu0 %593
  %595 = vrot.lane.b32.xlu0 %v562, 7
  %v596 = vpop.permute.xlu0 %595
  %597 = vrot.lane.b32.xlu0 %v563, 7
  %v598 = vpop.permute.xlu0 %597
  %599 = vrot.lane.b32.xlu0 %v564, 7
  %v600 = vpop.permute.xlu0 %599
  %v601 = vsel %vm335, %v582, %v584
  %v602 = vsel %vm335, %v586, %v588
  %v603 = vsel %vm335, %v590, %v592
  %v604 = vsel %vm335, %v594, %v596
  %v605 = vsel %vm335, %v598, %v600
  %v611 = vsel %vm345, %v493, 0
  %v614 = vsel %vm349, %v605, 0
  %616 = vmatprep.subr.bf16.mxu0 0
  %617 = vmatpush1.bf16.msra.mxu0 %v601
  %618 = vmatprep.subr.bf16.mxu0 0
  %619 = vmatpush1.bf16.msra.mxu0 %v602
  %620 = vmatprep.subr.bf16.mxu0 0
  %621 = vmatpush1.bf16.msra.mxu0 %v603
  %622 = vmatprep.subr.bf16.mxu0 0
  %623 = vmatpush1.bf16.msra.mxu0 %v604
  %624 = vmatprep.subr.bf16.mxu0 0
  %625 = vmatpush1.bf16.msra.mxu0 %v614
  %626 = vmatprep.subr.bf16.mxu0 0
  %627 = vmatpush1.bf16.msra.mxu0 0
  %628 = vmatprep.subr.bf16.mxu0 0
  %629 = vmatpush1.bf16.msra.mxu0 0
  %630 = vmatprep.subr.bf16.mxu0 0
  %631 = vmatpush1.bf16.msra.mxu0 0
  %632 = vmatprep.subr.bf16.mxu0 0
  %633 = vmatpush1.bf16.msra.mxu0 0
  %634 = vmatprep.subr.bf16.mxu0 0
  %635 = vmatpush1.bf16.msra.mxu0 0
  %636 = vmatprep.subr.bf16.mxu0 0
  %637 = vmatpush1.bf16.msra.mxu0 0
  %638 = vmatprep.subr.bf16.mxu0 0
  %639 = vmatpush1.bf16.msra.mxu0 0
  %640 = vmatprep.subr.bf16.mxu0 0
  %641 = vmatpush1.bf16.msra.mxu0 0
  %642 = vmatprep.subr.bf16.mxu0 0
  %643 = vmatpush1.bf16.msra.mxu0 0
  %644 = vmatprep.subr.bf16.mxu0 0
  %645 = vmatpush1.bf16.msra.mxu0 0
  %646 = vmatprep.subr.bf16.mxu0 0
  %647 = vmatpush1.bf16.msra.mxu0 0
  %648 = vmatprep.mubr.bf16.mxu0 0
  %649 = vmatmul.mubr.bf16.gmra.mrb[0].mxu0 %v611
  %v650 = vpop.f32.mrb[0].mxu0
  %v651 = vadd.f32 %v569, %v650
  %v652 = vpop.f32.mrb[0].mxu0
  %v653 = vpop.f32.mrb[0].mxu0
  %v654 = vpop.f32.mrb[0].mxu0
  %655 = vdwg.mxu0
  %v656 = vmax.f32 %v651, 0.0
  %v657 = vld [vmem:[%s9] sm:$0xf]
  %v658 = vpack.c.bf16 %v152, %v152
  %v659 = vld [vmem:[%s10] sm:$0xf]
  %v660 = vpack.c.bf16 %v232, %v232
  %vm661 = vcmask 64512
  %v663 = vsel %vm661, %v659, 0
  %v666 = vsel %vm349, %v660, 0
  %668 = vmatprep.subr.bf16.mxu0 0
  %669 = vmatpush1.bf16.msra.mxu0 %v666
  %670 = vmatprep.subr.bf16.mxu0 0
  %671 = vmatpush1.bf16.msra.mxu0 0
  %672 = vmatprep.subr.bf16.mxu0 0
  %673 = vmatpush1.bf16.msra.mxu0 0
  %674 = vmatprep.subr.bf16.mxu0 0
  %675 = vmatpush1.bf16.msra.mxu0 0
  %676 = vmatprep.subr.bf16.mxu0 0
  %677 = vmatpush1.bf16.msra.mxu0 0
  %678 = vmatprep.subr.bf16.mxu0 0
  %679 = vmatpush1.bf16.msra.mxu0 0
  %680 = vmatprep.subr.bf16.mxu0 0
  %681 = vmatpush1.bf16.msra.mxu0 0
  %682 = vmatprep.subr.bf16.mxu0 0
  %683 = vmatpush1.bf16.msra.mxu0 0
  %684 = vmatprep.subr.bf16.mxu0 0
  %685 = vmatpush1.bf16.msra.mxu0 0
  %686 = vmatprep.subr.bf16.mxu0 0
  %687 = vmatpush1.bf16.msra.mxu0 0
  %688 = vmatprep.subr.bf16.mxu0 0
  %689 = vmatpush1.bf16.msra.mxu0 0
  %690 = vmatprep.subr.bf16.mxu0 0
  %691 = vmatpush1.bf16.msra.mxu0 0
  %692 = vmatprep.subr.bf16.mxu0 0
  %693 = vmatpush1.bf16.msra.mxu0 0
  %694 = vmatprep.subr.bf16.mxu0 0
  %695 = vmatpush1.bf16.msra.mxu0 0
  %696 = vmatprep.subr.bf16.mxu0 0
  %697 = vmatpush1.bf16.msra.mxu0 0
  %698 = vmatprep.subr.bf16.mxu0 0
  %699 = vmatpush1.bf16.msra.mxu0 0
  %700 = vmatprep.mubr.bf16.mxu0 0
  %701 = vmatmul.mubr.bf16.gmra.mrb[0].mxu0 %v663
  %v702 = vpop.f32.mrb[0].mxu0
  %v703 = vadd.f32 0.0, %v702
  %v704 = vpop.f32.mrb[0].mxu0
  %v705 = vpop.f32.mrb[0].mxu0
  %v706 = vpop.f32.mrb[0].mxu0
  %707 = vdwg.mxu0
  %v709 = vsel %vm661, %v657, 0
  %v712 = vsel %vm349, %v658, 0
  %714 = vmatprep.subr.bf16.mxu0 0
  %715 = vmatpush1.bf16.msra.mxu0 %v712
  %716 = vmatprep.subr.bf16.mxu0 0
  %717 = vmatpush1.bf16.msra.mxu0 0
  %718 = vmatprep.subr.bf16.mxu0 0
  %719 = vmatpush1.bf16.msra.mxu0 0
  %720 = vmatprep.subr.bf16.mxu0 0
  %721 = vmatpush1.bf16.msra.mxu0 0
  %722 = vmatprep.subr.bf16.mxu0 0
  %723 = vmatpush1.bf16.msra.mxu0 0
  %724 = vmatprep.subr.bf16.mxu0 0
  %725 = vmatpush1.bf16.msra.mxu0 0
  %726 = vmatprep.subr.bf16.mxu0 0
  %727 = vmatpush1.bf16.msra.mxu0 0
  %728 = vmatprep.subr.bf16.mxu0 0
  %729 = vmatpush1.bf16.msra.mxu0 0
  %730 = vmatprep.subr.bf16.mxu0 0
  %731 = vmatpush1.bf16.msra.mxu0 0
  %732 = vmatprep.subr.bf16.mxu0 0
  %733 = vmatpush1.bf16.msra.mxu0 0
  %734 = vmatprep.subr.bf16.mxu0 0
  %735 = vmatpush1.bf16.msra.mxu0 0
  %736 = vmatprep.subr.bf16.mxu0 0
  %737 = vmatpush1.bf16.msra.mxu0 0
  %738 = vmatprep.subr.bf16.mxu0 0
  %739 = vmatpush1.bf16.msra.mxu0 0
  %740 = vmatprep.subr.bf16.mxu0 0
  %741 = vmatpush1.bf16.msra.mxu0 0
  %742 = vmatprep.subr.bf16.mxu0 0
  %743 = vmatpush1.bf16.msra.mxu0 0
  %744 = vmatprep.subr.bf16.mxu0 0
  %745 = vmatpush1.bf16.msra.mxu0 0
  %746 = vmatprep.mubr.bf16.mxu0 0
  %747 = vmatmul.mubr.bf16.gmra.mrb[0].mxu0 %v709
  %v748 = vpop.f32.mrb[0].mxu0
  %v749 = vadd.f32 %v703, %v748
  %v750 = vpop.f32.mrb[0].mxu0
  %v751 = vpop.f32.mrb[0].mxu0
  %v752 = vpop.f32.mrb[0].mxu0
  %753 = vdwg.mxu0
  %v754 = vadd.f32 %v656, %v749
  %v755 = vld [vmem:[%s11] sm:$0xff]
  %757 = vset.pattern.permute.xlu0 0
  %758 = vperm.xlu0 %757, %v755
  %v759 = vpop.permute.xlu0 %758
  %v761 = vadd.f32 %v754, %v759
  %v762 = vmul.f32 %v761, %v490
  %763 = vst [vmem:[%s12] sm:$0xff] %v762
  // Predicated region
  $region50: #{resunet_forward.15} parent=0 // pred_check
    _
  $region51: #{resunet_forward.15} parent=0 // pred_check_branch
    %765 = sbr.rel (0) target = $region53
  $region52: #{resunet_forward.15} parent=0 // pred_region
    _
  $region53: #{resunet_forward.15} parent=0 // pred_fallthru
    _
  // Predicated region
  $region54: #{resunet_forward.15} parent=0 // pred_check
    _
  $region55: #{resunet_forward.15} parent=0 // pred_check_branch
    %767 = sbr.rel (0) target = $region57
  $region56: #{resunet_forward.15} parent=0 // pred_region
    _
  $region57: #{resunet_forward.15} parent=0 // pred_fallthru
    _

// kernel: resunet_forward.14
$region0: #{resunet_forward.14}
  #allocation0 [shape = 'u32[]', space=smem, size = 0x4, offset = 0x4, fixed_abs, tag = 'smem constant byte address 0x4 - core index']
  #allocation1 [shape = 'u32[144,128]{1,0:T(1,128)}', space=vmem, size = 0x12000, scoped, tag = 'internal scratch']
  #allocation2 [shape = 'f32[8,384]{1,0:T(8,128)}', space=vmem, size = 0x3000, scoped, tag = 'scratch operand']
  %s0 = inlined_call_operand.vmem [shape: f32[8,128], index: 0, kind: input, shape index: {}]
  %s1 = inlined_call_operand.vmem [shape: bf16[128,128], index: 1, kind: input, shape index: {}]
  %s2 = inlined_call_operand.vmem [shape: f32[8,128], index: 2, kind: input, shape index: {}]
  %s3 = inlined_call_operand.vmem [shape: f32[1,128], index: 3, kind: input, shape index: {}]
  %s4 = inlined_call_operand.vmem [shape: bf16[8,72], index: 4, kind: input, shape index: {}]
  %s5 = inlined_call_operand.vmem [shape: bf16[8,72], index: 5, kind: input, shape index: {}]
  %s6 = inlined_call_operand.vmem [shape: f32[8,1], index: 6, kind: input, shape index: {}]
  %s7 = inlined_call_operand.vmem [shape: bf16[8,72], index: 7, kind: input, shape index: {}]
  %s8 = inlined_call_operand.vmem [shape: f32[8,1], index: 8, kind: input, shape index: {}]
  %s9 = inlined_call_operand.vmem [shape: bf16[8,8], index: 9, kind: input, shape index: {}]
  %s10 = inlined_call_operand.vmem [shape: bf16[8,8], index: 10, kind: input, shape index: {}]
  %s11 = inlined_call_operand.vmem [shape: f32[8,1], index: 11, kind: input, shape index: {}]
  %s12 = inlined_call_operand.vmem [shape: f32[8,128], index: 12, kind: output, shape index: {}]
  %s13 = sld [smem:[#allocation0]]
  $region58: #{resunet_forward.14} parent=0
    _
  %s15 = ssub.s32 1, %s13
  %s16 = scalar_select 0, %s15, %s13
  // Predicated region
  $region2: #{resunet_forward.14} parent=0 // pred_check
    _
  $region3: #{resunet_forward.14} parent=0 // pred_check_branch
    %18 = sbr.rel (0) target = $region5
  $region4: #{resunet_forward.14} parent=0 // pred_region
    _
  $region5: #{resunet_forward.14} parent=0 // pred_fallthru
    _
  // Predicated region
  $region6: #{resunet_forward.14} parent=0 // pred_check
    _
  $region7: #{resunet_forward.14} parent=0 // pred_check_branch
    %20 = sbr.rel (0) target = $region9
  $region8: #{resunet_forward.14} parent=0 // pred_region
    _
  $region9: #{resunet_forward.14} parent=0 // pred_fallthru
    _
  // Predicated region
  $region10: #{resunet_forward.14} parent=0 // pred_check
    _
  $region11: #{resunet_forward.14} parent=0 // pred_check_branch
    %22 = sbr.rel (0) target = $region13
  $region12: #{resunet_forward.14} parent=0 // pred_region
    _
  $region13: #{resunet_forward.14} parent=0 // pred_fallthru
    _
  // Predicated region
  $region14: #{resunet_forward.14} parent=0 // pred_check
    _
  $region15: #{resunet_forward.14} parent=0 // pred_check_branch
    %24 = sbr.rel (0) target = $region17
  $region16: #{resunet_forward.14} parent=0 // pred_region
    _
  $region17: #{resunet_forward.14} parent=0 // pred_fallthru
    _
  // Predicated region
  $region18: #{resunet_forward.14} parent=0 // pred_check
    _
  $region19: #{resunet_forward.14} parent=0 // pred_check_branch
    %26 = sbr.rel (0) target = $region21
  $region20: #{resunet_forward.14} parent=0 // pred_region
    _
  $region21: #{resunet_forward.14} parent=0 // pred_fallthru
    _
  // Predicated region
  $region22: #{resunet_forward.14} parent=0 // pred_check
    _
  $region23: #{resunet_forward.14} parent=0 // pred_check_branch
    %28 = sbr.rel (0) target = $region25
  $region24: #{resunet_forward.14} parent=0 // pred_region
    _
  $region25: #{resunet_forward.14} parent=0 // pred_fallthru
    _
  // Predicated region
  $region26: #{resunet_forward.14} parent=0 // pred_check
    _
  $region27: #{resunet_forward.14} parent=0 // pred_check_branch
    %30 = sbr.rel (0) target = $region29
  $region28: #{resunet_forward.14} parent=0 // pred_region
    _
  $region29: #{resunet_forward.14} parent=0 // pred_fallthru
    _
  // Predicated region
  $region30: #{resunet_forward.14} parent=0 // pred_check
    _
  $region31: #{resunet_forward.14} parent=0 // pred_check_branch
    %32 = sbr.rel (0) target = $region33
  $region32: #{resunet_forward.14} parent=0 // pred_region
    _
  $region33: #{resunet_forward.14} parent=0 // pred_fallthru
    _
  // Predicated region
  $region34: #{resunet_forward.14} parent=0 // pred_check
    _
  $region35: #{resunet_forward.14} parent=0 // pred_check_branch
    %34 = sbr.rel (0) target = $region37
  $region36: #{resunet_forward.14} parent=0 // pred_region
    _
  $region37: #{resunet_forward.14} parent=0 // pred_fallthru
    _
  // Predicated region
  $region38: #{resunet_forward.14} parent=0 // pred_check
    _
  $region39: #{resunet_forward.14} parent=0 // pred_check_branch
    %36 = sbr.rel (0) target = $region41
  $region40: #{resunet_forward.14} parent=0 // pred_region
    _
  $region41: #{resunet_forward.14} parent=0 // pred_fallthru
    _
  // Predicated region
  $region42: #{resunet_forward.14} parent=0 // pred_check
    _
  $region43: #{resunet_forward.14} parent=0 // pred_check_branch
    %38 = sbr.rel (0) target = $region45
  $region44: #{resunet_forward.14} parent=0 // pred_region
    _
  $region45: #{resunet_forward.14} parent=0 // pred_fallthru
    _
  // Predicated region
  $region46: #{resunet_forward.14} parent=0 // pred_check
    _
  $region47: #{resunet_forward.14} parent=0 // pred_check_branch
    %40 = sbr.rel (0) target = $region49
  $region48: #{resunet_forward.14} parent=0 // pred_region
    _
  $region49: #{resunet_forward.14} parent=0 // pred_fallthru
    _
  %v42 = vld [vmem:[%s3] sm:$0x1]
  %43 = vst [vmem:[#allocation2] sm:$0xff] 0.0
  %44 = vst [vmem:[#allocation2 + $0x8] sm:$0xff] 0.0
  %45 = vst [vmem:[#allocation2 + $0x10] sm:$0xff] 0.0
  %v46 = vld [vmem:[%s0] sm:$0xff]
  %v47 = vpack.c.bf16 %v46, %v46
  %v48 = vld [vmem:[%s1] sm:$0xf]
  %v49 = vld [vmem:[%s1 + $0x4] sm:$0xf]
  %v50 = vld [vmem:[%s1 + $0x8] sm:$0xf]
  %v51 = vld [vmem:[%s1 + $0xc] sm:$0xf]
  %v52 = vld [vmem:[%s1 + $0x10] sm:$0xf]
  %v53 = vld [vmem:[%s1 + $0x14] sm:$0xf]
  %v54 = vld [vmem:[%s1 + $0x18] sm:$0xf]
  %v55 = vld [vmem:[%s1 + $0x1c] sm:$0xf]
  %v56 = vld [vmem:[%s1 + $0x20] sm:$0xf]
  %v57 = vld [vmem:[%s1 + $0x24] sm:$0xf]
  %v58 = vld [vmem:[%s1 + $0x28] sm:$0xf]
  %v59 = vld [vmem:[%s1 + $0x2c] sm:$0xf]
  %v60 = vld [vmem:[%s1 + $0x30] sm:$0xf]
  %v61 = vld [vmem:[%s1 + $0x34] sm:$0xf]
  %v62 = vld [vmem:[%s1 + $0x38] sm:$0xf]
  %v63 = vld [vmem:[%s1 + $0x3c] sm:$0xf]
  %v80 = vunpack.c.l.b16 %v48
  %v81 = vunpack.c.l.b16 %v49
  %v82 = vunpack.c.l.b16 %v50
  %v83 = vunpack.c.l.b16 %v51
  %v84 = vunpack.c.l.b16 %v52
  %v85 = vunpack.c.l.b16 %v53
  %v86 = vunpack.c.l.b16 %v54
  %v87 = vunpack.c.l.b16 %v55
  %v88 = vunpack.c.l.b16 %v56
  %v89 = vunpack.c.l.b16 %v57
  %v90 = vunpack.c.l.b16 %v58
  %v91 = vunpack.c.l.b16 %v59
  %v92 = vunpack.c.l.b16 %v60
  %v93 = vunpack.c.l.b16 %v61
  %v94 = vunpack.c.l.b16 %v62
  %v95 = vunpack.c.l.b16 %v63
  %v96 = vpack.c.b16 %v81, %v80
  %v97 = vpack.c.b16 %v83, %v82
  %v98 = vpack.c.b16 %v85, %v84
  %v99 = vpack.c.b16 %v87, %v86
  %v100 = vpack.c.b16 %v89, %v88
  %v101 = vpack.c.b16 %v91, %v90
  %v102 = vpack.c.b16 %v93, %v92
  %v103 = vpack.c.b16 %v95, %v94
  %112 = vmatprep.subr.bf16.mxu0 0
  %113 = vmatpush1.bf16.msra.mxu0 %v96
  %114 = vmatprep.subr.bf16.mxu0 0
  %115 = vmatpush1.bf16.msra.mxu0 %v97
  %116 = vmatprep.subr.bf16.mxu0 0
  %117 = vmatpush1.bf16.msra.mxu0 %v98
  %118 = vmatprep.subr.bf16.mxu0 0
  %119 = vmatpush1.bf16.msra.mxu0 %v99
  %120 = vmatprep.subr.bf16.mxu0 0
  %121 = vmatpush1.bf16.msra.mxu0 %v100
  %122 = vmatprep.subr.bf16.mxu0 0
  %123 = vmatpush1.bf16.msra.mxu0 %v101
  %124 = vmatprep.subr.bf16.mxu0 0
  %125 = vmatpush1.bf16.msra.mxu0 %v102
  %126 = vmatprep.subr.bf16.mxu0 0
  %127 = vmatpush1.bf16.msra.mxu0 %v103
  %128 = vmatprep.subr.bf16.mxu0 0
  %129 = vmatpush1.bf16.msra.mxu0 0
  %130 = vmatprep.subr.bf16.mxu0 0
  %131 = vmatpush1.bf16.msra.mxu0 0
  %132 = vmatprep.subr.bf16.mxu0 0
  %133 = vmatpush1.bf16.msra.mxu0 0
  %134 = vmatprep.subr.bf16.mxu0 0
  %135 = vmatpush1.bf16.msra.mxu0 0
  %136 = vmatprep.subr.bf16.mxu0 0
  %137 = vmatpush1.bf16.msra.mxu0 0
  %138 = vmatprep.subr.bf16.mxu0 0
  %139 = vmatpush1.bf16.msra.mxu0 0
  %140 = vmatprep.subr.bf16.mxu0 0
  %141 = vmatpush1.bf16.msra.mxu0 0
  %142 = vmatprep.subr.bf16.mxu0 0
  %143 = vmatpush1.bf16.msra.mxu0 0
  %144 = vmatprep.mubr.bf16.mxu0 0
  %145 = vmatmul.mubr.bf16.gmra.mrb[0].mxu0 %v47
  %v146 = vpop.f32.mrb[0].mxu0
  %v147 = vadd.f32 0.0, %v146
  %v148 = vpop.f32.mrb[0].mxu0
  %v149 = vpop.f32.mrb[0].mxu0
  %v150 = vpop.f32.mrb[0].mxu0
  %151 = vdwg.mxu0
  %v152 = vmax.f32 %v147, 0.0
  %v153 = vld [vmem:[%s4] sm:$0xf]
  %154 = vst [vmem:[#allocation2 + $0x8] sm:$0xff] %v152
  %v155 = vld [vmem:[#allocation2] sm:$0xff]
  %v156 = vld [vmem:[#allocation2 + $0x8] sm:$0xff]
  %v157 = vld [vmem:[#allocation2 + $0x8] sm:$0xff]
  %v158 = vld [vmem:[#allocation2 + $0x10] sm:$0xff]
  %161 = vrot.lane.b32.xlu0 %v155, 127
  %v162 = vpop.permute.xlu0 %161
  %163 = vrot.lane.b32.xlu0 %v156, 127
  %v164 = vpop.permute.xlu0 %163
  %vm165 = vcmask 1039360
  %v166 = vsel %vm165, %v162, %v164
  %169 = vrot.lane.b32.xlu0 %v155, 126
  %v170 = vpop.permute.xlu0 %169
  %171 = vrot.lane.b32.xlu0 %v156, 126
  %v172 = vpop.permute.xlu0 %171
  %vm173 = vcmask 1031168
  %v174 = vsel %vm173, %v170, %v172
  %177 = vrot.lane.b32.xlu0 %v155, 124
  %v178 = vpop.permute.xlu0 %177
  %179 = vrot.lane.b32.xlu0 %v156, 124
  %v180 = vpop.permute.xlu0 %179
  %vm181 = vcmask 1014784
  %v182 = vsel %vm181, %v178, %v180
  %185 = vrot.lane.b32.xlu0 %v156, 123
  %v186 = vpop.permute.xlu0 %185
  %190 = vrot.lane.b32.xlu0 %v157, 122
  %v191 = vpop.permute.xlu0 %190
  %192 = vrot.lane.b32.xlu0 %v158, 122
  %v193 = vpop.permute.xlu0 %192
  %vm194 = vcmask 998400
  %v195 = vsel %vm194, %v191, %v193
  %198 = vrot.lane.b32.xlu0 %v157, 120
  %v199 = vpop.permute.xlu0 %198
  %200 = vrot.lane.b32.xlu0 %v158, 120
  %v201 = vpop.permute.xlu0 %200
  %vm202 = vcmask 982016
  %v203 = vsel %vm202, %v199, %v201
  %206 = vrot.lane.b32.xlu0 %v157, 119
  %v207 = vpop.permute.xlu0 %206
  %208 = vrot.lane.b32.xlu0 %v158, 119
  %v209 = vpop.permute.xlu0 %208
  %vm210 = vcmask 973824
  %v211 = vsel %vm210, %v207, %v209
  %214 = vrot.lane.b32.xlu0 %v157, 118
  %v215 = vpop.permute.xlu0 %214
  %216 = vrot.lane.b32.xlu0 %v158, 118
  %v217 = vpop.permute.xlu0 %216
  %vm218 = vcmask 965632
  %v219 = vsel %vm218, %v215, %v217
  %v222 = vpack.c.bf16 %v166, %v155
  %v223 = vpack.c.bf16 %v164, %v156
  %v224 = vpack.c.bf16 %v182, %v174
  %v225 = vpack.c.bf16 %v180, %v172
  %v226 = vpack.c.bf16 %v191, %v186
  %v227 = vpack.c.bf16 %v195, %v186
  %v228 = vpack.c.bf16 %v207, %v199
  %v229 = vpack.c.bf16 %v211, %v203
  %v230 = vpack.c.bf16 %v215, %v215
  %v231 = vpack.c.bf16 %v219, %v219
  %v232 = vld [vmem:[%s2] sm:$0xff]
  %v233 = vld [vmem:[%s5] sm:$0xf]
  %234 = vst [vmem:[#allocation2 + $0x8] sm:$0xff] %v232
  %v235 = vld [vmem:[#allocation2] sm:$0xff]
  %v236 = vld [vmem:[#allocation2 + $0x8] sm:$0xff]
  %v237 = vld [vmem:[#allocation2 + $0x8] sm:$0xff]
  %v238 = vld [vmem:[#allocation2 + $0x10] sm:$0xff]
  %241 = vrot.lane.b32.xlu0 %v235, 127
  %v242 = vpop.permute.xlu0 %241
  %243 = vrot.lane.b32.xlu0 %v236, 127
  %v244 = vpop.permute.xlu0 %243
  %v245 = vsel %vm165, %v242, %v244
  %248 = vrot.lane.b32.xlu0 %v235, 126
  %v249 = vpop.permute.xlu0 %248
  %250 = vrot.lane.b32.xlu0 %v236, 126
  %v251 = vpop.permute.xlu0 %250
  %v252 = vsel %vm173, %v249, %v251
  %255 = vrot.lane.b32.xlu0 %v235, 124
  %v256 = vpop.permute.xlu0 %255
  %257 = vrot.lane.b32.xlu0 %v236, 124
  %v258 = vpop.permute.xlu0 %257
  %v259 = vsel %vm181, %v256, %v258
  %262 = vrot.lane.b32.xlu0 %v236, 123
  %v263 = vpop.permute.xlu0 %262
  %267 = vrot.lane.b32.xlu0 %v237, 122
  %v268 = vpop.permute.xlu0 %267
  %269 = vrot.lane.b32.xlu0 %v238, 122
  %v270 = vpop.permute.xlu0 %269
  %v271 = vsel %vm194, %v268, %v270
  %274 = vrot.lane.b32.xlu0 %v237, 120
  %v275 = vpop.permute.xlu0 %274
  %276 = vrot.lane.b32.xlu0 %v238, 120
  %v277 = vpop.permute.xlu0 %276
  %v278 = vsel %vm202, %v275, %v277
  %281 = vrot.lane.b32.xlu0 %v237, 119
  %v282 = vpop.permute.xlu0 %281
  %283 = vrot.lane.b32.xlu0 %v238, 119
  %v284 = vpop.permute.xlu0 %283
  %v285 = vsel %vm210, %v282, %v284
  %288 = vrot.lane.b32.xlu0 %v237, 118
  %v289 = vpop.permute.xlu0 %288
  %290 = vrot.lane.b32.xlu0 %v238, 118
  %v291 = vpop.permute.xlu0 %290
  %v292 = vsel %vm218, %v289, %v291
  %v295 = vpack.c.bf16 %v245, %v235
  %v296 = vpack.c.bf16 %v244, %v236
  %v297 = vpack.c.bf16 %v259, %v252
  %v298 = vpack.c.bf16 %v258, %v251
  %v299 = vpack.c.bf16 %v268, %v263
  %v300 = vpack.c.bf16 %v271, %v263
  %v301 = vpack.c.bf16 %v282, %v275
  %v302 = vpack.c.bf16 %v285, %v278
  %v303 = vpack.c.bf16 %v289, %v289
  %v304 = vpack.c.bf16 %v292, %v292
  %315 = vrot.lane.b32.xlu0 %v295, 5
  %v316 = vpop.permute.xlu0 %315
  %317 = vrot.lane.b32.xlu0 %v296, 5
  %v318 = vpop.permute.xlu0 %317
  %319 = vrot.lane.b32.xlu0 %v297, 5
  %v320 = vpop.permute.xlu0 %319
  %321 = vrot.lane.b32.xlu0 %v298, 5
  %v322 = vpop.permute.xlu0 %321
  %323 = vrot.lane.b32.xlu0 %v299, 5
  %v324 = vpop.permute.xlu0 %323
  %325 = vrot.lane.b32.xlu0 %v300, 5
  %v326 = vpop.permute.xlu0 %325
  %327 = vrot.lane.b32.xlu0 %v301, 5
  %v328 = vpop.permute.xlu0 %327
  %329 = vrot.lane.b32.xlu0 %v302, 5
  %v330 = vpop.permute.xlu0 %329
  %331 = vrot.lane.b32.xlu0 %v303, 5
  %v332 = vpop.permute.xlu0 %331
  %333 = vrot.lane.b32.xlu0 %v304, 5
  %v334 = vpop.permute.xlu0 %333
  %vm335 = vcmask 39936
  %v336 = vsel %vm335, %v316, %v318
  %v337 = vsel %vm335, %v320, %v322
  %v338 = vsel %vm335, %v324, %v326
  %v339 = vsel %vm335, %v328, %v330
  %v340 = vsel %vm335, %v332, %v334
  %vm345 = vcmask 588800
  %v347 = vsel %vm345, %v233, 0
  %vm349 = vcmask 1043456
  %v351 = vsel %vm349, %v340, 0
  %353 = vmatprep.subr.bf16.mxu0 0
  %354 = vmatpush1.bf16.msra.mxu0 %v336
  %355 = vmatprep.subr.bf16.mxu0 0
  %356 = vmatpush1.bf16.msra.mxu0 %v337
  %357 = vmatprep.subr.bf16.mxu0 0
  %358 = vmatpush1.bf16.msra.mxu0 %v338
  %359 = vmatprep.subr.bf16.mxu0 0
  %360 = vmatpush1.bf16.msra.mxu0 %v339
  %361 = vmatprep.subr.bf16.mxu0 0
  %362 = vmatpush1.bf16.msra.mxu0 %v351
  %363 = vmatprep.subr.bf16.mxu0 0
  %364 = vmatpush1.bf16.msra.mxu0 0
  %365 = vmatprep.subr.bf16.mxu0 0
  %366 = vmatpush1.bf16.msra.mxu0 0
  %367 = vmatprep.subr.bf16.mxu0 0
  %368 = vmatpush1.bf16.msra.mxu0 0
  %369 = vmatprep.subr.bf16.mxu0 0
  %370 = vmatpush1.bf16.msra.mxu0 0
  %371 = vmatprep.subr.bf16.mxu0 0
  %372 = vmatpush1.bf16.msra.mxu0 0
  %373 = vmatprep.subr.bf16.mxu0 0
  %374 = vmatpush1.bf16.msra.mxu0 0
  %375 = vmatprep.subr.bf16.mxu0 0
  %376 = vmatpush1.bf16.msra.mxu0 0
  %377 = vmatprep.subr.bf16.mxu0 0
  %378 = vmatpush1.bf16.msra.mxu0 0
  %379 = vmatprep.subr.bf16.mxu0 0
  %380 = vmatpush1.bf16.msra.mxu0 0
  %381 = vmatprep.subr.bf16.mxu0 0
  %382 = vmatpush1.bf16.msra.mxu0 0
  %383 = vmatprep.subr.bf16.mxu0 0
  %384 = vmatpush1.bf16.msra.mxu0 0
  %385 = vmatprep.mubr.bf16.mxu0 0
  %386 = vmatmul.mubr.bf16.gmra.mrb[0].mxu0 %v347
  %v387 = vpop.f32.mrb[0].mxu0
  %v388 = vadd.f32 0.0, %v387
  %v389 = vpop.f32.mrb[0].mxu0
  %v390 = vpop.f32.mrb[0].mxu0
  %v391 = vpop.f32.mrb[0].mxu0
  %392 = vdwg.mxu0
  %403 = vrot.lane.b32.xlu0 %v222, 5
  %v404 = vpop.permute.xlu0 %403
  %405 = vrot.lane.b32.xlu0 %v223, 5
  %v406 = vpop.permute.xlu0 %405
  %407 = vrot.lane.b32.xlu0 %v224, 5
  %v408 = vpop.permute.xlu0 %407
  %409 = vrot.lane.b32.xlu0 %v225, 5
  %v410 = vpop.permute.xlu0 %409
  %411 = vrot.lane.b32.xlu0 %v226, 5
  %v412 = vpop.permute.xlu0 %411
  %413 = vrot.lane.b32.xlu0 %v227, 5
  %v414 = vpop.permute.xlu0 %413
  %415 = vrot.lane.b32.xlu0 %v228, 5
  %v416 = vpop.permute.xlu0 %415
  %417 = vrot.lane.b32.xlu0 %v229, 5
  %v418 = vpop.permute.xlu0 %417
  %419 = vrot.lane.b32.xlu0 %v230, 5
  %v420 = vpop.permute.xlu0 %419
  %421 = vrot.lane.b32.xlu0 %v231, 5
  %v422 = vpop.permute.xlu0 %421
  %v423 = vsel %vm335, %v404, %v406
  %v424 = vsel %vm335, %v408, %v410
  %v425 = vsel %vm335, %v412, %v414
  %v426 = vsel %vm335, %v416, %v418
  %v427 = vsel %vm335, %v420, %v422
  %v433 = vsel %vm345, %v153, 0
  %v436 = vsel %vm349, %v427, 0
  %438 = vmatprep.subr.bf16.mxu0 0
  %439 = vmatpush1.bf16.msra.mxu0 %v423
  %440 = vmatprep.subr.bf16.mxu0 0
  %441 = vmatpush1.bf16.msra.mxu0 %v424
  %442 = vmatprep.subr.bf16.mxu0 0
  %443 = vmatpush1.bf16.msra.mxu0 %v425
  %444 = vmatprep.subr.bf16.mxu0 0
  %445 = vmatpush1.bf16.msra.mxu0 %v426
  %446 = vmatprep.subr.bf16.mxu0 0
  %447 = vmatpush1.bf16.msra.mxu0 %v436
  %448 = vmatprep.subr.bf16.mxu0 0
  %449 = vmatpush1.bf16.msra.mxu0 0
  %450 = vmatprep.subr.bf16.mxu0 0
  %451 = vmatpush1.bf16.msra.mxu0 0
  %452 = vmatprep.subr.bf16.mxu0 0
  %453 = vmatpush1.bf16.msra.mxu0 0
  %454 = vmatprep.subr.bf16.mxu0 0
  %455 = vmatpush1.bf16.msra.mxu0 0
  %456 = vmatprep.subr.bf16.mxu0 0
  %457 = vmatpush1.bf16.msra.mxu0 0
  %458 = vmatprep.subr.bf16.mxu0 0
  %459 = vmatpush1.bf16.msra.mxu0 0
  %460 = vmatprep.subr.bf16.mxu0 0
  %461 = vmatpush1.bf16.msra.mxu0 0
  %462 = vmatprep.subr.bf16.mxu0 0
  %463 = vmatpush1.bf16.msra.mxu0 0
  %464 = vmatprep.subr.bf16.mxu0 0
  %465 = vmatpush1.bf16.msra.mxu0 0
  %466 = vmatprep.subr.bf16.mxu0 0
  %467 = vmatpush1.bf16.msra.mxu0 0
  %468 = vmatprep.subr.bf16.mxu0 0
  %469 = vmatpush1.bf16.msra.mxu0 0
  %470 = vmatprep.mubr.bf16.mxu0 0
  %471 = vmatmul.mubr.bf16.gmra.mrb[0].mxu0 %v433
  %v472 = vpop.f32.mrb[0].mxu0
  %v473 = vadd.f32 %v388, %v472
  %v474 = vpop.f32.mrb[0].mxu0
  %v475 = vpop.f32.mrb[0].mxu0
  %v476 = vpop.f32.mrb[0].mxu0
  %477 = vdwg.mxu0
  %v478 = vld [vmem:[%s6] sm:$0xff]
  %480 = vset.pattern.permute.xlu0 0
  %481 = vperm.xlu0 %480, %v478
  %v482 = vpop.permute.xlu0 %481
  %v484 = vadd.f32 %v473, %v482
  %v485 = vmax.f32 %v484, 0.0
  %v487 = vlaneseq
  %v488 = vshrl.u32 %v487, 7
  %v489 = vsub.s32 0, %v488
  %v490 = vrot.slane %v42, %v489
  %v492 = vmul.f32 %v485, %v490
  %v493 = vld [vmem:[%s7] sm:$0xf]
  %494 = vst [vmem:[#allocation2 + $0x8] sm:$0xff] %v492
  %v495 = vld [vmem:[#allocation2] sm:$0xff]
  %v496 = vld [vmem:[#allocation2 + $0x8] sm:$0xff]
  %v497 = vld [vmem:[#allocation2 + $0x8] sm:$0xff]
  %v498 = vld [vmem:[#allocation2 + $0x10] sm:$0xff]
  %501 = vrot.lane.b32.xlu0 %v495, 127
  %v502 = vpop.permute.xlu0 %501
  %503 = vrot.lane.b32.xlu0 %v496, 127
  %v504 = vpop.permute.xlu0 %503
  %v505 = vsel %vm165, %v502, %v504
  %508 = vrot.lane.b32.xlu0 %v495, 126
  %v509 = vpop.permute.xlu0 %508
  %510 = vrot.lane.b32.xlu0 %v496, 126
  %v511 = vpop.permute.xlu0 %510
  %v512 = vsel %vm173, %v509, %v511
  %515 = vrot.lane.b32.xlu0 %v495, 124
  %v516 = vpop.permute.xlu0 %515
  %517 = vrot.lane.b32.xlu0 %v496, 124
  %v518 = vpop.permute.xlu0 %517
  %v519 = vsel %vm181, %v516, %v518
  %522 = vrot.lane.b32.xlu0 %v496, 123
  %v523 = vpop.permute.xlu0 %522
  %527 = vrot.lane.b32.xlu0 %v497, 122
  %v528 = vpop.permute.xlu0 %527
  %529 = vrot.lane.b32.xlu0 %v498, 122
  %v530 = vpop.permute.xlu0 %529
  %v531 = vsel %vm194, %v528, %v530
  %534 = vrot.lane.b32.xlu0 %v497, 120
  %v535 = vpop.permute.xlu0 %534
  %536 = vrot.lane.b32.xlu0 %v498, 120
  %v537 = vpop.permute.xlu0 %536
  %v538 = vsel %vm202, %v535, %v537
  %541 = vrot.lane.b32.xlu0 %v497, 119
  %v542 = vpop.permute.xlu0 %541
  %543 = vrot.lane.b32.xlu0 %v498, 119
  %v544 = vpop.permute.xlu0 %543
  %v545 = vsel %vm210, %v542, %v544
  %548 = vrot.lane.b32.xlu0 %v497, 118
  %v549 = vpop.permute.xlu0 %548
  %550 = vrot.lane.b32.xlu0 %v498, 118
  %v551 = vpop.permute.xlu0 %550
  %v552 = vsel %vm218, %v549, %v551
  %v555 = vpack.c.bf16 %v505, %v495
  %v556 = vpack.c.bf16 %v504, %v496
  %v557 = vpack.c.bf16 %v519, %v512
  %v558 = vpack.c.bf16 %v518, %v511
  %v559 = vpack.c.bf16 %v528, %v523
  %v560 = vpack.c.bf16 %v531, %v523
  %v561 = vpack.c.bf16 %v542, %v535
  %v562 = vpack.c.bf16 %v545, %v538
  %v563 = vpack.c.bf16 %v549, %v549
  %v564 = vpack.c.bf16 %v552, %v552
  %v565 = vld [vmem:[%s8] sm:$0xff]
  %567 = vset.pattern.permute.xlu0 0
  %568 = vperm.xlu0 %567, %v565
  %v569 = vpop.permute.xlu0 %568
  %581 = vrot.lane.b32.xlu0 %v555, 5
  %v582 = vpop.permute.xlu0 %581
  %583 = vrot.lane.b32.xlu0 %v556, 5
  %v584 = vpop.permute.xlu0 %583
  %585 = vrot.lane.b32.xlu0 %v557, 5
  %v586 = vpop.permute.xlu0 %585
  %587 = vrot.lane.b32.xlu0 %v558, 5
  %v588 = vpop.permute.xlu0 %587
  %589 = vrot.lane.b32.xlu0 %v559, 5
  %v590 = vpop.permute.xlu0 %589
  %591 = vrot.lane.b32.xlu0 %v560, 5
  %v592 = vpop.permute.xlu0 %591
  %593 = vrot.lane.b32.xlu0 %v561, 5
  %v594 = vpop.permute.xlu0 %593
  %595 = vrot.lane.b32.xlu0 %v562, 5
  %v596 = vpop.permute.xlu0 %595
  %597 = vrot.lane.b32.xlu0 %v563, 5
  %v598 = vpop.permute.xlu0 %597
  %599 = vrot.lane.b32.xlu0 %v564, 5
  %v600 = vpop.permute.xlu0 %599
  %v601 = vsel %vm335, %v582, %v584
  %v602 = vsel %vm335, %v586, %v588
  %v603 = vsel %vm335, %v590, %v592
  %v604 = vsel %vm335, %v594, %v596
  %v605 = vsel %vm335, %v598, %v600
  %v611 = vsel %vm345, %v493, 0
  %v614 = vsel %vm349, %v605, 0
  %616 = vmatprep.subr.bf16.mxu0 0
  %617 = vmatpush1.bf16.msra.mxu0 %v601
  %618 = vmatprep.subr.bf16.mxu0 0
  %619 = vmatpush1.bf16.msra.mxu0 %v602
  %620 = vmatprep.subr.bf16.mxu0 0
  %621 = vmatpush1.bf16.msra.mxu0 %v603
  %622 = vmatprep.subr.bf16.mxu0 0
  %623 = vmatpush1.bf16.msra.mxu0 %v604
  %624 = vmatprep.subr.bf16.mxu0 0
  %625 = vmatpush1.bf16.msra.mxu0 %v614
  %626 = vmatprep.subr.bf16.mxu0 0
  %627 = vmatpush1.bf16.msra.mxu0 0
  %628 = vmatprep.subr.bf16.mxu0 0
  %629 = vmatpush1.bf16.msra.mxu0 0
  %630 = vmatprep.subr.bf16.mxu0 0
  %631 = vmatpush1.bf16.msra.mxu0 0
  %632 = vmatprep.subr.bf16.mxu0 0
  %633 = vmatpush1.bf16.msra.mxu0 0
  %634 = vmatprep.subr.bf16.mxu0 0
  %635 = vmatpush1.bf16.msra.mxu0 0
  %636 = vmatprep.subr.bf16.mxu0 0
  %637 = vmatpush1.bf16.msra.mxu0 0
  %638 = vmatprep.subr.bf16.mxu0 0
  %639 = vmatpush1.bf16.msra.mxu0 0
  %640 = vmatprep.subr.bf16.mxu0 0
  %641 = vmatpush1.bf16.msra.mxu0 0
  %642 = vmatprep.subr.bf16.mxu0 0
  %643 = vmatpush1.bf16.msra.mxu0 0
  %644 = vmatprep.subr.bf16.mxu0 0
  %645 = vmatpush1.bf16.msra.mxu0 0
  %646 = vmatprep.subr.bf16.mxu0 0
  %647 = vmatpush1.bf16.msra.mxu0 0
  %648 = vmatprep.mubr.bf16.mxu0 0
  %649 = vmatmul.mubr.bf16.gmra.mrb[0].mxu0 %v611
  %v650 = vpop.f32.mrb[0].mxu0
  %v651 = vadd.f32 %v569, %v650
  %v652 = vpop.f32.mrb[0].mxu0
  %v653 = vpop.f32.mrb[0].mxu0
  %v654 = vpop.f32.mrb[0].mxu0
  %655 = vdwg.mxu0
  %v656 = vmax.f32 %v651, 0.0
  %v657 = vld [vmem:[%s9] sm:$0xf]
  %v658 = vpack.c.bf16 %v152, %v152
  %v659 = vld [vmem:[%s10] sm:$0xf]
  %v660 = vpack.c.bf16 %v232, %v232
  %vm661 = vcmask 64512
  %v663 = vsel %vm661, %v659, 0
  %v666 = vsel %vm349, %v660, 0
  %668 = vmatprep.subr.bf16.mxu0 0
  %669 = vmatpush1.bf16.msra.mxu0 %v666
  %670 = vmatprep.subr.bf16.mxu0 0
  %671 = vmatpush1.bf16.msra.mxu0 0
  %672 = vmatprep.subr.bf16.mxu0 0
  %673 = vmatpush1.bf16.msra.mxu0 0
  %674 = vmatprep.subr.bf16.mxu0 0
  %675 = vmatpush1.bf16.msra.mxu0 0
  %676 = vmatprep.subr.bf16.mxu0 0
  %677 = vmatpush1.bf16.msra.mxu0 0
  %678 = vmatprep.subr.bf16.mxu0 0
  %679 = vmatpush1.bf16.msra.mxu0 0
  %680 = vmatprep.subr.bf16.mxu0 0
  %681 = vmatpush1.bf16.msra.mxu0 0
  %682 = vmatprep.subr.bf16.mxu0 0
  %683 = vmatpush1.bf16.msra.mxu0 0
  %684 = vmatprep.subr.bf16.mxu0 0
  %685 = vmatpush1.bf16.msra.mxu0 0
  %686 = vmatprep.subr.bf16.mxu0 0
  %687 = vmatpush1.bf16.msra.mxu0 0
  %688 = vmatprep.subr.bf16.mxu0 0
  %689 = vmatpush1.bf16.msra.mxu0 0
  %690 = vmatprep.subr.bf16.mxu0 0
  %691 = vmatpush1.bf16.msra.mxu0 0
  %692 = vmatprep.subr.bf16.mxu0 0
  %693 = vmatpush1.bf16.msra.mxu0 0
  %694 = vmatprep.subr.bf16.mxu0 0
  %695 = vmatpush1.bf16.msra.mxu0 0
  %696 = vmatprep.subr.bf16.mxu0 0
  %697 = vmatpush1.bf16.msra.mxu0 0
  %698 = vmatprep.subr.bf16.mxu0 0
  %699 = vmatpush1.bf16.msra.mxu0 0
  %700 = vmatprep.mubr.bf16.mxu0 0
  %701 = vmatmul.mubr.bf16.gmra.mrb[0].mxu0 %v663
  %v702 = vpop.f32.mrb[0].mxu0
  %v703 = vadd.f32 0.0, %v702
  %v704 = vpop.f32.mrb[0].mxu0
  %v705 = vpop.f32.mrb[0].mxu0
  %v706 = vpop.f32.mrb[0].mxu0
  %707 = vdwg.mxu0
  %v709 = vsel %vm661, %v657, 0
  %v712 = vsel %vm349, %v658, 0
  %714 = vmatprep.subr.bf16.mxu0 0
  %715 = vmatpush1.bf16.msra.mxu0 %v712
  %716 = vmatprep.subr.bf16.mxu0 0
  %717 = vmatpush1.bf16.msra.mxu0 0
  %718 = vmatprep.subr.bf16.mxu0 0
  %719 = vmatpush1.bf16.msra.mxu0 0
  %720 = vmatprep.subr.bf16.mxu0 0
  %721 = vmatpush1.bf16.msra.mxu0 0
  %722 = vmatprep.subr.bf16.mxu0 0
  %723 = vmatpush1.bf16.msra.mxu0 0
  %724 = vmatprep.subr.bf16.mxu0 0
  %725 = vmatpush1.bf16.msra.mxu0 0
  %726 = vmatprep.subr.bf16.mxu0 0
  %727 = vmatpush1.bf16.msra.mxu0 0
  %728 = vmatprep.subr.bf16.mxu0 0
  %729 = vmatpush1.bf16.msra.mxu0 0
  %730 = vmatprep.subr.bf16.mxu0 0
  %731 = vmatpush1.bf16.msra.mxu0 0
  %732 = vmatprep.subr.bf16.mxu0 0
  %733 = vmatpush1.bf16.msra.mxu0 0
  %734 = vmatprep.subr.bf16.mxu0 0
  %735 = vmatpush1.bf16.msra.mxu0 0
  %736 = vmatprep.subr.bf16.mxu0 0
  %737 = vmatpush1.bf16.msra.mxu0 0
  %738 = vmatprep.subr.bf16.mxu0 0
  %739 = vmatpush1.bf16.msra.mxu0 0
  %740 = vmatprep.subr.bf16.mxu0 0
  %741 = vmatpush1.bf16.msra.mxu0 0
  %742 = vmatprep.subr.bf16.mxu0 0
  %743 = vmatpush1.bf16.msra.mxu0 0
  %744 = vmatprep.subr.bf16.mxu0 0
  %745 = vmatpush1.bf16.msra.mxu0 0
  %746 = vmatprep.mubr.bf16.mxu0 0
  %747 = vmatmul.mubr.bf16.gmra.mrb[0].mxu0 %v709
  %v748 = vpop.f32.mrb[0].mxu0
  %v749 = vadd.f32 %v703, %v748
  %v750 = vpop.f32.mrb[0].mxu0
  %v751 = vpop.f32.mrb[0].mxu0
  %v752 = vpop.f32.mrb[0].mxu0
  %753 = vdwg.mxu0
  %v754 = vadd.f32 %v656, %v749
  %v755 = vld [vmem:[%s11] sm:$0xff]
  %757 = vset.pattern.permute.xlu0 0
  %758 = vperm.xlu0 %757, %v755
  %v759 = vpop.permute.xlu0 %758
  %v761 = vadd.f32 %v754, %v759
  %v762 = vmul.f32 %v761, %v490
  %763 = vst [vmem:[%s12] sm:$0xff] %v762
  // Predicated region
  $region50: #{resunet_forward.14} parent=0 // pred_check
    _
  $region51: #{resunet_forward.14} parent=0 // pred_check_branch
    %765 = sbr.rel (0) target = $region53
  $region52: #{resunet_forward.14} parent=0 // pred_region
    _
  $region53: #{resunet_forward.14} parent=0 // pred_fallthru
    _
  // Predicated region
  $region54: #{resunet_forward.14} parent=0 // pred_check
    _
  $region55: #{resunet_forward.14} parent=0 // pred_check_branch
    %767 = sbr.rel (0) target = $region57
  $region56: #{resunet_forward.14} parent=0 // pred_region
    _
  $region57: #{resunet_forward.14} parent=0 // pred_fallthru
    _

// kernel: resunet_forward.16
$region0: #{resunet_forward.16}
  #allocation0 [shape = 'u32[]', space=smem, size = 0x4, offset = 0x4, fixed_abs, tag = 'smem constant byte address 0x4 - core index']
  #allocation1 [shape = 'u32[144,128]{1,0:T(1,128)}', space=vmem, size = 0x12000, scoped, tag = 'internal scratch']
  #allocation2 [shape = 'f32[8,512]{1,0:T(8,128)}', space=vmem, size = 0x4000, scoped, tag = 'scratch operand']
  %s0 = inlined_call_operand.vmem [shape: f32[8,128], index: 0, kind: input, shape index: {}]
  %s1 = inlined_call_operand.vmem [shape: bf16[128,256], index: 1, kind: input, shape index: {}]
  %s2 = inlined_call_operand.vmem [shape: f32[8,256], index: 2, kind: input, shape index: {}]
  %s3 = inlined_call_operand.vmem [shape: f32[1,256], index: 3, kind: input, shape index: {}]
  %s4 = inlined_call_operand.vmem [shape: bf16[8,72], index: 4, kind: input, shape index: {}]
  %s5 = inlined_call_operand.vmem [shape: bf16[8,72], index: 5, kind: input, shape index: {}]
  %s6 = inlined_call_operand.vmem [shape: f32[8,1], index: 6, kind: input, shape index: {}]
  %s7 = inlined_call_operand.vmem [shape: bf16[8,72], index: 7, kind: input, shape index: {}]
  %s8 = inlined_call_operand.vmem [shape: f32[8,1], index: 8, kind: input, shape index: {}]
  %s9 = inlined_call_operand.vmem [shape: bf16[8,8], index: 9, kind: input, shape index: {}]
  %s10 = inlined_call_operand.vmem [shape: bf16[8,8], index: 10, kind: input, shape index: {}]
  %s11 = inlined_call_operand.vmem [shape: f32[8,1], index: 11, kind: input, shape index: {}]
  %s12 = inlined_call_operand.vmem [shape: f32[8,256], index: 12, kind: output, shape index: {}]
  %s13 = sld [smem:[#allocation0]]
  $region58: #{resunet_forward.16} parent=0
    _
  %s15 = ssub.s32 1, %s13
  %s16 = scalar_select 0, %s15, %s13
  // Predicated region
  $region2: #{resunet_forward.16} parent=0 // pred_check
    _
  $region3: #{resunet_forward.16} parent=0 // pred_check_branch
    %18 = sbr.rel (0) target = $region5
  $region4: #{resunet_forward.16} parent=0 // pred_region
    _
  $region5: #{resunet_forward.16} parent=0 // pred_fallthru
    _
  // Predicated region
  $region6: #{resunet_forward.16} parent=0 // pred_check
    _
  $region7: #{resunet_forward.16} parent=0 // pred_check_branch
    %20 = sbr.rel (0) target = $region9
  $region8: #{resunet_forward.16} parent=0 // pred_region
    _
  $region9: #{resunet_forward.16} parent=0 // pred_fallthru
    _
  // Predicated region
  $region10: #{resunet_forward.16} parent=0 // pred_check
    _
  $region11: #{resunet_forward.16} parent=0 // pred_check_branch
    %22 = sbr.rel (0) target = $region13
  $region12: #{resunet_forward.16} parent=0 // pred_region
    _
  $region13: #{resunet_forward.16} parent=0 // pred_fallthru
    _
  // Predicated region
  $region14: #{resunet_forward.16} parent=0 // pred_check
    _
  $region15: #{resunet_forward.16} parent=0 // pred_check_branch
    %24 = sbr.rel (0) target = $region17
  $region16: #{resunet_forward.16} parent=0 // pred_region
    _
  $region17: #{resunet_forward.16} parent=0 // pred_fallthru
    _
  // Predicated region
  $region18: #{resunet_forward.16} parent=0 // pred_check
    _
  $region19: #{resunet_forward.16} parent=0 // pred_check_branch
    %26 = sbr.rel (0) target = $region21
  $region20: #{resunet_forward.16} parent=0 // pred_region
    _
  $region21: #{resunet_forward.16} parent=0 // pred_fallthru
    _
  // Predicated region
  $region22: #{resunet_forward.16} parent=0 // pred_check
    _
  $region23: #{resunet_forward.16} parent=0 // pred_check_branch
    %28 = sbr.rel (0) target = $region25
  $region24: #{resunet_forward.16} parent=0 // pred_region
    _
  $region25: #{resunet_forward.16} parent=0 // pred_fallthru
    _
  // Predicated region
  $region26: #{resunet_forward.16} parent=0 // pred_check
    _
  $region27: #{resunet_forward.16} parent=0 // pred_check_branch
    %30 = sbr.rel (0) target = $region29
  $region28: #{resunet_forward.16} parent=0 // pred_region
    _
  $region29: #{resunet_forward.16} parent=0 // pred_fallthru
    _
  // Predicated region
  $region30: #{resunet_forward.16} parent=0 // pred_check
    _
  $region31: #{resunet_forward.16} parent=0 // pred_check_branch
    %32 = sbr.rel (0) target = $region33
  $region32: #{resunet_forward.16} parent=0 // pred_region
    _
  $region33: #{resunet_forward.16} parent=0 // pred_fallthru
    _
  // Predicated region
  $region34: #{resunet_forward.16} parent=0 // pred_check
    _
  $region35: #{resunet_forward.16} parent=0 // pred_check_branch
    %34 = sbr.rel (0) target = $region37
  $region36: #{resunet_forward.16} parent=0 // pred_region
    _
  $region37: #{resunet_forward.16} parent=0 // pred_fallthru
    _
  // Predicated region
  $region38: #{resunet_forward.16} parent=0 // pred_check
    _
  $region39: #{resunet_forward.16} parent=0 // pred_check_branch
    %36 = sbr.rel (0) target = $region41
  $region40: #{resunet_forward.16} parent=0 // pred_region
    _
  $region41: #{resunet_forward.16} parent=0 // pred_fallthru
    _
  // Predicated region
  $region42: #{resunet_forward.16} parent=0 // pred_check
    _
  $region43: #{resunet_forward.16} parent=0 // pred_check_branch
    %38 = sbr.rel (0) target = $region45
  $region44: #{resunet_forward.16} parent=0 // pred_region
    _
  $region45: #{resunet_forward.16} parent=0 // pred_fallthru
    _
  // Predicated region
  $region46: #{resunet_forward.16} parent=0 // pred_check
    _
  $region47: #{resunet_forward.16} parent=0 // pred_check_branch
    %40 = sbr.rel (0) target = $region49
  $region48: #{resunet_forward.16} parent=0 // pred_region
    _
  $region49: #{resunet_forward.16} parent=0 // pred_fallthru
    _
  %v42 = vld [vmem:[%s3] sm:$0x3]
  %43 = vst [vmem:[#allocation2] sm:$0xff] 0.0
  %44 = vst [vmem:[#allocation2 + $0x8] sm:$0xff] 0.0
  %45 = vst [vmem:[#allocation2 + $0x10] sm:$0xff] 0.0
  %46 = vst [vmem:[#allocation2 + $0x18] sm:$0xff] 0.0
  %v47 = vld [vmem:[%s0] sm:$0xff]
  %v48 = vpack.c.bf16 %v47, %v47
  %v49 = vld [vmem:[%s1] sm:$0xff]
  %v50 = vld [vmem:[%s1 + $0x8] sm:$0xff]
  %v51 = vld [vmem:[%s1 + $0x10] sm:$0xff]
  %v52 = vld [vmem:[%s1 + $0x18] sm:$0xff]
  %v53 = vld [vmem:[%s1 + $0x20] sm:$0xff]
  %v54 = vld [vmem:[%s1 + $0x28] sm:$0xff]
  %v55 = vld [vmem:[%s1 + $0x30] sm:$0xff]
  %v56 = vld [vmem:[%s1 + $0x38] sm:$0xff]
  %v57 = vld [vmem:[%s1 + $0x40] sm:$0xff]
  %v58 = vld [vmem:[%s1 + $0x48] sm:$0xff]
  %v59 = vld [vmem:[%s1 + $0x50] sm:$0xff]
  %v60 = vld [vmem:[%s1 + $0x58] sm:$0xff]
  %v61 = vld [vmem:[%s1 + $0x60] sm:$0xff]
  %v62 = vld [vmem:[%s1 + $0x68] sm:$0xff]
  %v63 = vld [vmem:[%s1 + $0x70] sm:$0xff]
  %v64 = vld [vmem:[%s1 + $0x78] sm:$0xff]
  %v81 = vunpack.c.l.b16 %v49
  %v82 = vunpack.c.h.b16 %v49
  %v83 = vunpack.c.l.b16 %v50
  %v84 = vunpack.c.h.b16 %v50
  %v85 = vunpack.c.l.b16 %v51
  %v86 = vunpack.c.h.b16 %v51
  %v87 = vunpack.c.l.b16 %v52
  %v88 = vunpack.c.h.b16 %v52
  %v89 = vunpack.c.l.b16 %v53
  %v90 = vunpack.c.h.b16 %v53
  %v91 = vunpack.c.l.b16 %v54
  %v92 = vunpack.c.h.b16 %v54
  %v93 = vunpack.c.l.b16 %v55
  %v94 = vunpack.c.h.b16 %v55
  %v95 = vunpack.c.l.b16 %v56
  %v96 = vunpack.c.h.b16 %v56
  %v97 = vunpack.c.l.b16 %v57
  %v98 = vunpack.c.h.b16 %v57
  %v99 = vunpack.c.l.b16 %v58
  %v100 = vunpack.c.h.b16 %v58
  %v101 = vunpack.c.l.b16 %v59
  %v102 = vunpack.c.h.b16 %v59
  %v103 = vunpack.c.l.b16 %v60
  %v104 = vunpack.c.h.b16 %v60
  %v105 = vunpack.c.l.b16 %v61
  %v106 = vunpack.c.h.b16 %v61
  %v107 = vunpack.c.l.b16 %v62
  %v108 = vunpack.c.h.b16 %v62
  %v109 = vunpack.c.l.b16 %v63
  %v110 = vunpack.c.h.b16 %v63
  %v111 = vunpack.c.l.b16 %v64
  %v112 = vunpack.c.h.b16 %v64
  %v113 = vpack.c.b16 %v83, %v81
  %v114 = vpack.c.b16 %v84, %v82
  %v115 = vpack.c.b16 %v87, %v85
  %v116 = vpack.c.b16 %v88, %v86
  %v117 = vpack.c.b16 %v91, %v89
  %v118 = vpack.c.b16 %v92, %v90
  %v119 = vpack.c.b16 %v95, %v93
  %v120 = vpack.c.b16 %v96, %v94
  %v121 = vpack.c.b16 %v99, %v97
  %v122 = vpack.c.b16 %v100, %v98
  %v123 = vpack.c.b16 %v103, %v101
  %v124 = vpack.c.b16 %v104, %v102
  %v125 = vpack.c.b16 %v107, %v105
  %v126 = vpack.c.b16 %v108, %v106
  %v127 = vpack.c.b16 %v111, %v109
  %v128 = vpack.c.b16 %v112, %v110
  %145 = vmatprep.subr.bf16.mxu0 %v114
  %146 = vmatpush1.bf16.msra.mxu0 %v113
  %147 = vmatprep.subr.bf16.mxu0 %v116
  %148 = vmatpush1.bf16.msra.mxu0 %v115
  %149 = vmatprep.subr.bf16.mxu0 %v118
  %150 = vmatpush1.bf16.msra.mxu0 %v117
  %151 = vmatprep.subr.bf16.mxu0 %v120
  %152 = vmatpush1.bf16.msra.mxu0 %v119
  %153 = vmatprep.subr.bf16.mxu0 %v122
  %154 = vmatpush1.bf16.msra.mxu0 %v121
  %155 = vmatprep.subr.bf16.mxu0 %v124
  %156 = vmatpush1.bf16.msra.mxu0 %v123
  %157 = vmatprep.subr.bf16.mxu0 %v126
  %158 = vmatpush1.bf16.msra.mxu0 %v125
  %159 = vmatprep.subr.bf16.mxu0 %v128
  %160 = vmatpush1.bf16.msra.mxu0 %v127
  %161 = vmatprep.subr.bf16.mxu0 0
  %162 = vmatpush1.bf16.msra.mxu0 0
  %163 = vmatprep.subr.bf16.mxu0 0
  %164 = vmatpush1.bf16.msra.mxu0 0
  %165 = vmatprep.subr.bf16.mxu0 0
  %166 = vmatpush1.bf16.msra.mxu0 0
  %167 = vmatprep.subr.bf16.mxu0 0
  %168 = vmatpush1.bf16.msra.mxu0 0
  %169 = vmatprep.subr.bf16.mxu0 0
  %170 = vmatpush1.bf16.msra.mxu0 0
  %171 = vmatprep.subr.bf16.mxu0 0
  %172 = vmatpush1.bf16.msra.mxu0 0
  %173 = vmatprep.subr.bf16.mxu0 0
  %174 = vmatpush1.bf16.msra.mxu0 0
  %175 = vmatprep.subr.bf16.mxu0 0
  %176 = vmatpush1.bf16.msra.mxu0 0
  %177 = vmatprep.mubr.bf16.mxu0 0
  %178 = vmatmul.mubr.bf16.gmra.mrb[0].mxu0 %v48
  %v179 = vpop.f32.mrb[0].mxu0
  %v180 = vadd.f32 0.0, %v179
  %v181 = vpop.f32.mrb[0].mxu0
  %v182 = vadd.f32 0.0, %v181
  %v183 = vpop.f32.mrb[0].mxu0
  %v184 = vpop.f32.mrb[0].mxu0
  %185 = vdwg.mxu0
  %v186 = vmax.f32 %v180, 0.0
  %v187 = vmax.f32 %v182, 0.0
  %v188 = vld [vmem:[%s4] sm:$0xf]
  %189 = vst [vmem:[#allocation2 + $0x8] sm:$0xff] %v186
  %190 = vst [vmem:[#allocation2 + $0x10] sm:$0xff] %v187
  %v191 = vld [vmem:[#allocation2] sm:$0xff]
  %v192 = vld [vmem:[#allocation2 + $0x8] sm:$0xff]
  %v193 = vld [vmem:[#allocation2 + $0x10] sm:$0xff]
  %v194 = vld [vmem:[#allocation2 + $0x8] sm:$0xff]
  %v195 = vld [vmem:[#allocation2 + $0x10] sm:$0xff]
  %v196 = vld [vmem:[#allocation2 + $0x18] sm:$0xff]
  %200 = vrot.lane.b32.xlu0 %v191, 127
  %v201 = vpop.permute.xlu0 %200
  %202 = vrot.lane.b32.xlu0 %v192, 127
  %v203 = vpop.permute.xlu0 %202
  %204 = vrot.lane.b32.xlu0 %v193, 127
  %v205 = vpop.permute.xlu0 %204
  %vm206 = vcmask 1039360
  %v207 = vsel %vm206, %v201, %v203
  %v208 = vsel %vm206, %v203, %v205
  %212 = vrot.lane.b32.xlu0 %v191, 126
  %v213 = vpop.permute.xlu0 %212
  %214 = vrot.lane.b32.xlu0 %v192, 126
  %v215 = vpop.permute.xlu0 %214
  %216 = vrot.lane.b32.xlu0 %v193, 126
  %v217 = vpop.permute.xlu0 %216
  %vm218 = vcmask 1031168
  %v219 = vsel %vm218, %v213, %v215
  %v220 = vsel %vm218, %v215, %v217
  %224 = vrot.lane.b32.xlu0 %v191, 118
  %v225 = vpop.permute.xlu0 %224
  %226 = vrot.lane.b32.xlu0 %v192, 118
  %v227 = vpop.permute.xlu0 %226
  %228 = vrot.lane.b32.xlu0 %v193, 118
  %v229 = vpop.permute.xlu0 %228
  %vm230 = vcmask 965632
  %v231 = vsel %vm230, %v225, %v227
  %v232 = vsel %vm230, %v227, %v229
  %236 = vrot.lane.b32.xlu0 %v192, 117
  %v237 = vpop.permute.xlu0 %236
  %238 = vrot.lane.b32.xlu0 %v193, 117
  %v239 = vpop.permute.xlu0 %238
  %vm240 = vcmask 957440
  %v241 = vsel %vm240, %v237, %v239
  %248 = vrot.lane.b32.xlu0 %v194, 116
  %v249 = vpop.permute.xlu0 %248
  %250 = vrot.lane.b32.xlu0 %v195, 116
  %v251 = vpop.permute.xlu0 %250
  %252 = vrot.lane.b32.xlu0 %v196, 116
  %v253 = vpop.permute.xlu0 %252
  %vm254 = vcmask 949248
  %v255 = vsel %vm254, %v249, %v251
  %v256 = vsel %vm254, %v251, %v253
  %260 = vrot.lane.b32.xlu0 %v194, 108
  %v261 = vpop.permute.xlu0 %260
  %262 = vrot.lane.b32.xlu0 %v195, 108
  %v263 = vpop.permute.xlu0 %262
  %264 = vrot.lane.b32.xlu0 %v196, 108
  %v265 = vpop.permute.xlu0 %264
  %vm266 = vcmask 883712
  %v267 = vsel %vm266, %v261, %v263
  %v268 = vsel %vm266, %v263, %v265
  %272 = vrot.lane.b32.xlu0 %v194, 107
  %v273 = vpop.permute.xlu0 %272
  %274 = vrot.lane.b32.xlu0 %v195, 107
  %v275 = vpop.permute.xlu0 %274
  %276 = vrot.lane.b32.xlu0 %v196, 107
  %v277 = vpop.permute.xlu0 %276
  %vm278 = vcmask 875520
  %v279 = vsel %vm278, %v273, %v275
  %v280 = vsel %vm278, %v275, %v277
  %284 = vrot.lane.b32.xlu0 %v194, 106
  %v285 = vpop.permute.xlu0 %284
  %286 = vrot.lane.b32.xlu0 %v195, 106
  %v287 = vpop.permute.xlu0 %286
  %288 = vrot.lane.b32.xlu0 %v196, 106
  %v289 = vpop.permute.xlu0 %288
  %vm290 = vcmask 867328
  %v291 = vsel %vm290, %v285, %v287
  %v292 = vsel %vm290, %v287, %v289
  %v296 = vpack.c.bf16 %v207, %v191
  %v297 = vpack.c.bf16 %v208, %v192
  %v298 = vpack.c.bf16 %v205, %v193
  %v299 = vpack.c.bf16 %v231, %v219
  %v300 = vpack.c.bf16 %v232, %v220
  %v301 = vpack.c.bf16 %v229, %v217
  %v302 = vpack.c.bf16 %v249, %v237
  %v303 = vpack.c.bf16 %v255, %v241
  %v304 = vpack.c.bf16 %v256, %v239
  %v305 = vpack.c.bf16 %v273, %v261
  %v306 = vpack.c.bf16 %v279, %v267
  %v307 = vpack.c.bf16 %v280, %v268
  %v308 = vpack.c.bf16 %v285, %v285
  %v309 = vpack.c.bf16 %v291, %v291
  %v310 = vpack.c.bf16 %v292, %v292
  %v311 = vld [vmem:[%s2] sm:$0xff]
  %v312 = vld [vmem:[%s2 + $0x8] sm:$0xff]
  %v313 = vld [vmem:[%s5] sm:$0xf]
  %314 = vst [vmem:[#allocation2 + $0x8] sm:$0xff] %v311
  %315 = vst [vmem:[#allocation2 + $0x10] sm:$0xff] %v312
  %v316 = vld [vmem:[#allocation2] sm:$0xff]
  %v317 = vld [vmem:[#allocation2 + $0x8] sm:$0xff]
  %v318 = vld [vmem:[#allocation2 + $0x10] sm:$0xff]
  %v319 = vld [vmem:[#allocation2 + $0x8] sm:$0xff]
  %v320 = vld [vmem:[#allocation2 + $0x10] sm:$0xff]
  %v321 = vld [vmem:[#allocation2 + $0x18] sm:$0xff]
  %325 = vrot.lane.b32.xlu0 %v316, 127
  %v326 = vpop.permute.xlu0 %325
  %327 = vrot.lane.b32.xlu0 %v317, 127
  %v328 = vpop.permute.xlu0 %327
  %329 = vrot.lane.b32.xlu0 %v318, 127
  %v330 = vpop.permute.xlu0 %329
  %v331 = vsel %vm206, %v326, %v328
  %v332 = vsel %vm206, %v328, %v330
  %336 = vrot.lane.b32.xlu0 %v316, 126
  %v337 = vpop.permute.xlu0 %336
  %338 = vrot.lane.b32.xlu0 %v317, 126
  %v339 = vpop.permute.xlu0 %338
  %340 = vrot.lane.b32.xlu0 %v318, 126
  %v341 = vpop.permute.xlu0 %340
  %v342 = vsel %vm218, %v337, %v339
  %v343 = vsel %vm218, %v339, %v341
  %347 = vrot.lane.b32.xlu0 %v316, 118
  %v348 = vpop.permute.xlu0 %347
  %349 = vrot.lane.b32.xlu0 %v317, 118
  %v350 = vpop.permute.xlu0 %349
  %351 = vrot.lane.b32.xlu0 %v318, 118
  %v352 = vpop.permute.xlu0 %351
  %v353 = vsel %vm230, %v348, %v350
  %v354 = vsel %vm230, %v350, %v352
  %358 = vrot.lane.b32.xlu0 %v317, 117
  %v359 = vpop.permute.xlu0 %358
  %360 = vrot.lane.b32.xlu0 %v318, 117
  %v361 = vpop.permute.xlu0 %360
  %v362 = vsel %vm240, %v359, %v361
  %369 = vrot.lane.b32.xlu0 %v319, 116
  %v370 = vpop.permute.xlu0 %369
  %371 = vrot.lane.b32.xlu0 %v320, 116
  %v372 = vpop.permute.xlu0 %371
  %373 = vrot.lane.b32.xlu0 %v321, 116
  %v374 = vpop.permute.xlu0 %373
  %v375 = vsel %vm254, %v370, %v372
  %v376 = vsel %vm254, %v372, %v374
  %380 = vrot.lane.b32.xlu0 %v319, 108
  %v381 = vpop.permute.xlu0 %380
  %382 = vrot.lane.b32.xlu0 %v320, 108
  %v383 = vpop.permute.xlu0 %382
  %384 = vrot.lane.b32.xlu0 %v321, 108
  %v385 = vpop.permute.xlu0 %384
  %v386 = vsel %vm266, %v381, %v383
  %v387 = vsel %vm266, %v383, %v385
  %391 = vrot.lane.b32.xlu0 %v319, 107
  %v392 = vpop.permute.xlu0 %391
  %393 = vrot.lane.b32.xlu0 %v320, 107
  %v394 = vpop.permute.xlu0 %393
  %395 = vrot.lane.b32.xlu0 %v321, 107
  %v396 = vpop.permute.xlu0 %395
  %v397 = vsel %vm278, %v392, %v394
  %v398 = vsel %vm278, %v394, %v396
  %402 = vrot.lane.b32.xlu0 %v319, 106
  %v403 = vpop.permute.xlu0 %402
  %404 = vrot.lane.b32.xlu0 %v320, 106
  %v405 = vpop.permute.xlu0 %404
  %406 = vrot.lane.b32.xlu0 %v321, 106
  %v407 = vpop.permute.xlu0 %406
  %v408 = vsel %vm290, %v403, %v405
  %v409 = vsel %vm290, %v405, %v407
  %v413 = vpack.c.bf16 %v331, %v316
  %v414 = vpack.c.bf16 %v332, %v317
  %v415 = vpack.c.bf16 %v330, %v318
  %v416 = vpack.c.bf16 %v353, %v342
  %v417 = vpack.c.bf16 %v354, %v343
  %v418 = vpack.c.bf16 %v352, %v341
  %v419 = vpack.c.bf16 %v370, %v359
  %v420 = vpack.c.bf16 %v375, %v362
  %v421 = vpack.c.bf16 %v376, %v361
  %v422 = vpack.c.bf16 %v392, %v381
  %v423 = vpack.c.bf16 %v397, %v386
  %v424 = vpack.c.bf16 %v398, %v387
  %v425 = vpack.c.bf16 %v403, %v403
  %v426 = vpack.c.bf16 %v408, %v408
  %v427 = vpack.c.bf16 %v409, %v409
  %443 = vrot.lane.b32.xlu0 %v413, 11
  %v444 = vpop.permute.xlu0 %443
  %445 = vrot.lane.b32.xlu0 %v414, 11
  %v446 = vpop.permute.xlu0 %445
  %447 = vrot.lane.b32.xlu0 %v415, 11
  %v448 = vpop.permute.xlu0 %447
  %449 = vrot.lane.b32.xlu0 %v416, 11
  %v450 = vpop.permute.xlu0 %449
  %451 = vrot.lane.b32.xlu0 %v417, 11
  %v452 = vpop.permute.xlu0 %451
  %453 = vrot.lane.b32.xlu0 %v418, 11
  %v454 = vpop.permute.xlu0 %453
  %455 = vrot.lane.b32.xlu0 %v419, 11
  %v456 = vpop.permute.xlu0 %455
  %457 = vrot.lane.b32.xlu0 %v420, 11
  %v458 = vpop.permute.xlu0 %457
  %459 = vrot.lane.b32.xlu0 %v421, 11
  %v460 = vpop.permute.xlu0 %459
  %461 = vrot.lane.b32.xlu0 %v422, 11
  %v462 = vpop.permute.xlu0 %461
  %463 = vrot.lane.b32.xlu0 %v423, 11
  %v464 = vpop.permute.xlu0 %463
  %465 = vrot.lane.b32.xlu0 %v424, 11
  %v466 = vpop.permute.xlu0 %465
  %467 = vrot.lane.b32.xlu0 %v425, 11
  %v468 = vpop.permute.xlu0 %467
  %469 = vrot.lane.b32.xlu0 %v426, 11
  %v470 = vpop.permute.xlu0 %469
  %471 = vrot.lane.b32.xlu0 %v427, 11
  %v472 = vpop.permute.xlu0 %471
  %vm473 = vcmask 89088
  %v474 = vsel %vm473, %v444, %v446
  %v475 = vsel %vm473, %v446, %v448
  %v476 = vsel %vm473, %v450, %v452
  %v477 = vsel %vm473, %v452, %v454
  %v478 = vsel %vm473, %v456, %v458
  %v479 = vsel %vm473, %v458, %v460
  %v480 = vsel %vm473, %v462, %v464
  %v481 = vsel %vm473, %v464, %v466
  %v482 = vsel %vm473, %v468, %v470
  %v483 = vsel %vm473, %v470, %v472
  %vm492 = vcmask 588800
  %v494 = vsel %vm492, %v313, 0
  %vm496 = vcmask 1043456
  %v498 = vsel %vm496, %v482, 0
  %v501 = vsel %vm496, %v483, 0
  %503 = vmatprep.subr.bf16.mxu0 %v475
  %504 = vmatpush1.bf16.msra.mxu0 %v474
  %505 = vmatprep.subr.bf16.mxu0 %v477
  %506 = vmatpush1.bf16.msra.mxu0 %v476
  %507 = vmatprep.subr.bf16.mxu0 %v479
  %508 = vmatpush1.bf16.msra.mxu0 %v478
  %509 = vmatprep.subr.bf16.mxu0 %v481
  %510 = vmatpush1.bf16.msra.mxu0 %v480
  %511 = vmatprep.subr.bf16.mxu0 %v501
  %512 = vmatpush1.bf16.msra.mxu0 %v498
  %513 = vmatprep.subr.bf16.mxu0 0
  %514 = vmatpush1.bf16.msra.mxu0 0
  %515 = vmatprep.subr.bf16.mxu0 0
  %516 = vmatpush1.bf16.msra.mxu0 0
  %517 = vmatprep.subr.bf16.mxu0 0
  %518 = vmatpush1.bf16.msra.mxu0 0
  %519 = vmatprep.subr.bf16.mxu0 0
  %520 = vmatpush1.bf16.msra.mxu0 0
  %521 = vmatprep.subr.bf16.mxu0 0
  %522 = vmatpush1.bf16.msra.mxu0 0
  %523 = vmatprep.subr.bf16.mxu0 0
  %524 = vmatpush1.bf16.msra.mxu0 0
  %525 = vmatprep.subr.bf16.mxu0 0
  %526 = vmatpush1.bf16.msra.mxu0 0
  %527 = vmatprep.subr.bf16.mxu0 0
  %528 = vmatpush1.bf16.msra.mxu0 0
  %529 = vmatprep.subr.bf16.mxu0 0
  %530 = vmatpush1.bf16.msra.mxu0 0
  %531 = vmatprep.subr.bf16.mxu0 0
  %532 = vmatpush1.bf16.msra.mxu0 0
  %533 = vmatprep.subr.bf16.mxu0 0
  %534 = vmatpush1.bf16.msra.mxu0 0
  %535 = vmatprep.mubr.bf16.mxu0 0
  %536 = vmatmul.mubr.bf16.gmra.mrb[0].mxu0 %v494
  %v537 = vpop.f32.mrb[0].mxu0
  %v538 = vadd.f32 0.0, %v537
  %v539 = vpop.f32.mrb[0].mxu0
  %v540 = vadd.f32 0.0, %v539
  %v541 = vpop.f32.mrb[0].mxu0
  %v542 = vpop.f32.mrb[0].mxu0
  %543 = vdwg.mxu0
  %559 = vrot.lane.b32.xlu0 %v296, 11
  %v560 = vpop.permute.xlu0 %559
  %561 = vrot.lane.b32.xlu0 %v297, 11
  %v562 = vpop.permute.xlu0 %561
  %563 = vrot.lane.b32.xlu0 %v298, 11
  %v564 = vpop.permute.xlu0 %563
  %565 = vrot.lane.b32.xlu0 %v299, 11
  %v566 = vpop.permute.xlu0 %565
  %567 = vrot.lane.b32.xlu0 %v300, 11
  %v568 = vpop.permute.xlu0 %567
  %569 = vrot.lane.b32.xlu0 %v301, 11
  %v570 = vpop.permute.xlu0 %569
  %571 = vrot.lane.b32.xlu0 %v302, 11
  %v572 = vpop.permute.xlu0 %571
  %573 = vrot.lane.b32.xlu0 %v303, 11
  %v574 = vpop.permute.xlu0 %573
  %575 = vrot.lane.b32.xlu0 %v304, 11
  %v576 = vpop.permute.xlu0 %575
  %577 = vrot.lane.b32.xlu0 %v305, 11
  %v578 = vpop.permute.xlu0 %577
  %579 = vrot.lane.b32.xlu0 %v306, 11
  %v580 = vpop.permute.xlu0 %579
  %581 = vrot.lane.b32.xlu0 %v307, 11
  %v582 = vpop.permute.xlu0 %581
  %583 = vrot.lane.b32.xlu0 %v308, 11
  %v584 = vpop.permute.xlu0 %583
  %585 = vrot.lane.b32.xlu0 %v309, 11
  %v586 = vpop.permute.xlu0 %585
  %587 = vrot.lane.b32.xlu0 %v310, 11
  %v588 = vpop.permute.xlu0 %587
  %v589 = vsel %vm473, %v560, %v562
  %v590 = vsel %vm473, %v562, %v564
  %v591 = vsel %vm473, %v566, %v568
  %v592 = vsel %vm473, %v568, %v570
  %v593 = vsel %vm473, %v572, %v574
  %v594 = vsel %vm473, %v574, %v576
  %v595 = vsel %vm473, %v578, %v580
  %v596 = vsel %vm473, %v580, %v582
  %v597 = vsel %vm473, %v584, %v586
  %v598 = vsel %vm473, %v586, %v588
  %v608 = vsel %vm492, %v188, 0
  %v611 = vsel %vm496, %v597, 0
  %v614 = vsel %vm496, %v598, 0
  %616 = vmatprep.subr.bf16.mxu0 %v590
  %617 = vmatpush1.bf16.msra.mxu0 %v589
  %618 = vmatprep.subr.bf16.mxu0 %v592
  %619 = vmatpush1.bf16.msra.mxu0 %v591
  %620 = vmatprep.subr.bf16.mxu0 %v594
  %621 = vmatpush1.bf16.msra.mxu0 %v593
  %622 = vmatprep.subr.bf16.mxu0 %v596
  %623 = vmatpush1.bf16.msra.mxu0 %v595
  %624 = vmatprep.subr.bf16.mxu0 %v614
  %625 = vmatpush1.bf16.msra.mxu0 %v611
  %626 = vmatprep.subr.bf16.mxu0 0
  %627 = vmatpush1.bf16.msra.mxu0 0
  %628 = vmatprep.subr.bf16.mxu0 0
  %629 = vmatpush1.bf16.msra.mxu0 0
  %630 = vmatprep.subr.bf16.mxu0 0
  %631 = vmatpush1.bf16.msra.mxu0 0
  %632 = vmatprep.subr.bf16.mxu0 0
  %633 = vmatpush1.bf16.msra.mxu0 0
  %634 = vmatprep.subr.bf16.mxu0 0
  %635 = vmatpush1.bf16.msra.mxu0 0
  %636 = vmatprep.subr.bf16.mxu0 0
  %637 = vmatpush1.bf16.msra.mxu0 0
  %638 = vmatprep.subr.bf16.mxu0 0
  %639 = vmatpush1.bf16.msra.mxu0 0
  %640 = vmatprep.subr.bf16.mxu0 0
  %641 = vmatpush1.bf16.msra.mxu0 0
  %642 = vmatprep.subr.bf16.mxu0 0
  %643 = vmatpush1.bf16.msra.mxu0 0
  %644 = vmatprep.subr.bf16.mxu0 0
  %645 = vmatpush1.bf16.msra.mxu0 0
  %646 = vmatprep.subr.bf16.mxu0 0
  %647 = vmatpush1.bf16.msra.mxu0 0
  %648 = vmatprep.mubr.bf16.mxu0 0
  %649 = vmatmul.mubr.bf16.gmra.mrb[0].mxu0 %v608
  %v650 = vpop.f32.mrb[0].mxu0
  %v651 = vadd.f32 %v538, %v650
  %v652 = vpop.f32.mrb[0].mxu0
  %v653 = vadd.f32 %v540, %v652
  %v654 = vpop.f32.mrb[0].mxu0
  %v655 = vpop.f32.mrb[0].mxu0
  %656 = vdwg.mxu0
  %v657 = vld [vmem:[%s6] sm:$0xff]
  %659 = vset.pattern.permute.xlu0 0
  %660 = vperm.xlu0 %659, %v657
  %v661 = vpop.permute.xlu0 %660
  %v663 = vadd.f32 %v651, %v661
  %v664 = vadd.f32 %v653, %v661
  %v665 = vmax.f32 %v663, 0.0
  %v666 = vmax.f32 %v664, 0.0
  %v668 = vlaneseq
  %v669 = vshrl.u32 %v668, 7
  %v670 = vsub.s32 0, %v669
  %v671 = vrot.slane %v42, %v670
  %v672 = vlaneseq
  %v673 = vshrl.u32 %v672, 7
  %v674 = vsub.s32 1, %v673
  %v675 = vrot.slane %v42, %v674
  %v678 = vmul.f32 %v665, %v671
  %v679 = vmul.f32 %v666, %v675
  %v680 = vld [vmem:[%s7] sm:$0xf]
  %681 = vst [vmem:[#allocation2 + $0x8] sm:$0xff] %v678
  %682 = vst [vmem:[#allocation2 + $0x10] sm:$0xff] %v679
  %v683 = vld [vmem:[#allocation2] sm:$0xff]
  %v684 = vld [vmem:[#allocation2 + $0x8] sm:$0xff]
  %v685 = vld [vmem:[#allocation2 + $0x10] sm:$0xff]
  %v686 = vld [vmem:[#allocation2 + $0x8] sm:$0xff]
  %v687 = vld [vmem:[#allocation2 + $0x10] sm:$0xff]
  %v688 = vld [vmem:[#allocation2 + $0x18] sm:$0xff]
  %692 = vrot.lane.b32.xlu0 %v683, 127
  %v693 = vpop.permute.xlu0 %692
  %694 = vrot.lane.b32.xlu0 %v684, 127
  %v695 = vpop.permute.xlu0 %694
  %696 = vrot.lane.b32.xlu0 %v685, 127
  %v697 = vpop.permute.xlu0 %696
  %v698 = vsel %vm206, %v693, %v695
  %v699 = vsel %vm206, %v695, %v697
  %703 = vrot.lane.b32.xlu0 %v683, 126
  %v704 = vpop.permute.xlu0 %703
  %705 = vrot.lane.b32.xlu0 %v684, 126
  %v706 = vpop.permute.xlu0 %705
  %707 = vrot.lane.b32.xlu0 %v685, 126
  %v708 = vpop.permute.xlu0 %707
  %v709 = vsel %vm218, %v704, %v706
  %v710 = vsel %vm218, %v706, %v708
  %714 = vrot.lane.b32.xlu0 %v683, 118
  %v715 = vpop.permute.xlu0 %714
  %716 = vrot.lane.b32.xlu0 %v684, 118
  %v717 = vpop.permute.xlu0 %716
  %718 = vrot.lane.b32.xlu0 %v685, 118
  %v719 = vpop.permute.xlu0 %718
  %v720 = vsel %vm230, %v715, %v717
  %v721 = vsel %vm230, %v717, %v719
  %725 = vrot.lane.b32.xlu0 %v684, 117
  %v726 = vpop.permute.xlu0 %725
  %727 = vrot.lane.b32.xlu0 %v685, 117
  %v728 = vpop.permute.xlu0 %727
  %v729 = vsel %vm240, %v726, %v728
  %736 = vrot.lane.b32.xlu0 %v686, 116
  %v737 = vpop.permute.xlu0 %736
  %738 = vrot.lane.b32.xlu0 %v687, 116
  %v739 = vpop.permute.xlu0 %738
  %740 = vrot.lane.b32.xlu0 %v688, 116
  %v741 = vpop.permute.xlu0 %740
  %v742 = vsel %vm254, %v737, %v739
  %v743 = vsel %vm254, %v739, %v741
  %747 = vrot.lane.b32.xlu0 %v686, 108
  %v748 = vpop.permute.xlu0 %747
  %749 = vrot.lane.b32.xlu0 %v687, 108
  %v750 = vpop.permute.xlu0 %749
  %751 = vrot.lane.b32.xlu0 %v688, 108
  %v752 = vpop.permute.xlu0 %751
  %v753 = vsel %vm266, %v748, %v750
  %v754 = vsel %vm266, %v750, %v752
  %758 = vrot.lane.b32.xlu0 %v686, 107
  %v759 = vpop.permute.xlu0 %758
  %760 = vrot.lane.b32.xlu0 %v687, 107
  %v761 = vpop.permute.xlu0 %760
  %762 = vrot.lane.b32.xlu0 %v688, 107
  %v763 = vpop.permute.xlu0 %762
  %v764 = vsel %vm278, %v759, %v761
  %v765 = vsel %vm278, %v761, %v763
  %769 = vrot.lane.b32.xlu0 %v686, 106
  %v770 = vpop.permute.xlu0 %769
  %771 = vrot.lane.b32.xlu0 %v687, 106
  %v772 = vpop.permute.xlu0 %771
  %773 = vrot.lane.b32.xlu0 %v688, 106
  %v774 = vpop.permute.xlu0 %773
  %v775 = vsel %vm290, %v770, %v772
  %v776 = vsel %vm290, %v772, %v774
  %v780 = vpack.c.bf16 %v698, %v683
  %v781 = vpack.c.bf16 %v699, %v684
  %v782 = vpack.c.bf16 %v697, %v685
  %v783 = vpack.c.bf16 %v720, %v709
  %v784 = vpack.c.bf16 %v721, %v710
  %v785 = vpack.c.bf16 %v719, %v708
  %v786 = vpack.c.bf16 %v737, %v726
  %v787 = vpack.c.bf16 %v742, %v729
  %v788 = vpack.c.bf16 %v743, %v728
  %v789 = vpack.c.bf16 %v759, %v748
  %v790 = vpack.c.bf16 %v764, %v753
  %v791 = vpack.c.bf16 %v765, %v754
  %v792 = vpack.c.bf16 %v770, %v770
  %v793 = vpack.c.bf16 %v775, %v775
  %v794 = vpack.c.bf16 %v776, %v776
  %v795 = vld [vmem:[%s8] sm:$0xff]
  %797 = vset.pattern.permute.xlu0 0
  %798 = vperm.xlu0 %797, %v795
  %v799 = vpop.permute.xlu0 %798
  %816 = vrot.lane.b32.xlu0 %v780, 11
  %v817 = vpop.permute.xlu0 %816
  %818 = vrot.lane.b32.xlu0 %v781, 11
  %v819 = vpop.permute.xlu0 %818
  %820 = vrot.lane.b32.xlu0 %v782, 11
  %v821 = vpop.permute.xlu0 %820
  %822 = vrot.lane.b32.xlu0 %v783, 11
  %v823 = vpop.permute.xlu0 %822
  %824 = vrot.lane.b32.xlu0 %v784, 11
  %v825 = vpop.permute.xlu0 %824
  %826 = vrot.lane.b32.xlu0 %v785, 11
  %v827 = vpop.permute.xlu0 %826
  %828 = vrot.lane.b32.xlu0 %v786, 11
  %v829 = vpop.permute.xlu0 %828
  %830 = vrot.lane.b32.xlu0 %v787, 11
  %v831 = vpop.permute.xlu0 %830
  %832 = vrot.lane.b32.xlu0 %v788, 11
  %v833 = vpop.permute.xlu0 %832
  %834 = vrot.lane.b32.xlu0 %v789, 11
  %v835 = vpop.permute.xlu0 %834
  %836 = vrot.lane.b32.xlu0 %v790, 11
  %v837 = vpop.permute.xlu0 %836
  %838 = vrot.lane.b32.xlu0 %v791, 11
  %v839 = vpop.permute.xlu0 %838
  %840 = vrot.lane.b32.xlu0 %v792, 11
  %v841 = vpop.permute.xlu0 %840
  %842 = vrot.lane.b32.xlu0 %v793, 11
  %v843 = vpop.permute.xlu0 %842
  %844 = vrot.lane.b32.xlu0 %v794, 11
  %v845 = vpop.permute.xlu0 %844
  %v846 = vsel %vm473, %v817, %v819
  %v847 = vsel %vm473, %v819, %v821
  %v848 = vsel %vm473, %v823, %v825
  %v849 = vsel %vm473, %v825, %v827
  %v850 = vsel %vm473, %v829, %v831
  %v851 = vsel %vm473, %v831, %v833
  %v852 = vsel %vm473, %v835, %v837
  %v853 = vsel %vm473, %v837, %v839
  %v854 = vsel %vm473, %v841, %v843
  %v855 = vsel %vm473, %v843, %v845
  %v865 = vsel %vm492, %v680, 0
  %v868 = vsel %vm496, %v854, 0
  %v871 = vsel %vm496, %v855, 0
  %873 = vmatprep.subr.bf16.mxu0 %v847
  %874 = vmatpush1.bf16.msra.mxu0 %v846
  %875 = vmatprep.subr.bf16.mxu0 %v849
  %876 = vmatpush1.bf16.msra.mxu0 %v848
  %877 = vmatprep.subr.bf16.mxu0 %v851
  %878 = vmatpush1.bf16.msra.mxu0 %v850
  %879 = vmatprep.subr.bf16.mxu0 %v853
  %880 = vmatpush1.bf16.msra.mxu0 %v852
  %881 = vmatprep.subr.bf16.mxu0 %v871
  %882 = vmatpush1.bf16.msra.mxu0 %v868
  %883 = vmatprep.subr.bf16.mxu0 0
  %884 = vmatpush1.bf16.msra.mxu0 0
  %885 = vmatprep.subr.bf16.mxu0 0
  %886 = vmatpush1.bf16.msra.mxu0 0
  %887 = vmatprep.subr.bf16.mxu0 0
  %888 = vmatpush1.bf16.msra.mxu0 0
  %889 = vmatprep.subr.bf16.mxu0 0
  %890 = vmatpush1.bf16.msra.mxu0 0
  %891 = vmatprep.subr.bf16.mxu0 0
  %892 = vmatpush1.bf16.msra.mxu0 0
  %893 = vmatprep.subr.bf16.mxu0 0
  %894 = vmatpush1.bf16.msra.mxu0 0
  %895 = vmatprep.subr.bf16.mxu0 0
  %896 = vmatpush1.bf16.msra.mxu0 0
  %897 = vmatprep.subr.bf16.mxu0 0
  %898 = vmatpush1.bf16.msra.mxu0 0
  %899 = vmatprep.subr.bf16.mxu0 0
  %900 = vmatpush1.bf16.msra.mxu0 0
  %901 = vmatprep.subr.bf16.mxu0 0
  %902 = vmatpush1.bf16.msra.mxu0 0
  %903 = vmatprep.subr.bf16.mxu0 0
  %904 = vmatpush1.bf16.msra.mxu0 0
  %905 = vmatprep.mubr.bf16.mxu0 0
  %906 = vmatmul.mubr.bf16.gmra.mrb[0].mxu0 %v865
  %v907 = vpop.f32.mrb[0].mxu0
  %v908 = vadd.f32 %v799, %v907
  %v909 = vpop.f32.mrb[0].mxu0
  %v910 = vadd.f32 %v799, %v909
  %v911 = vpop.f32.mrb[0].mxu0
  %v912 = vpop.f32.mrb[0].mxu0
  %913 = vdwg.mxu0
  %v914 = vmax.f32 %v908, 0.0
  %v915 = vmax.f32 %v910, 0.0
  %v916 = vld [vmem:[%s9] sm:$0xf]
  %v917 = vpack.c.bf16 %v186, %v186
  %v918 = vpack.c.bf16 %v187, %v187
  %v919 = vld [vmem:[%s10] sm:$0xf]
  %v920 = vpack.c.bf16 %v311, %v311
  %v921 = vpack.c.bf16 %v312, %v312
  %vm922 = vcmask 64512
  %v924 = vsel %vm922, %v919, 0
  %v927 = vsel %vm496, %v920, 0
  %v930 = vsel %vm496, %v921, 0
  %932 = vmatprep.subr.bf16.mxu0 %v930
  %933 = vmatpush1.bf16.msra.mxu0 %v927
  %934 = vmatprep.subr.bf16.mxu0 0
  %935 = vmatpush1.bf16.msra.mxu0 0
  %936 = vmatprep.subr.bf16.mxu0 0
  %937 = vmatpush1.bf16.msra.mxu0 0
  %938 = vmatprep.subr.bf16.mxu0 0
  %939 = vmatpush1.bf16.msra.mxu0 0
  %940 = vmatprep.subr.bf16.mxu0 0
  %941 = vmatpush1.bf16.msra.mxu0 0
  %942 = vmatprep.subr.bf16.mxu0 0
  %943 = vmatpush1.bf16.msra.mxu0 0
  %944 = vmatprep.subr.bf16.mxu0 0
  %945 = vmatpush1.bf16.msra.mxu0 0
  %946 = vmatprep.subr.bf16.mxu0 0
  %947 = vmatpush1.bf16.msra.mxu0 0
  %948 = vmatprep.subr.bf16.mxu0 0
  %949 = vmatpush1.bf16.msra.mxu0 0
  %950 = vmatprep.subr.bf16.mxu0 0
  %951 = vmatpush1.bf16.msra.mxu0 0
  %952 = vmatprep.subr.bf16.mxu0 0
  %953 = vmatpush1.bf16.msra.mxu0 0
  %954 = vmatprep.subr.bf16.mxu0 0
  %955 = vmatpush1.bf16.msra.mxu0 0
  %956 = vmatprep.subr.bf16.mxu0 0
  %957 = vmatpush1.bf16.msra.mxu0 0
  %958 = vmatprep.subr.bf16.mxu0 0
  %959 = vmatpush1.bf16.msra.mxu0 0
  %960 = vmatprep.subr.bf16.mxu0 0
  %961 = vmatpush1.bf16.msra.mxu0 0
  %962 = vmatprep.subr.bf16.mxu0 0
  %963 = vmatpush1.bf16.msra.mxu0 0
  %964 = vmatprep.mubr.bf16.mxu0 0
  %965 = vmatmul.mubr.bf16.gmra.mrb[0].mxu0 %v924
  %v966 = vpop.f32.mrb[0].mxu0
  %v967 = vadd.f32 0.0, %v966
  %v968 = vpop.f32.mrb[0].mxu0
  %v969 = vadd.f32 0.0, %v968
  %v970 = vpop.f32.mrb[0].mxu0
  %v971 = vpop.f32.mrb[0].mxu0
  %972 = vdwg.mxu0
  %v974 = vsel %vm922, %v916, 0
  %v977 = vsel %vm496, %v917, 0
  %v980 = vsel %vm496, %v918, 0
  %982 = vmatprep.subr.bf16.mxu0 %v980
  %983 = vmatpush1.bf16.msra.mxu0 %v977
  %984 = vmatprep.subr.bf16.mxu0 0
  %985 = vmatpush1.bf16.msra.mxu0 0
  %986 = vmatprep.subr.bf16.mxu0 0
  %987 = vmatpush1.bf16.msra.mxu0 0
  %988 = vmatprep.subr.bf16.mxu0 0
  %989 = vmatpush1.bf16.msra.mxu0 0
  %990 = vmatprep.subr.bf16.mxu0 0
  %991 = vmatpush1.bf16.msra.mxu0 0
  %992 = vmatprep.subr.bf16.mxu0 0
  %993 = vmatpush1.bf16.msra.mxu0 0
  %994 = vmatprep.subr.bf16.mxu0 0
  %995 = vmatpush1.bf16.msra.mxu0 0
  %996 = vmatprep.subr.bf16.mxu0 0
  %997 = vmatpush1.bf16.msra.mxu0 0
  %998 = vmatprep.subr.bf16.mxu0 0
  %999 = vmatpush1.bf16.msra.mxu0 0
  %1000 = vmatprep.subr.bf16.mxu0 0
  %1001 = vmatpush1.bf16.msra.mxu0 0
  %1002 = vmatprep.subr.bf16.mxu0 0
  %1003 = vmatpush1.bf16.msra.mxu0 0
  %1004 = vmatprep.subr.bf16.mxu0 0
  %1005 = vmatpush1.bf16.msra.mxu0 0
  %1006 = vmatprep.subr.bf16.mxu0 0
  %1007 = vmatpush1.bf16.msra.mxu0 0
  %1008 = vmatprep.subr.bf16.mxu0 0
  %1009 = vmatpush1.bf16.msra.mxu0 0
  %1010 = vmatprep.subr.bf16.mxu0 0
  %1011 = vmatpush1.bf16.msra.mxu0 0
  %1012 = vmatprep.subr.bf16.mxu0 0
  %1013 = vmatpush1.bf16.msra.mxu0 0
  %1014 = vmatprep.mubr.bf16.mxu0 0
  %1015 = vmatmul.mubr.bf16.gmra.mrb[0].mxu0 %v974
  %v1016 = vpop.f32.mrb[0].mxu0
  %v1017 = vadd.f32 %v967, %v1016
  %v1018 = vpop.f32.mrb[0].mxu0
  %v1019 = vadd.f32 %v969, %v1018
  %v1020 = vpop.f32.mrb[0].mxu0
  %v1021 = vpop.f32.mrb[0].mxu0
  %1022 = vdwg.mxu0
  %v1023 = vadd.f32 %v914, %v1017
  %v1024 = vadd.f32 %v915, %v1019
  %v1025 = vld [vmem:[%s11] sm:$0xff]
  %1027 = vset.pattern.permute.xlu0 0
  %1028 = vperm.xlu0 %1027, %v1025
  %v1029 = vpop.permute.xlu0 %1028
  %v1031 = vadd.f32 %v1023, %v1029
  %v1032 = vadd.f32 %v1024, %v1029
  %v1033 = vmul.f32 %v1031, %v671
  %v1034 = vmul.f32 %v1032, %v675
  %1035 = vst [vmem:[%s12] sm:$0xff] %v1033
  %1036 = vst [vmem:[%s12 + $0x8] sm:$0xff] %v1034
  // Predicated region
  $region50: #{resunet_forward.16} parent=0 // pred_check
    _
  $region51: #{resunet_forward.16} parent=0 // pred_check_branch
    %1038 = sbr.rel (0) target = $region53
  $region52: #{resunet_forward.16} parent=0 // pred_region
    _
  $region53: #{resunet_forward.16} parent=0 // pred_fallthru
    _
  // Predicated region
  $region54: #{resunet_forward.16} parent=0 // pred_check
    _
  $region55: #{resunet_forward.16} parent=0 // pred_check_branch
    %1040 = sbr.rel (0) target = $region57
  $region56: #{resunet_forward.16} parent=0 // pred_region
    _
  $region57: #{resunet_forward.16} parent=0 // pred_fallthru
    _

// kernel: resunet_forward.17
$region0: #{resunet_forward.17}
  #allocation0 [shape = 'u32[]', space=smem, size = 0x4, offset = 0x4, fixed_abs, tag = 'smem constant byte address 0x4 - core index']
  #allocation1 [shape = 'u32[144,128]{1,0:T(1,128)}', space=vmem, size = 0x12000, scoped, tag = 'internal scratch']
  #allocation2 [shape = 'f32[8,1024]{1,0:T(8,128)}', space=vmem, size = 0x8000, scoped, tag = 'scratch operand']
  %s0 = inlined_call_operand.vmem [shape: f32[8,256], index: 0, kind: input, shape index: {}]
  %s1 = inlined_call_operand.vmem [shape: bf16[256,768], index: 1, kind: input, shape index: {}]
  %s2 = inlined_call_operand.vmem [shape: f32[8,768], index: 2, kind: input, shape index: {}]
  %s3 = inlined_call_operand.vmem [shape: f32[1,768], index: 3, kind: input, shape index: {}]
  %s4 = inlined_call_operand.vmem [shape: bf16[8,72], index: 4, kind: input, shape index: {}]
  %s5 = inlined_call_operand.vmem [shape: bf16[8,72], index: 5, kind: input, shape index: {}]
  %s6 = inlined_call_operand.vmem [shape: f32[8,1], index: 6, kind: input, shape index: {}]
  %s7 = inlined_call_operand.vmem [shape: bf16[8,72], index: 7, kind: input, shape index: {}]
  %s8 = inlined_call_operand.vmem [shape: f32[8,1], index: 8, kind: input, shape index: {}]
  %s9 = inlined_call_operand.vmem [shape: bf16[8,8], index: 9, kind: input, shape index: {}]
  %s10 = inlined_call_operand.vmem [shape: bf16[8,8], index: 10, kind: input, shape index: {}]
  %s11 = inlined_call_operand.vmem [shape: f32[8,1], index: 11, kind: input, shape index: {}]
  %s12 = inlined_call_operand.vmem [shape: bf16[2,8], index: 12, kind: input, shape index: {}]
  %s13 = inlined_call_operand.vmem [shape: f32[2,1], index: 13, kind: input, shape index: {}]
  %s14 = inlined_call_operand.vmem [shape: f32[2,768], index: 14, kind: output, shape index: {}]
  %s15 = sld [smem:[#allocation0]]
  $region66: #{resunet_forward.17} parent=0
    _
  %s17 = ssub.s32 1, %s15
  %s18 = scalar_select 0, %s17, %s15
  // Predicated region
  $region2: #{resunet_forward.17} parent=0 // pred_check
    _
  $region3: #{resunet_forward.17} parent=0 // pred_check_branch
    %20 = sbr.rel (0) target = $region5
  $region4: #{resunet_forward.17} parent=0 // pred_region
    _
  $region5: #{resunet_forward.17} parent=0 // pred_fallthru
    _
  // Predicated region
  $region6: #{resunet_forward.17} parent=0 // pred_check
    _
  $region7: #{resunet_forward.17} parent=0 // pred_check_branch
    %22 = sbr.rel (0) target = $region9
  $region8: #{resunet_forward.17} parent=0 // pred_region
    _
  $region9: #{resunet_forward.17} parent=0 // pred_fallthru
    _
  // Predicated region
  $region10: #{resunet_forward.17} parent=0 // pred_check
    _
  $region11: #{resunet_forward.17} parent=0 // pred_check_branch
    %24 = sbr.rel (0) target = $region13
  $region12: #{resunet_forward.17} parent=0 // pred_region
    _
  $region13: #{resunet_forward.17} parent=0 // pred_fallthru
    _
  // Predicated region
  $region14: #{resunet_forward.17} parent=0 // pred_check
    _
  $region15: #{resunet_forward.17} parent=0 // pred_check_branch
    %26 = sbr.rel (0) target = $region17
  $region16: #{resunet_forward.17} parent=0 // pred_region
    _
  $region17: #{resunet_forward.17} parent=0 // pred_fallthru
    _
  // Predicated region
  $region18: #{resunet_forward.17} parent=0 // pred_check
    _
  $region19: #{resunet_forward.17} parent=0 // pred_check_branch
    %28 = sbr.rel (0) target = $region21
  $region20: #{resunet_forward.17} parent=0 // pred_region
    _
  $region21: #{resunet_forward.17} parent=0 // pred_fallthru
    _
  // Predicated region
  $region22: #{resunet_forward.17} parent=0 // pred_check
    _
  $region23: #{resunet_forward.17} parent=0 // pred_check_branch
    %30 = sbr.rel (0) target = $region25
  $region24: #{resunet_forward.17} parent=0 // pred_region
    _
  $region25: #{resunet_forward.17} parent=0 // pred_fallthru
    _
  // Predicated region
  $region26: #{resunet_forward.17} parent=0 // pred_check
    _
  $region27: #{resunet_forward.17} parent=0 // pred_check_branch
    %32 = sbr.rel (0) target = $region29
  $region28: #{resunet_forward.17} parent=0 // pred_region
    _
  $region29: #{resunet_forward.17} parent=0 // pred_fallthru
    _
  // Predicated region
  $region30: #{resunet_forward.17} parent=0 // pred_check
    _
  $region31: #{resunet_forward.17} parent=0 // pred_check_branch
    %34 = sbr.rel (0) target = $region33
  $region32: #{resunet_forward.17} parent=0 // pred_region
    _
  $region33: #{resunet_forward.17} parent=0 // pred_fallthru
    _
  // Predicated region
  $region34: #{resunet_forward.17} parent=0 // pred_check
    _
  $region35: #{resunet_forward.17} parent=0 // pred_check_branch
    %36 = sbr.rel (0) target = $region37
  $region36: #{resunet_forward.17} parent=0 // pred_region
    _
  $region37: #{resunet_forward.17} parent=0 // pred_fallthru
    _
  // Predicated region
  $region38: #{resunet_forward.17} parent=0 // pred_check
    _
  $region39: #{resunet_forward.17} parent=0 // pred_check_branch
    %38 = sbr.rel (0) target = $region41
  $region40: #{resunet_forward.17} parent=0 // pred_region
    _
  $region41: #{resunet_forward.17} parent=0 // pred_fallthru
    _
  // Predicated region
  $region42: #{resunet_forward.17} parent=0 // pred_check
    _
  $region43: #{resunet_forward.17} parent=0 // pred_check_branch
    %40 = sbr.rel (0) target = $region45
  $region44: #{resunet_forward.17} parent=0 // pred_region
    _
  $region45: #{resunet_forward.17} parent=0 // pred_fallthru
    _
  // Predicated region
  $region46: #{resunet_forward.17} parent=0 // pred_check
    _
  $region47: #{resunet_forward.17} parent=0 // pred_check_branch
    %42 = sbr.rel (0) target = $region49
  $region48: #{resunet_forward.17} parent=0 // pred_region
    _
  $region49: #{resunet_forward.17} parent=0 // pred_fallthru
    _
  // Predicated region
  $region50: #{resunet_forward.17} parent=0 // pred_check
    _
  $region51: #{resunet_forward.17} parent=0 // pred_check_branch
    %44 = sbr.rel (0) target = $region53
  $region52: #{resunet_forward.17} parent=0 // pred_region
    _
  $region53: #{resunet_forward.17} parent=0 // pred_fallthru
    _
  // Predicated region
  $region54: #{resunet_forward.17} parent=0 // pred_check
    _
  $region55: #{resunet_forward.17} parent=0 // pred_check_branch
    %46 = sbr.rel (0) target = $region57
  $region56: #{resunet_forward.17} parent=0 // pred_region
    _
  $region57: #{resunet_forward.17} parent=0 // pred_fallthru
    _
  %v48 = vld [vmem:[%s3] sm:$0x3f]
  %49 = vst [vmem:[#allocation2] sm:$0xff] 0.0
  %50 = vst [vmem:[#allocation2 + $0x8] sm:$0xff] 0.0
  %51 = vst [vmem:[#allocation2 + $0x10] sm:$0xff] 0.0
  %52 = vst [vmem:[#allocation2 + $0x18] sm:$0xff] 0.0
  %53 = vst [vmem:[#allocation2 + $0x20] sm:$0xff] 0.0
  %54 = vst [vmem:[#allocation2 + $0x28] sm:$0xff] 0.0
  %55 = vst [vmem:[#allocation2 + $0x30] sm:$0xff] 0.0
  %56 = vst [vmem:[#allocation2 + $0x38] sm:$0xff] 0.0
  %v57 = vld [vmem:[%s0] sm:$0xff]
  %v58 = vld [vmem:[%s0 + $0x8] sm:$0xff]
  %v59 = vpack.c.bf16 %v57, %v57
  %v60 = vpack.c.bf16 %v58, %v58
  %v61 = vld [vmem:[%s1] sm:$0xff]
  %v62 = vld [vmem:[%s1 + $0x8] sm:$0xff]
  %v63 = vld [vmem:[%s1 + $0x10] sm:$0xff]
  %v64 = vld [vmem:[%s1 + $0x18] sm:$0xff]
  %v65 = vld [vmem:[%s1 + $0x20] sm:$0xff]
  %v66 = vld [vmem:[%s1 + $0x28] sm:$0xff]
  %v67 = vld [vmem:[%s1 + $0x30] sm:$0xff]
  %v68 = vld [vmem:[%s1 + $0x38] sm:$0xff]
  %v69 = vld [vmem:[%s1 + $0x40] sm:$0xff]
  %v70 = vld [vmem:[%s1 + $0x48] sm:$0xff]
  %v71 = vld [vmem:[%s1 + $0x50] sm:$0xff]
  %v72 = vld [vmem:[%s1 + $0x58] sm:$0xff]
  %v73 = vld [vmem:[%s1 + $0x60] sm:$0xff]
  %v74 = vld [vmem:[%s1 + $0x68] sm:$0xff]
  %v75 = vld [vmem:[%s1 + $0x70] sm:$0xff]
  %v76 = vld [vmem:[%s1 + $0x78] sm:$0xff]
  %v77 = vld [vmem:[%s1 + $0x80] sm:$0xff]
  %v78 = vld [vmem:[%s1 + $0x88] sm:$0xff]
  %v79 = vld [vmem:[%s1 + $0x90] sm:$0xff]
  %v80 = vld [vmem:[%s1 + $0x98] sm:$0xff]
  %v81 = vld [vmem:[%s1 + $0xa0] sm:$0xff]
  %v82 = vld [vmem:[%s1 + $0xa8] sm:$0xff]
  %v83 = vld [vmem:[%s1 + $0xb0] sm:$0xff]
  %v84 = vld [vmem:[%s1 + $0xb8] sm:$0xff]
  %v85 = vld [vmem:[%s1 + $0xc0] sm:$0xff]
  %v86 = vld [vmem:[%s1 + $0xc8] sm:$0xff]
  %v87 = vld [vmem:[%s1 + $0xd0] sm:$0xff]
  %v88 = vld [vmem:[%s1 + $0xd8] sm:$0xff]
  %v89 = vld [vmem:[%s1 + $0xe0] sm:$0xff]
  %v90 = vld [vmem:[%s1 + $0xe8] sm:$0xff]
  %v91 = vld [vmem:[%s1 + $0xf0] sm:$0xff]
  %v92 = vld [vmem:[%s1 + $0xf8] sm:$0xff]
  %v93 = vld [vmem:[%s1 + $0x100] sm:$0xff]
  %v94 = vld [vmem:[%s1 + $0x108] sm:$0xff]
  %v95 = vld [vmem:[%s1 + $0x110] sm:$0xff]
  %v96 = vld [vmem:[%s1 + $0x118] sm:$0xff]
  %v97 = vld [vmem:[%s1 + $0x120] sm:$0xff]
  %v98 = vld [vmem:[%s1 + $0x128] sm:$0xff]
  %v99 = vld [vmem:[%s1 + $0x130] sm:$0xff]
  %v100 = vld [vmem:[%s1 + $0x138] sm:$0xff]
  %v101 = vld [vmem:[%s1 + $0x140] sm:$0xff]
  %v102 = vld [vmem:[%s1 + $0x148] sm:$0xff]
  %v103 = vld [vmem:[%s1 + $0x150] sm:$0xff]
  %v104 = vld [vmem:[%s1 + $0x158] sm:$0xff]
  %v105 = vld [vmem:[%s1 + $0x160] sm:$0xff]
  %v106 = vld [vmem:[%s1 + $0x168] sm:$0xff]
  %v107 = vld [vmem:[%s1 + $0x170] sm:$0xff]
  %v108 = vld [vmem:[%s1 + $0x178] sm:$0xff]
  %v109 = vld [vmem:[%s1 + $0x180] sm:$0xff]
  %v110 = vld [vmem:[%s1 + $0x188] sm:$0xff]
  %v111 = vld [vmem:[%s1 + $0x190] sm:$0xff]
  %v112 = vld [vmem:[%s1 + $0x198] sm:$0xff]
  %v113 = vld [vmem:[%s1 + $0x1a0] sm:$0xff]
  %v114 = vld [vmem:[%s1 + $0x1a8] sm:$0xff]
  %v115 = vld [vmem:[%s1 + $0x1b0] sm:$0xff]
  %v116 = vld [vmem:[%s1 + $0x1b8] sm:$0xff]
  %v117 = vld [vmem:[%s1 + $0x1c0] sm:$0xff]
  %v118 = vld [vmem:[%s1 + $0x1c8] sm:$0xff]
  %v119 = vld [vmem:[%s1 + $0x1d0] sm:$0xff]
  %v120 = vld [vmem:[%s1 + $0x1d8] sm:$0xff]
  %v121 = vld [vmem:[%s1 + $0x1e0] sm:$0xff]
  %v122 = vld [vmem:[%s1 + $0x1e8] sm:$0xff]
  %v123 = vld [vmem:[%s1 + $0x1f0] sm:$0xff]
  %v124 = vld [vmem:[%s1 + $0x1f8] sm:$0xff]
  %v125 = vld [vmem:[%s1 + $0x200] sm:$0xff]
  %v126 = vld [vmem:[%s1 + $0x208] sm:$0xff]
  %v127 = vld [vmem:[%s1 + $0x210] sm:$0xff]
  %v128 = vld [vmem:[%s1 + $0x218] sm:$0xff]
  %v129 = vld [vmem:[%s1 + $0x220] sm:$0xff]
  %v130 = vld [vmem:[%s1 + $0x228] sm:$0xff]
  %v131 = vld [vmem:[%s1 + $0x230] sm:$0xff]
  %v132 = vld [vmem:[%s1 + $0x238] sm:$0xff]
  %v133 = vld [vmem:[%s1 + $0x240] sm:$0xff]
  %v134 = vld [vmem:[%s1 + $0x248] sm:$0xff]
  %v135 = vld [vmem:[%s1 + $0x250] sm:$0xff]
  %v136 = vld [vmem:[%s1 + $0x258] sm:$0xff]
  %v137 = vld [vmem:[%s1 + $0x260] sm:$0xff]
  %v138 = vld [vmem:[%s1 + $0x268] sm:$0xff]
  %v139 = vld [vmem:[%s1 + $0x270] sm:$0xff]
  %v140 = vld [vmem:[%s1 + $0x278] sm:$0xff]
  %v141 = vld [vmem:[%s1 + $0x280] sm:$0xff]
  %v142 = vld [vmem:[%s1 + $0x288] sm:$0xff]
  %v143 = vld [vmem:[%s1 + $0x290] sm:$0xff]
  %v144 = vld [vmem:[%s1 + $0x298] sm:$0xff]
  %v145 = vld [vmem:[%s1 + $0x2a0] sm:$0xff]
  %v146 = vld [vmem:[%s1 + $0x2a8] sm:$0xff]
  %v147 = vld [vmem:[%s1 + $0x2b0] sm:$0xff]
  %v148 = vld [vmem:[%s1 + $0x2b8] sm:$0xff]
  %v149 = vld [vmem:[%s1 + $0x2c0] sm:$0xff]
  %v150 = vld [vmem:[%s1 + $0x2c8] sm:$0xff]
  %v151 = vld [vmem:[%s1 + $0x2d0] sm:$0xff]
  %v152 = vld [vmem:[%s1 + $0x2d8] sm:$0xff]
  %v153 = vld [vmem:[%s1 + $0x2e0] sm:$0xff]
  %v154 = vld [vmem:[%s1 + $0x2e8] sm:$0xff]
  %v155 = vld [vmem:[%s1 + $0x2f0] sm:$0xff]
  %v156 = vld [vmem:[%s1 + $0x2f8] sm:$0xff]
  %v253 = vunpack.c.l.b16 %v61
  %v254 = vunpack.c.h.b16 %v61
  %v255 = vunpack.c.l.b16 %v62
  %v256 = vunpack.c.h.b16 %v62
  %v257 = vunpack.c.l.b16 %v63
  %v258 = vunpack.c.h.b16 %v63
  %v259 = vunpack.c.l.b16 %v64
  %v260 = vunpack.c.h.b16 %v64
  %v261 = vunpack.c.l.b16 %v65
  %v262 = vunpack.c.h.b16 %v65
  %v263 = vunpack.c.l.b16 %v66
  %v264 = vunpack.c.h.b16 %v66
  %v265 = vunpack.c.l.b16 %v67
  %v266 = vunpack.c.h.b16 %v67
  %v267 = vunpack.c.l.b16 %v68
  %v268 = vunpack.c.h.b16 %v68
  %v269 = vunpack.c.l.b16 %v69
  %v270 = vunpack.c.h.b16 %v69
  %v271 = vunpack.c.l.b16 %v70
  %v272 = vunpack.c.h.b16 %v70
  %v273 = vunpack.c.l.b16 %v71
  %v274 = vunpack.c.h.b16 %v71
  %v275 = vunpack.c.l.b16 %v72
  %v276 = vunpack.c.h.b16 %v72
  %v277 = vunpack.c.l.b16 %v73
  %v278 = vunpack.c.h.b16 %v73
  %v279 = vunpack.c.l.b16 %v74
  %v280 = vunpack.c.h.b16 %v74
  %v281 = vunpack.c.l.b16 %v75
  %v282 = vunpack.c.h.b16 %v75
  %v283 = vunpack.c.l.b16 %v76
  %v284 = vunpack.c.h.b16 %v76
  %v285 = vunpack.c.l.b16 %v77
  %v286 = vunpack.c.h.b16 %v77
  %v287 = vunpack.c.l.b16 %v78
  %v288 = vunpack.c.h.b16 %v78
  %v289 = vunpack.c.l.b16 %v79
  %v290 = vunpack.c.h.b16 %v79
  %v291 = vunpack.c.l.b16 %v80
  %v292 = vunpack.c.h.b16 %v80
  %v293 = vunpack.c.l.b16 %v81
  %v294 = vunpack.c.h.b16 %v81
  %v295 = vunpack.c.l.b16 %v82
  %v296 = vunpack.c.h.b16 %v82
  %v297 = vunpack.c.l.b16 %v83
  %v298 = vunpack.c.h.b16 %v83
  %v299 = vunpack.c.l.b16 %v84
  %v300 = vunpack.c.h.b16 %v84
  %v301 = vunpack.c.l.b16 %v85
  %v302 = vunpack.c.h.b16 %v85
  %v303 = vunpack.c.l.b16 %v86
  %v304 = vunpack.c.h.b16 %v86
  %v305 = vunpack.c.l.b16 %v87
  %v306 = vunpack.c.h.b16 %v87
  %v307 = vunpack.c.l.b16 %v88
  %v308 = vunpack.c.h.b16 %v88
  %v309 = vunpack.c.l.b16 %v89
  %v310 = vunpack.c.h.b16 %v89
  %v311 = vunpack.c.l.b16 %v90
  %v312 = vunpack.c.h.b16 %v90
  %v313 = vunpack.c.l.b16 %v91
  %v314 = vunpack.c.h.b16 %v91
  %v315 = vunpack.c.l.b16 %v92
  %v316 = vunpack.c.h.b16 %v92
  %v317 = vunpack.c.l.b16 %v93
  %v318 = vunpack.c.h.b16 %v93
  %v319 = vunpack.c.l.b16 %v94
  %v320 = vunpack.c.h.b16 %v94
  %v321 = vunpack.c.l.b16 %v95
  %v322 = vunpack.c.h.b16 %v95
  %v323 = vunpack.c.l.b16 %v96
  %v324 = vunpack.c.h.b16 %v96
  %v325 = vunpack.c.l.b16 %v97
  %v326 = vunpack.c.h.b16 %v97
  %v327 = vunpack.c.l.b16 %v98
  %v328 = vunpack.c.h.b16 %v98
  %v329 = vunpack.c.l.b16 %v99
  %v330 = vunpack.c.h.b16 %v99
  %v331 = vunpack.c.l.b16 %v100
  %v332 = vunpack.c.h.b16 %v100
  %v333 = vunpack.c.l.b16 %v101
  %v334 = vunpack.c.h.b16 %v101
  %v335 = vunpack.c.l.b16 %v102
  %v336 = vunpack.c.h.b16 %v102
  %v337 = vunpack.c.l.b16 %v103
  %v338 = vunpack.c.h.b16 %v103
  %v339 = vunpack.c.l.b16 %v104
  %v340 = vunpack.c.h.b16 %v104
  %v341 = vunpack.c.l.b16 %v105
  %v342 = vunpack.c.h.b16 %v105
  %v343 = vunpack.c.l.b16 %v106
  %v344 = vunpack.c.h.b16 %v106
  %v345 = vunpack.c.l.b16 %v107
  %v346 = vunpack.c.h.b16 %v107
  %v347 = vunpack.c.l.b16 %v108
  %v348 = vunpack.c.h.b16 %v108
  %v349 = vunpack.c.l.b16 %v109
  %v350 = vunpack.c.h.b16 %v109
  %v351 = vunpack.c.l.b16 %v110
  %v352 = vunpack.c.h.b16 %v110
  %v353 = vunpack.c.l.b16 %v111
  %v354 = vunpack.c.h.b16 %v111
  %v355 = vunpack.c.l.b16 %v112
  %v356 = vunpack.c.h.b16 %v112
  %v357 = vunpack.c.l.b16 %v113
  %v358 = vunpack.c.h.b16 %v113
  %v359 = vunpack.c.l.b16 %v114
  %v360 = vunpack.c.h.b16 %v114
  %v361 = vunpack.c.l.b16 %v115
  %v362 = vunpack.c.h.b16 %v115
  %v363 = vunpack.c.l.b16 %v116
  %v364 = vunpack.c.h.b16 %v116
  %v365 = vunpack.c.l.b16 %v117
  %v366 = vunpack.c.h.b16 %v117
  %v367 = vunpack.c.l.b16 %v118
  %v368 = vunpack.c.h.b16 %v118
  %v369 = vunpack.c.l.b16 %v119
  %v370 = vunpack.c.h.b16 %v119
  %v371 = vunpack.c.l.b16 %v120
  %v372 = vunpack.c.h.b16 %v120
  %v373 = vunpack.c.l.b16 %v121
  %v374 = vunpack.c.h.b16 %v121
  %v375 = vunpack.c.l.b16 %v122
  %v376 = vunpack.c.h.b16 %v122
  %v377 = vunpack.c.l.b16 %v123
  %v378 = vunpack.c.h.b16 %v123
  %v379 = vunpack.c.l.b16 %v124
  %v380 = vunpack.c.h.b16 %v124
  %v381 = vunpack.c.l.b16 %v125
  %v382 = vunpack.c.h.b16 %v125
  %v383 = vunpack.c.l.b16 %v126
  %v384 = vunpack.c.h.b16 %v126
  %v385 = vunpack.c.l.b16 %v127
  %v386 = vunpack.c.h.b16 %v127
  %v387 = vunpack.c.l.b16 %v128
  %v388 = vunpack.c.h.b16 %v128
  %v389 = vunpack.c.l.b16 %v129
  %v390 = vunpack.c.h.b16 %v129
  %v391 = vunpack.c.l.b16 %v130
  %v392 = vunpack.c.h.b16 %v130
  %v393 = vunpack.c.l.b16 %v131
  %v394 = vunpack.c.h.b16 %v131
  %v395 = vunpack.c.l.b16 %v132
  %v396 = vunpack.c.h.b16 %v132
  %v397 = vunpack.c.l.b16 %v133
  %v398 = vunpack.c.h.b16 %v133
  %v399 = vunpack.c.l.b16 %v134
  %v400 = vunpack.c.h.b16 %v134
  %v401 = vunpack.c.l.b16 %v135
  %v402 = vunpack.c.h.b16 %v135
  %v403 = vunpack.c.l.b16 %v136
  %v404 = vunpack.c.h.b16 %v136
  %v405 = vunpack.c.l.b16 %v137
  %v406 = vunpack.c.h.b16 %v137
  %v407 = vunpack.c.l.b16 %v138
  %v408 = vunpack.c.h.b16 %v138
  %v409 = vunpack.c.l.b16 %v139
  %v410 = vunpack.c.h.b16 %v139
  %v411 = vunpack.c.l.b16 %v140
  %v412 = vunpack.c.h.b16 %v140
  %v413 = vunpack.c.l.b16 %v141
  %v414 = vunpack.c.h.b16 %v141
  %v415 = vunpack.c.l.b16 %v142
  %v416 = vunpack.c.h.b16 %v142
  %v417 = vunpack.c.l.b16 %v143
  %v418 = vunpack.c.h.b16 %v143
  %v419 = vunpack.c.l.b16 %v144
  %v420 = vunpack.c.h.b16 %v144
  %v421 = vunpack.c.l.b16 %v145
  %v422 = vunpack.c.h.b16 %v145
  %v423 = vunpack.c.l.b16 %v146
  %v424 = vunpack.c.h.b16 %v146
  %v425 = vunpack.c.l.b16 %v147
  %v426 = vunpack.c.h.b16 %v147
  %v427 = vunpack.c.l.b16 %v148
  %v428 = vunpack.c.h.b16 %v148
  %v429 = vunpack.c.l.b16 %v149
  %v430 = vunpack.c.h.b16 %v149
  %v431 = vunpack.c.l.b16 %v150
  %v432 = vunpack.c.h.b16 %v150
  %v433 = vunpack.c.l.b16 %v151
  %v434 = vunpack.c.h.b16 %v151
  %v435 = vunpack.c.l.b16 %v152
  %v436 = vunpack.c.h.b16 %v152
  %v437 = vunpack.c.l.b16 %v153
  %v438 = vunpack.c.h.b16 %v153
  %v439 = vunpack.c.l.b16 %v154
  %v440 = vunpack.c.h.b16 %v154
  %v441 = vunpack.c.l.b16 %v155
  %v442 = vunpack.c.h.b16 %v155
  %v443 = vunpack.c.l.b16 %v156
  %v444 = vunpack.c.h.b16 %v156
  %v445 = vpack.c.b16 %v259, %v253
  %v446 = vpack.c.b16 %v260, %v254
  %v447 = vpack.c.b16 %v261, %v255
  %v448 = vpack.c.b16 %v262, %v256
  %v449 = vpack.c.b16 %v263, %v257
  %v450 = vpack.c.b16 %v264, %v258
  %v451 = vpack.c.b16 %v271, %v265
  %v452 = vpack.c.b16 %v272, %v266
  %v453 = vpack.c.b16 %v273, %v267
  %v454 = vpack.c.b16 %v274, %v268
  %v455 = vpack.c.b16 %v275, %v269
  %v456 = vpack.c.b16 %v276, %v270
  %v457 = vpack.c.b16 %v283, %v277
  %v458 = vpack.c.b16 %v284, %v278
  %v459 = vpack.c.b16 %v285, %v279
  %v460 = vpack.c.b16 %v286, %v280
  %v461 = vpack.c.b16 %v287, %v281
  %v462 = vpack.c.b16 %v288, %v282
  %v463 = vpack.c.b16 %v295, %v289
  %v464 = vpack.c.b16 %v296, %v290
  %v465 = vpack.c.b16 %v297, %v291
  %v466 = vpack.c.b16 %v298, %v292
  %v467 = vpack.c.b16 %v299, %v293
  %v468 = vpack.c.b16 %v300, %v294
  %v469 = vpack.c.b16 %v307, %v301
  %v470 = vpack.c.b16 %v308, %v302
  %v471 = vpack.c.b16 %v309, %v303
  %v472 = vpack.c.b16 %v310, %v304
  %v473 = vpack.c.b16 %v311, %v305
  %v474 = vpack.c.b16 %v312, %v306
  %v475 = vpack.c.b16 %v319, %v313
  %v476 = vpack.c.b16 %v320, %v314
  %v477 = vpack.c.b16 %v321, %v315
  %v478 = vpack.c.b16 %v322, %v316
  %v479 = vpack.c.b16 %v323, %v317
  %v480 = vpack.c.b16 %v324, %v318
  %v481 = vpack.c.b16 %v331, %v325
  %v482 = vpack.c.b16 %v332, %v326
  %v483 = vpack.c.b16 %v333, %v327
  %v484 = vpack.c.b16 %v334, %v328
  %v485 = vpack.c.b16 %v335, %v329
  %v486 = vpack.c.b16 %v336, %v330
  %v487 = vpack.c.b16 %v343, %v337
  %v488 = vpack.c.b16 %v344, %v338
  %v489 = vpack.c.b16 %v345, %v339
  %v490 = vpack.c.b16 %v346, %v340
  %v491 = vpack.c.b16 %v347, %v341
  %v492 = vpack.c.b16 %v348, %v342
  %v493 = vpack.c.b16 %v355, %v349
  %v494 = vpack.c.b16 %v356, %v350
  %v495 = vpack.c.b16 %v357, %v351
  %v496 = vpack.c.b16 %v358, %v352
  %v497 = vpack.c.b16 %v359, %v353
  %v498 = vpack.c.b16 %v360, %v354
  %v499 = vpack.c.b16 %v367, %v361
  %v500 = vpack.c.b16 %v368, %v362
  %v501 = vpack.c.b16 %v369, %v363
  %v502 = vpack.c.b16 %v370, %v364
  %v503 = vpack.c.b16 %v371, %v365
  %v504 = vpack.c.b16 %v372, %v366
  %v505 = vpack.c.b16 %v379, %v373
  %v506 = vpack.c.b16 %v380, %v374
  %v507 = vpack.c.b16 %v381, %v375
  %v508 = vpack.c.b16 %v382, %v376
  %v509 = vpack.c.b16 %v383, %v377
  %v510 = vpack.c.b16 %v384, %v378
  %v511 = vpack.c.b16 %v391, %v385
  %v512 = vpack.c.b16 %v392, %v386
  %v513 = vpack.c.b16 %v393, %v387
  %v514 = vpack.c.b16 %v394, %v388
  %v515 = vpack.c.b16 %v395, %v389
  %v516 = vpack.c.b16 %v396, %v390
  %v517 = vpack.c.b16 %v403, %v397
  %v518 = vpack.c.b16 %v404, %v398
  %v519 = vpack.c.b16 %v405, %v399
  %v520 = vpack.c.b16 %v406, %v400
  %v521 = vpack.c.b16 %v407, %v401
  %v522 = vpack.c.b16 %v408, %v402
  %v523 = vpack.c.b16 %v415, %v409
  %v524 = vpack.c.b16 %v416, %v410
  %v525 = vpack.c.b16 %v417, %v411
  %v526 = vpack.c.b16 %v418, %v412
  %v527 = vpack.c.b16 %v419, %v413
  %v528 = vpack.c.b16 %v420, %v414
  %v529 = vpack.c.b16 %v427, %v421
  %v530 = vpack.c.b16 %v428, %v422
  %v531 = vpack.c.b16 %v429, %v423
  %v532 = vpack.c.b16 %v430, %v424
  %v533 = vpack.c.b16 %v431, %v425
  %v534 = vpack.c.b16 %v432, %v426
  %v535 = vpack.c.b16 %v439, %v433
  %v536 = vpack.c.b16 %v440, %v434
  %v537 = vpack.c.b16 %v441, %v435
  %v538 = vpack.c.b16 %v442, %v436
  %v539 = vpack.c.b16 %v443, %v437
  %v540 = vpack.c.b16 %v444, %v438
  %637 = vmatprep.subr.bf16.mxu0 %v446
  %638 = vmatpush1.bf16.msra.mxu0 %v445
  %639 = vmatprep.subr.bf16.mxu0 %v452
  %640 = vmatpush1.bf16.msra.mxu0 %v451
  %641 = vmatprep.subr.bf16.mxu0 %v458
  %642 = vmatpush1.bf16.msra.mxu0 %v457
  %643 = vmatprep.subr.bf16.mxu0 %v464
  %644 = vmatpush1.bf16.msra.mxu0 %v463
  %645 = vmatprep.subr.bf16.mxu0 %v470
  %646 = vmatpush1.bf16.msra.mxu0 %v469
  %647 = vmatprep.subr.bf16.mxu0 %v476
  %648 = vmatpush1.bf16.msra.mxu0 %v475
  %649 = vmatprep.subr.bf16.mxu0 %v482
  %650 = vmatpush1.bf16.msra.mxu0 %v481
  %651 = vmatprep.subr.bf16.mxu0 %v488
  %652 = vmatpush1.bf16.msra.mxu0 %v487
  %653 = vmatprep.subr.bf16.mxu0 %v494
  %654 = vmatpush1.bf16.msra.mxu0 %v493
  %655 = vmatprep.subr.bf16.mxu0 %v500
  %656 = vmatpush1.bf16.msra.mxu0 %v499
  %657 = vmatprep.subr.bf16.mxu0 %v506
  %658 = vmatpush1.bf16.msra.mxu0 %v505
  %659 = vmatprep.subr.bf16.mxu0 %v512
  %660 = vmatpush1.bf16.msra.mxu0 %v511
  %661 = vmatprep.subr.bf16.mxu0 %v518
  %662 = vmatpush1.bf16.msra.mxu0 %v517
  %663 = vmatprep.subr.bf16.mxu0 %v524
  %664 = vmatpush1.bf16.msra.mxu0 %v523
  %665 = vmatprep.subr.bf16.mxu0 %v530
  %666 = vmatpush1.bf16.msra.mxu0 %v529
  %667 = vmatprep.subr.bf16.mxu0 %v536
  %668 = vmatpush1.bf16.msra.mxu0 %v535
  %669 = vmatprep.mubr.bf16.mxu0 %v60
  %670 = vmatmul.mubr.bf16.gmra.mrb[0].mxu0 %v59
  %v671 = vpop.f32.mrb[0].mxu0
  %v672 = vadd.f32 0.0, %v671
  %v673 = vpop.f32.mrb[0].mxu0
  %v674 = vadd.f32 0.0, %v673
  %v675 = vpop.f32.mrb[0].mxu0
  %v676 = vpop.f32.mrb[0].mxu0
  %677 = vdwg.mxu0
  %678 = vmatprep.subr.bf16.mxu0 %v448
  %679 = vmatpush1.bf16.msra.mxu0 %v447
  %680 = vmatprep.subr.bf16.mxu0 %v454
  %681 = vmatpush1.bf16.msra.mxu0 %v453
  %682 = vmatprep.subr.bf16.mxu0 %v460
  %683 = vmatpush1.bf16.msra.mxu0 %v459
  %684 = vmatprep.subr.bf16.mxu0 %v466
  %685 = vmatpush1.bf16.msra.mxu0 %v465
  %686 = vmatprep.subr.bf16.mxu0 %v472
  %687 = vmatpush1.bf16.msra.mxu0 %v471
  %688 = vmatprep.subr.bf16.mxu0 %v478
  %689 = vmatpush1.bf16.msra.mxu0 %v477
  %690 = vmatprep.subr.bf16.mxu0 %v484
  %691 = vmatpush1.bf16.msra.mxu0 %v483
  %692 = vmatprep.subr.bf16.mxu0 %v490
  %693 = vmatpush1.bf16.msra.mxu0 %v489
  %694 = vmatprep.subr.bf16.mxu0 %v496
  %695 = vmatpush1.bf16.msra.mxu0 %v495
  %696 = vmatprep.subr.bf16.mxu0 %v502
  %697 = vmatpush1.bf16.msra.mxu0 %v501
  %698 = vmatprep.subr.bf16.mxu0 %v508
  %699 = vmatpush1.bf16.msra.mxu0 %v507
  %700 = vmatprep.subr.bf16.mxu0 %v514
  %701 = vmatpush1.bf16.msra.mxu0 %v513
  %702 = vmatprep.subr.bf16.mxu0 %v520
  %703 = vmatpush1.bf16.msra.mxu0 %v519
  %704 = vmatprep.subr.bf16.mxu0 %v526
  %705 = vmatpush1.bf16.msra.mxu0 %v525
  %706 = vmatprep.subr.bf16.mxu0 %v532
  %707 = vmatpush1.bf16.msra.mxu0 %v531
  %708 = vmatprep.subr.bf16.mxu0 %v538
  %709 = vmatpush1.bf16.msra.mxu0 %v537
  %710 = vmatprep.mubr.bf16.mxu0 %v60
  %711 = vmatmul.mubr.bf16.gmra.mrb[0].mxu0 %v59
  %v712 = vpop.f32.mrb[0].mxu0
  %v713 = vadd.f32 0.0, %v712
  %v714 = vpop.f32.mrb[0].mxu0
  %v715 = vadd.f32 0.0, %v714
  %v716 = vpop.f32.mrb[0].mxu0
  %v717 = vpop.f32.mrb[0].mxu0
  %718 = vdwg.mxu0
  %719 = vmatprep.subr.bf16.mxu0 %v450
  %720 = vmatpush1.bf16.msra.mxu0 %v449
  %721 = vmatprep.subr.bf16.mxu0 %v456
  %722 = vmatpush1.bf16.msra.mxu0 %v455
  %723 = vmatprep.subr.bf16.mxu0 %v462
  %724 = vmatpush1.bf16.msra.mxu0 %v461
  %725 = vmatprep.subr.bf16.mxu0 %v468
  %726 = vmatpush1.bf16.msra.mxu0 %v467
  %727 = vmatprep.subr.bf16.mxu0 %v474
  %728 = vmatpush1.bf16.msra.mxu0 %v473
  %729 = vmatprep.subr.bf16.mxu0 %v480
  %730 = vmatpush1.bf16.msra.mxu0 %v479
  %731 = vmatprep.subr.bf16.mxu0 %v486
  %732 = vmatpush1.bf16.msra.mxu0 %v485
  %733 = vmatprep.subr.bf16.mxu0 %v492
  %734 = vmatpush1.bf16.msra.mxu0 %v491
  %735 = vmatprep.subr.bf16.mxu0 %v498
  %736 = vmatpush1.bf16.msra.mxu0 %v497
  %737 = vmatprep.subr.bf16.mxu0 %v504
  %738 = vmatpush1.bf16.msra.mxu0 %v503
  %739 = vmatprep.subr.bf16.mxu0 %v510
  %740 = vmatpush1.bf16.msra.mxu0 %v509
  %741 = vmatprep.subr.bf16.mxu0 %v516
  %742 = vmatpush1.bf16.msra.mxu0 %v515
  %743 = vmatprep.subr.bf16.mxu0 %v522
  %744 = vmatpush1.bf16.msra.mxu0 %v521
  %745 = vmatprep.subr.bf16.mxu0 %v528
  %746 = vmatpush1.bf16.msra.mxu0 %v527
  %747 = vmatprep.subr.bf16.mxu0 %v534
  %748 = vmatpush1.bf16.msra.mxu0 %v533
  %749 = vmatprep.subr.bf16.mxu0 %v540
  %750 = vmatpush1.bf16.msra.mxu0 %v539
  %751 = vmatprep.mubr.bf16.mxu0 %v60
  %752 = vmatmul.mubr.bf16.gmra.mrb[0].mxu0 %v59
  %v753 = vpop.f32.mrb[0].mxu0
  %v754 = vadd.f32 0.0, %v753
  %v755 = vpop.f32.mrb[0].mxu0
  %v756 = vadd.f32 0.0, %v755
  %v757 = vpop.f32.mrb[0].mxu0
  %v758 = vpop.f32.mrb[0].mxu0
  %759 = vdwg.mxu0
  %v760 = vmax.f32 %v672, 0.0
  %v761 = vmax.f32 %v674, 0.0
  %v762 = vmax.f32 %v713, 0.0
  %v763 = vmax.f32 %v715, 0.0
  %v764 = vmax.f32 %v754, 0.0
  %v765 = vmax.f32 %v756, 0.0
  %v766 = vld [vmem:[%s4] sm:$0xf]
  %767 = vst [vmem:[#allocation2 + $0x8] sm:$0xff] %v760
  %768 = vst [vmem:[#allocation2 + $0x10] sm:$0xff] %v761
  %769 = vst [vmem:[#allocation2 + $0x18] sm:$0xff] %v762
  %770 = vst [vmem:[#allocation2 + $0x20] sm:$0xff] %v763
  %771 = vst [vmem:[#allocation2 + $0x28] sm:$0xff] %v764
  %772 = vst [vmem:[#allocation2 + $0x30] sm:$0xff] %v765
  %v773 = vld [vmem:[#allocation2] sm:$0xff]
  %v774 = vld [vmem:[#allocation2 + $0x8] sm:$0xff]
  %v775 = vld [vmem:[#allocation2 + $0x10] sm:$0xff]
  %v776 = vld [vmem:[#allocation2 + $0x18] sm:$0xff]
  %v777 = vld [vmem:[#allocation2 + $0x20] sm:$0xff]
  %v778 = vld [vmem:[#allocation2 + $0x28] sm:$0xff]
  %v779 = vld [vmem:[#allocation2 + $0x30] sm:$0xff]
  %v780 = vld [vmem:[#allocation2 + $0x8] sm:$0xff]
  %v781 = vld [vmem:[#allocation2 + $0x10] sm:$0xff]
  %v782 = vld [vmem:[#allocation2 + $0x18] sm:$0xff]
  %v783 = vld [vmem:[#allocation2 + $0x20] sm:$0xff]
  %v784 = vld [vmem:[#allocation2 + $0x28] sm:$0xff]
  %v785 = vld [vmem:[#allocation2 + $0x30] sm:$0xff]
  %v786 = vld [vmem:[#allocation2 + $0x38] sm:$0xff]
  %794 = vrot.lane.b32.xlu0 %v773, 127
  %v795 = vpop.permute.xlu0 %794
  %796 = vrot.lane.b32.xlu0 %v774, 127
  %v797 = vpop.permute.xlu0 %796
  %798 = vrot.lane.b32.xlu0 %v775, 127
  %v799 = vpop.permute.xlu0 %798
  %800 = vrot.lane.b32.xlu0 %v776, 127
  %v801 = vpop.permute.xlu0 %800
  %802 = vrot.lane.b32.xlu0 %v777, 127
  %v803 = vpop.permute.xlu0 %802
  %804 = vrot.lane.b32.xlu0 %v778, 127
  %v805 = vpop.permute.xlu0 %804
  %806 = vrot.lane.b32.xlu0 %v779, 127
  %v807 = vpop.permute.xlu0 %806
  %vm808 = vcmask 1039360
  %v809 = vsel %vm808, %v795, %v797
  %v810 = vsel %vm808, %v797, %v799
  %v811 = vsel %vm808, %v799, %v801
  %v812 = vsel %vm808, %v801, %v803
  %v813 = vsel %vm808, %v803, %v805
  %v814 = vsel %vm808, %v805, %v807
  %822 = vrot.lane.b32.xlu0 %v773, 126
  %v823 = vpop.permute.xlu0 %822
  %824 = vrot.lane.b32.xlu0 %v774, 126
  %v825 = vpop.permute.xlu0 %824
  %826 = vrot.lane.b32.xlu0 %v775, 126
  %v827 = vpop.permute.xlu0 %826
  %828 = vrot.lane.b32.xlu0 %v776, 126
  %v829 = vpop.permute.xlu0 %828
  %830 = vrot.lane.b32.xlu0 %v777, 126
  %v831 = vpop.permute.xlu0 %830
  %832 = vrot.lane.b32.xlu0 %v778, 126
  %v833 = vpop.permute.xlu0 %832
  %834 = vrot.lane.b32.xlu0 %v779, 126
  %v835 = vpop.permute.xlu0 %834
  %vm836 = vcmask 1031168
  %v837 = vsel %vm836, %v823, %v825
  %v838 = vsel %vm836, %v825, %v827
  %v839 = vsel %vm836, %v827, %v829
  %v840 = vsel %vm836, %v829, %v831
  %v841 = vsel %vm836, %v831, %v833
  %v842 = vsel %vm836, %v833, %v835
  %850 = vrot.lane.b32.xlu0 %v773, 110
  %v851 = vpop.permute.xlu0 %850
  %852 = vrot.lane.b32.xlu0 %v774, 110
  %v853 = vpop.permute.xlu0 %852
  %854 = vrot.lane.b32.xlu0 %v775, 110
  %v855 = vpop.permute.xlu0 %854
  %856 = vrot.lane.b32.xlu0 %v776, 110
  %v857 = vpop.permute.xlu0 %856
  %858 = vrot.lane.b32.xlu0 %v777, 110
  %v859 = vpop.permute.xlu0 %858
  %860 = vrot.lane.b32.xlu0 %v778, 110
  %v861 = vpop.permute.xlu0 %860
  %862 = vrot.lane.b32.xlu0 %v779, 110
  %v863 = vpop.permute.xlu0 %862
  %vm864 = vcmask 900096
  %v865 = vsel %vm864, %v851, %v853
  %v866 = vsel %vm864, %v853, %v855
  %v867 = vsel %vm864, %v855, %v857
  %v868 = vsel %vm864, %v857, %v859
  %v869 = vsel %vm864, %v859, %v861
  %v870 = vsel %vm864, %v861, %v863
  %878 = vrot.lane.b32.xlu0 %v774, 109
  %v879 = vpop.permute.xlu0 %878
  %880 = vrot.lane.b32.xlu0 %v775, 109
  %v881 = vpop.permute.xlu0 %880
  %882 = vrot.lane.b32.xlu0 %v776, 109
  %v883 = vpop.permute.xlu0 %882
  %884 = vrot.lane.b32.xlu0 %v777, 109
  %v885 = vpop.permute.xlu0 %884
  %886 = vrot.lane.b32.xlu0 %v778, 109
  %v887 = vpop.permute.xlu0 %886
  %888 = vrot.lane.b32.xlu0 %v779, 109
  %v889 = vpop.permute.xlu0 %888
  %vm890 = vcmask 891904
  %v891 = vsel %vm890, %v879, %v881
  %v892 = vsel %vm890, %v881, %v883
  %v893 = vsel %vm890, %v883, %v885
  %v894 = vsel %vm890, %v885, %v887
  %v895 = vsel %vm890, %v887, %v889
  %910 = vrot.lane.b32.xlu0 %v780, 108
  %v911 = vpop.permute.xlu0 %910
  %912 = vrot.lane.b32.xlu0 %v781, 108
  %v913 = vpop.permute.xlu0 %912
  %914 = vrot.lane.b32.xlu0 %v782, 108
  %v915 = vpop.permute.xlu0 %914
  %916 = vrot.lane.b32.xlu0 %v783, 108
  %v917 = vpop.permute.xlu0 %916
  %918 = vrot.lane.b32.xlu0 %v784, 108
  %v919 = vpop.permute.xlu0 %918
  %920 = vrot.lane.b32.xlu0 %v785, 108
  %v921 = vpop.permute.xlu0 %920
  %922 = vrot.lane.b32.xlu0 %v786, 108
  %v923 = vpop.permute.xlu0 %922
  %vm924 = vcmask 883712
  %v925 = vsel %vm924, %v911, %v913
  %v926 = vsel %vm924, %v913, %v915
  %v927 = vsel %vm924, %v915, %v917
  %v928 = vsel %vm924, %v917, %v919
  %v929 = vsel %vm924, %v919, %v921
  %v930 = vsel %vm924, %v921, %v923
  %938 = vrot.lane.b32.xlu0 %v780, 92
  %v939 = vpop.permute.xlu0 %938
  %940 = vrot.lane.b32.xlu0 %v781, 92
  %v941 = vpop.permute.xlu0 %940
  %942 = vrot.lane.b32.xlu0 %v782, 92
  %v943 = vpop.permute.xlu0 %942
  %944 = vrot.lane.b32.xlu0 %v783, 92
  %v945 = vpop.permute.xlu0 %944
  %946 = vrot.lane.b32.xlu0 %v784, 92
  %v947 = vpop.permute.xlu0 %946
  %948 = vrot.lane.b32.xlu0 %v785, 92
  %v949 = vpop.permute.xlu0 %948
  %950 = vrot.lane.b32.xlu0 %v786, 92
  %v951 = vpop.permute.xlu0 %950
  %vm952 = vcmask 752640
  %v953 = vsel %vm952, %v939, %v941
  %v954 = vsel %vm952, %v941, %v943
  %v955 = vsel %vm952, %v943, %v945
  %v956 = vsel %vm952, %v945, %v947
  %v957 = vsel %vm952, %v947, %v949
  %v958 = vsel %vm952, %v949, %v951
  %966 = vrot.lane.b32.xlu0 %v780, 91
  %v967 = vpop.permute.xlu0 %966
  %968 = vrot.lane.b32.xlu0 %v781, 91
  %v969 = vpop.permute.xlu0 %968
  %970 = vrot.lane.b32.xlu0 %v782, 91
  %v971 = vpop.permute.xlu0 %970
  %972 = vrot.lane.b32.xlu0 %v783, 91
  %v973 = vpop.permute.xlu0 %972
  %974 = vrot.lane.b32.xlu0 %v784, 91
  %v975 = vpop.permute.xlu0 %974
  %976 = vrot.lane.b32.xlu0 %v785, 91
  %v977 = vpop.permute.xlu0 %976
  %978 = vrot.lane.b32.xlu0 %v786, 91
  %v979 = vpop.permute.xlu0 %978
  %vm980 = vcmask 744448
  %v981 = vsel %vm980, %v967, %v969
  %v982 = vsel %vm980, %v969, %v971
  %v983 = vsel %vm980, %v971, %v973
  %v984 = vsel %vm980, %v973, %v975
  %v985 = vsel %vm980, %v975, %v977
  %v986 = vsel %vm980, %v977, %v979
  %994 = vrot.lane.b32.xlu0 %v780, 90
  %v995 = vpop.permute.xlu0 %994
  %996 = vrot.lane.b32.xlu0 %v781, 90
  %v997 = vpop.permute.xlu0 %996
  %998 = vrot.lane.b32.xlu0 %v782, 90
  %v999 = vpop.permute.xlu0 %998
  %1000 = vrot.lane.b32.xlu0 %v783, 90
  %v1001 = vpop.permute.xlu0 %1000
  %1002 = vrot.lane.b32.xlu0 %v784, 90
  %v1003 = vpop.permute.xlu0 %1002
  %1004 = vrot.lane.b32.xlu0 %v785, 90
  %v1005 = vpop.permute.xlu0 %1004
  %1006 = vrot.lane.b32.xlu0 %v786, 90
  %v1007 = vpop.permute.xlu0 %1006
  %vm1008 = vcmask 736256
  %v1009 = vsel %vm1008, %v995, %v997
  %v1010 = vsel %vm1008, %v997, %v999
  %v1011 = vsel %vm1008, %v999, %v1001
  %v1012 = vsel %vm1008, %v1001, %v1003
  %v1013 = vsel %vm1008, %v1003, %v1005
  %v1014 = vsel %vm1008, %v1005, %v1007
  %v1022 = vpack.c.bf16 %v809, %v773
  %v1023 = vpack.c.bf16 %v810, %v774
  %v1024 = vpack.c.bf16 %v811, %v775
  %v1025 = vpack.c.bf16 %v812, %v776
  %v1026 = vpack.c.bf16 %v813, %v777
  %v1027 = vpack.c.bf16 %v814, %v778
  %v1028 = vpack.c.bf16 %v807, %v779
  %v1029 = vpack.c.bf16 %v865, %v837
  %v1030 = vpack.c.bf16 %v866, %v838
  %v1031 = vpack.c.bf16 %v867, %v839
  %v1032 = vpack.c.bf16 %v868, %v840
  %v1033 = vpack.c.bf16 %v869, %v841
  %v1034 = vpack.c.bf16 %v870, %v842
  %v1035 = vpack.c.bf16 %v863, %v835
  %v1036 = vpack.c.bf16 %v911, %v879
  %v1037 = vpack.c.bf16 %v925, %v891
  %v1038 = vpack.c.bf16 %v926, %v892
  %v1039 = vpack.c.bf16 %v927, %v893
  %v1040 = vpack.c.bf16 %v928, %v894
  %v1041 = vpack.c.bf16 %v929, %v895
  %v1042 = vpack.c.bf16 %v930, %v889
  %v1043 = vpack.c.bf16 %v967, %v939
  %v1044 = vpack.c.bf16 %v981, %v953
  %v1045 = vpack.c.bf16 %v982, %v954
  %v1046 = vpack.c.bf16 %v983, %v955
  %v1047 = vpack.c.bf16 %v984, %v956
  %v1048 = vpack.c.bf16 %v985, %v957
  %v1049 = vpack.c.bf16 %v986, %v958
  %v1050 = vpack.c.bf16 %v995, %v995
  %v1051 = vpack.c.bf16 %v1009, %v1009
  %v1052 = vpack.c.bf16 %v1010, %v1010
  %v1053 = vpack.c.bf16 %v1011, %v1011
  %v1054 = vpack.c.bf16 %v1012, %v1012
  %v1055 = vpack.c.bf16 %v1013, %v1013
  %v1056 = vpack.c.bf16 %v1014, %v1014
  %v1057 = vld [vmem:[%s2] sm:$0xff]
  %v1058 = vld [vmem:[%s2 + $0x8] sm:$0xff]
  %v1059 = vld [vmem:[%s2 + $0x10] sm:$0xff]
  %v1060 = vld [vmem:[%s2 + $0x18] sm:$0xff]
  %v1061 = vld [vmem:[%s2 + $0x20] sm:$0xff]
  %v1062 = vld [vmem:[%s2 + $0x28] sm:$0xff]
  %v1063 = vld [vmem:[%s5] sm:$0xf]
  %1064 = vst [vmem:[#allocation2 + $0x8] sm:$0xff] %v1057
  %1065 = vst [vmem:[#allocation2 + $0x10] sm:$0xff] %v1058
  %1066 = vst [vmem:[#allocation2 + $0x18] sm:$0xff] %v1059
  %1067 = vst [vmem:[#allocation2 + $0x20] sm:$0xff] %v1060
  %1068 = vst [vmem:[#allocation2 + $0x28] sm:$0xff] %v1061
  %1069 = vst [vmem:[#allocation2 + $0x30] sm:$0xff] %v1062
  %v1070 = vld [vmem:[#allocation2] sm:$0xff]
  %v1071 = vld [vmem:[#allocation2 + $0x8] sm:$0xff]
  %v1072 = vld [vmem:[#allocation2 + $0x10] sm:$0xff]
  %v1073 = vld [vmem:[#allocation2 + $0x18] sm:$0xff]
  %v1074 = vld [vmem:[#allocation2 + $0x20] sm:$0xff]
  %v1075 = vld [vmem:[#allocation2 + $0x28] sm:$0xff]
  %v1076 = vld [vmem:[#allocation2 + $0x30] sm:$0xff]
  %v1077 = vld [vmem:[#allocation2 + $0x8] sm:$0xff]
  %v1078 = vld [vmem:[#allocation2 + $0x10] sm:$0xff]
  %v1079 = vld [vmem:[#allocation2 + $0x18] sm:$0xff]
  %v1080 = vld [vmem:[#allocation2 + $0x20] sm:$0xff]
  %v1081 = vld [vmem:[#allocation2 + $0x28] sm:$0xff]
  %v1082 = vld [vmem:[#allocation2 + $0x30] sm:$0xff]
  %v1083 = vld [vmem:[#allocation2 + $0x38] sm:$0xff]
  %1091 = vrot.lane.b32.xlu0 %v1070, 127
  %v1092 = vpop.permute.xlu0 %1091
  %1093 = vrot.lane.b32.xlu0 %v1071, 127
  %v1094 = vpop.permute.xlu0 %1093
  %1095 = vrot.lane.b32.xlu0 %v1072, 127
  %v1096 = vpop.permute.xlu0 %1095
  %1097 = vrot.lane.b32.xlu0 %v1073, 127
  %v1098 = vpop.permute.xlu0 %1097
  %1099 = vrot.lane.b32.xlu0 %v1074, 127
  %v1100 = vpop.permute.xlu0 %1099
  %1101 = vrot.lane.b32.xlu0 %v1075, 127
  %v1102 = vpop.permute.xlu0 %1101
  %1103 = vrot.lane.b32.xlu0 %v1076, 127
  %v1104 = vpop.permute.xlu0 %1103
  %v1105 = vsel %vm808, %v1092, %v1094
  %v1106 = vsel %vm808, %v1094, %v1096
  %v1107 = vsel %vm808, %v1096, %v1098
  %v1108 = vsel %vm808, %v1098, %v1100
  %v1109 = vsel %vm808, %v1100, %v1102
  %v1110 = vsel %vm808, %v1102, %v1104
  %1118 = vrot.lane.b32.xlu0 %v1070, 126
  %v1119 = vpop.permute.xlu0 %1118
  %1120 = vrot.lane.b32.xlu0 %v1071, 126
  %v1121 = vpop.permute.xlu0 %1120
  %1122 = vrot.lane.b32.xlu0 %v1072, 126
  %v1123 = vpop.permute.xlu0 %1122
  %1124 = vrot.lane.b32.xlu0 %v1073, 126
  %v1125 = vpop.permute.xlu0 %1124
  %1126 = vrot.lane.b32.xlu0 %v1074, 126
  %v1127 = vpop.permute.xlu0 %1126
  %1128 = vrot.lane.b32.xlu0 %v1075, 126
  %v1129 = vpop.permute.xlu0 %1128
  %1130 = vrot.lane.b32.xlu0 %v1076, 126
  %v1131 = vpop.permute.xlu0 %1130
  %v1132 = vsel %vm836, %v1119, %v1121
  %v1133 = vsel %vm836, %v1121, %v1123
  %v1134 = vsel %vm836, %v1123, %v1125
  %v1135 = vsel %vm836, %v1125, %v1127
  %v1136 = vsel %vm836, %v1127, %v1129
  %v1137 = vsel %vm836, %v1129, %v1131
  %1145 = vrot.lane.b32.xlu0 %v1070, 110
  %v1146 = vpop.permute.xlu0 %1145
  %1147 = vrot.lane.b32.xlu0 %v1071, 110
  %v1148 = vpop.permute.xlu0 %1147
  %1149 = vrot.lane.b32.xlu0 %v1072, 110
  %v1150 = vpop.permute.xlu0 %1149
  %1151 = vrot.lane.b32.xlu0 %v1073, 110
  %v1152 = vpop.permute.xlu0 %1151
  %1153 = vrot.lane.b32.xlu0 %v1074, 110
  %v1154 = vpop.permute.xlu0 %1153
  %1155 = vrot.lane.b32.xlu0 %v1075, 110
  %v1156 = vpop.permute.xlu0 %1155
  %1157 = vrot.lane.b32.xlu0 %v1076, 110
  %v1158 = vpop.permute.xlu0 %1157
  %v1159 = vsel %vm864, %v1146, %v1148
  %v1160 = vsel %vm864, %v1148, %v1150
  %v1161 = vsel %vm864, %v1150, %v1152
  %v1162 = vsel %vm864, %v1152, %v1154
  %v1163 = vsel %vm864, %v1154, %v1156
  %v1164 = vsel %vm864, %v1156, %v1158
  %1172 = vrot.lane.b32.xlu0 %v1071, 109
  %v1173 = vpop.permute.xlu0 %1172
  %1174 = vrot.lane.b32.xlu0 %v1072, 109
  %v1175 = vpop.permute.xlu0 %1174
  %1176 = vrot.lane.b32.xlu0 %v1073, 109
  %v1177 = vpop.permute.xlu0 %1176
  %1178 = vrot.lane.b32.xlu0 %v1074, 109
  %v1179 = vpop.permute.xlu0 %1178
  %1180 = vrot.lane.b32.xlu0 %v1075, 109
  %v1181 = vpop.permute.xlu0 %1180
  %1182 = vrot.lane.b32.xlu0 %v1076, 109
  %v1183 = vpop.permute.xlu0 %1182
  %v1184 = vsel %vm890, %v1173, %v1175
  %v1185 = vsel %vm890, %v1175, %v1177
  %v1186 = vsel %vm890, %v1177, %v1179
  %v1187 = vsel %vm890, %v1179, %v1181
  %v1188 = vsel %vm890, %v1181, %v1183
  %1203 = vrot.lane.b32.xlu0 %v1077, 108
  %v1204 = vpop.permute.xlu0 %1203
  %1205 = vrot.lane.b32.xlu0 %v1078, 108
  %v1206 = vpop.permute.xlu0 %1205
  %1207 = vrot.lane.b32.xlu0 %v1079, 108
  %v1208 = vpop.permute.xlu0 %1207
  %1209 = vrot.lane.b32.xlu0 %v1080, 108
  %v1210 = vpop.permute.xlu0 %1209
  %1211 = vrot.lane.b32.xlu0 %v1081, 108
  %v1212 = vpop.permute.xlu0 %1211
  %1213 = vrot.lane.b32.xlu0 %v1082, 108
  %v1214 = vpop.permute.xlu0 %1213
  %1215 = vrot.lane.b32.xlu0 %v1083, 108
  %v1216 = vpop.permute.xlu0 %1215
  %v1217 = vsel %vm924, %v1204, %v1206
  %v1218 = vsel %vm924, %v1206, %v1208
  %v1219 = vsel %vm924, %v1208, %v1210
  %v1220 = vsel %vm924, %v1210, %v1212
  %v1221 = vsel %vm924, %v1212, %v1214
  %v1222 = vsel %vm924, %v1214, %v1216
  %1230 = vrot.lane.b32.xlu0 %v1077, 92
  %v1231 = vpop.permute.xlu0 %1230
  %1232 = vrot.lane.b32.xlu0 %v1078, 92
  %v1233 = vpop.permute.xlu0 %1232
  %1234 = vrot.lane.b32.xlu0 %v1079, 92
  %v1235 = vpop.permute.xlu0 %1234
  %1236 = vrot.lane.b32.xlu0 %v1080, 92
  %v1237 = vpop.permute.xlu0 %1236
  %1238 = vrot.lane.b32.xlu0 %v1081, 92
  %v1239 = vpop.permute.xlu0 %1238
  %1240 = vrot.lane.b32.xlu0 %v1082, 92
  %v1241 = vpop.permute.xlu0 %1240
  %1242 = vrot.lane.b32.xlu0 %v1083, 92
  %v1243 = vpop.permute.xlu0 %1242
  %v1244 = vsel %vm952, %v1231, %v1233
  %v1245 = vsel %vm952, %v1233, %v1235
  %v1246 = vsel %vm952, %v1235, %v1237
  %v1247 = vsel %vm952, %v1237, %v1239
  %v1248 = vsel %vm952, %v1239, %v1241
  %v1249 = vsel %vm952, %v1241, %v1243
  %1257 = vrot.lane.b32.xlu0 %v1077, 91
  %v1258 = vpop.permute.xlu0 %1257
  %1259 = vrot.lane.b32.xlu0 %v1078, 91
  %v1260 = vpop.permute.xlu0 %1259
  %1261 = vrot.lane.b32.xlu0 %v1079, 91
  %v1262 = vpop.permute.xlu0 %1261
  %1263 = vrot.lane.b32.xlu0 %v1080, 91
  %v1264 = vpop.permute.xlu0 %1263
  %1265 = vrot.lane.b32.xlu0 %v1081, 91
  %v1266 = vpop.permute.xlu0 %1265
  %1267 = vrot.lane.b32.xlu0 %v1082, 91
  %v1268 = vpop.permute.xlu0 %1267
  %1269 = vrot.lane.b32.xlu0 %v1083, 91
  %v1270 = vpop.permute.xlu0 %1269
  %v1271 = vsel %vm980, %v1258, %v1260
  %v1272 = vsel %vm980, %v1260, %v1262
  %v1273 = vsel %vm980, %v1262, %v1264
  %v1274 = vsel %vm980, %v1264, %v1266
  %v1275 = vsel %vm980, %v1266, %v1268
  %v1276 = vsel %vm980, %v1268, %v1270
  %1284 = vrot.lane.b32.xlu0 %v1077, 90
  %v1285 = vpop.permute.xlu0 %1284
  %1286 = vrot.lane.b32.xlu0 %v1078, 90
  %v1287 = vpop.permute.xlu0 %1286
  %1288 = vrot.lane.b32.xlu0 %v1079, 90
  %v1289 = vpop.permute.xlu0 %1288
  %1290 = vrot.lane.b32.xlu0 %v1080, 90
  %v1291 = vpop.permute.xlu0 %1290
  %1292 = vrot.lane.b32.xlu0 %v1081, 90
  %v1293 = vpop.permute.xlu0 %1292
  %1294 = vrot.lane.b32.xlu0 %v1082, 90
  %v1295 = vpop.permute.xlu0 %1294
  %1296 = vrot.lane.b32.xlu0 %v1083, 90
  %v1297 = vpop.permute.xlu0 %1296
  %v1298 = vsel %vm1008, %v1285, %v1287
  %v1299 = vsel %vm1008, %v1287, %v1289
  %v1300 = vsel %vm1008, %v1289, %v1291
  %v1301 = vsel %vm1008, %v1291, %v1293
  %v1302 = vsel %vm1008, %v1293, %v1295
  %v1303 = vsel %vm1008, %v1295, %v1297
  %v1311 = vpack.c.bf16 %v1105, %v1070
  %v1312 = vpack.c.bf16 %v1106, %v1071
  %v1313 = vpack.c.bf16 %v1107, %v1072
  %v1314 = vpack.c.bf16 %v1108, %v1073
  %v1315 = vpack.c.bf16 %v1109, %v1074
  %v1316 = vpack.c.bf16 %v1110, %v1075
  %v1317 = vpack.c.bf16 %v1104, %v1076
  %v1318 = vpack.c.bf16 %v1159, %v1132
  %v1319 = vpack.c.bf16 %v1160, %v1133
  %v1320 = vpack.c.bf16 %v1161, %v1134
  %v1321 = vpack.c.bf16 %v1162, %v1135
  %v1322 = vpack.c.bf16 %v1163, %v1136
  %v1323 = vpack.c.bf16 %v1164, %v1137
  %v1324 = vpack.c.bf16 %v1158, %v1131
  %v1325 = vpack.c.bf16 %v1204, %v1173
  %v1326 = vpack.c.bf16 %v1217, %v1184
  %v1327 = vpack.c.bf16 %v1218, %v1185
  %v1328 = vpack.c.bf16 %v1219, %v1186
  %v1329 = vpack.c.bf16 %v1220, %v1187
  %v1330 = vpack.c.bf16 %v1221, %v1188
  %v1331 = vpack.c.bf16 %v1222, %v1183
  %v1332 = vpack.c.bf16 %v1258, %v1231
  %v1333 = vpack.c.bf16 %v1271, %v1244
  %v1334 = vpack.c.bf16 %v1272, %v1245
  %v1335 = vpack.c.bf16 %v1273, %v1246
  %v1336 = vpack.c.bf16 %v1274, %v1247
  %v1337 = vpack.c.bf16 %v1275, %v1248
  %v1338 = vpack.c.bf16 %v1276, %v1249
  %v1339 = vpack.c.bf16 %v1285, %v1285
  %v1340 = vpack.c.bf16 %v1298, %v1298
  %v1341 = vpack.c.bf16 %v1299, %v1299
  %v1342 = vpack.c.bf16 %v1300, %v1300
  %v1343 = vpack.c.bf16 %v1301, %v1301
  %v1344 = vpack.c.bf16 %v1302, %v1302
  %v1345 = vpack.c.bf16 %v1303, %v1303
  %1381 = vrot.lane.b32.xlu0 %v1311, 19
  %v1382 = vpop.permute.xlu0 %1381
  %1383 = vrot.lane.b32.xlu0 %v1312, 19
  %v1384 = vpop.permute.xlu0 %1383
  %1385 = vrot.lane.b32.xlu0 %v1313, 19
  %v1386 = vpop.permute.xlu0 %1385
  %1387 = vrot.lane.b32.xlu0 %v1314, 19
  %v1388 = vpop.permute.xlu0 %1387
  %1389 = vrot.lane.b32.xlu0 %v1315, 19
  %v1390 = vpop.permute.xlu0 %1389
  %1391 = vrot.lane.b32.xlu0 %v1316, 19
  %v1392 = vpop.permute.xlu0 %1391
  %1393 = vrot.lane.b32.xlu0 %v1317, 19
  %v1394 = vpop.permute.xlu0 %1393
  %1395 = vrot.lane.b32.xlu0 %v1318, 19
  %v1396 = vpop.permute.xlu0 %1395
  %1397 = vrot.lane.b32.xlu0 %v1319, 19
  %v1398 = vpop.permute.xlu0 %1397
  %1399 = vrot.lane.b32.xlu0 %v1320, 19
  %v1400 = vpop.permute.xlu0 %1399
  %1401 = vrot.lane.b32.xlu0 %v1321, 19
  %v1402 = vpop.permute.xlu0 %1401
  %1403 = vrot.lane.b32.xlu0 %v1322, 19
  %v1404 = vpop.permute.xlu0 %1403
  %1405 = vrot.lane.b32.xlu0 %v1323, 19
  %v1406 = vpop.permute.xlu0 %1405
  %1407 = vrot.lane.b32.xlu0 %v1324, 19
  %v1408 = vpop.permute.xlu0 %1407
  %1409 = vrot.lane.b32.xlu0 %v1325, 19
  %v1410 = vpop.permute.xlu0 %1409
  %1411 = vrot.lane.b32.xlu0 %v1326, 19
  %v1412 = vpop.permute.xlu0 %1411
  %1413 = vrot.lane.b32.xlu0 %v1327, 19
  %v1414 = vpop.permute.xlu0 %1413
  %1415 = vrot.lane.b32.xlu0 %v1328, 19
  %v1416 = vpop.permute.xlu0 %1415
  %1417 = vrot.lane.b32.xlu0 %v1329, 19
  %v1418 = vpop.permute.xlu0 %1417
  %1419 = vrot.lane.b32.xlu0 %v1330, 19
  %v1420 = vpop.permute.xlu0 %1419
  %1421 = vrot.lane.b32.xlu0 %v1331, 19
  %v1422 = vpop.permute.xlu0 %1421
  %1423 = vrot.lane.b32.xlu0 %v1332, 19
  %v1424 = vpop.permute.xlu0 %1423
  %1425 = vrot.lane.b32.xlu0 %v1333, 19
  %v1426 = vpop.permute.xlu0 %1425
  %1427 = vrot.lane.b32.xlu0 %v1334, 19
  %v1428 = vpop.permute.xlu0 %1427
  %1429 = vrot.lane.b32.xlu0 %v1335, 19
  %v1430 = vpop.permute.xlu0 %1429
  %1431 = vrot.lane.b32.xlu0 %v1336, 19
  %v1432 = vpop.permute.xlu0 %1431
  %1433 = vrot.lane.b32.xlu0 %v1337, 19
  %v1434 = vpop.permute.xlu0 %1433
  %1435 = vrot.lane.b32.xlu0 %v1338, 19
  %v1436 = vpop.permute.xlu0 %1435
  %1437 = vrot.lane.b32.xlu0 %v1339, 19
  %v1438 = vpop.permute.xlu0 %1437
  %1439 = vrot.lane.b32.xlu0 %v1340, 19
  %v1440 = vpop.permute.xlu0 %1439
  %1441 = vrot.lane.b32.xlu0 %v1341, 19
  %v1442 = vpop.permute.xlu0 %1441
  %1443 = vrot.lane.b32.xlu0 %v1342, 19
  %v1444 = vpop.permute.xlu0 %1443
  %1445 = vrot.lane.b32.xlu0 %v1343, 19
  %v1446 = vpop.permute.xlu0 %1445
  %1447 = vrot.lane.b32.xlu0 %v1344, 19
  %v1448 = vpop.permute.xlu0 %1447
  %1449 = vrot.lane.b32.xlu0 %v1345, 19
  %v1450 = vpop.permute.xlu0 %1449
  %vm1451 = vcmask 154624
  %v1452 = vsel %vm1451, %v1382, %v1384
  %v1453 = vsel %vm1451, %v1384, %v1386
  %v1454 = vsel %vm1451, %v1386, %v1388
  %v1455 = vsel %vm1451, %v1388, %v1390
  %v1456 = vsel %vm1451, %v1390, %v1392
  %v1457 = vsel %vm1451, %v1392, %v1394
  %v1458 = vsel %vm1451, %v1396, %v1398
  %v1459 = vsel %vm1451, %v1398, %v1400
  %v1460 = vsel %vm1451, %v1400, %v1402
  %v1461 = vsel %vm1451, %v1402, %v1404
  %v1462 = vsel %vm1451, %v1404, %v1406
  %v1463 = vsel %vm1451, %v1406, %v1408
  %v1464 = vsel %vm1451, %v1410, %v1412
  %v1465 = vsel %vm1451, %v1412, %v1414
  %v1466 = vsel %vm1451, %v1414, %v1416
  %v1467 = vsel %vm1451, %v1416, %v1418
  %v1468 = vsel %vm1451, %v1418, %v1420
  %v1469 = vsel %vm1451, %v1420, %v1422
  %v1470 = vsel %vm1451, %v1424, %v1426
  %v1471 = vsel %vm1451, %v1426, %v1428
  %v1472 = vsel %vm1451, %v1428, %v1430
  %v1473 = vsel %vm1451, %v1430, %v1432
  %v1474 = vsel %vm1451, %v1432, %v1434
  %v1475 = vsel %vm1451, %v1434, %v1436
  %v1476 = vsel %vm1451, %v1438, %v1440
  %v1477 = vsel %vm1451, %v1440, %v1442
  %v1478 = vsel %vm1451, %v1442, %v1444
  %v1479 = vsel %vm1451, %v1444, %v1446
  %v1480 = vsel %vm1451, %v1446, %v1448
  %v1481 = vsel %vm1451, %v1448, %v1450
  %vm1506 = vcmask 588800
  %v1508 = vsel %vm1506, %v1063, 0
  %vm1510 = vcmask 1043456
  %v1512 = vsel %vm1510, %v1476, 0
  %v1515 = vsel %vm1510, %v1477, 0
  %v1518 = vsel %vm1510, %v1478, 0
  %v1521 = vsel %vm1510, %v1479, 0
  %v1524 = vsel %vm1510, %v1480, 0
  %v1527 = vsel %vm1510, %v1481, 0
  %1529 = vmatprep.subr.bf16.mxu0 %v1453
  %1530 = vmatpush1.bf16.msra.mxu0 %v1452
  %1531 = vmatprep.subr.bf16.mxu0 %v1459
  %1532 = vmatpush1.bf16.msra.mxu0 %v1458
  %1533 = vmatprep.subr.bf16.mxu0 %v1465
  %1534 = vmatpush1.bf16.msra.mxu0 %v1464
  %1535 = vmatprep.subr.bf16.mxu0 %v1471
  %1536 = vmatpush1.bf16.msra.mxu0 %v1470
  %1537 = vmatprep.subr.bf16.mxu0 %v1515
  %1538 = vmatpush1.bf16.msra.mxu0 %v1512
  %1539 = vmatprep.subr.bf16.mxu0 0
  %1540 = vmatpush1.bf16.msra.mxu0 0
  %1541 = vmatprep.subr.bf16.mxu0 0
  %1542 = vmatpush1.bf16.msra.mxu0 0
  %1543 = vmatprep.subr.bf16.mxu0 0
  %1544 = vmatpush1.bf16.msra.mxu0 0
  %1545 = vmatprep.subr.bf16.mxu0 0
  %1546 = vmatpush1.bf16.msra.mxu0 0
  %1547 = vmatprep.subr.bf16.mxu0 0
  %1548 = vmatpush1.bf16.msra.mxu0 0
  %1549 = vmatprep.subr.bf16.mxu0 0
  %1550 = vmatpush1.bf16.msra.mxu0 0
  %1551 = vmatprep.subr.bf16.mxu0 0
  %1552 = vmatpush1.bf16.msra.mxu0 0
  %1553 = vmatprep.subr.bf16.mxu0 0
  %1554 = vmatpush1.bf16.msra.mxu0 0
  %1555 = vmatprep.subr.bf16.mxu0 0
  %1556 = vmatpush1.bf16.msra.mxu0 0
  %1557 = vmatprep.subr.bf16.mxu0 0
  %1558 = vmatpush1.bf16.msra.mxu0 0
  %1559 = vmatprep.subr.bf16.mxu0 0
  %1560 = vmatpush1.bf16.msra.mxu0 0
  %1561 = vmatprep.mubr.bf16.mxu0 0
  %1562 = vmatmul.mubr.bf16.gmra.mrb[0].mxu0 %v1508
  %v1563 = vpop.f32.mrb[0].mxu0
  %v1564 = vadd.f32 0.0, %v1563
  %v1565 = vpop.f32.mrb[0].mxu0
  %v1566 = vadd.f32 0.0, %v1565
  %v1567 = vpop.f32.mrb[0].mxu0
  %v1568 = vpop.f32.mrb[0].mxu0
  %1569 = vdwg.mxu0
  %1570 = vmatprep.subr.bf16.mxu0 %v1455
  %1571 = vmatpush1.bf16.msra.mxu0 %v1454
  %1572 = vmatprep.subr.bf16.mxu0 %v1461
  %1573 = vmatpush1.bf16.msra.mxu0 %v1460
  %1574 = vmatprep.subr.bf16.mxu0 %v1467
  %1575 = vmatpush1.bf16.msra.mxu0 %v1466
  %1576 = vmatprep.subr.bf16.mxu0 %v1473
  %1577 = vmatpush1.bf16.msra.mxu0 %v1472
  %1578 = vmatprep.subr.bf16.mxu0 %v1521
  %1579 = vmatpush1.bf16.msra.mxu0 %v1518
  %1580 = vmatprep.subr.bf16.mxu0 0
  %1581 = vmatpush1.bf16.msra.mxu0 0
  %1582 = vmatprep.subr.bf16.mxu0 0
  %1583 = vmatpush1.bf16.msra.mxu0 0
  %1584 = vmatprep.subr.bf16.mxu0 0
  %1585 = vmatpush1.bf16.msra.mxu0 0
  %1586 = vmatprep.subr.bf16.mxu0 0
  %1587 = vmatpush1.bf16.msra.mxu0 0
  %1588 = vmatprep.subr.bf16.mxu0 0
  %1589 = vmatpush1.bf16.msra.mxu0 0
  %1590 = vmatprep.subr.bf16.mxu0 0
  %1591 = vmatpush1.bf16.msra.mxu0 0
  %1592 = vmatprep.subr.bf16.mxu0 0
  %1593 = vmatpush1.bf16.msra.mxu0 0
  %1594 = vmatprep.subr.bf16.mxu0 0
  %1595 = vmatpush1.bf16.msra.mxu0 0
  %1596 = vmatprep.subr.bf16.mxu0 0
  %1597 = vmatpush1.bf16.msra.mxu0 0
  %1598 = vmatprep.subr.bf16.mxu0 0
  %1599 = vmatpush1.bf16.msra.mxu0 0
  %1600 = vmatprep.subr.bf16.mxu0 0
  %1601 = vmatpush1.bf16.msra.mxu0 0
  %1602 = vmatprep.mubr.bf16.mxu0 0
  %1603 = vmatmul.mubr.bf16.gmra.mrb[0].mxu0 %v1508
  %v1604 = vpop.f32.mrb[0].mxu0
  %v1605 = vadd.f32 0.0, %v1604
  %v1606 = vpop.f32.mrb[0].mxu0
  %v1607 = vadd.f32 0.0, %v1606
  %v1608 = vpop.f32.mrb[0].mxu0
  %v1609 = vpop.f32.mrb[0].mxu0
  %1610 = vdwg.mxu0
  %1611 = vmatprep.subr.bf16.mxu0 %v1457
  %1612 = vmatpush1.bf16.msra.mxu0 %v1456
  %1613 = vmatprep.subr.bf16.mxu0 %v1463
  %1614 = vmatpush1.bf16.msra.mxu0 %v1462
  %1615 = vmatprep.subr.bf16.mxu0 %v1469
  %1616 = vmatpush1.bf16.msra.mxu0 %v1468
  %1617 = vmatprep.subr.bf16.mxu0 %v1475
  %1618 = vmatpush1.bf16.msra.mxu0 %v1474
  %1619 = vmatprep.subr.bf16.mxu0 %v1527
  %1620 = vmatpush1.bf16.msra.mxu0 %v1524
  %1621 = vmatprep.subr.bf16.mxu0 0
  %1622 = vmatpush1.bf16.msra.mxu0 0
  %1623 = vmatprep.subr.bf16.mxu0 0
  %1624 = vmatpush1.bf16.msra.mxu0 0
  %1625 = vmatprep.subr.bf16.mxu0 0
  %1626 = vmatpush1.bf16.msra.mxu0 0
  %1627 = vmatprep.subr.bf16.mxu0 0
  %1628 = vmatpush1.bf16.msra.mxu0 0
  %1629 = vmatprep.subr.bf16.mxu0 0
  %1630 = vmatpush1.bf16.msra.mxu0 0
  %1631 = vmatprep.subr.bf16.mxu0 0
  %1632 = vmatpush1.bf16.msra.mxu0 0
  %1633 = vmatprep.subr.bf16.mxu0 0
  %1634 = vmatpush1.bf16.msra.mxu0 0
  %1635 = vmatprep.subr.bf16.mxu0 0
  %1636 = vmatpush1.bf16.msra.mxu0 0
  %1637 = vmatprep.subr.bf16.mxu0 0
  %1638 = vmatpush1.bf16.msra.mxu0 0
  %1639 = vmatprep.subr.bf16.mxu0 0
  %1640 = vmatpush1.bf16.msra.mxu0 0
  %1641 = vmatprep.subr.bf16.mxu0 0
  %1642 = vmatpush1.bf16.msra.mxu0 0
  %1643 = vmatprep.mubr.bf16.mxu0 0
  %1644 = vmatmul.mubr.bf16.gmra.mrb[0].mxu0 %v1508
  %v1645 = vpop.f32.mrb[0].mxu0
  %v1646 = vadd.f32 0.0, %v1645
  %v1647 = vpop.f32.mrb[0].mxu0
  %v1648 = vadd.f32 0.0, %v1647
  %v1649 = vpop.f32.mrb[0].mxu0
  %v1650 = vpop.f32.mrb[0].mxu0
  %1651 = vdwg.mxu0
  %1687 = vrot.lane.b32.xlu0 %v1022, 19
  %v1688 = vpop.permute.xlu0 %1687
  %1689 = vrot.lane.b32.xlu0 %v1023, 19
  %v1690 = vpop.permute.xlu0 %1689
  %1691 = vrot.lane.b32.xlu0 %v1024, 19
  %v1692 = vpop.permute.xlu0 %1691
  %1693 = vrot.lane.b32.xlu0 %v1025, 19
  %v1694 = vpop.permute.xlu0 %1693
  %1695 = vrot.lane.b32.xlu0 %v1026, 19
  %v1696 = vpop.permute.xlu0 %1695
  %1697 = vrot.lane.b32.xlu0 %v1027, 19
  %v1698 = vpop.permute.xlu0 %1697
  %1699 = vrot.lane.b32.xlu0 %v1028, 19
  %v1700 = vpop.permute.xlu0 %1699
  %1701 = vrot.lane.b32.xlu0 %v1029, 19
  %v1702 = vpop.permute.xlu0 %1701
  %1703 = vrot.lane.b32.xlu0 %v1030, 19
  %v1704 = vpop.permute.xlu0 %1703
  %1705 = vrot.lane.b32.xlu0 %v1031, 19
  %v1706 = vpop.permute.xlu0 %1705
  %1707 = vrot.lane.b32.xlu0 %v1032, 19
  %v1708 = vpop.permute.xlu0 %1707
  %1709 = vrot.lane.b32.xlu0 %v1033, 19
  %v1710 = vpop.permute.xlu0 %1709
  %1711 = vrot.lane.b32.xlu0 %v1034, 19
  %v1712 = vpop.permute.xlu0 %1711
  %1713 = vrot.lane.b32.xlu0 %v1035, 19
  %v1714 = vpop.permute.xlu0 %1713
  %1715 = vrot.lane.b32.xlu0 %v1036, 19
  %v1716 = vpop.permute.xlu0 %1715
  %1717 = vrot.lane.b32.xlu0 %v1037, 19
  %v1718 = vpop.permute.xlu0 %1717
  %1719 = vrot.lane.b32.xlu0 %v1038, 19
  %v1720 = vpop.permute.xlu0 %1719
  %1721 = vrot.lane.b32.xlu0 %v1039, 19
  %v1722 = vpop.permute.xlu0 %1721
  %1723 = vrot.lane.b32.xlu0 %v1040, 19
  %v1724 = vpop.permute.xlu0 %1723
  %1725 = vrot.lane.b32.xlu0 %v1041, 19
  %v1726 = vpop.permute.xlu0 %1725
  %1727 = vrot.lane.b32.xlu0 %v1042, 19
  %v1728 = vpop.permute.xlu0 %1727
  %1729 = vrot.lane.b32.xlu0 %v1043, 19
  %v1730 = vpop.permute.xlu0 %1729
  %1731 = vrot.lane.b32.xlu0 %v1044, 19
  %v1732 = vpop.permute.xlu0 %1731
  %1733 = vrot.lane.b32.xlu0 %v1045, 19
  %v1734 = vpop.permute.xlu0 %1733
  %1735 = vrot.lane.b32.xlu0 %v1046, 19
  %v1736 = vpop.permute.xlu0 %1735
  %1737 = vrot.lane.b32.xlu0 %v1047, 19
  %v1738 = vpop.permute.xlu0 %1737
  %1739 = vrot.lane.b32.xlu0 %v1048, 19
  %v1740 = vpop.permute.xlu0 %1739
  %1741 = vrot.lane.b32.xlu0 %v1049, 19
  %v1742 = vpop.permute.xlu0 %1741
  %1743 = vrot.lane.b32.xlu0 %v1050, 19
  %v1744 = vpop.permute.xlu0 %1743
  %1745 = vrot.lane.b32.xlu0 %v1051, 19
  %v1746 = vpop.permute.xlu0 %1745
  %1747 = vrot.lane.b32.xlu0 %v1052, 19
  %v1748 = vpop.permute.xlu0 %1747
  %1749 = vrot.lane.b32.xlu0 %v1053, 19
  %v1750 = vpop.permute.xlu0 %1749
  %1751 = vrot.lane.b32.xlu0 %v1054, 19
  %v1752 = vpop.permute.xlu0 %1751
  %1753 = vrot.lane.b32.xlu0 %v1055, 19
  %v1754 = vpop.permute.xlu0 %1753
  %1755 = vrot.lane.b32.xlu0 %v1056, 19
  %v1756 = vpop.permute.xlu0 %1755
  %v1757 = vsel %vm1451, %v1688, %v1690
  %v1758 = vsel %vm1451, %v1690, %v1692
  %v1759 = vsel %vm1451, %v1692, %v1694
  %v1760 = vsel %vm1451, %v1694, %v1696
  %v1761 = vsel %vm1451, %v1696, %v1698
  %v1762 = vsel %vm1451, %v1698, %v1700
  %v1763 = vsel %vm1451, %v1702, %v1704
  %v1764 = vsel %vm1451, %v1704, %v1706
  %v1765 = vsel %vm1451, %v1706, %v1708
  %v1766 = vsel %vm1451, %v1708, %v1710
  %v1767 = vsel %vm1451, %v1710, %v1712
  %v1768 = vsel %vm1451, %v1712, %v1714
  %v1769 = vsel %vm1451, %v1716, %v1718
  %v1770 = vsel %vm1451, %v1718, %v1720
  %v1771 = vsel %vm1451, %v1720, %v1722
  %v1772 = vsel %vm1451, %v1722, %v1724
  %v1773 = vsel %vm1451, %v1724, %v1726
  %v1774 = vsel %vm1451, %v1726, %v1728
  %v1775 = vsel %vm1451, %v1730, %v1732
  %v1776 = vsel %vm1451, %v1732, %v1734
  %v1777 = vsel %vm1451, %v1734, %v1736
  %v1778 = vsel %vm1451, %v1736, %v1738
  %v1779 = vsel %vm1451, %v1738, %v1740
  %v1780 = vsel %vm1451, %v1740, %v1742
  %v1781 = vsel %vm1451, %v1744, %v1746
  %v1782 = vsel %vm1451, %v1746, %v1748
  %v1783 = vsel %vm1451, %v1748, %v1750
  %v1784 = vsel %vm1451, %v1750, %v1752
  %v1785 = vsel %vm1451, %v1752, %v1754
  %v1786 = vsel %vm1451, %v1754, %v1756
  %v1812 = vsel %vm1506, %v766, 0
  %v1815 = vsel %vm1510, %v1781, 0
  %v1818 = vsel %vm1510, %v1782, 0
  %v1821 = vsel %vm1510, %v1783, 0
  %v1824 = vsel %vm1510, %v1784, 0
  %v1827 = vsel %vm1510, %v1785, 0
  %v1830 = vsel %vm1510, %v1786, 0
  %1832 = vmatprep.subr.bf16.mxu0 %v1758
  %1833 = vmatpush1.bf16.msra.mxu0 %v1757
  %1834 = vmatprep.subr.bf16.mxu0 %v1764
  %1835 = vmatpush1.bf16.msra.mxu0 %v1763
  %1836 = vmatprep.subr.bf16.mxu0 %v1770
  %1837 = vmatpush1.bf16.msra.mxu0 %v1769
  %1838 = vmatprep.subr.bf16.mxu0 %v1776
  %1839 = vmatpush1.bf16.msra.mxu0 %v1775
  %1840 = vmatprep.subr.bf16.mxu0 %v1818
  %1841 = vmatpush1.bf16.msra.mxu0 %v1815
  %1842 = vmatprep.subr.bf16.mxu0 0
  %1843 = vmatpush1.bf16.msra.mxu0 0
  %1844 = vmatprep.subr.bf16.mxu0 0
  %1845 = vmatpush1.bf16.msra.mxu0 0
  %1846 = vmatprep.subr.bf16.mxu0 0
  %1847 = vmatpush1.bf16.msra.mxu0 0
  %1848 = vmatprep.subr.bf16.mxu0 0
  %1849 = vmatpush1.bf16.msra.mxu0 0
  %1850 = vmatprep.subr.bf16.mxu0 0
  %1851 = vmatpush1.bf16.msra.mxu0 0
  %1852 = vmatprep.subr.bf16.mxu0 0
  %1853 = vmatpush1.bf16.msra.mxu0 0
  %1854 = vmatprep.subr.bf16.mxu0 0
  %1855 = vmatpush1.bf16.msra.mxu0 0
  %1856 = vmatprep.subr.bf16.mxu0 0
  %1857 = vmatpush1.bf16.msra.mxu0 0
  %1858 = vmatprep.subr.bf16.mxu0 0
  %1859 = vmatpush1.bf16.msra.mxu0 0
  %1860 = vmatprep.subr.bf16.mxu0 0
  %1861 = vmatpush1.bf16.msra.mxu0 0
  %1862 = vmatprep.subr.bf16.mxu0 0
  %1863 = vmatpush1.bf16.msra.mxu0 0
  %1864 = vmatprep.mubr.bf16.mxu0 0
  %1865 = vmatmul.mubr.bf16.gmra.mrb[0].mxu0 %v1812
  %v1866 = vpop.f32.mrb[0].mxu0
  %v1867 = vadd.f32 %v1564, %v1866
  %v1868 = vpop.f32.mrb[0].mxu0
  %v1869 = vadd.f32 %v1566, %v1868
  %v1870 = vpop.f32.mrb[0].mxu0
  %v1871 = vpop.f32.mrb[0].mxu0
  %1872 = vdwg.mxu0
  %1873 = vmatprep.subr.bf16.mxu0 %v1760
  %1874 = vmatpush1.bf16.msra.mxu0 %v1759
  %1875 = vmatprep.subr.bf16.mxu0 %v1766
  %1876 = vmatpush1.bf16.msra.mxu0 %v1765
  %1877 = vmatprep.subr.bf16.mxu0 %v1772
  %1878 = vmatpush1.bf16.msra.mxu0 %v1771
  %1879 = vmatprep.subr.bf16.mxu0 %v1778
  %1880 = vmatpush1.bf16.msra.mxu0 %v1777
  %1881 = vmatprep.subr.bf16.mxu0 %v1824
  %1882 = vmatpush1.bf16.msra.mxu0 %v1821
  %1883 = vmatprep.subr.bf16.mxu0 0
  %1884 = vmatpush1.bf16.msra.mxu0 0
  %1885 = vmatprep.subr.bf16.mxu0 0
  %1886 = vmatpush1.bf16.msra.mxu0 0
  %1887 = vmatprep.subr.bf16.mxu0 0
  %1888 = vmatpush1.bf16.msra.mxu0 0
  %1889 = vmatprep.subr.bf16.mxu0 0
  %1890 = vmatpush1.bf16.msra.mxu0 0
  %1891 = vmatprep.subr.bf16.mxu0 0
  %1892 = vmatpush1.bf16.msra.mxu0 0
  %1893 = vmatprep.subr.bf16.mxu0 0
  %1894 = vmatpush1.bf16.msra.mxu0 0
  %1895 = vmatprep.subr.bf16.mxu0 0
  %1896 = vmatpush1.bf16.msra.mxu0 0
  %1897 = vmatprep.subr.bf16.mxu0 0
  %1898 = vmatpush1.bf16.msra.mxu0 0
  %1899 = vmatprep.subr.bf16.mxu0 0
  %1900 = vmatpush1.bf16.msra.mxu0 0
  %1901 = vmatprep.subr.bf16.mxu0 0
  %1902 = vmatpush1.bf16.msra.mxu0 0
  %1903 = vmatprep.subr.bf16.mxu0 0
  %1904 = vmatpush1.bf16.msra.mxu0 0
  %1905 = vmatprep.mubr.bf16.mxu0 0
  %1906 = vmatmul.mubr.bf16.gmra.mrb[0].mxu0 %v1812
  %v1907 = vpop.f32.mrb[0].mxu0
  %v1908 = vadd.f32 %v1605, %v1907
  %v1909 = vpop.f32.mrb[0].mxu0
  %v1910 = vadd.f32 %v1607, %v1909
  %v1911 = vpop.f32.mrb[0].mxu0
  %v1912 = vpop.f32.mrb[0].mxu0
  %1913 = vdwg.mxu0
  %1914 = vmatprep.subr.bf16.mxu0 %v1762
  %1915 = vmatpush1.bf16.msra.mxu0 %v1761
  %1916 = vmatprep.subr.bf16.mxu0 %v1768
  %1917 = vmatpush1.bf16.msra.mxu0 %v1767
  %1918 = vmatprep.subr.bf16.mxu0 %v1774
  %1919 = vmatpush1.bf16.msra.mxu0 %v1773
  %1920 = vmatprep.subr.bf16.mxu0 %v1780
  %1921 = vmatpush1.bf16.msra.mxu0 %v1779
  %1922 = vmatprep.subr.bf16.mxu0 %v1830
  %1923 = vmatpush1.bf16.msra.mxu0 %v1827
  %1924 = vmatprep.subr.bf16.mxu0 0
  %1925 = vmatpush1.bf16.msra.mxu0 0
  %1926 = vmatprep.subr.bf16.mxu0 0
  %1927 = vmatpush1.bf16.msra.mxu0 0
  %1928 = vmatprep.subr.bf16.mxu0 0
  %1929 = vmatpush1.bf16.msra.mxu0 0
  %1930 = vmatprep.subr.bf16.mxu0 0
  %1931 = vmatpush1.bf16.msra.mxu0 0
  %1932 = vmatprep.subr.bf16.mxu0 0
  %1933 = vmatpush1.bf16.msra.mxu0 0
  %1934 = vmatprep.subr.bf16.mxu0 0
  %1935 = vmatpush1.bf16.msra.mxu0 0
  %1936 = vmatprep.subr.bf16.mxu0 0
  %1937 = vmatpush1.bf16.msra.mxu0 0
  %1938 = vmatprep.subr.bf16.mxu0 0
  %1939 = vmatpush1.bf16.msra.mxu0 0
  %1940 = vmatprep.subr.bf16.mxu0 0
  %1941 = vmatpush1.bf16.msra.mxu0 0
  %1942 = vmatprep.subr.bf16.mxu0 0
  %1943 = vmatpush1.bf16.msra.mxu0 0
  %1944 = vmatprep.subr.bf16.mxu0 0
  %1945 = vmatpush1.bf16.msra.mxu0 0
  %1946 = vmatprep.mubr.bf16.mxu0 0
  %1947 = vmatmul.mubr.bf16.gmra.mrb[0].mxu0 %v1812
  %v1948 = vpop.f32.mrb[0].mxu0
  %v1949 = vadd.f32 %v1646, %v1948
  %v1950 = vpop.f32.mrb[0].mxu0
  %v1951 = vadd.f32 %v1648, %v1950
  %v1952 = vpop.f32.mrb[0].mxu0
  %v1953 = vpop.f32.mrb[0].mxu0
  %1954 = vdwg.mxu0
  %v1955 = vld [vmem:[%s6] sm:$0xff]
  %1957 = vset.pattern.permute.xlu0 0
  %1958 = vperm.xlu0 %1957, %v1955
  %v1959 = vpop.permute.xlu0 %1958
  %v1961 = vadd.f32 %v1867, %v1959
  %v1962 = vadd.f32 %v1869, %v1959
  %v1963 = vadd.f32 %v1908, %v1959
  %v1964 = vadd.f32 %v1910, %v1959
  %v1965 = vadd.f32 %v1949, %v1959
  %v1966 = vadd.f32 %v1951, %v1959
  %v1967 = vmax.f32 %v1961, 0.0
  %v1968 = vmax.f32 %v1962, 0.0
  %v1969 = vmax.f32 %v1963, 0.0
  %v1970 = vmax.f32 %v1964, 0.0
  %v1971 = vmax.f32 %v1965, 0.0
  %v1972 = vmax.f32 %v1966, 0.0
  %v1974 = vlaneseq
  %v1975 = vshrl.u32 %v1974, 7
  %v1976 = vsub.s32 0, %v1975
  %v1977 = vrot.slane %v48, %v1976
  %v1978 = vlaneseq
  %v1979 = vshrl.u32 %v1978, 7
  %v1980 = vsub.s32 1, %v1979
  %v1981 = vrot.slane %v48, %v1980
  %v1982 = vlaneseq
  %v1983 = vshrl.u32 %v1982, 7
  %v1984 = vsub.s32 2, %v1983
  %v1985 = vrot.slane %v48, %v1984
  %v1986 = vlaneseq
  %v1987 = vshrl.u32 %v1986, 7
  %v1988 = vsub.s32 3, %v1987
  %v1989 = vrot.slane %v48, %v1988
  %v1990 = vlaneseq
  %v1991 = vshrl.u32 %v1990, 7
  %v1992 = vsub.s32 4, %v1991
  %v1993 = vrot.slane %v48, %v1992
  %v1994 = vlaneseq
  %v1995 = vshrl.u32 %v1994, 7
  %v1996 = vsub.s32 5, %v1995
  %v1997 = vrot.slane %v48, %v1996
  %v2004 = vmul.f32 %v1967, %v1977
  %v2005 = vmul.f32 %v1968, %v1981
  %v2006 = vmul.f32 %v1969, %v1985
  %v2007 = vmul.f32 %v1970, %v1989
  %v2008 = vmul.f32 %v1971, %v1993
  %v2009 = vmul.f32 %v1972, %v1997
  %v2010 = vld [vmem:[%s7] sm:$0xf]
  %2011 = vst [vmem:[#allocation2 + $0x8] sm:$0xff] %v2004
  %2012 = vst [vmem:[#allocation2 + $0x10] sm:$0xff] %v2005
  %2013 = vst [vmem:[#allocation2 + $0x18] sm:$0xff] %v2006
  %2014 = vst [vmem:[#allocation2 + $0x20] sm:$0xff] %v2007
  %2015 = vst [vmem:[#allocation2 + $0x28] sm:$0xff] %v2008
  %2016 = vst [vmem:[#allocation2 + $0x30] sm:$0xff] %v2009
  %v2017 = vld [vmem:[#allocation2] sm:$0xff]
  %v2018 = vld [vmem:[#allocation2 + $0x8] sm:$0xff]
  %v2019 = vld [vmem:[#allocation2 + $0x10] sm:$0xff]
  %v2020 = vld [vmem:[#allocation2 + $0x18] sm:$0xff]
  %v2021 = vld [vmem:[#allocation2 + $0x20] sm:$0xff]
  %v2022 = vld [vmem:[#allocation2 + $0x28] sm:$0xff]
  %v2023 = vld [vmem:[#allocation2 + $0x30] sm:$0xff]
  %v2024 = vld [vmem:[#allocation2 + $0x8] sm:$0xff]
  %v2025 = vld [vmem:[#allocation2 + $0x10] sm:$0xff]
  %v2026 = vld [vmem:[#allocation2 + $0x18] sm:$0xff]
  %v2027 = vld [vmem:[#allocation2 + $0x20] sm:$0xff]
  %v2028 = vld [vmem:[#allocation2 + $0x28] sm:$0xff]
  %v2029 = vld [vmem:[#allocation2 + $0x30] sm:$0xff]
  %v2030 = vld [vmem:[#allocation2 + $0x38] sm:$0xff]
  %2038 = vrot.lane.b32.xlu0 %v2017, 127
  %v2039 = vpop.permute.xlu0 %2038
  %2040 = vrot.lane.b32.xlu0 %v2018, 127
  %v2041 = vpop.permute.xlu0 %2040
  %2042 = vrot.lane.b32.xlu0 %v2019, 127
  %v2043 = vpop.permute.xlu0 %2042
  %2044 = vrot.lane.b32.xlu0 %v2020, 127
  %v2045 = vpop.permute.xlu0 %2044
  %2046 = vrot.lane.b32.xlu0 %v2021, 127
  %v2047 = vpop.permute.xlu0 %2046
  %2048 = vrot.lane.b32.xlu0 %v2022, 127
  %v2049 = vpop.permute.xlu0 %2048
  %2050 = vrot.lane.b32.xlu0 %v2023, 127
  %v2051 = vpop.permute.xlu0 %2050
  %v2052 = vsel %vm808, %v2039, %v2041
  %v2053 = vsel %vm808, %v2041, %v2043
  %v2054 = vsel %vm808, %v2043, %v2045
  %v2055 = vsel %vm808, %v2045, %v2047
  %v2056 = vsel %vm808, %v2047, %v2049
  %v2057 = vsel %vm808, %v2049, %v2051
  %2065 = vrot.lane.b32.xlu0 %v2017, 126
  %v2066 = vpop.permute.xlu0 %2065
  %2067 = vrot.lane.b32.xlu0 %v2018, 126
  %v2068 = vpop.permute.xlu0 %2067
  %2069 = vrot.lane.b32.xlu0 %v2019, 126
  %v2070 = vpop.permute.xlu0 %2069
  %2071 = vrot.lane.b32.xlu0 %v2020, 126
  %v2072 = vpop.permute.xlu0 %2071
  %2073 = vrot.lane.b32.xlu0 %v2021, 126
  %v2074 = vpop.permute.xlu0 %2073
  %2075 = vrot.lane.b32.xlu0 %v2022, 126
  %v2076 = vpop.permute.xlu0 %2075
  %2077 = vrot.lane.b32.xlu0 %v2023, 126
  %v2078 = vpop.permute.xlu0 %2077
  %v2079 = vsel %vm836, %v2066, %v2068
  %v2080 = vsel %vm836, %v2068, %v2070
  %v2081 = vsel %vm836, %v2070, %v2072
  %v2082 = vsel %vm836, %v2072, %v2074
  %v2083 = vsel %vm836, %v2074, %v2076
  %v2084 = vsel %vm836, %v2076, %v2078
  %2092 = vrot.lane.b32.xlu0 %v2017, 110
  %v2093 = vpop.permute.xlu0 %2092
  %2094 = vrot.lane.b32.xlu0 %v2018, 110
  %v2095 = vpop.permute.xlu0 %2094
  %2096 = vrot.lane.b32.xlu0 %v2019, 110
  %v2097 = vpop.permute.xlu0 %2096
  %2098 = vrot.lane.b32.xlu0 %v2020, 110
  %v2099 = vpop.permute.xlu0 %2098
  %2100 = vrot.lane.b32.xlu0 %v2021, 110
  %v2101 = vpop.permute.xlu0 %2100
  %2102 = vrot.lane.b32.xlu0 %v2022, 110
  %v2103 = vpop.permute.xlu0 %2102
  %2104 = vrot.lane.b32.xlu0 %v2023, 110
  %v2105 = vpop.permute.xlu0 %2104
  %v2106 = vsel %vm864, %v2093, %v2095
  %v2107 = vsel %vm864, %v2095, %v2097
  %v2108 = vsel %vm864, %v2097, %v2099
  %v2109 = vsel %vm864, %v2099, %v2101
  %v2110 = vsel %vm864, %v2101, %v2103
  %v2111 = vsel %vm864, %v2103, %v2105
  %2119 = vrot.lane.b32.xlu0 %v2018, 109
  %v2120 = vpop.permute.xlu0 %2119
  %2121 = vrot.lane.b32.xlu0 %v2019, 109
  %v2122 = vpop.permute.xlu0 %2121
  %2123 = vrot.lane.b32.xlu0 %v2020, 109
  %v2124 = vpop.permute.xlu0 %2123
  %2125 = vrot.lane.b32.xlu0 %v2021, 109
  %v2126 = vpop.permute.xlu0 %2125
  %2127 = vrot.lane.b32.xlu0 %v2022, 109
  %v2128 = vpop.permute.xlu0 %2127
  %2129 = vrot.lane.b32.xlu0 %v2023, 109
  %v2130 = vpop.permute.xlu0 %2129
  %v2131 = vsel %vm890, %v2120, %v2122
  %v2132 = vsel %vm890, %v2122, %v2124
  %v2133 = vsel %vm890, %v2124, %v2126
  %v2134 = vsel %vm890, %v2126, %v2128
  %v2135 = vsel %vm890, %v2128, %v2130
  %2150 = vrot.lane.b32.xlu0 %v2024, 108
  %v2151 = vpop.permute.xlu0 %2150
  %2152 = vrot.lane.b32.xlu0 %v2025, 108
  %v2153 = vpop.permute.xlu0 %2152
  %2154 = vrot.lane.b32.xlu0 %v2026, 108
  %v2155 = vpop.permute.xlu0 %2154
  %2156 = vrot.lane.b32.xlu0 %v2027, 108
  %v2157 = vpop.permute.xlu0 %2156
  %2158 = vrot.lane.b32.xlu0 %v2028, 108
  %v2159 = vpop.permute.xlu0 %2158
  %2160 = vrot.lane.b32.xlu0 %v2029, 108
  %v2161 = vpop.permute.xlu0 %2160
  %2162 = vrot.lane.b32.xlu0 %v2030, 108
  %v2163 = vpop.permute.xlu0 %2162
  %v2164 = vsel %vm924, %v2151, %v2153
  %v2165 = vsel %vm924, %v2153, %v2155
  %v2166 = vsel %vm924, %v2155, %v2157
  %v2167 = vsel %vm924, %v2157, %v2159
  %v2168 = vsel %vm924, %v2159, %v2161
  %v2169 = vsel %vm924, %v2161, %v2163
  %2177 = vrot.lane.b32.xlu0 %v2024, 92
  %v2178 = vpop.permute.xlu0 %2177
  %2179 = vrot.lane.b32.xlu0 %v2025, 92
  %v2180 = vpop.permute.xlu0 %2179
  %2181 = vrot.lane.b32.xlu0 %v2026, 92
  %v2182 = vpop.permute.xlu0 %2181
  %2183 = vrot.lane.b32.xlu0 %v2027, 92
  %v2184 = vpop.permute.xlu0 %2183
  %2185 = vrot.lane.b32.xlu0 %v2028, 92
  %v2186 = vpop.permute.xlu0 %2185
  %2187 = vrot.lane.b32.xlu0 %v2029, 92
  %v2188 = vpop.permute.xlu0 %2187
  %2189 = vrot.lane.b32.xlu0 %v2030, 92
  %v2190 = vpop.permute.xlu0 %2189
  %v2191 = vsel %vm952, %v2178, %v2180
  %v2192 = vsel %vm952, %v2180, %v2182
  %v2193 = vsel %vm952, %v2182, %v2184
  %v2194 = vsel %vm952, %v2184, %v2186
  %v2195 = vsel %vm952, %v2186, %v2188
  %v2196 = vsel %vm952, %v2188, %v2190
  %2204 = vrot.lane.b32.xlu0 %v2024, 91
  %v2205 = vpop.permute.xlu0 %2204
  %2206 = vrot.lane.b32.xlu0 %v2025, 91
  %v2207 = vpop.permute.xlu0 %2206
  %2208 = vrot.lane.b32.xlu0 %v2026, 91
  %v2209 = vpop.permute.xlu0 %2208
  %2210 = vrot.lane.b32.xlu0 %v2027, 91
  %v2211 = vpop.permute.xlu0 %2210
  %2212 = vrot.lane.b32.xlu0 %v2028, 91
  %v2213 = vpop.permute.xlu0 %2212
  %2214 = vrot.lane.b32.xlu0 %v2029, 91
  %v2215 = vpop.permute.xlu0 %2214
  %2216 = vrot.lane.b32.xlu0 %v2030, 91
  %v2217 = vpop.permute.xlu0 %2216
  %v2218 = vsel %vm980, %v2205, %v2207
  %v2219 = vsel %vm980, %v2207, %v2209
  %v2220 = vsel %vm980, %v2209, %v2211
  %v2221 = vsel %vm980, %v2211, %v2213
  %v2222 = vsel %vm980, %v2213, %v2215
  %v2223 = vsel %vm980, %v2215, %v2217
  %2231 = vrot.lane.b32.xlu0 %v2024, 90
  %v2232 = vpop.permute.xlu0 %2231
  %2233 = vrot.lane.b32.xlu0 %v2025, 90
  %v2234 = vpop.permute.xlu0 %2233
  %2235 = vrot.lane.b32.xlu0 %v2026, 90
  %v2236 = vpop.permute.xlu0 %2235
  %2237 = vrot.lane.b32.xlu0 %v2027, 90
  %v2238 = vpop.permute.xlu0 %2237
  %2239 = vrot.lane.b32.xlu0 %v2028, 90
  %v2240 = vpop.permute.xlu0 %2239
  %2241 = vrot.lane.b32.xlu0 %v2029, 90
  %v2242 = vpop.permute.xlu0 %2241
  %2243 = vrot.lane.b32.xlu0 %v2030, 90
  %v2244 = vpop.permute.xlu0 %2243
  %v2245 = vsel %vm1008, %v2232, %v2234
  %v2246 = vsel %vm1008, %v2234, %v2236
  %v2247 = vsel %vm1008, %v2236, %v2238
  %v2248 = vsel %vm1008, %v2238, %v2240
  %v2249 = vsel %vm1008, %v2240, %v2242
  %v2250 = vsel %vm1008, %v2242, %v2244
  %v2258 = vpack.c.bf16 %v2052, %v2017
  %v2259 = vpack.c.bf16 %v2053, %v2018
  %v2260 = vpack.c.bf16 %v2054, %v2019
  %v2261 = vpack.c.bf16 %v2055, %v2020
  %v2262 = vpack.c.bf16 %v2056, %v2021
  %v2263 = vpack.c.bf16 %v2057, %v2022
  %v2264 = vpack.c.bf16 %v2051, %v2023
  %v2265 = vpack.c.bf16 %v2106, %v2079
  %v2266 = vpack.c.bf16 %v2107, %v2080
  %v2267 = vpack.c.bf16 %v2108, %v2081
  %v2268 = vpack.c.bf16 %v2109, %v2082
  %v2269 = vpack.c.bf16 %v2110, %v2083
  %v2270 = vpack.c.bf16 %v2111, %v2084
  %v2271 = vpack.c.bf16 %v2105, %v2078
  %v2272 = vpack.c.bf16 %v2151, %v2120
  %v2273 = vpack.c.bf16 %v2164, %v2131
  %v2274 = vpack.c.bf16 %v2165, %v2132
  %v2275 = vpack.c.bf16 %v2166, %v2133
  %v2276 = vpack.c.bf16 %v2167, %v2134
  %v2277 = vpack.c.bf16 %v2168, %v2135
  %v2278 = vpack.c.bf16 %v2169, %v2130
  %v2279 = vpack.c.bf16 %v2205, %v2178
  %v2280 = vpack.c.bf16 %v2218, %v2191
  %v2281 = vpack.c.bf16 %v2219, %v2192
  %v2282 = vpack.c.bf16 %v2220, %v2193
  %v2283 = vpack.c.bf16 %v2221, %v2194
  %v2284 = vpack.c.bf16 %v2222, %v2195
  %v2285 = vpack.c.bf16 %v2223, %v2196
  %v2286 = vpack.c.bf16 %v2232, %v2232
  %v2287 = vpack.c.bf16 %v2245, %v2245
  %v2288 = vpack.c.bf16 %v2246, %v2246
  %v2289 = vpack.c.bf16 %v2247, %v2247
  %v2290 = vpack.c.bf16 %v2248, %v2248
  %v2291 = vpack.c.bf16 %v2249, %v2249
  %v2292 = vpack.c.bf16 %v2250, %v2250
  %v2293 = vld [vmem:[%s8] sm:$0xff]
  %2295 = vset.pattern.permute.xlu0 0
  %2296 = vperm.xlu0 %2295, %v2293
  %v2297 = vpop.permute.xlu0 %2296
  %2334 = vrot.lane.b32.xlu0 %v2258, 19
  %v2335 = vpop.permute.xlu0 %2334
  %2336 = vrot.lane.b32.xlu0 %v2259, 19
  %v2337 = vpop.permute.xlu0 %2336
  %2338 = vrot.lane.b32.xlu0 %v2260, 19
  %v2339 = vpop.permute.xlu0 %2338
  %2340 = vrot.lane.b32.xlu0 %v2261, 19
  %v2341 = vpop.permute.xlu0 %2340
  %2342 = vrot.lane.b32.xlu0 %v2262, 19
  %v2343 = vpop.permute.xlu0 %2342
  %2344 = vrot.lane.b32.xlu0 %v2263, 19
  %v2345 = vpop.permute.xlu0 %2344
  %2346 = vrot.lane.b32.xlu0 %v2264, 19
  %v2347 = vpop.permute.xlu0 %2346
  %2348 = vrot.lane.b32.xlu0 %v2265, 19
  %v2349 = vpop.permute.xlu0 %2348
  %2350 = vrot.lane.b32.xlu0 %v2266, 19
  %v2351 = vpop.permute.xlu0 %2350
  %2352 = vrot.lane.b32.xlu0 %v2267, 19
  %v2353 = vpop.permute.xlu0 %2352
  %2354 = vrot.lane.b32.xlu0 %v2268, 19
  %v2355 = vpop.permute.xlu0 %2354
  %2356 = vrot.lane.b32.xlu0 %v2269, 19
  %v2357 = vpop.permute.xlu0 %2356
  %2358 = vrot.lane.b32.xlu0 %v2270, 19
  %v2359 = vpop.permute.xlu0 %2358
  %2360 = vrot.lane.b32.xlu0 %v2271, 19
  %v2361 = vpop.permute.xlu0 %2360
  %2362 = vrot.lane.b32.xlu0 %v2272, 19
  %v2363 = vpop.permute.xlu0 %2362
  %2364 = vrot.lane.b32.xlu0 %v2273, 19
  %v2365 = vpop.permute.xlu0 %2364
  %2366 = vrot.lane.b32.xlu0 %v2274, 19
  %v2367 = vpop.permute.xlu0 %2366
  %2368 = vrot.lane.b32.xlu0 %v2275, 19
  %v2369 = vpop.permute.xlu0 %2368
  %2370 = vrot.lane.b32.xlu0 %v2276, 19
  %v2371 = vpop.permute.xlu0 %2370
  %2372 = vrot.lane.b32.xlu0 %v2277, 19
  %v2373 = vpop.permute.xlu0 %2372
  %2374 = vrot.lane.b32.xlu0 %v2278, 19
  %v2375 = vpop.permute.xlu0 %2374
  %2376 = vrot.lane.b32.xlu0 %v2279, 19
  %v2377 = vpop.permute.xlu0 %2376
  %2378 = vrot.lane.b32.xlu0 %v2280, 19
  %v2379 = vpop.permute.xlu0 %2378
  %2380 = vrot.lane.b32.xlu0 %v2281, 19
  %v2381 = vpop.permute.xlu0 %2380
  %2382 = vrot.lane.b32.xlu0 %v2282, 19
  %v2383 = vpop.permute.xlu0 %2382
  %2384 = vrot.lane.b32.xlu0 %v2283, 19
  %v2385 = vpop.permute.xlu0 %2384
  %2386 = vrot.lane.b32.xlu0 %v2284, 19
  %v2387 = vpop.permute.xlu0 %2386
  %2388 = vrot.lane.b32.xlu0 %v2285, 19
  %v2389 = vpop.permute.xlu0 %2388
  %2390 = vrot.lane.b32.xlu0 %v2286, 19
  %v2391 = vpop.permute.xlu0 %2390
  %2392 = vrot.lane.b32.xlu0 %v2287, 19
  %v2393 = vpop.permute.xlu0 %2392
  %2394 = vrot.lane.b32.xlu0 %v2288, 19
  %v2395 = vpop.permute.xlu0 %2394
  %2396 = vrot.lane.b32.xlu0 %v2289, 19
  %v2397 = vpop.permute.xlu0 %2396
  %2398 = vrot.lane.b32.xlu0 %v2290, 19
  %v2399 = vpop.permute.xlu0 %2398
  %2400 = vrot.lane.b32.xlu0 %v2291, 19
  %v2401 = vpop.permute.xlu0 %2400
  %2402 = vrot.lane.b32.xlu0 %v2292, 19
  %v2403 = vpop.permute.xlu0 %2402
  %v2404 = vsel %vm1451, %v2335, %v2337
  %v2405 = vsel %vm1451, %v2337, %v2339
  %v2406 = vsel %vm1451, %v2339, %v2341
  %v2407 = vsel %vm1451, %v2341, %v2343
  %v2408 = vsel %vm1451, %v2343, %v2345
  %v2409 = vsel %vm1451, %v2345, %v2347
  %v2410 = vsel %vm1451, %v2349, %v2351
  %v2411 = vsel %vm1451, %v2351, %v2353
  %v2412 = vsel %vm1451, %v2353, %v2355
  %v2413 = vsel %vm1451, %v2355, %v2357
  %v2414 = vsel %vm1451, %v2357, %v2359
  %v2415 = vsel %vm1451, %v2359, %v2361
  %v2416 = vsel %vm1451, %v2363, %v2365
  %v2417 = vsel %vm1451, %v2365, %v2367
  %v2418 = vsel %vm1451, %v2367, %v2369
  %v2419 = vsel %vm1451, %v2369, %v2371
  %v2420 = vsel %vm1451, %v2371, %v2373
  %v2421 = vsel %vm1451, %v2373, %v2375
  %v2422 = vsel %vm1451, %v2377, %v2379
  %v2423 = vsel %vm1451, %v2379, %v2381
  %v2424 = vsel %vm1451, %v2381, %v2383
  %v2425 = vsel %vm1451, %v2383, %v2385
  %v2426 = vsel %vm1451, %v2385, %v2387
  %v2427 = vsel %vm1451, %v2387, %v2389
  %v2428 = vsel %vm1451, %v2391, %v2393
  %v2429 = vsel %vm1451, %v2393, %v2395
  %v2430 = vsel %vm1451, %v2395, %v2397
  %v2431 = vsel %vm1451, %v2397, %v2399
  %v2432 = vsel %vm1451, %v2399, %v2401
  %v2433 = vsel %vm1451, %v2401, %v2403
  %v2459 = vsel %vm1506, %v2010, 0
  %v2462 = vsel %vm1510, %v2428, 0
  %v2465 = vsel %vm1510, %v2429, 0
  %v2468 = vsel %vm1510, %v2430, 0
  %v2471 = vsel %vm1510, %v2431, 0
  %v2474 = vsel %vm1510, %v2432, 0
  %v2477 = vsel %vm1510, %v2433, 0
  %2479 = vmatprep.subr.bf16.mxu0 %v2405
  %2480 = vmatpush1.bf16.msra.mxu0 %v2404
  %2481 = vmatprep.subr.bf16.mxu0 %v2411
  %2482 = vmatpush1.bf16.msra.mxu0 %v2410
  %2483 = vmatprep.subr.bf16.mxu0 %v2417
  %2484 = vmatpush1.bf16.msra.mxu0 %v2416
  %2485 = vmatprep.subr.bf16.mxu0 %v2423
  %2486 = vmatpush1.bf16.msra.mxu0 %v2422
  %2487 = vmatprep.subr.bf16.mxu0 %v2465
  %2488 = vmatpush1.bf16.msra.mxu0 %v2462
  %2489 = vmatprep.subr.bf16.mxu0 0
  %2490 = vmatpush1.bf16.msra.mxu0 0
  %2491 = vmatprep.subr.bf16.mxu0 0
  %2492 = vmatpush1.bf16.msra.mxu0 0
  %2493 = vmatprep.subr.bf16.mxu0 0
  %2494 = vmatpush1.bf16.msra.mxu0 0
  %2495 = vmatprep.subr.bf16.mxu0 0
  %2496 = vmatpush1.bf16.msra.mxu0 0
  %2497 = vmatprep.subr.bf16.mxu0 0
  %2498 = vmatpush1.bf16.msra.mxu0 0
  %2499 = vmatprep.subr.bf16.mxu0 0
  %2500 = vmatpush1.bf16.msra.mxu0 0
  %2501 = vmatprep.subr.bf16.mxu0 0
  %2502 = vmatpush1.bf16.msra.mxu0 0
  %2503 = vmatprep.subr.bf16.mxu0 0
  %2504 = vmatpush1.bf16.msra.mxu0 0
  %2505 = vmatprep.subr.bf16.mxu0 0
  %2506 = vmatpush1.bf16.msra.mxu0 0
  %2507 = vmatprep.subr.bf16.mxu0 0
  %2508 = vmatpush1.bf16.msra.mxu0 0
  %2509 = vmatprep.subr.bf16.mxu0 0
  %2510 = vmatpush1.bf16.msra.mxu0 0
  %2511 = vmatprep.mubr.bf16.mxu0 0
  %2512 = vmatmul.mubr.bf16.gmra.mrb[0].mxu0 %v2459
  %v2513 = vpop.f32.mrb[0].mxu0
  %v2514 = vadd.f32 %v2297, %v2513
  %v2515 = vpop.f32.mrb[0].mxu0
  %v2516 = vadd.f32 %v2297, %v2515
  %v2517 = vpop.f32.mrb[0].mxu0
  %v2518 = vpop.f32.mrb[0].mxu0
  %2519 = vdwg.mxu0
  %2520 = vmatprep.subr.bf16.mxu0 %v2407
  %2521 = vmatpush1.bf16.msra.mxu0 %v2406
  %2522 = vmatprep.subr.bf16.mxu0 %v2413
  %2523 = vmatpush1.bf16.msra.mxu0 %v2412
  %2524 = vmatprep.subr.bf16.mxu0 %v2419
  %2525 = vmatpush1.bf16.msra.mxu0 %v2418
  %2526 = vmatprep.subr.bf16.mxu0 %v2425
  %2527 = vmatpush1.bf16.msra.mxu0 %v2424
  %2528 = vmatprep.subr.bf16.mxu0 %v2471
  %2529 = vmatpush1.bf16.msra.mxu0 %v2468
  %2530 = vmatprep.subr.bf16.mxu0 0
  %2531 = vmatpush1.bf16.msra.mxu0 0
  %2532 = vmatprep.subr.bf16.mxu0 0
  %2533 = vmatpush1.bf16.msra.mxu0 0
  %2534 = vmatprep.subr.bf16.mxu0 0
  %2535 = vmatpush1.bf16.msra.mxu0 0
  %2536 = vmatprep.subr.bf16.mxu0 0
  %2537 = vmatpush1.bf16.msra.mxu0 0
  %2538 = vmatprep.subr.bf16.mxu0 0
  %2539 = vmatpush1.bf16.msra.mxu0 0
  %2540 = vmatprep.subr.bf16.mxu0 0
  %2541 = vmatpush1.bf16.msra.mxu0 0
  %2542 = vmatprep.subr.bf16.mxu0 0
  %2543 = vmatpush1.bf16.msra.mxu0 0
  %2544 = vmatprep.subr.bf16.mxu0 0
  %2545 = vmatpush1.bf16.msra.mxu0 0
  %2546 = vmatprep.subr.bf16.mxu0 0
  %2547 = vmatpush1.bf16.msra.mxu0 0
  %2548 = vmatprep.subr.bf16.mxu0 0
  %2549 = vmatpush1.bf16.msra.mxu0 0
  %2550 = vmatprep.subr.bf16.mxu0 0
  %2551 = vmatpush1.bf16.msra.mxu0 0
  %2552 = vmatprep.mubr.bf16.mxu0 0
  %2553 = vmatmul.mubr.bf16.gmra.mrb[0].mxu0 %v2459
  %v2554 = vpop.f32.mrb[0].mxu0
  %v2555 = vadd.f32 %v2297, %v2554
  %v2556 = vpop.f32.mrb[0].mxu0
  %v2557 = vadd.f32 %v2297, %v2556
  %v2558 = vpop.f32.mrb[0].mxu0
  %v2559 = vpop.f32.mrb[0].mxu0
  %2560 = vdwg.mxu0
  %2561 = vmatprep.subr.bf16.mxu0 %v2409
  %2562 = vmatpush1.bf16.msra.mxu0 %v2408
  %2563 = vmatprep.subr.bf16.mxu0 %v2415
  %2564 = vmatpush1.bf16.msra.mxu0 %v2414
  %2565 = vmatprep.subr.bf16.mxu0 %v2421
  %2566 = vmatpush1.bf16.msra.mxu0 %v2420
  %2567 = vmatprep.subr.bf16.mxu0 %v2427
  %2568 = vmatpush1.bf16.msra.mxu0 %v2426
  %2569 = vmatprep.subr.bf16.mxu0 %v2477
  %2570 = vmatpush1.bf16.msra.mxu0 %v2474
  %2571 = vmatprep.subr.bf16.mxu0 0
  %2572 = vmatpush1.bf16.msra.mxu0 0
  %2573 = vmatprep.subr.bf16.mxu0 0
  %2574 = vmatpush1.bf16.msra.mxu0 0
  %2575 = vmatprep.subr.bf16.mxu0 0
  %2576 = vmatpush1.bf16.msra.mxu0 0
  %2577 = vmatprep.subr.bf16.mxu0 0
  %2578 = vmatpush1.bf16.msra.mxu0 0
  %2579 = vmatprep.subr.bf16.mxu0 0
  %2580 = vmatpush1.bf16.msra.mxu0 0
  %2581 = vmatprep.subr.bf16.mxu0 0
  %2582 = vmatpush1.bf16.msra.mxu0 0
  %2583 = vmatprep.subr.bf16.mxu0 0
  %2584 = vmatpush1.bf16.msra.mxu0 0
  %2585 = vmatprep.subr.bf16.mxu0 0
  %2586 = vmatpush1.bf16.msra.mxu0 0
  %2587 = vmatprep.subr.bf16.mxu0 0
  %2588 = vmatpush1.bf16.msra.mxu0 0
  %2589 = vmatprep.subr.bf16.mxu0 0
  %2590 = vmatpush1.bf16.msra.mxu0 0
  %2591 = vmatprep.subr.bf16.mxu0 0
  %2592 = vmatpush1.bf16.msra.mxu0 0
  %2593 = vmatprep.mubr.bf16.mxu0 0
  %2594 = vmatmul.mubr.bf16.gmra.mrb[0].mxu0 %v2459
  %v2595 = vpop.f32.mrb[0].mxu0
  %v2596 = vadd.f32 %v2297, %v2595
  %v2597 = vpop.f32.mrb[0].mxu0
  %v2598 = vadd.f32 %v2297, %v2597
  %v2599 = vpop.f32.mrb[0].mxu0
  %v2600 = vpop.f32.mrb[0].mxu0
  %2601 = vdwg.mxu0
  %v2602 = vmax.f32 %v2514, 0.0
  %v2603 = vmax.f32 %v2516, 0.0
  %v2604 = vmax.f32 %v2555, 0.0
  %v2605 = vmax.f32 %v2557, 0.0
  %v2606 = vmax.f32 %v2596, 0.0
  %v2607 = vmax.f32 %v2598, 0.0
  %v2608 = vld [vmem:[%s9] sm:$0xf]
  %v2609 = vpack.c.bf16 %v760, %v760
  %v2610 = vpack.c.bf16 %v761, %v761
  %v2611 = vpack.c.bf16 %v762, %v762
  %v2612 = vpack.c.bf16 %v763, %v763
  %v2613 = vpack.c.bf16 %v764, %v764
  %v2614 = vpack.c.bf16 %v765, %v765
  %v2615 = vld [vmem:[%s10] sm:$0xf]
  %v2616 = vpack.c.bf16 %v1057, %v1057
  %v2617 = vpack.c.bf16 %v1058, %v1058
  %v2618 = vpack.c.bf16 %v1059, %v1059
  %v2619 = vpack.c.bf16 %v1060, %v1060
  %v2620 = vpack.c.bf16 %v1061, %v1061
  %v2621 = vpack.c.bf16 %v1062, %v1062
  %vm2622 = vcmask 64512
  %v2624 = vsel %vm2622, %v2615, 0
  %v2627 = vsel %vm1510, %v2616, 0
  %v2630 = vsel %vm1510, %v2617, 0
  %v2633 = vsel %vm1510, %v2618, 0
  %v2636 = vsel %vm1510, %v2619, 0
  %v2639 = vsel %vm1510, %v2620, 0
  %v2642 = vsel %vm1510, %v2621, 0
  %2644 = vmatprep.subr.bf16.mxu0 %v2630
  %2645 = vmatpush1.bf16.msra.mxu0 %v2627
  %2646 = vmatprep.subr.bf16.mxu0 0
  %2647 = vmatpush1.bf16.msra.mxu0 0
  %2648 = vmatprep.subr.bf16.mxu0 0
  %2649 = vmatpush1.bf16.msra.mxu0 0
  %2650 = vmatprep.subr.bf16.mxu0 0
  %2651 = vmatpush1.bf16.msra.mxu0 0
  %2652 = vmatprep.subr.bf16.mxu0 0
  %2653 = vmatpush1.bf16.msra.mxu0 0
  %2654 = vmatprep.subr.bf16.mxu0 0
  %2655 = vmatpush1.bf16.msra.mxu0 0
  %2656 = vmatprep.subr.bf16.mxu0 0
  %2657 = vmatpush1.bf16.msra.mxu0 0
  %2658 = vmatprep.subr.bf16.mxu0 0
  %2659 = vmatpush1.bf16.msra.mxu0 0
  %2660 = vmatprep.subr.bf16.mxu0 0
  %2661 = vmatpush1.bf16.msra.mxu0 0
  %2662 = vmatprep.subr.bf16.mxu0 0
  %2663 = vmatpush1.bf16.msra.mxu0 0
  %2664 = vmatprep.subr.bf16.mxu0 0
  %2665 = vmatpush1.bf16.msra.mxu0 0
  %2666 = vmatprep.subr.bf16.mxu0 0
  %2667 = vmatpush1.bf16.msra.mxu0 0
  %2668 = vmatprep.subr.bf16.mxu0 0
  %2669 = vmatpush1.bf16.msra.mxu0 0
  %2670 = vmatprep.subr.bf16.mxu0 0
  %2671 = vmatpush1.bf16.msra.mxu0 0
  %2672 = vmatprep.subr.bf16.mxu0 0
  %2673 = vmatpush1.bf16.msra.mxu0 0
  %2674 = vmatprep.subr.bf16.mxu0 0
  %2675 = vmatpush1.bf16.msra.mxu0 0
  %2676 = vmatprep.mubr.bf16.mxu0 0
  %2677 = vmatmul.mubr.bf16.gmra.mrb[0].mxu0 %v2624
  %v2678 = vpop.f32.mrb[0].mxu0
  %v2679 = vadd.f32 0.0, %v2678
  %v2680 = vpop.f32.mrb[0].mxu0
  %v2681 = vadd.f32 0.0, %v2680
  %v2682 = vpop.f32.mrb[0].mxu0
  %v2683 = vpop.f32.mrb[0].mxu0
  %2684 = vdwg.mxu0
  %2685 = vmatprep.subr.bf16.mxu0 %v2636
  %2686 = vmatpush1.bf16.msra.mxu0 %v2633
  %2687 = vmatprep.subr.bf16.mxu0 0
  %2688 = vmatpush1.bf16.msra.mxu0 0
  %2689 = vmatprep.subr.bf16.mxu0 0
  %2690 = vmatpush1.bf16.msra.mxu0 0
  %2691 = vmatprep.subr.bf16.mxu0 0
  %2692 = vmatpush1.bf16.msra.mxu0 0
  %2693 = vmatprep.subr.bf16.mxu0 0
  %2694 = vmatpush1.bf16.msra.mxu0 0
  %2695 = vmatprep.subr.bf16.mxu0 0
  %2696 = vmatpush1.bf16.msra.mxu0 0
  %2697 = vmatprep.subr.bf16.mxu0 0
  %2698 = vmatpush1.bf16.msra.mxu0 0
  %2699 = vmatprep.subr.bf16.mxu0 0
  %2700 = vmatpush1.bf16.msra.mxu0 0
  %2701 = vmatprep.subr.bf16.mxu0 0
  %2702 = vmatpush1.bf16.msra.mxu0 0
  %2703 = vmatprep.subr.bf16.mxu0 0
  %2704 = vmatpush1.bf16.msra.mxu0 0
  %2705 = vmatprep.subr.bf16.mxu0 0
  %2706 = vmatpush1.bf16.msra.mxu0 0
  %2707 = vmatprep.subr.bf16.mxu0 0
  %2708 = vmatpush1.bf16.msra.mxu0 0
  %2709 = vmatprep.subr.bf16.mxu0 0
  %2710 = vmatpush1.bf16.msra.mxu0 0
  %2711 = vmatprep.subr.bf16.mxu0 0
  %2712 = vmatpush1.bf16.msra.mxu0 0
  %2713 = vmatprep.subr.bf16.mxu0 0
  %2714 = vmatpush1.bf16.msra.mxu0 0
  %2715 = vmatprep.subr.bf16.mxu0 0
  %2716 = vmatpush1.bf16.msra.mxu0 0
  %2717 = vmatprep.mubr.bf16.mxu0 0
  %2718 = vmatmul.mubr.bf16.gmra.mrb[0].mxu0 %v2624
  %v2719 = vpop.f32.mrb[0].mxu0
  %v2720 = vadd.f32 0.0, %v2719
  %v2721 = vpop.f32.mrb[0].mxu0
  %v2722 = vadd.f32 0.0, %v2721
  %v2723 = vpop.f32.mrb[0].mxu0
  %v2724 = vpop.f32.mrb[0].mxu0
  %2725 = vdwg.mxu0
  %2726 = vmatprep.subr.bf16.mxu0 %v2642
  %2727 = vmatpush1.bf16.msra.mxu0 %v2639
  %2728 = vmatprep.subr.bf16.mxu0 0
  %2729 = vmatpush1.bf16.msra.mxu0 0
  %2730 = vmatprep.subr.bf16.mxu0 0
  %2731 = vmatpush1.bf16.msra.mxu0 0
  %2732 = vmatprep.subr.bf16.mxu0 0
  %2733 = vmatpush1.bf16.msra.mxu0 0
  %2734 = vmatprep.subr.bf16.mxu0 0
  %2735 = vmatpush1.bf16.msra.mxu0 0
  %2736 = vmatprep.subr.bf16.mxu0 0
  %2737 = vmatpush1.bf16.msra.mxu0 0
  %2738 = vmatprep.subr.bf16.mxu0 0
  %2739 = vmatpush1.bf16.msra.mxu0 0
  %2740 = vmatprep.subr.bf16.mxu0 0
  %2741 = vmatpush1.bf16.msra.mxu0 0
  %2742 = vmatprep.subr.bf16.mxu0 0
  %2743 = vmatpush1.bf16.msra.mxu0 0
  %2744 = vmatprep.subr.bf16.mxu0 0
  %2745 = vmatpush1.bf16.msra.mxu0 0
  %2746 = vmatprep.subr.bf16.mxu0 0
  %2747 = vmatpush1.bf16.msra.mxu0 0
  %2748 = vmatprep.subr.bf16.mxu0 0
  %2749 = vmatpush1.bf16.msra.mxu0 0
  %2750 = vmatprep.subr.bf16.mxu0 0
  %2751 = vmatpush1.bf16.msra.mxu0 0
  %2752 = vmatprep.subr.bf16.mxu0 0
  %2753 = vmatpush1.bf16.msra.mxu0 0
  %2754 = vmatprep.subr.bf16.mxu0 0
  %2755 = vmatpush1.bf16.msra.mxu0 0
  %2756 = vmatprep.subr.bf16.mxu0 0
  %2757 = vmatpush1.bf16.msra.mxu0 0
  %2758 = vmatprep.mubr.bf16.mxu0 0
  %2759 = vmatmul.mubr.bf16.gmra.mrb[0].mxu0 %v2624
  %v2760 = vpop.f32.mrb[0].mxu0
  %v2761 = vadd.f32 0.0, %v2760
  %v2762 = vpop.f32.mrb[0].mxu0
  %v2763 = vadd.f32 0.0, %v2762
  %v2764 = vpop.f32.mrb[0].mxu0
  %v2765 = vpop.f32.mrb[0].mxu0
  %2766 = vdwg.mxu0
  %v2768 = vsel %vm2622, %v2608, 0
  %v2771 = vsel %vm1510, %v2609, 0
  %v2774 = vsel %vm1510, %v2610, 0
  %v2777 = vsel %vm1510, %v2611, 0
  %v2780 = vsel %vm1510, %v2612, 0
  %v2783 = vsel %vm1510, %v2613, 0
  %v2786 = vsel %vm1510, %v2614, 0
  %2788 = vmatprep.subr.bf16.mxu0 %v2774
  %2789 = vmatpush1.bf16.msra.mxu0 %v2771
  %2790 = vmatprep.subr.bf16.mxu0 0
  %2791 = vmatpush1.bf16.msra.mxu0 0
  %2792 = vmatprep.subr.bf16.mxu0 0
  %2793 = vmatpush1.bf16.msra.mxu0 0
  %2794 = vmatprep.subr.bf16.mxu0 0
  %2795 = vmatpush1.bf16.msra.mxu0 0
  %2796 = vmatprep.subr.bf16.mxu0 0
  %2797 = vmatpush1.bf16.msra.mxu0 0
  %2798 = vmatprep.subr.bf16.mxu0 0
  %2799 = vmatpush1.bf16.msra.mxu0 0
  %2800 = vmatprep.subr.bf16.mxu0 0
  %2801 = vmatpush1.bf16.msra.mxu0 0
  %2802 = vmatprep.subr.bf16.mxu0 0
  %2803 = vmatpush1.bf16.msra.mxu0 0
  %2804 = vmatprep.subr.bf16.mxu0 0
  %2805 = vmatpush1.bf16.msra.mxu0 0
  %2806 = vmatprep.subr.bf16.mxu0 0
  %2807 = vmatpush1.bf16.msra.mxu0 0
  %2808 = vmatprep.subr.bf16.mxu0 0
  %2809 = vmatpush1.bf16.msra.mxu0 0
  %2810 = vmatprep.subr.bf16.mxu0 0
  %2811 = vmatpush1.bf16.msra.mxu0 0
  %2812 = vmatprep.subr.bf16.mxu0 0
  %2813 = vmatpush1.bf16.msra.mxu0 0
  %2814 = vmatprep.subr.bf16.mxu0 0
  %2815 = vmatpush1.bf16.msra.mxu0 0
  %2816 = vmatprep.subr.bf16.mxu0 0
  %2817 = vmatpush1.bf16.msra.mxu0 0
  %2818 = vmatprep.subr.bf16.mxu0 0
  %2819 = vmatpush1.bf16.msra.mxu0 0
  %2820 = vmatprep.mubr.bf16.mxu0 0
  %2821 = vmatmul.mubr.bf16.gmra.mrb[0].mxu0 %v2768
  %v2822 = vpop.f32.mrb[0].mxu0
  %v2823 = vadd.f32 %v2679, %v2822
  %v2824 = vpop.f32.mrb[0].mxu0
  %v2825 = vadd.f32 %v2681, %v2824
  %v2826 = vpop.f32.mrb[0].mxu0
  %v2827 = vpop.f32.mrb[0].mxu0
  %2828 = vdwg.mxu0
  %2829 = vmatprep.subr.bf16.mxu0 %v2780
  %2830 = vmatpush1.bf16.msra.mxu0 %v2777
  %2831 = vmatprep.subr.bf16.mxu0 0
  %2832 = vmatpush1.bf16.msra.mxu0 0
  %2833 = vmatprep.subr.bf16.mxu0 0
  %2834 = vmatpush1.bf16.msra.mxu0 0
  %2835 = vmatprep.subr.bf16.mxu0 0
  %2836 = vmatpush1.bf16.msra.mxu0 0
  %2837 = vmatprep.subr.bf16.mxu0 0
  %2838 = vmatpush1.bf16.msra.mxu0 0
  %2839 = vmatprep.subr.bf16.mxu0 0
  %2840 = vmatpush1.bf16.msra.mxu0 0
  %2841 = vmatprep.subr.bf16.mxu0 0
  %2842 = vmatpush1.bf16.msra.mxu0 0
  %2843 = vmatprep.subr.bf16.mxu0 0
  %2844 = vmatpush1.bf16.msra.mxu0 0
  %2845 = vmatprep.subr.bf16.mxu0 0
  %2846 = vmatpush1.bf16.msra.mxu0 0
  %2847 = vmatprep.subr.bf16.mxu0 0
  %2848 = vmatpush1.bf16.msra.mxu0 0
  %2849 = vmatprep.subr.bf16.mxu0 0
  %2850 = vmatpush1.bf16.msra.mxu0 0
  %2851 = vmatprep.subr.bf16.mxu0 0
  %2852 = vmatpush1.bf16.msra.mxu0 0
  %2853 = vmatprep.subr.bf16.mxu0 0
  %2854 = vmatpush1.bf16.msra.mxu0 0
  %2855 = vmatprep.subr.bf16.mxu0 0
  %2856 = vmatpush1.bf16.msra.mxu0 0
  %2857 = vmatprep.subr.bf16.mxu0 0
  %2858 = vmatpush1.bf16.msra.mxu0 0
  %2859 = vmatprep.subr.bf16.mxu0 0
  %2860 = vmatpush1.bf16.msra.mxu0 0
  %2861 = vmatprep.mubr.bf16.mxu0 0
  %2862 = vmatmul.mubr.bf16.gmra.mrb[0].mxu0 %v2768
  %v2863 = vpop.f32.mrb[0].mxu0
  %v2864 = vadd.f32 %v2720, %v2863
  %v2865 = vpop.f32.mrb[0].mxu0
  %v2866 = vadd.f32 %v2722, %v2865
  %v2867 = vpop.f32.mrb[0].mxu0
  %v2868 = vpop.f32.mrb[0].mxu0
  %2869 = vdwg.mxu0
  %2870 = vmatprep.subr.bf16.mxu0 %v2786
  %2871 = vmatpush1.bf16.msra.mxu0 %v2783
  %2872 = vmatprep.subr.bf16.mxu0 0
  %2873 = vmatpush1.bf16.msra.mxu0 0
  %2874 = vmatprep.subr.bf16.mxu0 0
  %2875 = vmatpush1.bf16.msra.mxu0 0
  %2876 = vmatprep.subr.bf16.mxu0 0
  %2877 = vmatpush1.bf16.msra.mxu0 0
  %2878 = vmatprep.subr.bf16.mxu0 0
  %2879 = vmatpush1.bf16.msra.mxu0 0
  %2880 = vmatprep.subr.bf16.mxu0 0
  %2881 = vmatpush1.bf16.msra.mxu0 0
  %2882 = vmatprep.subr.bf16.mxu0 0
  %2883 = vmatpush1.bf16.msra.mxu0 0
  %2884 = vmatprep.subr.bf16.mxu0 0
  %2885 = vmatpush1.bf16.msra.mxu0 0
  %2886 = vmatprep.subr.bf16.mxu0 0
  %2887 = vmatpush1.bf16.msra.mxu0 0
  %2888 = vmatprep.subr.bf16.mxu0 0
  %2889 = vmatpush1.bf16.msra.mxu0 0
  %2890 = vmatprep.subr.bf16.mxu0 0
  %2891 = vmatpush1.bf16.msra.mxu0 0
  %2892 = vmatprep.subr.bf16.mxu0 0
  %2893 = vmatpush1.bf16.msra.mxu0 0
  %2894 = vmatprep.subr.bf16.mxu0 0
  %2895 = vmatpush1.bf16.msra.mxu0 0
  %2896 = vmatprep.subr.bf16.mxu0 0
  %2897 = vmatpush1.bf16.msra.mxu0 0
  %2898 = vmatprep.subr.bf16.mxu0 0
  %2899 = vmatpush1.bf16.msra.mxu0 0
  %2900 = vmatprep.subr.bf16.mxu0 0
  %2901 = vmatpush1.bf16.msra.mxu0 0
  %2902 = vmatprep.mubr.bf16.mxu0 0
  %2903 = vmatmul.mubr.bf16.gmra.mrb[0].mxu0 %v2768
  %v2904 = vpop.f32.mrb[0].mxu0
  %v2905 = vadd.f32 %v2761, %v2904
  %v2906 = vpop.f32.mrb[0].mxu0
  %v2907 = vadd.f32 %v2763, %v2906
  %v2908 = vpop.f32.mrb[0].mxu0
  %v2909 = vpop.f32.mrb[0].mxu0
  %2910 = vdwg.mxu0
  %v2911 = vadd.f32 %v2602, %v2823
  %v2912 = vadd.f32 %v2603, %v2825
  %v2913 = vadd.f32 %v2604, %v2864
  %v2914 = vadd.f32 %v2605, %v2866
  %v2915 = vadd.f32 %v2606, %v2905
  %v2916 = vadd.f32 %v2607, %v2907
  %v2917 = vld [vmem:[%s11] sm:$0xff]
  %2919 = vset.pattern.permute.xlu0 0
  %2920 = vperm.xlu0 %2919, %v2917
  %v2921 = vpop.permute.xlu0 %2920
  %v2923 = vadd.f32 %v2911, %v2921
  %v2924 = vadd.f32 %v2912, %v2921
  %v2925 = vadd.f32 %v2913, %v2921
  %v2926 = vadd.f32 %v2914, %v2921
  %v2927 = vadd.f32 %v2915, %v2921
  %v2928 = vadd.f32 %v2916, %v2921
  %v2929 = vld [vmem:[%s12] sm:$0x1]
  %v2930 = vpack.c.bf16 %v2923, %v2923
  %v2931 = vpack.c.bf16 %v2924, %v2924
  %v2932 = vpack.c.bf16 %v2925, %v2925
  %v2933 = vpack.c.bf16 %v2926, %v2926
  %v2934 = vpack.c.bf16 %v2927, %v2927
  %v2935 = vpack.c.bf16 %v2928, %v2928
  %v2936 = vld [vmem:[%s13] sm:$0x3]
  %2938 = vset.pattern.permute.xlu0 0
  %2939 = vperm.xlu0 %2938, %v2936
  %v2940 = vpop.permute.xlu0 %2939
  %v2943 = vsel %vm2622, %v2929, 0
  %v2946 = vsel %vm1510, %v2930, 0
  %v2949 = vsel %vm1510, %v2931, 0
  %v2952 = vsel %vm1510, %v2932, 0
  %v2955 = vsel %vm1510, %v2933, 0
  %v2958 = vsel %vm1510, %v2934, 0
  %v2961 = vsel %vm1510, %v2935, 0
  %2963 = vmatprep.subr.bf16.mxu0 %v2949
  %2964 = vmatpush1.bf16.msra.mxu0 %v2946
  %2965 = vmatprep.subr.bf16.mxu0 0
  %2966 = vmatpush1.bf16.msra.mxu0 0
  %2967 = vmatprep.subr.bf16.mxu0 0
  %2968 = vmatpush1.bf16.msra.mxu0 0
  %2969 = vmatprep.subr.bf16.mxu0 0
  %2970 = vmatpush1.bf16.msra.mxu0 0
  %2971 = vmatprep.subr.bf16.mxu0 0
  %2972 = vmatpush1.bf16.msra.mxu0 0
  %2973 = vmatprep.subr.bf16.mxu0 0
  %2974 = vmatpush1.bf16.msra.mxu0 0
  %2975 = vmatprep.subr.bf16.mxu0 0
  %2976 = vmatpush1.bf16.msra.mxu0 0
  %2977 = vmatprep.subr.bf16.mxu0 0
  %2978 = vmatpush1.bf16.msra.mxu0 0
  %2979 = vmatprep.subr.bf16.mxu0 0
  %2980 = vmatpush1.bf16.msra.mxu0 0
  %2981 = vmatprep.subr.bf16.mxu0 0
  %2982 = vmatpush1.bf16.msra.mxu0 0
  %2983 = vmatprep.subr.bf16.mxu0 0
  %2984 = vmatpush1.bf16.msra.mxu0 0
  %2985 = vmatprep.subr.bf16.mxu0 0
  %2986 = vmatpush1.bf16.msra.mxu0 0
  %2987 = vmatprep.subr.bf16.mxu0 0
  %2988 = vmatpush1.bf16.msra.mxu0 0
  %2989 = vmatprep.subr.bf16.mxu0 0
  %2990 = vmatpush1.bf16.msra.mxu0 0
  %2991 = vmatprep.subr.bf16.mxu0 0
  %2992 = vmatpush1.bf16.msra.mxu0 0
  %2993 = vmatprep.subr.bf16.mxu0 0
  %2994 = vmatpush1.bf16.msra.mxu0 0
  %2995 = vmatprep.mubr.bf16.mxu0 0
  %2996 = vmatmul.mubr.bf16.gmra.mrb[0].mxu0 %v2943
  %v2997 = vpop.f32.mrb[0].mxu0
  %v2998 = vadd.f32 %v2940, %v2997
  %v2999 = vpop.f32.mrb[0].mxu0
  %v3000 = vadd.f32 %v2940, %v2999
  %v3001 = vpop.f32.mrb[0].mxu0
  %v3002 = vpop.f32.mrb[0].mxu0
  %3003 = vdwg.mxu0
  %3004 = vmatprep.subr.bf16.mxu0 %v2955
  %3005 = vmatpush1.bf16.msra.mxu0 %v2952
  %3006 = vmatprep.subr.bf16.mxu0 0
  %3007 = vmatpush1.bf16.msra.mxu0 0
  %3008 = vmatprep.subr.bf16.mxu0 0
  %3009 = vmatpush1.bf16.msra.mxu0 0
  %3010 = vmatprep.subr.bf16.mxu0 0
  %3011 = vmatpush1.bf16.msra.mxu0 0
  %3012 = vmatprep.subr.bf16.mxu0 0
  %3013 = vmatpush1.bf16.msra.mxu0 0
  %3014 = vmatprep.subr.bf16.mxu0 0
  %3015 = vmatpush1.bf16.msra.mxu0 0
  %3016 = vmatprep.subr.bf16.mxu0 0
  %3017 = vmatpush1.bf16.msra.mxu0 0
  %3018 = vmatprep.subr.bf16.mxu0 0
  %3019 = vmatpush1.bf16.msra.mxu0 0
  %3020 = vmatprep.subr.bf16.mxu0 0
  %3021 = vmatpush1.bf16.msra.mxu0 0
  %3022 = vmatprep.subr.bf16.mxu0 0
  %3023 = vmatpush1.bf16.msra.mxu0 0
  %3024 = vmatprep.subr.bf16.mxu0 0
  %3025 = vmatpush1.bf16.msra.mxu0 0
  %3026 = vmatprep.subr.bf16.mxu0 0
  %3027 = vmatpush1.bf16.msra.mxu0 0
  %3028 = vmatprep.subr.bf16.mxu0 0
  %3029 = vmatpush1.bf16.msra.mxu0 0
  %3030 = vmatprep.subr.bf16.mxu0 0
  %3031 = vmatpush1.bf16.msra.mxu0 0
  %3032 = vmatprep.subr.bf16.mxu0 0
  %3033 = vmatpush1.bf16.msra.mxu0 0
  %3034 = vmatprep.subr.bf16.mxu0 0
  %3035 = vmatpush1.bf16.msra.mxu0 0
  %3036 = vmatprep.mubr.bf16.mxu0 0
  %3037 = vmatmul.mubr.bf16.gmra.mrb[0].mxu0 %v2943
  %v3038 = vpop.f32.mrb[0].mxu0
  %v3039 = vadd.f32 %v2940, %v3038
  %v3040 = vpop.f32.mrb[0].mxu0
  %v3041 = vadd.f32 %v2940, %v3040
  %v3042 = vpop.f32.mrb[0].mxu0
  %v3043 = vpop.f32.mrb[0].mxu0
  %3044 = vdwg.mxu0
  %3045 = vmatprep.subr.bf16.mxu0 %v2961
  %3046 = vmatpush1.bf16.msra.mxu0 %v2958
  %3047 = vmatprep.subr.bf16.mxu0 0
  %3048 = vmatpush1.bf16.msra.mxu0 0
  %3049 = vmatprep.subr.bf16.mxu0 0
  %3050 = vmatpush1.bf16.msra.mxu0 0
  %3051 = vmatprep.subr.bf16.mxu0 0
  %3052 = vmatpush1.bf16.msra.mxu0 0
  %3053 = vmatprep.subr.bf16.mxu0 0
  %3054 = vmatpush1.bf16.msra.mxu0 0
  %3055 = vmatprep.subr.bf16.mxu0 0
  %3056 = vmatpush1.bf16.msra.mxu0 0
  %3057 = vmatprep.subr.bf16.mxu0 0
  %3058 = vmatpush1.bf16.msra.mxu0 0
  %3059 = vmatprep.subr.bf16.mxu0 0
  %3060 = vmatpush1.bf16.msra.mxu0 0
  %3061 = vmatprep.subr.bf16.mxu0 0
  %3062 = vmatpush1.bf16.msra.mxu0 0
  %3063 = vmatprep.subr.bf16.mxu0 0
  %3064 = vmatpush1.bf16.msra.mxu0 0
  %3065 = vmatprep.subr.bf16.mxu0 0
  %3066 = vmatpush1.bf16.msra.mxu0 0
  %3067 = vmatprep.subr.bf16.mxu0 0
  %3068 = vmatpush1.bf16.msra.mxu0 0
  %3069 = vmatprep.subr.bf16.mxu0 0
  %3070 = vmatpush1.bf16.msra.mxu0 0
  %3071 = vmatprep.subr.bf16.mxu0 0
  %3072 = vmatpush1.bf16.msra.mxu0 0
  %3073 = vmatprep.subr.bf16.mxu0 0
  %3074 = vmatpush1.bf16.msra.mxu0 0
  %3075 = vmatprep.subr.bf16.mxu0 0
  %3076 = vmatpush1.bf16.msra.mxu0 0
  %3077 = vmatprep.mubr.bf16.mxu0 0
  %3078 = vmatmul.mubr.bf16.gmra.mrb[0].mxu0 %v2943
  %v3079 = vpop.f32.mrb[0].mxu0
  %v3080 = vadd.f32 %v2940, %v3079
  %v3081 = vpop.f32.mrb[0].mxu0
  %v3082 = vadd.f32 %v2940, %v3081
  %v3083 = vpop.f32.mrb[0].mxu0
  %v3084 = vpop.f32.mrb[0].mxu0
  %3085 = vdwg.mxu0
  %v3086 = vmax.f32 %v2998, 0.0
  %v3087 = vmax.f32 %v3000, 0.0
  %v3088 = vmax.f32 %v3039, 0.0
  %v3089 = vmax.f32 %v3041, 0.0
  %v3090 = vmax.f32 %v3080, 0.0
  %v3091 = vmax.f32 %v3082, 0.0
  %v3092 = vmul.f32 %v3086, %v1977
  %v3093 = vmul.f32 %v3087, %v1981
  %v3094 = vmul.f32 %v3088, %v1985
  %v3095 = vmul.f32 %v3089, %v1989
  %v3096 = vmul.f32 %v3090, %v1993
  %v3097 = vmul.f32 %v3091, %v1997
  %v3104 = vcombine.low %v3092, %v3093
  %v3105 = vcombine.low %v3094, %v3095
  %v3107 = vunpack.c.l.s4 1983009808
  %v3108 = vunpack.c.0.s8 %v3107
  %v3109 = vlaneseq
  %v3110 = vshrl.u32 %v3109, 7
  %v3111 = vsub.s32 %v3108, %v3110
  %v3112 = vrot.slane %v3104, %v3111
  %v3114 = vunpack.c.l.s4 1983009808
  %v3115 = vunpack.c.0.s8 %v3114
  %v3116 = vlaneseq
  %v3117 = vshrl.u32 %v3116, 7
  %v3118 = vsub.s32 %v3115, %v3117
  %v3119 = vrot.slane %v3105, %v3118
  %v3120 = vcombine.low %v3112, %v3119
  %v3121 = vcombine.low %v3096, %v3097
  %v3123 = vunpack.c.l.s4 1983009808
  %v3124 = vunpack.c.0.s8 %v3123
  %v3125 = vlaneseq
  %v3126 = vshrl.u32 %v3125, 7
  %v3127 = vsub.s32 %v3124, %v3126
  %v3128 = vrot.slane %v3121, %v3127
  %3131 = vst [vmem:[%s14] sm:$0xff] %v3120
  %3132 = vst [vmem:[%s14 + $0x8] sm:$0xf] %v3128
  // Predicated region
  $region58: #{resunet_forward.17} parent=0 // pred_check
    _
  $region59: #{resunet_forward.17} parent=0 // pred_check_branch
    %3134 = sbr.rel (0) target = $region61
  $region60: #{resunet_forward.17} parent=0 // pred_region
    _
  $region61: #{resunet_forward.17} parent=0 // pred_fallthru
    _
  // Predicated region
  $region62: #{resunet_forward.17} parent=0 // pred_check
    _
  $region63: #{resunet_forward.17} parent=0 // pred_check_branch
    %3136 = sbr.rel (0) target = $region65
  $region64: #{resunet_forward.17} parent=0 // pred_region
    _
  $region65: #{resunet_forward.17} parent=0 // pred_fallthru
    _

</llo_original>
